<compile_context>
chip_gen: v6e
topology: v6e:2x2x1
jax: 0.10.0
libtpu: 0.0.40
codegen_flags: <defaults>
</compile_context>

<pallas_src>
import jax
import jax.numpy as jnp
from jax.experimental import pallas as pl
from jax.experimental.pallas import tpu as pltpu


_CONV_TM_MAX = 1024   # max lane-dim tile (multiple of 128) for the conv GEMM kernels
_HEAD_TB_MAX = 128    # max batch tile (multiple of 8) for the fused conv3 + FC head


def _round_up(x, m):
    return ((x + m - 1) // m) * m


# ----------------------------------------------------------------------------
# Pallas kernels
# ----------------------------------------------------------------------------
def _conv_gemm_kernel(w_ref, p_ref, b_ref, o_ref):
    """Channel-major conv GEMM: o(Cout, TM) = relu(w(Cout, K) @ p(K, TM) + b(Cout, 1)).

    w/p are bf16 (MXU-native), accumulation + bias + ReLU in f32, store bf16.
    Output minor dim is the padded (batch*spatial) axis -> lane-dense stores.
    """
    acc = jnp.dot(w_ref[...], p_ref[...], preferred_element_type=jnp.float32)
    o_ref[...] = jnp.maximum(acc + b_ref[...], 0.0).astype(o_ref.dtype)


def _head_kernel(p3_ref, t_ref, a_ref,
                 w3_ref, b3_ref, wa_ref, ba_ref,
                 s1_ref, w1s_ref, b1_ref, w2_ref, b2_ref, wq_ref, bq_ref,
                 o_ref):
    """Fused conv3 (one im2col GEMM) + actionFC + timestep fold + 3-layer finishFC.

    Per batch tile (TB rows, TB % 8 == 0):
      y3    = relu(P3(49*TB, 288) @ W3(288, 32) + b3)           one big conv3 GEMM
      hconv = sum_s y3[s] @ W1s[s]                              batched einsum + reduce
      a_act = relu(action @ Wa + ba)
      h1    = hconv + b1 + timestep * S1[0] + a_act @ S1        exact fc1 folding
      q     = (h1 @ W2 + b2) . wq_row + bq
    where S1[ch] = sum over the 49 spatial fc1 rows of channel ch and W1s[s] holds
    fc1's rows for conv channels 1..32 at spatial position s.  This is exactly
    torch's concat(time, conv) + broadcast(action) -> flatten -> finishFC.
    """
    f32 = jnp.float32
    n_s, tb, k3 = p3_ref.shape
    cc = w3_ref.shape[1]

    # conv3 + ReLU for all 49 spatial positions x TB batch rows as ONE GEMM.
    p3 = p3_ref[...].reshape(n_s * tb, k3)            # leading-dim merge (TB % 8 == 0)
    y3 = jnp.dot(p3, w3_ref[...], preferred_element_type=f32) + b3_ref[...]
    y3 = jnp.maximum(y3, 0.0).reshape(n_s, tb, cc)    # leading-dim split

    # fc1 conv-channel rows: batched matmul over spatial, reduce over spatial.
    h1 = jnp.einsum('sbc,sco->sbo', y3, w1s_ref[...],
                    preferred_element_type=f32).sum(axis=0)       # (TB, 32)

    # actionFC + folded timestep plane + folded (spatially broadcast) action term.
    s1 = s1_ref[...]                                               # (33, 32)
    a_act = jnp.dot(a_ref[...], wa_ref[...], preferred_element_type=f32) + ba_ref[...]
    a_act = jnp.maximum(a_act, 0.0)
    h1 = (h1 + b1_ref[...] + t_ref[...] * s1[0:1, :]
          + jnp.dot(a_act, s1, preferred_element_type=f32))

    # finishFC layers 2 and 3 (no activations, matching the PyTorch module).
    h2 = jnp.dot(h1, w2_ref[...], preferred_element_type=f32) + b2_ref[...]
    q = jnp.sum(h2 * wq_ref[...], axis=1, keepdims=True) + bq_ref[...]
    o_ref[...] = q.astype(o_ref.dtype)


# ----------------------------------------------------------------------------
# pallas_call wrappers
# ----------------------------------------------------------------------------
def _conv_gemm(w_t, patches_t, bias_col, *, tm):
    """y(Cout, M_pad) = relu(w_t @ patches_t + bias), grid tiles the M (lane) axis."""
    cout, k = w_t.shape
    _, m_pad = patches_t.shape
    grid = (m_pad // tm,)
    return pl.pallas_call(
        _conv_gemm_kernel,
        out_shape=jax.ShapeDtypeStruct((cout, m_pad), jnp.bfloat16),
        grid=grid,
        in_specs=[
            pl.BlockSpec((cout, k), lambda j: (0, 0)),
            pl.BlockSpec((k, tm), lambda j: (0, j)),
            pl.BlockSpec((cout, 1), lambda j: (0, 0)),
        ],
        out_specs=pl.BlockSpec((cout, tm), lambda j: (0, j)),
        compiler_params=pltpu.CompilerParams(
            dimension_semantics=("parallel",),
            vmem_limit_bytes=32 * 1024 * 1024,
        ),
    )(w_t, patches_t, bias_col)


def _full_spec(arr):
    nd = arr.ndim
    return pl.BlockSpec(arr.shape, lambda i, _nd=nd: (0,) * _nd)


def _fused_head(p3_sbk, t_b1, a_ba, pk, *, tb):
    """Fused conv3 + actionFC + timestep fold + finishFC, gridded over batch tiles."""
    n_s, b_pad, k3 = p3_sbk.shape
    n_act = a_ba.shape[1]
    grid = (b_pad // tb,)
    return pl.pallas_call(
        _head_kernel,
        out_shape=jax.ShapeDtypeStruct((b_pad, 1), jnp.float32),
        grid=grid,
        in_specs=[
            pl.BlockSpec((n_s, tb, k3), lambda i: (0, i, 0)),
            pl.BlockSpec((tb, 1), lambda i: (i, 0)),
            pl.BlockSpec((tb, n_act), lambda i: (i, 0)),
            _full_spec(pk["conv3_w"]), _full_spec(pk["conv3_b"]),
            _full_spec(pk["act_w"]), _full_spec(pk["act_b"]),
            _full_spec(pk["fc1_s1"]), _full_spec(pk["fc1_ws"]), _full_spec(pk["fc1_b"]),
            _full_spec(pk["fc2_w"]), _full_spec(pk["fc2_b"]),
            _full_spec(pk["fc3_w"]), _full_spec(pk["fc3_b"]),
        ],
        out_specs=pl.BlockSpec((tb, 1), lambda i: (i, 0)),
        compiler_params=pltpu.CompilerParams(
            dimension_semantics=("parallel",),
            vmem_limit_bytes=32 * 1024 * 1024,
        ),
    )(p3_sbk, t_b1, a_ba,
      pk["conv3_w"], pk["conv3_b"], pk["act_w"], pk["act_b"],
      pk["fc1_s1"], pk["fc1_ws"], pk["fc1_b"],
      pk["fc2_w"], pk["fc2_b"], pk["fc3_w"], pk["fc3_b"])


# ----------------------------------------------------------------------------
# Glue (jitted XLA): channel-major im2col (emits (K, M) directly), padding
# ----------------------------------------------------------------------------
def conv2d_size_out(size, kernel_size, stride):
    return (size - (kernel_size - 1) - 1) // stride + 1


# TODO(synk): strided im2col window extraction stays in XLA glue (fused under the
# surrounding jit); moving it in-kernel needs strided VMEM window loads.
def _im2col_km(x_cnhw, kh, kw, stride):
    """x:(C,B,H,W) -> patches:(KH*KW*C, B*OH*OW); K order (kh,kw,c), M order (b,oh,ow).

    Built as a stack of strided slices + row-major adjacent-dim merges only, so no
    HBM-level transpose of the patch matrix is needed.
    """
    c, bsz, h, w = x_cnhw.shape
    oh = (h - kh) // stride + 1
    ow = (w - kw) // stride + 1
    cols = []
    for i in range(kh):
        for j in range(kw):
            cols.append(jax.lax.slice(
                x_cnhw, (0, 0, i, j),
                (c, bsz, i + stride * (oh - 1) + 1, j + stride * (ow - 1) + 1),
                (1, 1, stride, stride)))
    p = jnp.stack(cols, axis=0)                        # (KH*KW, C, B, OH, OW)
    return p.reshape(kh * kw * c, bsz * oh * ow), oh, ow


def _conv_layer(x_cnhw, w_t, b_col, ksize, stride):
    """Conv2d(valid, stride) + ReLU via channel-major bf16 Pallas GEMM.  CNHW in/out."""
    cout = w_t.shape[0]
    _, bsz, _, _ = x_cnhw.shape
    patches, oh, ow = _im2col_km(x_cnhw, ksize, ksize, stride)
    patches = patches.astype(jnp.bfloat16)
    m = bsz * oh * ow
    tm = min(_CONV_TM_MAX, _round_up(m, 128))
    m_pad = _round_up(m, tm)
    patches = jnp.pad(patches, ((0, 0), (0, m_pad - m)))
    y = _conv_gemm(w_t, patches, b_col, tm=tm)         # (Cout, M_pad) bf16
    return y[:, :m].reshape(cout, bsz, oh, ow)         # channel-major (C, B, OH, OW)


@jax.jit
def soft_q_forward(packed, image_nchw, action, timestep):
    """Exact forward of SoftQNetwork.forward (NCHW image, (B,A) action, (B,) timestep)."""
    bsz = image_nchw.shape[0]
    x = jnp.transpose(image_nchw.astype(jnp.float32), (1, 0, 2, 3))     # (C, B, H, W)
    x = _conv_layer(x, packed["conv1_w"], packed["conv1_b"], 4, 2)      # (32, B, 31, 31)
    x = _conv_layer(x, packed["conv2_w"], packed["conv2_b"], 3, 2)      # (32, B, 15, 15)

    # conv3 patches laid out (S=49, B_pad, K=288), k order (kh,kw,cin), s = oh*7+ow,
    # so the fused head kernel only does leading-dim merges in-kernel.
    cout2, _, h2, w2 = x.shape
    k3, s3 = 3, 2
    oh3 = (h2 - k3) // s3 + 1
    ow3 = (w2 - k3) // s3 + 1
    cols = [jax.lax.slice(
                x, (0, 0, i, j),
                (cout2, bsz, i + s3 * (oh3 - 1) + 1, j + s3 * (ow3 - 1) + 1),
                (1, 1, s3, s3))
            for i in range(k3) for j in range(k3)]
    p = jnp.stack(cols, axis=0)                                         # (9, 32, B, 7, 7)
    p3 = jnp.transpose(p, (3, 4, 2, 0, 1)).astype(jnp.float32)          # (7, 7, B, 9, 32)
    p3 = p3.reshape(oh3 * ow3, bsz, k3 * k3 * cout2)                    # (49, B, 288)

    tb = min(_HEAD_TB_MAX, _round_up(bsz, 8))
    b_pad = _round_up(bsz, tb)
    pad = b_pad - bsz
    p3 = jnp.pad(p3, ((0, 0), (0, pad), (0, 0)))
    t = jnp.pad(timestep.astype(jnp.float32).reshape(bsz, 1), ((0, pad), (0, 0)))
    a = jnp.pad(action.astype(jnp.float32), ((0, pad), (0, 0)))

    q = _fused_head(p3, t, a, packed, tb=tb)
    return q[:bsz]


# ----------------------------------------------------------------------------
# Parameters: torch-layout init, one-time kernel-layout packing, f32 reference
# ----------------------------------------------------------------------------
def init_raw_params(key, c, h, w, num_actions):
    """Random parameters in the PyTorch layouts (Conv2d OIHW, Linear (out, in))."""
    out_channels = [32, 32, 32]
    kernel_sizes = [4, 3, 3]
    strides = [2, 2, 2]
    convw, convh = w, h
    for ksz, st in zip(kernel_sizes, strides):
        convw = conv2d_size_out(convw, ksz, st)
        convh = conv2d_size_out(convh, ksz, st)
    linear_input_size = convw * convh * (out_channels[2] + 1)

    ks = jax.random.split(key, 14)

    def rnd(k, shape, scale):
        return (scale * jax.random.normal(k, shape)).astype(jnp.float32)

    return {
        "conv1_w": rnd(ks[0], (out_channels[0], c, 4, 4), 0.05),
        "conv1_b": rnd(ks[1], (out_channels[0],), 0.05),
        "conv2_w": rnd(ks[2], (out_channels[1], out_channels[0], 3, 3), 0.05),
        "conv2_b": rnd(ks[3], (out_channels[1],), 0.05),
        "conv3_w": rnd(ks[4], (out_channels[2], out_channels[1], 3, 3), 0.05),
        "conv3_b": rnd(ks[5], (out_channels[2],), 0.05),
        "act_w": rnd(ks[6], (out_channels[2] + 1, num_actions), 0.1),
        "act_b": rnd(ks[7], (out_channels[2] + 1,), 0.1),
        "fc1_w": rnd(ks[8], (32, linear_input_size), 0.02),
        "fc1_b": rnd(ks[9], (32,), 0.02),
        "fc2_w": rnd(ks[10], (32, 32), 0.1),
        "fc2_b": rnd(ks[11], (32,), 0.1),
        "fc3_w": rnd(ks[12], (1, 32), 0.2),
        "fc3_b": rnd(ks[13], (1,), 0.2),
    }


def pack_params(raw):
    """One-time re-layout of the torch-layout weights for the kernels (hot-path free)."""
    n_sp = raw["fc1_w"].shape[1] // 33                   # conv3 spatial size (7*7 = 49)
    # fc1 rows in NCHW-flatten order: (channel 0..32, spatial 0..48, out 32)
    w1t = jnp.transpose(raw["fc1_w"]).reshape(33, n_sp, 32)

    def conv_w(wt):  # OIHW -> (Cout, KH*KW*Cin) with (kh, kw, cin) column order
        return jnp.transpose(wt, (0, 2, 3, 1)).reshape(wt.shape[0], -1)

    return {
        # conv1/conv2 run on the MXU in bf16 (f32 accumulate); biases stay f32.
        "conv1_w": conv_w(raw["conv1_w"]).astype(jnp.bfloat16),
        "conv1_b": raw["conv1_b"].reshape(-1, 1),
        "conv2_w": conv_w(raw["conv2_w"]).astype(jnp.bfloat16),
        "conv2_b": raw["conv2_b"].reshape(-1, 1),
        # conv3 is consumed inside the fused head kernel as (K, Cout), f32.
        "conv3_w": jnp.transpose(raw["conv3_w"], (2, 3, 1, 0)).reshape(-1, raw["conv3_w"].shape[0]),
        "conv3_b": raw["conv3_b"].reshape(1, -1),
        "act_w": jnp.transpose(raw["act_w"]),            # (num_actions, 33)
        "act_b": raw["act_b"].reshape(1, -1),
        # Folded fc1: S1[ch] = sum over spatial rows of channel ch (used by the
        # timestep plane and the spatially-broadcast action term); fc1_ws[s] =
        # fc1 rows of conv channels 1..32 at spatial position s.
        "fc1_s1": w1t.sum(axis=1),                       # (33, 32)
        "fc1_ws": jnp.transpose(w1t[1:], (1, 0, 2)),     # (49, 32, 32)
        "fc1_b": raw["fc1_b"].reshape(1, -1),
        "fc2_w": jnp.transpose(raw["fc2_w"]),
        "fc2_b": raw["fc2_b"].reshape(1, -1),
        "fc3_w": raw["fc3_w"],                           # kept as (1, 32) row vector
        "fc3_b": raw["fc3_b"].reshape(1, -1),
    }


def reference_forward(raw, image, action, timestep):
    """Pure-JAX f32 reference matching SoftQNetwork.forward (validation only)."""
    hp = jax.lax.Precision.HIGHEST
    x = image.astype(jnp.float32)

    def conv(inp, wt, bs, st):
        y = jax.lax.conv_general_dilated(
            inp, wt, (st, st), "VALID",
            dimension_numbers=("NCHW", "OIHW", "NCHW"), precision=hp)
        return jax.nn.relu(y + bs.reshape(1, -1, 1, 1))

    y = conv(x, raw["conv1_w"], raw["conv1_b"], 2)
    y = conv(y, raw["conv2_w"], raw["conv2_b"], 2)
    y = conv(y, raw["conv3_w"], raw["conv3_b"], 2)                    # (B, 32, 7, 7)
    bsz = x.shape[0]
    t = timestep.astype(jnp.float32).reshape(bsz, 1)
    time_tiled = jnp.repeat(t, 49, axis=0).reshape(bsz, 1, 7, 7)
    state = jnp.concatenate([time_tiled, y], axis=1)                  # (B, 33, 7, 7)
    a = jax.nn.relu(jnp.dot(action, raw["act_w"].T, precision=hp) + raw["act_b"])
    sa = state + a[:, :, None, None]
    flat = sa.reshape(bsz, -1)
    h1 = jnp.dot(flat, raw["fc1_w"].T, precision=hp) + raw["fc1_b"]
    h2 = jnp.dot(h1, raw["fc2_w"].T, precision=hp) + raw["fc2_b"]
    return jnp.dot(h2, raw["fc3_w"].T, precision=hp) + raw["fc3_b"]


if __name__ == "__main__":
    key = jax.random.PRNGKey(0)
    kp, ki, ka, kt = jax.random.split(key, 4)

    # The forward pass hard-codes a 7x7 conv map, which requires 64x64 input.
    batch, c, h, w, num_actions = 2, 4, 64, 64, 4
    raw = init_raw_params(kp, c, h, w, num_actions)
    packed = pack_params(raw)

    image = jax.random.normal(ki, (batch, c, h, w), dtype=jnp.float32)
    action = jax.random.normal(ka, (batch, num_actions), dtype=jnp.float32)
    timestep = jax.random.uniform(kt, (batch,), dtype=jnp.float32)

    q = soft_q_forward(packed, image, action, timestep)
    q = jax.block_until_ready(q)
    assert q.shape == (batch, 1) and q.dtype == jnp.float32

    # Tolerance covers bf16 conv1/conv2 MXU inputs (f32 accumulation) + f32 summation
    # order differences from the fc1 folding.
    q_ref = reference_forward(raw, image, action, timestep)
    assert jnp.allclose(q, q_ref, rtol=2e-2, atol=2e-2), (q, q_ref)
    print("KERNEL_OK")
</pallas_src>

<mosaic_0001>
module attributes {stable_mosaic.version = 11 : i64} {
  func.func @_conv_gemm_kernel(%arg0: i32, %arg1: memref<32x64xbf16, #tpu.memory_space<vmem>>, %arg2: memref<64x1024xbf16, #tpu.memory_space<vmem>>, %arg3: memref<32x1xf32, #tpu.memory_space<vmem>>, %arg4: memref<32x1024xbf16, #tpu.memory_space<vmem>>) attributes {dimension_semantics = [#tpu.dimension_semantics<parallel>], iteration_bounds = array<i64: 2>, scalar_prefetch = 0 : i64, scratch_operands = 0 : i64, tpu.core_type = #tpu.core_type<tc>, window_params = [{pipeline_mode = #tpu.pipeline_mode<synchronous>, transform_indices = @transform_0, window_bounds = array<i64: 32, 64>}, {transform_indices = @transform_1, window_bounds = array<i64: 64, 1024>}, {pipeline_mode = #tpu.pipeline_mode<synchronous>, transform_indices = @transform_2, window_bounds = array<i64: 32, 1>}, {transform_indices = @transform_3, window_bounds = array<i64: 32, 1024>}]} {
    %c0 = arith.constant 0 : index
    %c0_0 = arith.constant 0 : index
    %0 = vector.load %arg1[%c0, %c0_0] : memref<32x64xbf16, #tpu.memory_space<vmem>>, vector<32x64xbf16>
    %c0_1 = arith.constant 0 : index
    %c0_2 = arith.constant 0 : index
    %1 = vector.load %arg2[%c0_1, %c0_2] : memref<64x1024xbf16, #tpu.memory_space<vmem>>, vector<64x1024xbf16>
    %cst = arith.constant dense<0.000000e+00> : vector<32x1024xf32>
    %2 = tpu.matmul %0, %1, %cst {dimension_numbers = #tpu.dot_dimension_numbers<[1], [0], [0], [1], [0, 0, 1, 1], [], []>} : vector<32x64xbf16>, vector<64x1024xbf16>, vector<32x1024xf32> -> vector<32x1024xf32>
    %c0_3 = arith.constant 0 : index
    %c0_4 = arith.constant 0 : index
    %3 = vector.load %arg3[%c0_3, %c0_4] : memref<32x1xf32, #tpu.memory_space<vmem>>, vector<32x1xf32>
    %4 = vector.broadcast %3 : vector<32x1xf32> to vector<32x1024xf32>
    %5 = arith.addf %2, %4 : vector<32x1024xf32>
    %cst_5 = arith.constant 0.000000e+00 : f32
    %6 = vector.broadcast %cst_5 : f32 to vector<32x1024xf32>
    %7 = arith.maximumf %5, %6 : vector<32x1024xf32>
    %8 = arith.truncf %7 : vector<32x1024xf32> to vector<32x1024xbf16>
    %c0_6 = arith.constant 0 : index
    %c0_7 = arith.constant 0 : index
    %9 = vector.load %arg4[%c0_6, %c0_7] : memref<32x1024xbf16, #tpu.memory_space<vmem>>, vector<32x1024xbf16>
    tpu.vector_store %arg4[%c0_6, %c0_7], %8 {strides = array<i32>} : memref<32x1024xbf16, #tpu.memory_space<vmem>>, vector<32x1024xbf16>,
    return
  }
  func.func @transform_0(%arg0: i32) -> (i32, i32) {
    %c0_i32 = arith.constant 0 : i32
    %c0_i32_0 = arith.constant 0 : i32
    %c0_i32_1 = arith.constant 0 : i32
    return %c0_i32, %c0_i32_0 : i32, i32
  }
  func.func @transform_1(%arg0: i32) -> (i32, i32) {
    %c0_i32 = arith.constant 0 : i32
    %c0_i32_0 = arith.constant 0 : i32
    return %c0_i32, %arg0 : i32, i32
  }
  func.func @transform_2(%arg0: i32) -> (i32, i32) {
    %c0_i32 = arith.constant 0 : i32
    %c0_i32_0 = arith.constant 0 : i32
    %c0_i32_1 = arith.constant 0 : i32
    return %c0_i32, %c0_i32_0 : i32, i32
  }
  func.func @transform_3(%arg0: i32) -> (i32, i32) {
    %c0_i32 = arith.constant 0 : i32
    %c0_i32_0 = arith.constant 0 : i32
    return %c0_i32, %arg0 : i32, i32
  }
}

module attributes {stable_mosaic.version = 11 : i64} {
  func.func @_conv_gemm_kernel(%arg0: i32, %arg1: memref<32x288xbf16, #tpu.memory_space<vmem>>, %arg2: memref<288x512xbf16, #tpu.memory_space<vmem>>, %arg3: memref<32x1xf32, #tpu.memory_space<vmem>>, %arg4: memref<32x512xbf16, #tpu.memory_space<vmem>>) attributes {dimension_semantics = [#tpu.dimension_semantics<parallel>], iteration_bounds = array<i64: 1>, scalar_prefetch = 0 : i64, scratch_operands = 0 : i64, tpu.core_type = #tpu.core_type<tc>, window_params = [{pipeline_mode = #tpu.pipeline_mode<synchronous>, transform_indices = @transform_0, window_bounds = array<i64: 32, 288>}, {transform_indices = @transform_1, window_bounds = array<i64: 288, 512>}, {pipeline_mode = #tpu.pipeline_mode<synchronous>, transform_indices = @transform_2, window_bounds = array<i64: 32, 1>}, {transform_indices = @transform_3, window_bounds = array<i64: 32, 512>}]} {
    %c0 = arith.constant 0 : index
    %c0_0 = arith.constant 0 : index
    %0 = vector.load %arg1[%c0, %c0_0] : memref<32x288xbf16, #tpu.memory_space<vmem>>, vector<32x288xbf16>
    %c0_1 = arith.constant 0 : index
    %c0_2 = arith.constant 0 : index
    %1 = vector.load %arg2[%c0_1, %c0_2] : memref<288x512xbf16, #tpu.memory_space<vmem>>, vector<288x512xbf16>
    %cst = arith.constant dense<0.000000e+00> : vector<32x512xf32>
    %2 = tpu.matmul %0, %1, %cst {dimension_numbers = #tpu.dot_dimension_numbers<[1], [0], [0], [1], [0, 0, 1, 1], [], []>} : vector<32x288xbf16>, vector<288x512xbf16>, vector<32x512xf32> -> vector<32x512xf32>
    %c0_3 = arith.constant 0 : index
    %c0_4 = arith.constant 0 : index
    %3 = vector.load %arg3[%c0_3, %c0_4] : memref<32x1xf32, #tpu.memory_space<vmem>>, vector<32x1xf32>
    %4 = vector.broadcast %3 : vector<32x1xf32> to vector<32x512xf32>
    %5 = arith.addf %2, %4 : vector<32x512xf32>
    %cst_5 = arith.constant 0.000000e+00 : f32
    %6 = vector.broadcast %cst_5 : f32 to vector<32x512xf32>
    %7 = arith.maximumf %5, %6 : vector<32x512xf32>
    %8 = arith.truncf %7 : vector<32x512xf32> to vector<32x512xbf16>
    %c0_6 = arith.constant 0 : index
    %c0_7 = arith.constant 0 : index
    %9 = vector.load %arg4[%c0_6, %c0_7] : memref<32x512xbf16, #tpu.memory_space<vmem>>, vector<32x512xbf16>
    tpu.vector_store %arg4[%c0_6, %c0_7], %8 {strides = array<i32>} : memref<32x512xbf16, #tpu.memory_space<vmem>>, vector<32x512xbf16>,
    return
  }
  func.func @transform_0(%arg0: i32) -> (i32, i32) {
    %c0_i32 = arith.constant 0 : i32
    %c0_i32_0 = arith.constant 0 : i32
    %c0_i32_1 = arith.constant 0 : i32
    return %c0_i32, %c0_i32_0 : i32, i32
  }
  func.func @transform_1(%arg0: i32) -> (i32, i32) {
    %c0_i32 = arith.constant 0 : i32
    %c0_i32_0 = arith.constant 0 : i32
    return %c0_i32, %arg0 : i32, i32
  }
  func.func @transform_2(%arg0: i32) -> (i32, i32) {
    %c0_i32 = arith.constant 0 : i32
    %c0_i32_0 = arith.constant 0 : i32
    %c0_i32_1 = arith.constant 0 : i32
    return %c0_i32, %c0_i32_0 : i32, i32
  }
  func.func @transform_3(%arg0: i32) -> (i32, i32) {
    %c0_i32 = arith.constant 0 : i32
    %c0_i32_0 = arith.constant 0 : i32
    return %c0_i32, %arg0 : i32, i32
  }
}

module attributes {stable_mosaic.version = 11 : i64} {
  func.func @_head_kernel(%arg0: i32, %arg1: memref<49x8x288xf32, #tpu.memory_space<vmem>>, %arg2: memref<8x1xf32, #tpu.memory_space<vmem>>, %arg3: memref<8x4xf32, #tpu.memory_space<vmem>>, %arg4: memref<288x32xf32, #tpu.memory_space<vmem>>, %arg5: memref<1x32xf32, #tpu.memory_space<vmem>>, %arg6: memref<4x33xf32, #tpu.memory_space<vmem>>, %arg7: memref<1x33xf32, #tpu.memory_space<vmem>>, %arg8: memref<33x32xf32, #tpu.memory_space<vmem>>, %arg9: memref<49x32x32xf32, #tpu.memory_space<vmem>>, %arg10: memref<1x32xf32, #tpu.memory_space<vmem>>, %arg11: memref<32x32xf32, #tpu.memory_space<vmem>>, %arg12: memref<1x32xf32, #tpu.memory_space<vmem>>, %arg13: memref<1x32xf32, #tpu.memory_space<vmem>>, %arg14: memref<1x1xf32, #tpu.memory_space<vmem>>, %arg15: memref<8x1xf32, #tpu.memory_space<vmem>>) attributes {dimension_semantics = [#tpu.dimension_semantics<parallel>], iteration_bounds = array<i64: 1>, scalar_prefetch = 0 : i64, scratch_operands = 0 : i64, tpu.core_type = #tpu.core_type<tc>, window_params = [{transform_indices = @transform_0, window_bounds = array<i64: 49, 8, 288>}, {transform_indices = @transform_1, window_bounds = array<i64: 8, 1>}, {transform_indices = @transform_2, window_bounds = array<i64: 8, 4>}, {pipeline_mode = #tpu.pipeline_mode<synchronous>, transform_indices = @transform_3, window_bounds = array<i64: 288, 32>}, {pipeline_mode = #tpu.pipeline_mode<synchronous>, transform_indices = @transform_4, window_bounds = array<i64: 1, 32>}, {pipeline_mode = #tpu.pipeline_mode<synchronous>, transform_indices = @transform_5, window_bounds = array<i64: 4, 33>}, {pipeline_mode = #tpu.pipeline_mode<synchronous>, transform_indices = @transform_6, window_bounds = array<i64: 1, 33>}, {pipeline_mode = #tpu.pipeline_mode<synchronous>, transform_indices = @transform_7, window_bounds = array<i64: 33, 32>}, {pipeline_mode = #tpu.pipeline_mode<synchronous>, transform_indices = @transform_8, window_bounds = array<i64: 49, 32, 32>}, {pipeline_mode = #tpu.pipeline_mode<synchronous>, transform_indices = @transform_9, window_bounds = array<i64: 1, 32>}, {pipeline_mode = #tpu.pipeline_mode<synchronous>, transform_indices = @transform_10, window_bounds = array<i64: 32, 32>}, {pipeline_mode = #tpu.pipeline_mode<synchronous>, transform_indices = @transform_11, window_bounds = array<i64: 1, 32>}, {pipeline_mode = #tpu.pipeline_mode<synchronous>, transform_indices = @transform_12, window_bounds = array<i64: 1, 32>}, {pipeline_mode = #tpu.pipeline_mode<synchronous>, transform_indices = @transform_13, window_bounds = array<i64: 1, 1>}, {transform_indices = @transform_14, window_bounds = array<i64: 8, 1>}]} {
    %c0 = arith.constant 0 : index
    %c0_0 = arith.constant 0 : index
    %c0_1 = arith.constant 0 : index
    %0 = vector.load %arg1[%c0, %c0_0, %c0_1] : memref<49x8x288xf32, #tpu.memory_space<vmem>>, vector<49x8x288xf32>
    %1 = vector.shape_cast %0 : vector<49x8x288xf32> to vector<392x288xf32>
    %c0_2 = arith.constant 0 : index
    %c0_3 = arith.constant 0 : index
    %2 = vector.load %arg4[%c0_2, %c0_3] : memref<288x32xf32, #tpu.memory_space<vmem>>, vector<288x32xf32>
    %cst = arith.constant dense<0.000000e+00> : vector<392x32xf32>
    %3 = tpu.matmul %1, %2, %cst {dimension_numbers = #tpu.dot_dimension_numbers<[1], [0], [0], [1], [0, 0, 1, 1], [], []>} : vector<392x288xf32>, vector<288x32xf32>, vector<392x32xf32> -> vector<392x32xf32>
    %c0_4 = arith.constant 0 : index
    %c0_5 = arith.constant 0 : index
    %4 = vector.load %arg5[%c0_4, %c0_5] : memref<1x32xf32, #tpu.memory_space<vmem>>, vector<1x32xf32>
    %5 = vector.broadcast %4 : vector<1x32xf32> to vector<392x32xf32>
    %6 = arith.addf %3, %5 : vector<392x32xf32>
    %cst_6 = arith.constant 0.000000e+00 : f32
    %7 = vector.broadcast %cst_6 : f32 to vector<392x32xf32>
    %8 = arith.maximumf %6, %7 : vector<392x32xf32>
    %9 = vector.shape_cast %8 : vector<392x32xf32> to vector<49x8x32xf32>
    %c0_7 = arith.constant 0 : index
    %c0_8 = arith.constant 0 : index
    %c0_9 = arith.constant 0 : index
    %10 = vector.load %arg9[%c0_7, %c0_8, %c0_9] : memref<49x32x32xf32, #tpu.memory_space<vmem>>, vector<49x32x32xf32>
    "tpu.trace_start"() <{level = 10 : i32, message = "sbc,sco->sbo"}> : () -> ()
    %cst_10 = arith.constant dense<0.000000e+00> : vector<49x8x32xf32>
    %11 = tpu.matmul %9, %10, %cst_10 {dimension_numbers = #tpu.dot_dimension_numbers<[2], [1], [1], [2], [0, 0, 0, 1, 1, 2], [0], [0]>} : vector<49x8x32xf32>, vector<49x32x32xf32>, vector<49x8x32xf32> -> vector<49x8x32xf32>
    "tpu.trace_stop"() : () -> ()
    %cst_11 = arith.constant dense<0.000000e+00> : vector<8x32xf32>
    %12 = vector.multi_reduction <add>, %11, %cst_11 [0] : vector<49x8x32xf32> to vector<8x32xf32>
    %c0_12 = arith.constant 0 : index
    %c0_13 = arith.constant 0 : index
    %13 = vector.load %arg8[%c0_12, %c0_13] : memref<33x32xf32, #tpu.memory_space<vmem>>, vector<33x32xf32>
    %c0_14 = arith.constant 0 : index
    %c0_15 = arith.constant 0 : index
    %14 = vector.load %arg3[%c0_14, %c0_15] : memref<8x4xf32, #tpu.memory_space<vmem>>, vector<8x4xf32>
    %c0_16 = arith.constant 0 : index
    %c0_17 = arith.constant 0 : index
    %15 = vector.load %arg6[%c0_16, %c0_17] : memref<4x33xf32, #tpu.memory_space<vmem>>, vector<4x33xf32>
    %cst_18 = arith.constant dense<0.000000e+00> : vector<8x33xf32>
    %16 = tpu.matmul %14, %15, %cst_18 {dimension_numbers = #tpu.dot_dimension_numbers<[1], [0], [0], [1], [0, 0, 1, 1], [], []>} : vector<8x4xf32>, vector<4x33xf32>, vector<8x33xf32> -> vector<8x33xf32>
    %c0_19 = arith.constant 0 : index
    %c0_20 = arith.constant 0 : index
    %17 = vector.load %arg7[%c0_19, %c0_20] : memref<1x33xf32, #tpu.memory_space<vmem>>, vector<1x33xf32>
    %18 = vector.broadcast %17 : vector<1x33xf32> to vector<8x33xf32>
    %19 = arith.addf %16, %18 : vector<8x33xf32>
    %cst_21 = arith.constant 0.000000e+00 : f32
    %20 = vector.broadcast %cst_21 : f32 to vector<8x33xf32>
    %21 = arith.maximumf %19, %20 : vector<8x33xf32>
    %c0_22 = arith.constant 0 : index
    %c0_23 = arith.constant 0 : index
    %22 = vector.load %arg10[%c0_22, %c0_23] : memref<1x32xf32, #tpu.memory_space<vmem>>, vector<1x32xf32>
    %23 = vector.broadcast %22 : vector<1x32xf32> to vector<8x32xf32>
    %24 = arith.addf %12, %23 : vector<8x32xf32>
    %c0_24 = arith.constant 0 : index
    %c0_25 = arith.constant 0 : index
    %25 = vector.load %arg2[%c0_24, %c0_25] : memref<8x1xf32, #tpu.memory_space<vmem>>, vector<8x1xf32>
    %26 = vector.extract_strided_slice %13 {offsets = [0, 0], sizes = [1, 32], strides = [1, 1]} : vector<33x32xf32> to vector<1x32xf32>
    %27 = vector.broadcast %25 : vector<8x1xf32> to vector<8x32xf32>
    %28 = vector.broadcast %26 : vector<1x32xf32> to vector<8x32xf32>
    %29 = arith.mulf %27, %28 : vector<8x32xf32>
    %30 = arith.addf %24, %29 : vector<8x32xf32>
    %cst_26 = arith.constant dense<0.000000e+00> : vector<8x32xf32>
    %31 = tpu.matmul %21, %13, %cst_26 {dimension_numbers = #tpu.dot_dimension_numbers<[1], [0], [0], [1], [0, 0, 1, 1], [], []>} : vector<8x33xf32>, vector<33x32xf32>, vector<8x32xf32> -> vector<8x32xf32>
    %32 = arith.addf %30, %31 : vector<8x32xf32>
    %c0_27 = arith.constant 0 : index
    %c0_28 = arith.constant 0 : index
    %33 = vector.load %arg11[%c0_27, %c0_28] : memref<32x32xf32, #tpu.memory_space<vmem>>, vector<32x32xf32>
    %cst_29 = arith.constant dense<0.000000e+00> : vector<8x32xf32>
    %34 = tpu.matmul %32, %33, %cst_29 {dimension_numbers = #tpu.dot_dimension_numbers<[1], [0], [0], [1], [0, 0, 1, 1], [], []>} : vector<8x32xf32>, vector<32x32xf32>, vector<8x32xf32> -> vector<8x32xf32>
    %c0_30 = arith.constant 0 : index
    %c0_31 = arith.constant 0 : index
    %35 = vector.load %arg12[%c0_30, %c0_31] : memref<1x32xf32, #tpu.memory_space<vmem>>, vector<1x32xf32>
    %36 = vector.broadcast %35 : vector<1x32xf32> to vector<8x32xf32>
    %37 = arith.addf %34, %36 : vector<8x32xf32>
    %c0_32 = arith.constant 0 : index
    %c0_33 = arith.constant 0 : index
    %38 = vector.load %arg13[%c0_32, %c0_33] : memref<1x32xf32, #tpu.memory_space<vmem>>, vector<1x32xf32>
    %39 = vector.broadcast %38 : vector<1x32xf32> to vector<8x32xf32>
    %40 = arith.mulf %37, %39 : vector<8x32xf32>
    %cst_34 = arith.constant dense<0.000000e+00> : vector<8xf32>
    %41 = vector.multi_reduction <add>, %40, %cst_34 [1] : vector<8x32xf32> to vector<8xf32>
    %42 = vector.shape_cast %41 : vector<8xf32> to vector<8x1xf32>
    %c0_35 = arith.constant 0 : index
    %c0_36 = arith.constant 0 : index
    %43 = vector.load %arg14[%c0_35, %c0_36] : memref<1x1xf32, #tpu.memory_space<vmem>>, vector<1x1xf32>
    %44 = vector.broadcast %43 : vector<1x1xf32> to vector<8x1xf32>
    %45 = arith.addf %42, %44 : vector<8x1xf32>
    %c0_37 = arith.constant 0 : index
    %c0_38 = arith.constant 0 : index
    %46 = vector.load %arg15[%c0_37, %c0_38] : memref<8x1xf32, #tpu.memory_space<vmem>>, vector<8x1xf32>
    tpu.vector_store %arg15[%c0_37, %c0_38], %45 {strides = array<i32>} : memref<8x1xf32, #tpu.memory_space<vmem>>, vector<8x1xf32>,
    return
  }
  func.func @transform_0(%arg0: i32) -> (i32, i32, i32) {
    %c0_i32 = arith.constant 0 : i32
    %c0_i32_0 = arith.constant 0 : i32
    %c0_i32_1 = arith.constant 0 : i32
    return %c0_i32, %arg0, %c0_i32_0 : i32, i32, i32
  }
  func.func @transform_1(%arg0: i32) -> (i32, i32) {
    %c0_i32 = arith.constant 0 : i32
    %c0_i32_0 = arith.constant 0 : i32
    return %arg0, %c0_i32 : i32, i32
  }
  func.func @transform_2(%arg0: i32) -> (i32, i32) {
    %c0_i32 = arith.constant 0 : i32
    %c0_i32_0 = arith.constant 0 : i32
    return %arg0, %c0_i32 : i32, i32
  }
  func.func @transform_3(%arg0: i32) -> (i32, i32) {
    %c0_i32 = arith.constant 0 : i32
    %c0_i32_0 = arith.constant 0 : i32
    %c0_i32_1 = arith.constant 0 : i32
    return %c0_i32, %c0_i32_0 : i32, i32
  }
  func.func @transform_4(%arg0: i32) -> (i32, i32) {
    %c0_i32 = arith.constant 0 : i32
    %c0_i32_0 = arith.constant 0 : i32
    %c0_i32_1 = arith.constant 0 : i32
    return %c0_i32, %c0_i32_0 : i32, i32
  }
  func.func @transform_5(%arg0: i32) -> (i32, i32) {
    %c0_i32 = arith.constant 0 : i32
    %c0_i32_0 = arith.constant 0 : i32
    %c0_i32_1 = arith.constant 0 : i32
    return %c0_i32, %c0_i32_0 : i32, i32
  }
  func.func @transform_6(%arg0: i32) -> (i32, i32) {
    %c0_i32 = arith.constant 0 : i32
    %c0_i32_0 = arith.constant 0 : i32
    %c0_i32_1 = arith.constant 0 : i32
    return %c0_i32, %c0_i32_0 : i32, i32
  }
  func.func @transform_7(%arg0: i32) -> (i32, i32) {
    %c0_i32 = arith.constant 0 : i32
    %c0_i32_0 = arith.constant 0 : i32
    %c0_i32_1 = arith.constant 0 : i32
    return %c0_i32, %c0_i32_0 : i32, i32
  }
  func.func @transform_8(%arg0: i32) -> (i32, i32, i32) {
    %c0_i32 = arith.constant 0 : i32
    %c0_i32_0 = arith.constant 0 : i32
    %c0_i32_1 = arith.constant 0 : i32
    %c0_i32_2 = arith.constant 0 : i32
    return %c0_i32, %c0_i32_0, %c0_i32_1 : i32, i32, i32
  }
  func.func @transform_9(%arg0: i32) -> (i32, i32) {
    %c0_i32 = arith.constant 0 : i32
    %c0_i32_0 = arith.constant 0 : i32
    %c0_i32_1 = arith.constant 0 : i32
    return %c0_i32, %c0_i32_0 : i32, i32
  }
  func.func @transform_10(%arg0: i32) -> (i32, i32) {
    %c0_i32 = arith.constant 0 : i32
    %c0_i32_0 = arith.constant 0 : i32
    %c0_i32_1 = arith.constant 0 : i32
    return %c0_i32, %c0_i32_0 : i32, i32
  }
  func.func @transform_11(%arg0: i32) -> (i32, i32) {
    %c0_i32 = arith.constant 0 : i32
    %c0_i32_0 = arith.constant 0 : i32
    %c0_i32_1 = arith.constant 0 : i32
    return %c0_i32, %c0_i32_0 : i32, i32
  }
  func.func @transform_12(%arg0: i32) -> (i32, i32) {
    %c0_i32 = arith.constant 0 : i32
    %c0_i32_0 = arith.constant 0 : i32
    %c0_i32_1 = arith.constant 0 : i32
    return %c0_i32, %c0_i32_0 : i32, i32
  }
  func.func @transform_13(%arg0: i32) -> (i32, i32) {
    %c0_i32 = arith.constant 0 : i32
    %c0_i32_0 = arith.constant 0 : i32
    %c0_i32_1 = arith.constant 0 : i32
    return %c0_i32, %c0_i32_0 : i32, i32
  }
  func.func @transform_14(%arg0: i32) -> (i32, i32) {
    %c0_i32 = arith.constant 0 : i32
    %c0_i32_0 = arith.constant 0 : i32
    return %arg0, %c0_i32 : i32, i32
  }
}

</mosaic_0001>

<llo_original>
// kernel: soft_q_forward.3
$region0: #{soft_q_forward.3}
  #allocation0 [shape = 'u32[]', space=smem, size = 0x4, offset = 0x4, fixed_abs, tag = 'smem constant byte address 0x4 - core index']
  #allocation1 [shape = 'u32[144,128]{1,0:T(1,128)}', space=vmem, size = 0x12000, scoped, tag = 'internal scratch']
  %s0 = inlined_call_operand.vmem [shape: bf16[32,64], index: 0, kind: input, shape index: {}]
  %s1 = inlined_call_operand.vmem [shape: bf16[64,2048], index: 1, kind: input, shape index: {}]
  %s2 = inlined_call_operand.vmem [shape: f32[32,1], index: 2, kind: input, shape index: {}]
  %s3 = inlined_call_operand.vmem [shape: bf16[32,2048], index: 3, kind: output, shape index: {}]
  %s4 = sld [smem:[#allocation0]]
  $region87: #{soft_q_forward.3} parent=0
    _
  %s6 = ssub.s32 1, %s4
  %s7 = scalar_select 0, %s6, %s4
  $region1: #{soft_q_forward.3} parent=0
    #allocation2 [shape = 'u8[262144]{0}', space=vmem, size = 0x40000, scoped, tag = 'input window, operand 1']
    #allocation3 [shape = 'u8[131072]{0}', space=vmem, size = 0x20000, scoped, tag = 'output window, operand 0']
    loop: start=0, step=1, limit=4
    $region2: #{soft_q_forward.3} parent=1 // loop_pre_header
      _
    $region3: #{soft_q_forward.3} parent=1 // loop_header
      %s9 = sphi 0, %s13
      %p10 = scmp.ge.s32.totalorder %s9, 4
      %s17 = sphi 0, %s17
      %s19 = sphi 0, %s17
      %s20 = sphi 0, %s19
      %s34 = sphi 0, %s20
      %s40 = sphi 0, %s42
      %s43 = sphi 0, %s40
      %s44 = sphi 0, %s43
      %s60 = sphi 0, %s44
      %s64 = sphi 0, %s64
      %s66 = sphi 0, %s64
      %s67 = sphi 0, %s66
      %s81 = sphi 0, %s67
      %s87 = sphi 0, %s89
      %s90 = sphi 0, %s87
      %s91 = sphi 0, %s90
      %s107 = sphi 0, %s91
    $region4: #{soft_q_forward.3} parent=1 // loop_header_branch
      %12 = sbr.rel (%p10) target = $region8
    $region5: #{soft_q_forward.3} parent=1 // loop_body
      %s14 = ssub.s32 %s9, 1
      %s15 = ssub.s32 %s9, 2
      %s16 = sadd.s32 %s9, 1
      %s18 = sadd.s32 %s17, 1
      %p21 = scmp.eq.s32.totalorder %s9, 1
      %p22 = scmp.ne.s32.totalorder %s17, %s19
      %p23 = scmp.eq.s32.totalorder %s9, 0
      %p24 = por %p22, %p23
      %p25 = scmp.ne.s32.totalorder %s17, %s19
      %p26 = scmp.eq.s32.totalorder %s14, 1
      %p27 = por %p25, %p26
      %p28 = scmp.ne.s32.totalorder %s19, %s20
      %p29 = scmp.eq.s32.totalorder %s14, 0
      %p30 = por %p28, %p29
      %p31 = scmp.ne.s32.totalorder %s19, %s20
      %p32 = scmp.eq.s32.totalorder %s15, 1
      %p33 = por %p31, %p32
      %p35 = scmp.ne.s32.totalorder %s20, %s34
      %p36 = scmp.eq.s32.totalorder %s15, 0
      %p37 = por %p35, %p36
      %s38 = ssub.s32 %s9, %s16
      %p39 = scmp.eq.s32.totalorder %s38, 0
      %s41 = sadd.s32 %s40, 1
      %s42 = scalar_select %p39, %s40, %s41
      %p45 = pneg %p39
      %p46 = scmp.eq.s32.totalorder %s9, 1
      %p47 = por %p45, %p46
      %p48 = scmp.ne.s32.totalorder %s40, %s43
      %p49 = scmp.eq.s32.totalorder %s9, 0
      %p50 = por %p48, %p49
      %p51 = scmp.ne.s32.totalorder %s40, %s43
      %p52 = scmp.eq.s32.totalorder %s14, 1
      %p53 = por %p51, %p52
      %p54 = scmp.ne.s32.totalorder %s43, %s44
      %p55 = scmp.eq.s32.totalorder %s14, 0
      %p56 = por %p54, %p55
      %p57 = scmp.ne.s32.totalorder %s43, %s44
      %p58 = scmp.eq.s32.totalorder %s15, 1
      %p59 = por %p57, %p58
      %p61 = scmp.ne.s32.totalorder %s44, %s60
      %p62 = scmp.eq.s32.totalorder %s15, 0
      %p63 = por %p61, %p62
      %s65 = sadd.s32 %s64, 1
      %p68 = scmp.eq.s32.totalorder %s9, 1
      %p69 = scmp.ne.s32.totalorder %s64, %s66
      %p70 = scmp.eq.s32.totalorder %s9, 0
      %p71 = por %p69, %p70
      %p72 = scmp.ne.s32.totalorder %s64, %s66
      %p73 = scmp.eq.s32.totalorder %s14, 1
      %p74 = por %p72, %p73
      %p75 = scmp.ne.s32.totalorder %s66, %s67
      %p76 = scmp.eq.s32.totalorder %s14, 0
      %p77 = por %p75, %p76
      %p78 = scmp.ne.s32.totalorder %s66, %s67
      %p79 = scmp.eq.s32.totalorder %s15, 1
      %p80 = por %p78, %p79
      %p82 = scmp.ne.s32.totalorder %s67, %s81
      %p83 = scmp.eq.s32.totalorder %s15, 0
      %p84 = por %p82, %p83
      %s85 = ssub.s32 %s9, %s16
      %p86 = scmp.eq.s32.totalorder %s85, 0
      %s88 = sadd.s32 %s87, 1
      %s89 = scalar_select %p86, %s87, %s88
      %p92 = pneg %p86
      %p93 = scmp.eq.s32.totalorder %s9, 1
      %p94 = por %p92, %p93
      %p95 = scmp.ne.s32.totalorder %s87, %s90
      %p96 = scmp.eq.s32.totalorder %s9, 0
      %p97 = por %p95, %p96
      %p98 = scmp.ne.s32.totalorder %s87, %s90
      %p99 = scmp.eq.s32.totalorder %s14, 1
      %p100 = por %p98, %p99
      %p101 = scmp.ne.s32.totalorder %s90, %s91
      %p102 = scmp.eq.s32.totalorder %s14, 0
      %p103 = por %p101, %p102
      %p104 = scmp.ne.s32.totalorder %s90, %s91
      %p105 = scmp.eq.s32.totalorder %s15, 1
      %p106 = por %p104, %p105
      %p108 = scmp.ne.s32.totalorder %s91, %s107
      %p109 = scmp.eq.s32.totalorder %s15, 0
      %p110 = por %p108, %p109
      %p111 = scmp.le.s32.totalorder 1, %s9
      %p112 = scmp.lt.s32.totalorder %s9, 3
      %p113 = pnand %p111, %p112
      %p114 = pneg %p113
      // Predicated region
      $region9: #{soft_q_forward.3} parent=5 // pred_check
        _
      $region10: #{soft_q_forward.3} parent=5 // pred_check_branch
        %116 = sbr.rel (%p113) target = $region12
      $region11: #{soft_q_forward.3} parent=5 // pred_region
        %s117 = ssub.s32 %s9, 1
        // Predicated region
        $region13: #{soft_q_forward.3} parent=11 // pred_check
          %p118 = pneg %p30
        $region14: #{soft_q_forward.3} parent=11 // pred_check_branch
          %120 = sbr.rel (%p118) target = $region16
        $region15: #{soft_q_forward.3} parent=11 // pred_region
          _
        $region16: #{soft_q_forward.3} parent=11 // pred_fallthru
          _
        // Predicated region
        $region17: #{soft_q_forward.3} parent=11 // pred_check
          %p121 = pneg %p77
        $region18: #{soft_q_forward.3} parent=11 // pred_check_branch
          %123 = sbr.rel (%p121) target = $region20
        $region19: #{soft_q_forward.3} parent=11 // pred_region
          _
        $region20: #{soft_q_forward.3} parent=11 // pred_fallthru
          _
      $region12: #{soft_q_forward.3} parent=5 // pred_fallthru
        _
      %p124 = scmp.lt.s32.totalorder %s9, 2
      // Predicated region
      $region21: #{soft_q_forward.3} parent=5 // pred_check
        %p125 = pneg %p124
      $region22: #{soft_q_forward.3} parent=5 // pred_check_branch
        %127 = sbr.rel (%p125) target = $region24
      $region23: #{soft_q_forward.3} parent=5 // pred_region
        // Predicated region
        $region25: #{soft_q_forward.3} parent=23 // pred_check
          %p128 = pneg %p50
        $region26: #{soft_q_forward.3} parent=23 // pred_check_branch
          %130 = sbr.rel (%p128) target = $region28
        $region27: #{soft_q_forward.3} parent=23 // pred_region
          %s131 = sand.u32 %s40, 1
          %s132 = sand.u32 %s40, 1
          %s133 = smul.addr %s132, 256
          %s134 = scalar_lea.vmem [#allocation2], %s133
          %s135 = smul.u32 8, %s9
          %s136 = smul.addr %s135, 4
          %s137 = scalar_lea.vmem %s1, %s136
          // Predicated region
          $region29: #{soft_q_forward.3} parent=27 // pred_check
            _
          $region30: #{soft_q_forward.3} parent=27 // pred_check_branch
            %139 = sbr.rel (0) target = $region32
          $region31: #{soft_q_forward.3} parent=27 // pred_region
            // Predicated region
            $region33: #{soft_q_forward.3} parent=31 // pred_check
              _
            $region34: #{soft_q_forward.3} parent=31 // pred_check_branch
              %141 = sbr.rel (0) target = $region36
            $region35: #{soft_q_forward.3} parent=31 // pred_region
              loop: start=0, step=1, limit=1
              $region37: #{soft_q_forward.3} parent=35 // loop_pre_header
                _
              $region38: #{soft_q_forward.3} parent=35 // loop_header
                %s143 = sphi 0, %s147
                %p144 = scmp.ge.s32.totalorder %s143, 1
                %s148 = sphi %s137, %s137
                %s149 = sphi %s134, %s134
              $region39: #{soft_q_forward.3} parent=35 // loop_header_branch
                %146 = sbr.rel (%p144) target = $region43
              $region40: #{soft_q_forward.3} parent=35 // loop_body
                %v150 = vld [vmem:[%s148] sm:$0xff]
                %151 = vst [vmem:[%s149] sm:$0xff] %v150
                %v152 = vld [vmem:[%s148 + $0x8] sm:$0xff]
                %153 = vst [vmem:[%s149 + $0x8] sm:$0xff] %v152
                %v154 = vld [vmem:[%s148 + $0x10] sm:$0xff]
                %155 = vst [vmem:[%s149 + $0x10] sm:$0xff] %v154
                %v156 = vld [vmem:[%s148 + $0x18] sm:$0xff]
                %157 = vst [vmem:[%s149 + $0x18] sm:$0xff] %v156
                %v158 = vld [vmem:[%s148 + $0x40] sm:$0xff]
                %159 = vst [vmem:[%s149 + $0x20] sm:$0xff] %v158
                %v160 = vld [vmem:[%s148 + $0x48] sm:$0xff]
                %161 = vst [vmem:[%s149 + $0x28] sm:$0xff] %v160
                %v162 = vld [vmem:[%s148 + $0x50] sm:$0xff]
                %163 = vst [vmem:[%s149 + $0x30] sm:$0xff] %v162
                %v164 = vld [vmem:[%s148 + $0x58] sm:$0xff]
                %165 = vst [vmem:[%s149 + $0x38] sm:$0xff] %v164
                %v166 = vld [vmem:[%s148 + $0x80] sm:$0xff]
                %167 = vst [vmem:[%s149 + $0x40] sm:$0xff] %v166
                %v168 = vld [vmem:[%s148 + $0x88] sm:$0xff]
                %169 = vst [vmem:[%s149 + $0x48] sm:$0xff] %v168
                %v170 = vld [vmem:[%s148 + $0x90] sm:$0xff]
                %171 = vst [vmem:[%s149 + $0x50] sm:$0xff] %v170
                %v172 = vld [vmem:[%s148 + $0x98] sm:$0xff]
                %173 = vst [vmem:[%s149 + $0x58] sm:$0xff] %v172
                %v174 = vld [vmem:[%s148 + $0xc0] sm:$0xff]
                %175 = vst [vmem:[%s149 + $0x60] sm:$0xff] %v174
                %v176 = vld [vmem:[%s148 + $0xc8] sm:$0xff]
                %177 = vst [vmem:[%s149 + $0x68] sm:$0xff] %v176
                %v178 = vld [vmem:[%s148 + $0xd0] sm:$0xff]
                %179 = vst [vmem:[%s149 + $0x70] sm:$0xff] %v178
                %v180 = vld [vmem:[%s148 + $0xd8] sm:$0xff]
                %181 = vst [vmem:[%s149 + $0x78] sm:$0xff] %v180
                %v182 = vld [vmem:[%s148 + $0x100] sm:$0xff]
                %183 = vst [vmem:[%s149 + $0x80] sm:$0xff] %v182
                %v184 = vld [vmem:[%s148 + $0x108] sm:$0xff]
                %185 = vst [vmem:[%s149 + $0x88] sm:$0xff] %v184
                %v186 = vld [vmem:[%s148 + $0x110] sm:$0xff]
                %187 = vst [vmem:[%s149 + $0x90] sm:$0xff] %v186
                %v188 = vld [vmem:[%s148 + $0x118] sm:$0xff]
                %189 = vst [vmem:[%s149 + $0x98] sm:$0xff] %v188
                %v190 = vld [vmem:[%s148 + $0x140] sm:$0xff]
                %191 = vst [vmem:[%s149 + $0xa0] sm:$0xff] %v190
                %v192 = vld [vmem:[%s148 + $0x148] sm:$0xff]
                %193 = vst [vmem:[%s149 + $0xa8] sm:$0xff] %v192
                %v194 = vld [vmem:[%s148 + $0x150] sm:$0xff]
                %195 = vst [vmem:[%s149 + $0xb0] sm:$0xff] %v194
                %v196 = vld [vmem:[%s148 + $0x158] sm:$0xff]
                %197 = vst [vmem:[%s149 + $0xb8] sm:$0xff] %v196
                %v198 = vld [vmem:[%s148 + $0x180] sm:$0xff]
                %199 = vst [vmem:[%s149 + $0xc0] sm:$0xff] %v198
                %v200 = vld [vmem:[%s148 + $0x188] sm:$0xff]
                %201 = vst [vmem:[%s149 + $0xc8] sm:$0xff] %v200
                %v202 = vld [vmem:[%s148 + $0x190] sm:$0xff]
                %203 = vst [vmem:[%s149 + $0xd0] sm:$0xff] %v202
                %v204 = vld [vmem:[%s148 + $0x198] sm:$0xff]
                %205 = vst [vmem:[%s149 + $0xd8] sm:$0xff] %v204
                %v206 = vld [vmem:[%s148 + $0x1c0] sm:$0xff]
                %207 = vst [vmem:[%s149 + $0xe0] sm:$0xff] %v206
                %v208 = vld [vmem:[%s148 + $0x1c8] sm:$0xff]
                %209 = vst [vmem:[%s149 + $0xe8] sm:$0xff] %v208
                %v210 = vld [vmem:[%s148 + $0x1d0] sm:$0xff]
                %211 = vst [vmem:[%s149 + $0xf0] sm:$0xff] %v210
                %v212 = vld [vmem:[%s148 + $0x1d8] sm:$0xff]
                %213 = vst [vmem:[%s149 + $0xf8] sm:$0xff] %v212
              $region41: #{soft_q_forward.3} parent=35 // loop_footer
                %s147 = sadd.s32 1, %s143
              $region42: #{soft_q_forward.3} parent=35 // loop_footer_branch
                %142 = sbr.rel target = $region38
              $region43: #{soft_q_forward.3} parent=35 // loop_exit
                _
            $region36: #{soft_q_forward.3} parent=31 // pred_fallthru
              _
            // Predicated region
            $region44: #{soft_q_forward.3} parent=31 // pred_check
              _
            $region45: #{soft_q_forward.3} parent=31 // pred_check_branch
              %215 = sbr.rel target = $region47
            $region46: #{soft_q_forward.3} parent=31 // pred_region
              _
            $region47: #{soft_q_forward.3} parent=31 // pred_fallthru
              _
          $region32: #{soft_q_forward.3} parent=27 // pred_fallthru
            _
          %216 = vnop
        $region28: #{soft_q_forward.3} parent=23 // pred_fallthru
          _
      $region24: #{soft_q_forward.3} parent=5 // pred_fallthru
        _
      %p217 = scmp.le.s32.totalorder 1, %s9
      %p218 = scmp.lt.s32.totalorder %s9, 3
      %p219 = pnand %p217, %p218
      %p220 = pneg %p219
      // Predicated region
      $region48: #{soft_q_forward.3} parent=5 // pred_check
        _
      $region49: #{soft_q_forward.3} parent=5 // pred_check_branch
        %222 = sbr.rel (%p219) target = $region51
      $region50: #{soft_q_forward.3} parent=5 // pred_region
        %s223 = ssub.s32 %s9, 1
        %s224 = sand.u32 %s43, 1
        %s225 = sand.u32 %s43, 1
        %s226 = smul.addr %s225, 256
        %s227 = scalar_lea.vmem [#allocation2], %s226
        // Predicated region
        $region52: #{soft_q_forward.3} parent=50 // pred_check
          %p228 = pneg %p56
        $region53: #{soft_q_forward.3} parent=50 // pred_check_branch
          %230 = sbr.rel (%p228) target = $region55
        $region54: #{soft_q_forward.3} parent=50 // pred_region
          _
        $region55: #{soft_q_forward.3} parent=50 // pred_fallthru
          _
        %p231 = pneg %p30
        %p232 = pneg %p27
        %s233 = sand.u32 %s43, 1
        %s234 = sand.u32 %s43, 1
        %s235 = smul.addr %s234, 256
        %s236 = scalar_lea.vmem [#allocation2], %s235
        %p237 = pneg %p56
        %p238 = pneg %p53
        %p239 = pneg %p77
        %p240 = pneg %p74
        %p241 = pneg %p103
        %p242 = pneg %p100
        %s243 = sand.u32 %s90, 1
        %s244 = sand.u32 %s90, 1
        %s245 = smul.addr %s244, 128
        %s246 = scalar_lea.vmem [#allocation3], %s245
        %s247 = smul.u32 8, %s14
        %s248 = smul.u32 8, %s14
        %v250 = vld [vmem:[%s0] sm:$0xf]
        %v251 = vld [vmem:[%s0 + $0x4] sm:$0xf]
        %v252 = vld [vmem:[%s0 + $0x8] sm:$0xf]
        %v253 = vld [vmem:[%s0 + $0xc] sm:$0xf]
        %v254 = vld [vmem:[%s227] sm:$0xff]
        %v255 = vld [vmem:[%s227 + $0x8] sm:$0xff]
        %v256 = vld [vmem:[%s227 + $0x10] sm:$0xff]
        %v257 = vld [vmem:[%s227 + $0x18] sm:$0xff]
        %v258 = vld [vmem:[%s227 + $0x20] sm:$0xff]
        %v259 = vld [vmem:[%s227 + $0x28] sm:$0xff]
        %v260 = vld [vmem:[%s227 + $0x30] sm:$0xff]
        %v261 = vld [vmem:[%s227 + $0x38] sm:$0xff]
        %v262 = vld [vmem:[%s227 + $0x40] sm:$0xff]
        %v263 = vld [vmem:[%s227 + $0x48] sm:$0xff]
        %v264 = vld [vmem:[%s227 + $0x50] sm:$0xff]
        %v265 = vld [vmem:[%s227 + $0x58] sm:$0xff]
        %v266 = vld [vmem:[%s227 + $0x60] sm:$0xff]
        %v267 = vld [vmem:[%s227 + $0x68] sm:$0xff]
        %v268 = vld [vmem:[%s227 + $0x70] sm:$0xff]
        %v269 = vld [vmem:[%s227 + $0x78] sm:$0xff]
        %v270 = vld [vmem:[%s227 + $0x80] sm:$0xff]
        %v271 = vld [vmem:[%s227 + $0x88] sm:$0xff]
        %v272 = vld [vmem:[%s227 + $0x90] sm:$0xff]
        %v273 = vld [vmem:[%s227 + $0x98] sm:$0xff]
        %v274 = vld [vmem:[%s227 + $0xa0] sm:$0xff]
        %v275 = vld [vmem:[%s227 + $0xa8] sm:$0xff]
        %v276 = vld [vmem:[%s227 + $0xb0] sm:$0xff]
        %v277 = vld [vmem:[%s227 + $0xb8] sm:$0xff]
        %v278 = vld [vmem:[%s227 + $0xc0] sm:$0xff]
        %v279 = vld [vmem:[%s227 + $0xc8] sm:$0xff]
        %v280 = vld [vmem:[%s227 + $0xd0] sm:$0xff]
        %v281 = vld [vmem:[%s227 + $0xd8] sm:$0xff]
        %v282 = vld [vmem:[%s227 + $0xe0] sm:$0xff]
        %v283 = vld [vmem:[%s227 + $0xe8] sm:$0xff]
        %v284 = vld [vmem:[%s227 + $0xf0] sm:$0xff]
        %v285 = vld [vmem:[%s227 + $0xf8] sm:$0xff]
        %v286 = vld [vmem:[%s2] sm:$0xff]
        %v287 = vld [vmem:[%s2 + $0x8] sm:$0xff]
        %v288 = vld [vmem:[%s2 + $0x10] sm:$0xff]
        %v289 = vld [vmem:[%s2 + $0x18] sm:$0xff]
        %291 = vset.pattern.permute.xlu0 0
        %292 = vperm.xlu0 %291, %v286
        %v293 = vpop.permute.xlu0 %292
        %296 = vset.pattern.permute.xlu0 0
        %297 = vperm.xlu0 %296, %v287
        %v298 = vpop.permute.xlu0 %297
        %301 = vset.pattern.permute.xlu0 0
        %302 = vperm.xlu0 %301, %v288
        %v303 = vpop.permute.xlu0 %302
        %306 = vset.pattern.permute.xlu0 0
        %307 = vperm.xlu0 %306, %v289
        %v308 = vpop.permute.xlu0 %307
        %v314 = vunpack.c.l.b16 %v250
        %v315 = vunpack.c.l.b16 %v251
        %v316 = vunpack.c.l.b16 %v252
        %v317 = vunpack.c.l.b16 %v253
        %v318 = vpack.c.b16 %v315, %v314
        %v319 = vpack.c.b16 %v317, %v316
        %v352 = vunpack.c.l.b16 %v254
        %v353 = vunpack.c.h.b16 %v254
        %v354 = vunpack.c.l.b16 %v255
        %v355 = vunpack.c.h.b16 %v255
        %v356 = vunpack.c.l.b16 %v256
        %v357 = vunpack.c.h.b16 %v256
        %v358 = vunpack.c.l.b16 %v257
        %v359 = vunpack.c.h.b16 %v257
        %v360 = vunpack.c.l.b16 %v258
        %v361 = vunpack.c.h.b16 %v258
        %v362 = vunpack.c.l.b16 %v259
        %v363 = vunpack.c.h.b16 %v259
        %v364 = vunpack.c.l.b16 %v260
        %v365 = vunpack.c.h.b16 %v260
        %v366 = vunpack.c.l.b16 %v261
        %v367 = vunpack.c.h.b16 %v261
        %v368 = vunpack.c.l.b16 %v262
        %v369 = vunpack.c.h.b16 %v262
        %v370 = vunpack.c.l.b16 %v263
        %v371 = vunpack.c.h.b16 %v263
        %v372 = vunpack.c.l.b16 %v264
        %v373 = vunpack.c.h.b16 %v264
        %v374 = vunpack.c.l.b16 %v265
        %v375 = vunpack.c.h.b16 %v265
        %v376 = vunpack.c.l.b16 %v266
        %v377 = vunpack.c.h.b16 %v266
        %v378 = vunpack.c.l.b16 %v267
        %v379 = vunpack.c.h.b16 %v267
        %v380 = vunpack.c.l.b16 %v268
        %v381 = vunpack.c.h.b16 %v268
        %v382 = vunpack.c.l.b16 %v269
        %v383 = vunpack.c.h.b16 %v269
        %v384 = vunpack.c.l.b16 %v270
        %v385 = vunpack.c.h.b16 %v270
        %v386 = vunpack.c.l.b16 %v271
        %v387 = vunpack.c.h.b16 %v271
        %v388 = vunpack.c.l.b16 %v272
        %v389 = vunpack.c.h.b16 %v272
        %v390 = vunpack.c.l.b16 %v273
        %v391 = vunpack.c.h.b16 %v273
        %v392 = vunpack.c.l.b16 %v274
        %v393 = vunpack.c.h.b16 %v274
        %v394 = vunpack.c.l.b16 %v275
        %v395 = vunpack.c.h.b16 %v275
        %v396 = vunpack.c.l.b16 %v276
        %v397 = vunpack.c.h.b16 %v276
        %v398 = vunpack.c.l.b16 %v277
        %v399 = vunpack.c.h.b16 %v277
        %v400 = vunpack.c.l.b16 %v278
        %v401 = vunpack.c.h.b16 %v278
        %v402 = vunpack.c.l.b16 %v279
        %v403 = vunpack.c.h.b16 %v279
        %v404 = vunpack.c.l.b16 %v280
        %v405 = vunpack.c.h.b16 %v280
        %v406 = vunpack.c.l.b16 %v281
        %v407 = vunpack.c.h.b16 %v281
        %v408 = vunpack.c.l.b16 %v282
        %v409 = vunpack.c.h.b16 %v282
        %v410 = vunpack.c.l.b16 %v283
        %v411 = vunpack.c.h.b16 %v283
        %v412 = vunpack.c.l.b16 %v284
        %v413 = vunpack.c.h.b16 %v284
        %v414 = vunpack.c.l.b16 %v285
        %v415 = vunpack.c.h.b16 %v285
        %v416 = vpack.c.b16 %v360, %v352
        %v417 = vpack.c.b16 %v361, %v353
        %v418 = vpack.c.b16 %v362, %v354
        %v419 = vpack.c.b16 %v363, %v355
        %v420 = vpack.c.b16 %v364, %v356
        %v421 = vpack.c.b16 %v365, %v357
        %v422 = vpack.c.b16 %v366, %v358
        %v423 = vpack.c.b16 %v367, %v359
        %v424 = vpack.c.b16 %v376, %v368
        %v425 = vpack.c.b16 %v377, %v369
        %v426 = vpack.c.b16 %v378, %v370
        %v427 = vpack.c.b16 %v379, %v371
        %v428 = vpack.c.b16 %v380, %v372
        %v429 = vpack.c.b16 %v381, %v373
        %v430 = vpack.c.b16 %v382, %v374
        %v431 = vpack.c.b16 %v383, %v375
        %v432 = vpack.c.b16 %v392, %v384
        %v433 = vpack.c.b16 %v393, %v385
        %v434 = vpack.c.b16 %v394, %v386
        %v435 = vpack.c.b16 %v395, %v387
        %v436 = vpack.c.b16 %v396, %v388
        %v437 = vpack.c.b16 %v397, %v389
        %v438 = vpack.c.b16 %v398, %v390
        %v439 = vpack.c.b16 %v399, %v391
        %v440 = vpack.c.b16 %v408, %v400
        %v441 = vpack.c.b16 %v409, %v401
        %v442 = vpack.c.b16 %v410, %v402
        %v443 = vpack.c.b16 %v411, %v403
        %v444 = vpack.c.b16 %v412, %v404
        %v445 = vpack.c.b16 %v413, %v405
        %v446 = vpack.c.b16 %v414, %v406
        %v447 = vpack.c.b16 %v415, %v407
        %vm480 = vcmask 523264
        %v482 = vsel %vm480, %v318, 0
        %v485 = vsel %vm480, %v319, 0
        %487 = vmatprep.subr.bf16.mxu0 0
        %488 = vmatpush1.bf16.msra.mxu0 0
        %489 = vmatprep.subr.bf16.mxu0 0
        %490 = vmatpush1.bf16.msra.mxu0 0
        %491 = vmatprep.subr.bf16.mxu0 0
        %492 = vmatpush1.bf16.msra.mxu0 0
        %493 = vmatprep.subr.bf16.mxu0 0
        %494 = vmatpush1.bf16.msra.mxu0 0
        %495 = vmatprep.subr.bf16.mxu0 %v441
        %496 = vmatpush1.bf16.msra.mxu0 %v440
        %497 = vmatprep.subr.bf16.mxu0 %v433
        %498 = vmatpush1.bf16.msra.mxu0 %v432
        %499 = vmatprep.subr.bf16.mxu0 %v425
        %500 = vmatpush1.bf16.msra.mxu0 %v424
        %501 = vmatprep.subr.bf16.mxu0 %v417
        %502 = vmatpush1.bf16.msra.mxu0 %v416
        %503 = vmatprep.subr.bf16.mxu0 0
        %504 = vmatpush2.bf16.msra.mxu0 0
        %505 = vmatprep.subr.bf16.mxu0 0
        %506 = vmatpush2.bf16.msra.mxu0 0
        %507 = vmatprep.subr.bf16.mxu0 0
        %508 = vmatpush2.bf16.msra.mxu0 0
        %509 = vmatprep.subr.bf16.mxu0 0
        %510 = vmatpush2.bf16.msra.mxu0 0
        %511 = vmatprep.subr.bf16.mxu0 0
        %512 = vmatpush2.bf16.msra.mxu0 0
        %513 = vmatprep.subr.bf16.mxu0 0
        %514 = vmatpush2.bf16.msra.mxu0 0
        %515 = vmatprep.subr.bf16.mxu0 0
        %516 = vmatpush2.bf16.msra.mxu0 0
        %517 = vmatprep.subr.bf16.mxu0 0
        %518 = vmatpush2.bf16.msra.mxu0 0
        %519 = vmatprep.mubr.bf16.mxu0 0
        %520 = vmatmul.mubr.bf16.gmra.mxu0 %v482
        %v521 = vpop.f32.mrf.mxu0
        %v522 = vadd.f32 %v293, %v521
        %v523 = vpop.f32.mrf.mxu0
        %v524 = vadd.f32 %v293, %v523
        %v525 = vpop.f32.mrf.mxu0
        %v526 = vadd.f32 %v298, %v525
        %v527 = vpop.f32.mrf.mxu0
        %v528 = vadd.f32 %v298, %v527
        %529 = vmatprep.mubr.bf16.mxu0 0
        %530 = vmatmul.mubr.bf16.gmra.mxu0 %v485
        %v531 = vpop.f32.mrf.mxu0
        %v532 = vadd.f32 %v303, %v531
        %v533 = vpop.f32.mrf.mxu0
        %v534 = vadd.f32 %v303, %v533
        %v535 = vpop.f32.mrf.mxu0
        %v536 = vadd.f32 %v308, %v535
        %v537 = vpop.f32.mrf.mxu0
        %v538 = vadd.f32 %v308, %v537
        %539 = vdwg.mxu0
        %540 = vmatprep.subr.bf16.mxu0 0
        %541 = vmatpush1.bf16.msra.mxu0 0
        %542 = vmatprep.subr.bf16.mxu0 0
        %543 = vmatpush1.bf16.msra.mxu0 0
        %544 = vmatprep.subr.bf16.mxu0 0
        %545 = vmatpush1.bf16.msra.mxu0 0
        %546 = vmatprep.subr.bf16.mxu0 0
        %547 = vmatpush1.bf16.msra.mxu0 0
        %548 = vmatprep.subr.bf16.mxu0 %v443
        %549 = vmatpush1.bf16.msra.mxu0 %v442
        %550 = vmatprep.subr.bf16.mxu0 %v435
        %551 = vmatpush1.bf16.msra.mxu0 %v434
        %552 = vmatprep.subr.bf16.mxu0 %v427
        %553 = vmatpush1.bf16.msra.mxu0 %v426
        %554 = vmatprep.subr.bf16.mxu0 %v419
        %555 = vmatpush1.bf16.msra.mxu0 %v418
        %556 = vmatprep.subr.bf16.mxu0 0
        %557 = vmatpush2.bf16.msra.mxu0 0
        %558 = vmatprep.subr.bf16.mxu0 0
        %559 = vmatpush2.bf16.msra.mxu0 0
        %560 = vmatprep.subr.bf16.mxu0 0
        %561 = vmatpush2.bf16.msra.mxu0 0
        %562 = vmatprep.subr.bf16.mxu0 0
        %563 = vmatpush2.bf16.msra.mxu0 0
        %564 = vmatprep.subr.bf16.mxu0 0
        %565 = vmatpush2.bf16.msra.mxu0 0
        %566 = vmatprep.subr.bf16.mxu0 0
        %567 = vmatpush2.bf16.msra.mxu0 0
        %568 = vmatprep.subr.bf16.mxu0 0
        %569 = vmatpush2.bf16.msra.mxu0 0
        %570 = vmatprep.subr.bf16.mxu0 0
        %571 = vmatpush2.bf16.msra.mxu0 0
        %572 = vmatprep.mubr.bf16.mxu0 0
        %573 = vmatmul.mubr.bf16.gmra.mxu0 %v482
        %v574 = vpop.f32.mrf.mxu0
        %v575 = vadd.f32 %v293, %v574
        %v576 = vpop.f32.mrf.mxu0
        %v577 = vadd.f32 %v293, %v576
        %v578 = vpop.f32.mrf.mxu0
        %v579 = vadd.f32 %v298, %v578
        %v580 = vpop.f32.mrf.mxu0
        %v581 = vadd.f32 %v298, %v580
        %582 = vmatprep.mubr.bf16.mxu0 0
        %583 = vmatmul.mubr.bf16.gmra.mxu0 %v485
        %v584 = vpop.f32.mrf.mxu0
        %v585 = vadd.f32 %v303, %v584
        %v586 = vpop.f32.mrf.mxu0
        %v587 = vadd.f32 %v303, %v586
        %v588 = vpop.f32.mrf.mxu0
        %v589 = vadd.f32 %v308, %v588
        %v590 = vpop.f32.mrf.mxu0
        %v591 = vadd.f32 %v308, %v590
        %592 = vdwg.mxu0
        %593 = vmatprep.subr.bf16.mxu0 0
        %594 = vmatpush1.bf16.msra.mxu0 0
        %595 = vmatprep.subr.bf16.mxu0 0
        %596 = vmatpush1.bf16.msra.mxu0 0
        %597 = vmatprep.subr.bf16.mxu0 0
        %598 = vmatpush1.bf16.msra.mxu0 0
        %599 = vmatprep.subr.bf16.mxu0 0
        %600 = vmatpush1.bf16.msra.mxu0 0
        %601 = vmatprep.subr.bf16.mxu0 %v445
        %602 = vmatpush1.bf16.msra.mxu0 %v444
        %603 = vmatprep.subr.bf16.mxu0 %v437
        %604 = vmatpush1.bf16.msra.mxu0 %v436
        %605 = vmatprep.subr.bf16.mxu0 %v429
        %606 = vmatpush1.bf16.msra.mxu0 %v428
        %607 = vmatprep.subr.bf16.mxu0 %v421
        %608 = vmatpush1.bf16.msra.mxu0 %v420
        %609 = vmatprep.subr.bf16.mxu0 0
        %610 = vmatpush2.bf16.msra.mxu0 0
        %611 = vmatprep.subr.bf16.mxu0 0
        %612 = vmatpush2.bf16.msra.mxu0 0
        %613 = vmatprep.subr.bf16.mxu0 0
        %614 = vmatpush2.bf16.msra.mxu0 0
        %615 = vmatprep.subr.bf16.mxu0 0
        %616 = vmatpush2.bf16.msra.mxu0 0
        %617 = vmatprep.subr.bf16.mxu0 0
        %618 = vmatpush2.bf16.msra.mxu0 0
        %619 = vmatprep.subr.bf16.mxu0 0
        %620 = vmatpush2.bf16.msra.mxu0 0
        %621 = vmatprep.subr.bf16.mxu0 0
        %622 = vmatpush2.bf16.msra.mxu0 0
        %623 = vmatprep.subr.bf16.mxu0 0
        %624 = vmatpush2.bf16.msra.mxu0 0
        %625 = vmatprep.mubr.bf16.mxu0 0
        %626 = vmatmul.mubr.bf16.gmra.mxu0 %v482
        %v627 = vpop.f32.mrf.mxu0
        %v628 = vadd.f32 %v293, %v627
        %v629 = vpop.f32.mrf.mxu0
        %v630 = vadd.f32 %v293, %v629
        %v631 = vpop.f32.mrf.mxu0
        %v632 = vadd.f32 %v298, %v631
        %v633 = vpop.f32.mrf.mxu0
        %v634 = vadd.f32 %v298, %v633
        %635 = vmatprep.mubr.bf16.mxu0 0
        %636 = vmatmul.mubr.bf16.gmra.mxu0 %v485
        %v637 = vpop.f32.mrf.mxu0
        %v638 = vadd.f32 %v303, %v637
        %v639 = vpop.f32.mrf.mxu0
        %v640 = vadd.f32 %v303, %v639
        %v641 = vpop.f32.mrf.mxu0
        %v642 = vadd.f32 %v308, %v641
        %v643 = vpop.f32.mrf.mxu0
        %v644 = vadd.f32 %v308, %v643
        %645 = vdwg.mxu0
        %646 = vmatprep.subr.bf16.mxu0 0
        %647 = vmatpush1.bf16.msra.mxu0 0
        %648 = vmatprep.subr.bf16.mxu0 0
        %649 = vmatpush1.bf16.msra.mxu0 0
        %650 = vmatprep.subr.bf16.mxu0 0
        %651 = vmatpush1.bf16.msra.mxu0 0
        %652 = vmatprep.subr.bf16.mxu0 0
        %653 = vmatpush1.bf16.msra.mxu0 0
        %654 = vmatprep.subr.bf16.mxu0 %v447
        %655 = vmatpush1.bf16.msra.mxu0 %v446
        %656 = vmatprep.subr.bf16.mxu0 %v439
        %657 = vmatpush1.bf16.msra.mxu0 %v438
        %658 = vmatprep.subr.bf16.mxu0 %v431
        %659 = vmatpush1.bf16.msra.mxu0 %v430
        %660 = vmatprep.subr.bf16.mxu0 %v423
        %661 = vmatpush1.bf16.msra.mxu0 %v422
        %662 = vmatprep.subr.bf16.mxu0 0
        %663 = vmatpush2.bf16.msra.mxu0 0
        %664 = vmatprep.subr.bf16.mxu0 0
        %665 = vmatpush2.bf16.msra.mxu0 0
        %666 = vmatprep.subr.bf16.mxu0 0
        %667 = vmatpush2.bf16.msra.mxu0 0
        %668 = vmatprep.subr.bf16.mxu0 0
        %669 = vmatpush2.bf16.msra.mxu0 0
        %670 = vmatprep.subr.bf16.mxu0 0
        %671 = vmatpush2.bf16.msra.mxu0 0
        %672 = vmatprep.subr.bf16.mxu0 0
        %673 = vmatpush2.bf16.msra.mxu0 0
        %674 = vmatprep.subr.bf16.mxu0 0
        %675 = vmatpush2.bf16.msra.mxu0 0
        %676 = vmatprep.subr.bf16.mxu0 0
        %677 = vmatpush2.bf16.msra.mxu0 0
        %678 = vmatprep.mubr.bf16.mxu0 0
        %679 = vmatmul.mubr.bf16.gmra.mxu0 %v482
        %v680 = vpop.f32.mrf.mxu0
        %v681 = vadd.f32 %v293, %v680
        %v682 = vpop.f32.mrf.mxu0
        %v683 = vadd.f32 %v293, %v682
        %v684 = vpop.f32.mrf.mxu0
        %v685 = vadd.f32 %v298, %v684
        %v686 = vpop.f32.mrf.mxu0
        %v687 = vadd.f32 %v298, %v686
        %688 = vmatprep.mubr.bf16.mxu0 0
        %689 = vmatmul.mubr.bf16.gmra.mxu0 %v485
        %v690 = vpop.f32.mrf.mxu0
        %v691 = vadd.f32 %v303, %v690
        %v692 = vpop.f32.mrf.mxu0
        %v693 = vadd.f32 %v303, %v692
        %v694 = vpop.f32.mrf.mxu0
        %v695 = vadd.f32 %v308, %v694
        %v696 = vpop.f32.mrf.mxu0
        %v697 = vadd.f32 %v308, %v696
        %698 = vdwg.mxu0
        %v699 = vmax.f32 %v522, 0.0
        %v700 = vmax.f32 %v524, 0.0
        %v701 = vmax.f32 %v575, 0.0
        %v702 = vmax.f32 %v577, 0.0
        %v703 = vmax.f32 %v628, 0.0
        %v704 = vmax.f32 %v630, 0.0
        %v705 = vmax.f32 %v681, 0.0
        %v706 = vmax.f32 %v683, 0.0
        %v707 = vmax.f32 %v526, 0.0
        %v708 = vmax.f32 %v528, 0.0
        %v709 = vmax.f32 %v579, 0.0
        %v710 = vmax.f32 %v581, 0.0
        %v711 = vmax.f32 %v632, 0.0
        %v712 = vmax.f32 %v634, 0.0
        %v713 = vmax.f32 %v685, 0.0
        %v714 = vmax.f32 %v687, 0.0
        %v715 = vmax.f32 %v532, 0.0
        %v716 = vmax.f32 %v534, 0.0
        %v717 = vmax.f32 %v585, 0.0
        %v718 = vmax.f32 %v587, 0.0
        %v719 = vmax.f32 %v638, 0.0
        %v720 = vmax.f32 %v640, 0.0
        %v721 = vmax.f32 %v691, 0.0
        %v722 = vmax.f32 %v693, 0.0
        %v723 = vmax.f32 %v536, 0.0
        %v724 = vmax.f32 %v538, 0.0
        %v725 = vmax.f32 %v589, 0.0
        %v726 = vmax.f32 %v591, 0.0
        %v727 = vmax.f32 %v642, 0.0
        %v728 = vmax.f32 %v644, 0.0
        %v729 = vmax.f32 %v695, 0.0
        %v730 = vmax.f32 %v697, 0.0
        %v731 = vpack.c.bf16 %v707, %v699
        %v732 = vpack.c.bf16 %v708, %v700
        %v733 = vpack.c.bf16 %v709, %v701
        %v734 = vpack.c.bf16 %v710, %v702
        %v735 = vpack.c.bf16 %v711, %v703
        %v736 = vpack.c.bf16 %v712, %v704
        %v737 = vpack.c.bf16 %v713, %v705
        %v738 = vpack.c.bf16 %v714, %v706
        %v739 = vpack.c.bf16 %v723, %v715
        %v740 = vpack.c.bf16 %v724, %v716
        %v741 = vpack.c.bf16 %v725, %v717
        %v742 = vpack.c.bf16 %v726, %v718
        %v743 = vpack.c.bf16 %v727, %v719
        %v744 = vpack.c.bf16 %v728, %v720
        %v745 = vpack.c.bf16 %v729, %v721
        %v746 = vpack.c.bf16 %v730, %v722
        %v763 = vunpack.c.l.b16 %v731
        %v764 = vunpack.c.l.b16 %v732
        %v765 = vunpack.c.l.b16 %v733
        %v766 = vunpack.c.l.b16 %v734
        %v767 = vunpack.c.l.b16 %v735
        %v768 = vunpack.c.l.b16 %v736
        %v769 = vunpack.c.l.b16 %v737
        %v770 = vunpack.c.l.b16 %v738
        %v771 = vunpack.c.h.b16 %v731
        %v772 = vunpack.c.h.b16 %v732
        %v773 = vunpack.c.h.b16 %v733
        %v774 = vunpack.c.h.b16 %v734
        %v775 = vunpack.c.h.b16 %v735
        %v776 = vunpack.c.h.b16 %v736
        %v777 = vunpack.c.h.b16 %v737
        %v778 = vunpack.c.h.b16 %v738
        %v779 = vunpack.c.l.b16 %v739
        %v780 = vunpack.c.l.b16 %v740
        %v781 = vunpack.c.l.b16 %v741
        %v782 = vunpack.c.l.b16 %v742
        %v783 = vunpack.c.l.b16 %v743
        %v784 = vunpack.c.l.b16 %v744
        %v785 = vunpack.c.l.b16 %v745
        %v786 = vunpack.c.l.b16 %v746
        %v787 = vunpack.c.h.b16 %v739
        %v788 = vunpack.c.h.b16 %v740
        %v789 = vunpack.c.h.b16 %v741
        %v790 = vunpack.c.h.b16 %v742
        %v791 = vunpack.c.h.b16 %v743
        %v792 = vunpack.c.h.b16 %v744
        %v793 = vunpack.c.h.b16 %v745
        %v794 = vunpack.c.h.b16 %v746
        %v795 = vpack.c.b16 %v764, %v763
        %v796 = vpack.c.b16 %v766, %v765
        %v797 = vpack.c.b16 %v768, %v767
        %v798 = vpack.c.b16 %v770, %v769
        %v799 = vpack.c.b16 %v772, %v771
        %v800 = vpack.c.b16 %v774, %v773
        %v801 = vpack.c.b16 %v776, %v775
        %v802 = vpack.c.b16 %v778, %v777
        %v803 = vpack.c.b16 %v780, %v779
        %v804 = vpack.c.b16 %v782, %v781
        %v805 = vpack.c.b16 %v784, %v783
        %v806 = vpack.c.b16 %v786, %v785
        %v807 = vpack.c.b16 %v788, %v787
        %v808 = vpack.c.b16 %v790, %v789
        %v809 = vpack.c.b16 %v792, %v791
        %v810 = vpack.c.b16 %v794, %v793
        %827 = vst [vmem:[%s246] sm:$0xff] %v795
        %828 = vst [vmem:[%s246 + $0x8] sm:$0xff] %v796
        %829 = vst [vmem:[%s246 + $0x10] sm:$0xff] %v797
        %830 = vst [vmem:[%s246 + $0x18] sm:$0xff] %v798
        %831 = vst [vmem:[%s246 + $0x20] sm:$0xff] %v799
        %832 = vst [vmem:[%s246 + $0x28] sm:$0xff] %v800
        %833 = vst [vmem:[%s246 + $0x30] sm:$0xff] %v801
        %834 = vst [vmem:[%s246 + $0x38] sm:$0xff] %v802
        %835 = vst [vmem:[%s246 + $0x40] sm:$0xff] %v803
        %836 = vst [vmem:[%s246 + $0x48] sm:$0xff] %v804
        %837 = vst [vmem:[%s246 + $0x50] sm:$0xff] %v805
        %838 = vst [vmem:[%s246 + $0x58] sm:$0xff] %v806
        %839 = vst [vmem:[%s246 + $0x60] sm:$0xff] %v807
        %840 = vst [vmem:[%s246 + $0x68] sm:$0xff] %v808
        %841 = vst [vmem:[%s246 + $0x70] sm:$0xff] %v809
        %842 = vst [vmem:[%s246 + $0x78] sm:$0xff] %v810
        %s843 = sand.u32 %s90, 1
        %s844 = sand.u32 %s90, 1
        %s845 = smul.addr %s844, 128
        %s846 = scalar_lea.vmem [#allocation3], %s845
        // Predicated region
        $region56: #{soft_q_forward.3} parent=50 // pred_check
          %p847 = pneg %p100
        $region57: #{soft_q_forward.3} parent=50 // pred_check_branch
          %849 = sbr.rel (%p847) target = $region59
        $region58: #{soft_q_forward.3} parent=50 // pred_region
          %s850 = smul.u32 8, %s14
          %s851 = smul.addr %s850, 4
          %s852 = scalar_lea.vmem %s3, %s851
          // Predicated region
          $region60: #{soft_q_forward.3} parent=58 // pred_check
            _
          $region61: #{soft_q_forward.3} parent=58 // pred_check_branch
            %854 = sbr.rel (0) target = $region63
          $region62: #{soft_q_forward.3} parent=58 // pred_region
            // Predicated region
            $region64: #{soft_q_forward.3} parent=62 // pred_check
              _
            $region65: #{soft_q_forward.3} parent=62 // pred_check_branch
              %856 = sbr.rel (0) target = $region67
            $region66: #{soft_q_forward.3} parent=62 // pred_region
              loop: start=0, step=1, limit=1
              $region68: #{soft_q_forward.3} parent=66 // loop_pre_header
                _
              $region69: #{soft_q_forward.3} parent=66 // loop_header
                %s858 = sphi 0, %s862
                %p859 = scmp.ge.s32.totalorder %s858, 1
                %s863 = sphi %s846, %s846
                %s864 = sphi %s852, %s852
              $region70: #{soft_q_forward.3} parent=66 // loop_header_branch
                %861 = sbr.rel (%p859) target = $region74
              $region71: #{soft_q_forward.3} parent=66 // loop_body
                %v865 = vld [vmem:[%s863] sm:$0xff]
                %866 = vst [vmem:[%s864] sm:$0xff] %v865
                %v867 = vld [vmem:[%s863 + $0x8] sm:$0xff]
                %868 = vst [vmem:[%s864 + $0x8] sm:$0xff] %v867
                %v869 = vld [vmem:[%s863 + $0x10] sm:$0xff]
                %870 = vst [vmem:[%s864 + $0x10] sm:$0xff] %v869
                %v871 = vld [vmem:[%s863 + $0x18] sm:$0xff]
                %872 = vst [vmem:[%s864 + $0x18] sm:$0xff] %v871
                %v873 = vld [vmem:[%s863 + $0x20] sm:$0xff]
                %874 = vst [vmem:[%s864 + $0x40] sm:$0xff] %v873
                %v875 = vld [vmem:[%s863 + $0x28] sm:$0xff]
                %876 = vst [vmem:[%s864 + $0x48] sm:$0xff] %v875
                %v877 = vld [vmem:[%s863 + $0x30] sm:$0xff]
                %878 = vst [vmem:[%s864 + $0x50] sm:$0xff] %v877
                %v879 = vld [vmem:[%s863 + $0x38] sm:$0xff]
                %880 = vst [vmem:[%s864 + $0x58] sm:$0xff] %v879
                %v881 = vld [vmem:[%s863 + $0x40] sm:$0xff]
                %882 = vst [vmem:[%s864 + $0x80] sm:$0xff] %v881
                %v883 = vld [vmem:[%s863 + $0x48] sm:$0xff]
                %884 = vst [vmem:[%s864 + $0x88] sm:$0xff] %v883
                %v885 = vld [vmem:[%s863 + $0x50] sm:$0xff]
                %886 = vst [vmem:[%s864 + $0x90] sm:$0xff] %v885
                %v887 = vld [vmem:[%s863 + $0x58] sm:$0xff]
                %888 = vst [vmem:[%s864 + $0x98] sm:$0xff] %v887
                %v889 = vld [vmem:[%s863 + $0x60] sm:$0xff]
                %890 = vst [vmem:[%s864 + $0xc0] sm:$0xff] %v889
                %v891 = vld [vmem:[%s863 + $0x68] sm:$0xff]
                %892 = vst [vmem:[%s864 + $0xc8] sm:$0xff] %v891
                %v893 = vld [vmem:[%s863 + $0x70] sm:$0xff]
                %894 = vst [vmem:[%s864 + $0xd0] sm:$0xff] %v893
                %v895 = vld [vmem:[%s863 + $0x78] sm:$0xff]
                %896 = vst [vmem:[%s864 + $0xd8] sm:$0xff] %v895
              $region72: #{soft_q_forward.3} parent=66 // loop_footer
                %s862 = sadd.s32 1, %s858
              $region73: #{soft_q_forward.3} parent=66 // loop_footer_branch
                %857 = sbr.rel target = $region69
              $region74: #{soft_q_forward.3} parent=66 // loop_exit
                _
            $region67: #{soft_q_forward.3} parent=62 // pred_fallthru
              _
            // Predicated region
            $region75: #{soft_q_forward.3} parent=62 // pred_check
              _
            $region76: #{soft_q_forward.3} parent=62 // pred_check_branch
              %898 = sbr.rel target = $region78
            $region77: #{soft_q_forward.3} parent=62 // pred_region
              _
            $region78: #{soft_q_forward.3} parent=62 // pred_fallthru
              _
          $region63: #{soft_q_forward.3} parent=58 // pred_fallthru
            _
          %899 = vnop
        $region59: #{soft_q_forward.3} parent=50 // pred_fallthru
          _
      $region51: #{soft_q_forward.3} parent=5 // pred_fallthru
        _
      %p900 = scmp.le.s32.totalorder 2, %s9
      // Predicated region
      $region79: #{soft_q_forward.3} parent=5 // pred_check
        %p901 = pneg %p900
      $region80: #{soft_q_forward.3} parent=5 // pred_check_branch
        %903 = sbr.rel (%p901) target = $region82
      $region81: #{soft_q_forward.3} parent=5 // pred_region
        %s904 = ssub.s32 %s9, 2
        // Predicated region
        $region83: #{soft_q_forward.3} parent=81 // pred_check
          %p905 = pneg %p106
        $region84: #{soft_q_forward.3} parent=81 // pred_check_branch
          %907 = sbr.rel (%p905) target = $region86
        $region85: #{soft_q_forward.3} parent=81 // pred_region
          %s908 = sand.u32 %s91, 1
          %s909 = sand.u32 %s91, 1
          %s910 = smul.addr %s909, 128
          %s911 = scalar_lea.vmem [#allocation3], %s910
        $region86: #{soft_q_forward.3} parent=81 // pred_fallthru
          _
      $region82: #{soft_q_forward.3} parent=5 // pred_fallthru
        _
    $region6: #{soft_q_forward.3} parent=1 // loop_footer
      %s13 = sadd.s32 1, %s9
    $region7: #{soft_q_forward.3} parent=1 // loop_footer_branch
      %8 = sbr.rel target = $region3
    $region8: #{soft_q_forward.3} parent=1 // loop_exit
      _

// kernel: soft_q_forward.4
$region0: #{soft_q_forward.4}
  #allocation0 [shape = 'u32[]', space=smem, size = 0x4, offset = 0x4, fixed_abs, tag = 'smem constant byte address 0x4 - core index']
  #allocation1 [shape = 'u32[144,128]{1,0:T(1,128)}', space=vmem, size = 0x12000, scoped, tag = 'internal scratch']
  %s0 = inlined_call_operand.vmem [shape: bf16[32,288], index: 0, kind: input, shape index: {}]
  %s1 = inlined_call_operand.vmem [shape: bf16[288,512], index: 1, kind: input, shape index: {}]
  %s2 = inlined_call_operand.vmem [shape: f32[32,1], index: 2, kind: input, shape index: {}]
  %s3 = inlined_call_operand.vmem [shape: bf16[32,512], index: 3, kind: output, shape index: {}]
  %s4 = sld [smem:[#allocation0]]
  $region22: #{soft_q_forward.4} parent=0
    _
  %s6 = ssub.s32 1, %s4
  %s7 = scalar_select 0, %s6, %s4
  // Predicated region
  $region2: #{soft_q_forward.4} parent=0 // pred_check
    _
  $region3: #{soft_q_forward.4} parent=0 // pred_check_branch
    %9 = sbr.rel (0) target = $region5
  $region4: #{soft_q_forward.4} parent=0 // pred_region
    _
  $region5: #{soft_q_forward.4} parent=0 // pred_fallthru
    _
  // Predicated region
  $region6: #{soft_q_forward.4} parent=0 // pred_check
    _
  $region7: #{soft_q_forward.4} parent=0 // pred_check_branch
    %11 = sbr.rel (0) target = $region9
  $region8: #{soft_q_forward.4} parent=0 // pred_region
    _
  $region9: #{soft_q_forward.4} parent=0 // pred_fallthru
    _
  // Predicated region
  $region10: #{soft_q_forward.4} parent=0 // pred_check
    _
  $region11: #{soft_q_forward.4} parent=0 // pred_check_branch
    %13 = sbr.rel (0) target = $region13
  $region12: #{soft_q_forward.4} parent=0 // pred_region
    _
  $region13: #{soft_q_forward.4} parent=0 // pred_fallthru
    _
  %v15 = vld [vmem:[%s0] sm:$0xff]
  %v16 = vld [vmem:[%s0 + $0x8] sm:$0xf]
  %v17 = vld [vmem:[%s0 + $0xc] sm:$0xff]
  %v18 = vld [vmem:[%s0 + $0x14] sm:$0xf]
  %v19 = vld [vmem:[%s0 + $0x18] sm:$0xff]
  %v20 = vld [vmem:[%s0 + $0x20] sm:$0xf]
  %v21 = vld [vmem:[%s0 + $0x24] sm:$0xff]
  %v22 = vld [vmem:[%s0 + $0x2c] sm:$0xf]
  %v23 = vld [vmem:[%s1] sm:$0xff]
  %v24 = vld [vmem:[%s1 + $0x8] sm:$0xff]
  %v25 = vld [vmem:[%s1 + $0x10] sm:$0xff]
  %v26 = vld [vmem:[%s1 + $0x18] sm:$0xff]
  %v27 = vld [vmem:[%s1 + $0x20] sm:$0xff]
  %v28 = vld [vmem:[%s1 + $0x28] sm:$0xff]
  %v29 = vld [vmem:[%s1 + $0x30] sm:$0xff]
  %v30 = vld [vmem:[%s1 + $0x38] sm:$0xff]
  %v31 = vld [vmem:[%s1 + $0x40] sm:$0xff]
  %v32 = vld [vmem:[%s1 + $0x48] sm:$0xff]
  %v33 = vld [vmem:[%s1 + $0x50] sm:$0xff]
  %v34 = vld [vmem:[%s1 + $0x58] sm:$0xff]
  %v35 = vld [vmem:[%s1 + $0x60] sm:$0xff]
  %v36 = vld [vmem:[%s1 + $0x68] sm:$0xff]
  %v37 = vld [vmem:[%s1 + $0x70] sm:$0xff]
  %v38 = vld [vmem:[%s1 + $0x78] sm:$0xff]
  %v39 = vld [vmem:[%s1 + $0x80] sm:$0xff]
  %v40 = vld [vmem:[%s1 + $0x88] sm:$0xff]
  %v41 = vld [vmem:[%s1 + $0x90] sm:$0xff]
  %v42 = vld [vmem:[%s1 + $0x98] sm:$0xff]
  %v43 = vld [vmem:[%s1 + $0xa0] sm:$0xff]
  %v44 = vld [vmem:[%s1 + $0xa8] sm:$0xff]
  %v45 = vld [vmem:[%s1 + $0xb0] sm:$0xff]
  %v46 = vld [vmem:[%s1 + $0xb8] sm:$0xff]
  %v47 = vld [vmem:[%s1 + $0xc0] sm:$0xff]
  %v48 = vld [vmem:[%s1 + $0xc8] sm:$0xff]
  %v49 = vld [vmem:[%s1 + $0xd0] sm:$0xff]
  %v50 = vld [vmem:[%s1 + $0xd8] sm:$0xff]
  %v51 = vld [vmem:[%s1 + $0xe0] sm:$0xff]
  %v52 = vld [vmem:[%s1 + $0xe8] sm:$0xff]
  %v53 = vld [vmem:[%s1 + $0xf0] sm:$0xff]
  %v54 = vld [vmem:[%s1 + $0xf8] sm:$0xff]
  %v55 = vld [vmem:[%s1 + $0x100] sm:$0xff]
  %v56 = vld [vmem:[%s1 + $0x108] sm:$0xff]
  %v57 = vld [vmem:[%s1 + $0x110] sm:$0xff]
  %v58 = vld [vmem:[%s1 + $0x118] sm:$0xff]
  %v59 = vld [vmem:[%s1 + $0x120] sm:$0xff]
  %v60 = vld [vmem:[%s1 + $0x128] sm:$0xff]
  %v61 = vld [vmem:[%s1 + $0x130] sm:$0xff]
  %v62 = vld [vmem:[%s1 + $0x138] sm:$0xff]
  %v63 = vld [vmem:[%s1 + $0x140] sm:$0xff]
  %v64 = vld [vmem:[%s1 + $0x148] sm:$0xff]
  %v65 = vld [vmem:[%s1 + $0x150] sm:$0xff]
  %v66 = vld [vmem:[%s1 + $0x158] sm:$0xff]
  %v67 = vld [vmem:[%s1 + $0x160] sm:$0xff]
  %v68 = vld [vmem:[%s1 + $0x168] sm:$0xff]
  %v69 = vld [vmem:[%s1 + $0x170] sm:$0xff]
  %v70 = vld [vmem:[%s1 + $0x178] sm:$0xff]
  %v71 = vld [vmem:[%s1 + $0x180] sm:$0xff]
  %v72 = vld [vmem:[%s1 + $0x188] sm:$0xff]
  %v73 = vld [vmem:[%s1 + $0x190] sm:$0xff]
  %v74 = vld [vmem:[%s1 + $0x198] sm:$0xff]
  %v75 = vld [vmem:[%s1 + $0x1a0] sm:$0xff]
  %v76 = vld [vmem:[%s1 + $0x1a8] sm:$0xff]
  %v77 = vld [vmem:[%s1 + $0x1b0] sm:$0xff]
  %v78 = vld [vmem:[%s1 + $0x1b8] sm:$0xff]
  %v79 = vld [vmem:[%s1 + $0x1c0] sm:$0xff]
  %v80 = vld [vmem:[%s1 + $0x1c8] sm:$0xff]
  %v81 = vld [vmem:[%s1 + $0x1d0] sm:$0xff]
  %v82 = vld [vmem:[%s1 + $0x1d8] sm:$0xff]
  %v83 = vld [vmem:[%s1 + $0x1e0] sm:$0xff]
  %v84 = vld [vmem:[%s1 + $0x1e8] sm:$0xff]
  %v85 = vld [vmem:[%s1 + $0x1f0] sm:$0xff]
  %v86 = vld [vmem:[%s1 + $0x1f8] sm:$0xff]
  %v87 = vld [vmem:[%s1 + $0x200] sm:$0xff]
  %v88 = vld [vmem:[%s1 + $0x208] sm:$0xff]
  %v89 = vld [vmem:[%s1 + $0x210] sm:$0xff]
  %v90 = vld [vmem:[%s1 + $0x218] sm:$0xff]
  %v91 = vld [vmem:[%s1 + $0x220] sm:$0xff]
  %v92 = vld [vmem:[%s1 + $0x228] sm:$0xff]
  %v93 = vld [vmem:[%s1 + $0x230] sm:$0xff]
  %v94 = vld [vmem:[%s1 + $0x238] sm:$0xff]
  %v95 = vld [vmem:[%s2] sm:$0xff]
  %v96 = vld [vmem:[%s2 + $0x8] sm:$0xff]
  %v97 = vld [vmem:[%s2 + $0x10] sm:$0xff]
  %v98 = vld [vmem:[%s2 + $0x18] sm:$0xff]
  %100 = vset.pattern.permute.xlu0 0
  %101 = vperm.xlu0 %100, %v95
  %v102 = vpop.permute.xlu0 %101
  %105 = vset.pattern.permute.xlu0 0
  %106 = vperm.xlu0 %105, %v96
  %v107 = vpop.permute.xlu0 %106
  %110 = vset.pattern.permute.xlu0 0
  %111 = vperm.xlu0 %110, %v97
  %v112 = vpop.permute.xlu0 %111
  %115 = vset.pattern.permute.xlu0 0
  %116 = vperm.xlu0 %115, %v98
  %v117 = vpop.permute.xlu0 %116
  %v127 = vunpack.c.l.b16 %v15
  %v128 = vunpack.c.h.b16 %v15
  %v129 = vunpack.c.l.b16 %v16
  %v130 = vunpack.c.l.b16 %v17
  %v131 = vunpack.c.h.b16 %v17
  %v132 = vunpack.c.l.b16 %v18
  %v133 = vunpack.c.l.b16 %v19
  %v134 = vunpack.c.h.b16 %v19
  %v135 = vunpack.c.l.b16 %v20
  %v136 = vunpack.c.l.b16 %v21
  %v137 = vunpack.c.h.b16 %v21
  %v138 = vunpack.c.l.b16 %v22
  %v139 = vpack.c.b16 %v130, %v127
  %v140 = vpack.c.b16 %v131, %v128
  %v141 = vpack.c.b16 %v132, %v129
  %v142 = vpack.c.b16 %v136, %v133
  %v143 = vpack.c.b16 %v137, %v134
  %v144 = vpack.c.b16 %v138, %v135
  %v221 = vunpack.c.l.b16 %v23
  %v222 = vunpack.c.h.b16 %v23
  %v223 = vunpack.c.l.b16 %v24
  %v224 = vunpack.c.h.b16 %v24
  %v225 = vunpack.c.l.b16 %v25
  %v226 = vunpack.c.h.b16 %v25
  %v227 = vunpack.c.l.b16 %v26
  %v228 = vunpack.c.h.b16 %v26
  %v229 = vunpack.c.l.b16 %v27
  %v230 = vunpack.c.h.b16 %v27
  %v231 = vunpack.c.l.b16 %v28
  %v232 = vunpack.c.h.b16 %v28
  %v233 = vunpack.c.l.b16 %v29
  %v234 = vunpack.c.h.b16 %v29
  %v235 = vunpack.c.l.b16 %v30
  %v236 = vunpack.c.h.b16 %v30
  %v237 = vunpack.c.l.b16 %v31
  %v238 = vunpack.c.h.b16 %v31
  %v239 = vunpack.c.l.b16 %v32
  %v240 = vunpack.c.h.b16 %v32
  %v241 = vunpack.c.l.b16 %v33
  %v242 = vunpack.c.h.b16 %v33
  %v243 = vunpack.c.l.b16 %v34
  %v244 = vunpack.c.h.b16 %v34
  %v245 = vunpack.c.l.b16 %v35
  %v246 = vunpack.c.h.b16 %v35
  %v247 = vunpack.c.l.b16 %v36
  %v248 = vunpack.c.h.b16 %v36
  %v249 = vunpack.c.l.b16 %v37
  %v250 = vunpack.c.h.b16 %v37
  %v251 = vunpack.c.l.b16 %v38
  %v252 = vunpack.c.h.b16 %v38
  %v253 = vunpack.c.l.b16 %v39
  %v254 = vunpack.c.h.b16 %v39
  %v255 = vunpack.c.l.b16 %v40
  %v256 = vunpack.c.h.b16 %v40
  %v257 = vunpack.c.l.b16 %v41
  %v258 = vunpack.c.h.b16 %v41
  %v259 = vunpack.c.l.b16 %v42
  %v260 = vunpack.c.h.b16 %v42
  %v261 = vunpack.c.l.b16 %v43
  %v262 = vunpack.c.h.b16 %v43
  %v263 = vunpack.c.l.b16 %v44
  %v264 = vunpack.c.h.b16 %v44
  %v265 = vunpack.c.l.b16 %v45
  %v266 = vunpack.c.h.b16 %v45
  %v267 = vunpack.c.l.b16 %v46
  %v268 = vunpack.c.h.b16 %v46
  %v269 = vunpack.c.l.b16 %v47
  %v270 = vunpack.c.h.b16 %v47
  %v271 = vunpack.c.l.b16 %v48
  %v272 = vunpack.c.h.b16 %v48
  %v273 = vunpack.c.l.b16 %v49
  %v274 = vunpack.c.h.b16 %v49
  %v275 = vunpack.c.l.b16 %v50
  %v276 = vunpack.c.h.b16 %v50
  %v277 = vunpack.c.l.b16 %v51
  %v278 = vunpack.c.h.b16 %v51
  %v279 = vunpack.c.l.b16 %v52
  %v280 = vunpack.c.h.b16 %v52
  %v281 = vunpack.c.l.b16 %v53
  %v282 = vunpack.c.h.b16 %v53
  %v283 = vunpack.c.l.b16 %v54
  %v284 = vunpack.c.h.b16 %v54
  %v285 = vunpack.c.l.b16 %v55
  %v286 = vunpack.c.h.b16 %v55
  %v287 = vunpack.c.l.b16 %v56
  %v288 = vunpack.c.h.b16 %v56
  %v289 = vunpack.c.l.b16 %v57
  %v290 = vunpack.c.h.b16 %v57
  %v291 = vunpack.c.l.b16 %v58
  %v292 = vunpack.c.h.b16 %v58
  %v293 = vunpack.c.l.b16 %v59
  %v294 = vunpack.c.h.b16 %v59
  %v295 = vunpack.c.l.b16 %v60
  %v296 = vunpack.c.h.b16 %v60
  %v297 = vunpack.c.l.b16 %v61
  %v298 = vunpack.c.h.b16 %v61
  %v299 = vunpack.c.l.b16 %v62
  %v300 = vunpack.c.h.b16 %v62
  %v301 = vunpack.c.l.b16 %v63
  %v302 = vunpack.c.h.b16 %v63
  %v303 = vunpack.c.l.b16 %v64
  %v304 = vunpack.c.h.b16 %v64
  %v305 = vunpack.c.l.b16 %v65
  %v306 = vunpack.c.h.b16 %v65
  %v307 = vunpack.c.l.b16 %v66
  %v308 = vunpack.c.h.b16 %v66
  %v309 = vunpack.c.l.b16 %v67
  %v310 = vunpack.c.h.b16 %v67
  %v311 = vunpack.c.l.b16 %v68
  %v312 = vunpack.c.h.b16 %v68
  %v313 = vunpack.c.l.b16 %v69
  %v314 = vunpack.c.h.b16 %v69
  %v315 = vunpack.c.l.b16 %v70
  %v316 = vunpack.c.h.b16 %v70
  %v317 = vunpack.c.l.b16 %v71
  %v318 = vunpack.c.h.b16 %v71
  %v319 = vunpack.c.l.b16 %v72
  %v320 = vunpack.c.h.b16 %v72
  %v321 = vunpack.c.l.b16 %v73
  %v322 = vunpack.c.h.b16 %v73
  %v323 = vunpack.c.l.b16 %v74
  %v324 = vunpack.c.h.b16 %v74
  %v325 = vunpack.c.l.b16 %v75
  %v326 = vunpack.c.h.b16 %v75
  %v327 = vunpack.c.l.b16 %v76
  %v328 = vunpack.c.h.b16 %v76
  %v329 = vunpack.c.l.b16 %v77
  %v330 = vunpack.c.h.b16 %v77
  %v331 = vunpack.c.l.b16 %v78
  %v332 = vunpack.c.h.b16 %v78
  %v333 = vunpack.c.l.b16 %v79
  %v334 = vunpack.c.h.b16 %v79
  %v335 = vunpack.c.l.b16 %v80
  %v336 = vunpack.c.h.b16 %v80
  %v337 = vunpack.c.l.b16 %v81
  %v338 = vunpack.c.h.b16 %v81
  %v339 = vunpack.c.l.b16 %v82
  %v340 = vunpack.c.h.b16 %v82
  %v341 = vunpack.c.l.b16 %v83
  %v342 = vunpack.c.h.b16 %v83
  %v343 = vunpack.c.l.b16 %v84
  %v344 = vunpack.c.h.b16 %v84
  %v345 = vunpack.c.l.b16 %v85
  %v346 = vunpack.c.h.b16 %v85
  %v347 = vunpack.c.l.b16 %v86
  %v348 = vunpack.c.h.b16 %v86
  %v349 = vunpack.c.l.b16 %v87
  %v350 = vunpack.c.h.b16 %v87
  %v351 = vunpack.c.l.b16 %v88
  %v352 = vunpack.c.h.b16 %v88
  %v353 = vunpack.c.l.b16 %v89
  %v354 = vunpack.c.h.b16 %v89
  %v355 = vunpack.c.l.b16 %v90
  %v356 = vunpack.c.h.b16 %v90
  %v357 = vunpack.c.l.b16 %v91
  %v358 = vunpack.c.h.b16 %v91
  %v359 = vunpack.c.l.b16 %v92
  %v360 = vunpack.c.h.b16 %v92
  %v361 = vunpack.c.l.b16 %v93
  %v362 = vunpack.c.h.b16 %v93
  %v363 = vunpack.c.l.b16 %v94
  %v364 = vunpack.c.h.b16 %v94
  %v365 = vpack.c.b16 %v225, %v221
  %v366 = vpack.c.b16 %v226, %v222
  %v367 = vpack.c.b16 %v227, %v223
  %v368 = vpack.c.b16 %v228, %v224
  %v369 = vpack.c.b16 %v233, %v229
  %v370 = vpack.c.b16 %v234, %v230
  %v371 = vpack.c.b16 %v235, %v231
  %v372 = vpack.c.b16 %v236, %v232
  %v373 = vpack.c.b16 %v241, %v237
  %v374 = vpack.c.b16 %v242, %v238
  %v375 = vpack.c.b16 %v243, %v239
  %v376 = vpack.c.b16 %v244, %v240
  %v377 = vpack.c.b16 %v249, %v245
  %v378 = vpack.c.b16 %v250, %v246
  %v379 = vpack.c.b16 %v251, %v247
  %v380 = vpack.c.b16 %v252, %v248
  %v381 = vpack.c.b16 %v257, %v253
  %v382 = vpack.c.b16 %v258, %v254
  %v383 = vpack.c.b16 %v259, %v255
  %v384 = vpack.c.b16 %v260, %v256
  %v385 = vpack.c.b16 %v265, %v261
  %v386 = vpack.c.b16 %v266, %v262
  %v387 = vpack.c.b16 %v267, %v263
  %v388 = vpack.c.b16 %v268, %v264
  %v389 = vpack.c.b16 %v273, %v269
  %v390 = vpack.c.b16 %v274, %v270
  %v391 = vpack.c.b16 %v275, %v271
  %v392 = vpack.c.b16 %v276, %v272
  %v393 = vpack.c.b16 %v281, %v277
  %v394 = vpack.c.b16 %v282, %v278
  %v395 = vpack.c.b16 %v283, %v279
  %v396 = vpack.c.b16 %v284, %v280
  %v397 = vpack.c.b16 %v289, %v285
  %v398 = vpack.c.b16 %v290, %v286
  %v399 = vpack.c.b16 %v291, %v287
  %v400 = vpack.c.b16 %v292, %v288
  %v401 = vpack.c.b16 %v297, %v293
  %v402 = vpack.c.b16 %v298, %v294
  %v403 = vpack.c.b16 %v299, %v295
  %v404 = vpack.c.b16 %v300, %v296
  %v405 = vpack.c.b16 %v305, %v301
  %v406 = vpack.c.b16 %v306, %v302
  %v407 = vpack.c.b16 %v307, %v303
  %v408 = vpack.c.b16 %v308, %v304
  %v409 = vpack.c.b16 %v313, %v309
  %v410 = vpack.c.b16 %v314, %v310
  %v411 = vpack.c.b16 %v315, %v311
  %v412 = vpack.c.b16 %v316, %v312
  %v413 = vpack.c.b16 %v321, %v317
  %v414 = vpack.c.b16 %v322, %v318
  %v415 = vpack.c.b16 %v323, %v319
  %v416 = vpack.c.b16 %v324, %v320
  %v417 = vpack.c.b16 %v329, %v325
  %v418 = vpack.c.b16 %v330, %v326
  %v419 = vpack.c.b16 %v331, %v327
  %v420 = vpack.c.b16 %v332, %v328
  %v421 = vpack.c.b16 %v337, %v333
  %v422 = vpack.c.b16 %v338, %v334
  %v423 = vpack.c.b16 %v339, %v335
  %v424 = vpack.c.b16 %v340, %v336
  %v425 = vpack.c.b16 %v345, %v341
  %v426 = vpack.c.b16 %v346, %v342
  %v427 = vpack.c.b16 %v347, %v343
  %v428 = vpack.c.b16 %v348, %v344
  %v429 = vpack.c.b16 %v353, %v349
  %v430 = vpack.c.b16 %v354, %v350
  %v431 = vpack.c.b16 %v355, %v351
  %v432 = vpack.c.b16 %v356, %v352
  %v433 = vpack.c.b16 %v361, %v357
  %v434 = vpack.c.b16 %v362, %v358
  %v435 = vpack.c.b16 %v363, %v359
  %v436 = vpack.c.b16 %v364, %v360
  %vm509 = vcmask 261120
  %v511 = vsel %vm509, %v141, 0
  %v514 = vsel %vm509, %v144, 0
  %516 = vmatprep.subr.bf16.mxu0 %v394
  %517 = vmatpush1.bf16.msra.mxu0 %v393
  %518 = vmatprep.subr.bf16.mxu0 %v390
  %519 = vmatpush1.bf16.msra.mxu0 %v389
  %520 = vmatprep.subr.bf16.mxu0 %v386
  %521 = vmatpush1.bf16.msra.mxu0 %v385
  %522 = vmatprep.subr.bf16.mxu0 %v382
  %523 = vmatpush1.bf16.msra.mxu0 %v381
  %524 = vmatprep.subr.bf16.mxu0 %v378
  %525 = vmatpush1.bf16.msra.mxu0 %v377
  %526 = vmatprep.subr.bf16.mxu0 %v374
  %527 = vmatpush1.bf16.msra.mxu0 %v373
  %528 = vmatprep.subr.bf16.mxu0 %v370
  %529 = vmatpush1.bf16.msra.mxu0 %v369
  %530 = vmatprep.subr.bf16.mxu0 %v366
  %531 = vmatpush1.bf16.msra.mxu0 %v365
  %532 = vmatprep.subr.bf16.mxu0 %v426
  %533 = vmatpush2.bf16.msra.mxu0 %v425
  %534 = vmatprep.subr.bf16.mxu0 %v422
  %535 = vmatpush2.bf16.msra.mxu0 %v421
  %536 = vmatprep.subr.bf16.mxu0 %v418
  %537 = vmatpush2.bf16.msra.mxu0 %v417
  %538 = vmatprep.subr.bf16.mxu0 %v414
  %539 = vmatpush2.bf16.msra.mxu0 %v413
  %540 = vmatprep.subr.bf16.mxu0 %v410
  %541 = vmatpush2.bf16.msra.mxu0 %v409
  %542 = vmatprep.subr.bf16.mxu0 %v406
  %543 = vmatpush2.bf16.msra.mxu0 %v405
  %544 = vmatprep.subr.bf16.mxu0 %v402
  %545 = vmatpush2.bf16.msra.mxu0 %v401
  %546 = vmatprep.subr.bf16.mxu0 %v398
  %547 = vmatpush2.bf16.msra.mxu0 %v397
  %548 = vmatprep.mubr.bf16.mxu0 %v140
  %549 = vmatmul.mubr.bf16.gmra.mxu0 %v139
  %v550 = vpop.f32.mrf.mxu0
  %v551 = vadd.f32 %v102, %v550
  %v552 = vpop.f32.mrf.mxu0
  %v553 = vadd.f32 %v102, %v552
  %v554 = vpop.f32.mrf.mxu0
  %v555 = vadd.f32 %v107, %v554
  %v556 = vpop.f32.mrf.mxu0
  %v557 = vadd.f32 %v107, %v556
  %558 = vmatprep.mubr.bf16.mxu0 %v143
  %559 = vmatmul.mubr.bf16.gmra.mxu0 %v142
  %v560 = vpop.f32.mrf.mxu0
  %v561 = vadd.f32 %v112, %v560
  %v562 = vpop.f32.mrf.mxu0
  %v563 = vadd.f32 %v112, %v562
  %v564 = vpop.f32.mrf.mxu0
  %v565 = vadd.f32 %v117, %v564
  %v566 = vpop.f32.mrf.mxu0
  %v567 = vadd.f32 %v117, %v566
  %568 = vdwg.mxu0
  %569 = vmatprep.subr.bf16.mxu0 0
  %570 = vmatpush1.bf16.msra.mxu0 0
  %571 = vmatprep.subr.bf16.mxu0 0
  %572 = vmatpush1.bf16.msra.mxu0 0
  %573 = vmatprep.subr.bf16.mxu0 0
  %574 = vmatpush1.bf16.msra.mxu0 0
  %575 = vmatprep.subr.bf16.mxu0 0
  %576 = vmatpush1.bf16.msra.mxu0 0
  %577 = vmatprep.subr.bf16.mxu0 0
  %578 = vmatpush1.bf16.msra.mxu0 0
  %579 = vmatprep.subr.bf16.mxu0 0
  %580 = vmatpush1.bf16.msra.mxu0 0
  %581 = vmatprep.subr.bf16.mxu0 %v434
  %582 = vmatpush1.bf16.msra.mxu0 %v433
  %583 = vmatprep.subr.bf16.mxu0 %v430
  %584 = vmatpush1.bf16.msra.mxu0 %v429
  %585 = vmatprep.subr.bf16.mxu0 0
  %586 = vmatpush2.bf16.msra.mxu0 0
  %587 = vmatprep.subr.bf16.mxu0 0
  %588 = vmatpush2.bf16.msra.mxu0 0
  %589 = vmatprep.subr.bf16.mxu0 0
  %590 = vmatpush2.bf16.msra.mxu0 0
  %591 = vmatprep.subr.bf16.mxu0 0
  %592 = vmatpush2.bf16.msra.mxu0 0
  %593 = vmatprep.subr.bf16.mxu0 0
  %594 = vmatpush2.bf16.msra.mxu0 0
  %595 = vmatprep.subr.bf16.mxu0 0
  %596 = vmatpush2.bf16.msra.mxu0 0
  %597 = vmatprep.subr.bf16.mxu0 0
  %598 = vmatpush2.bf16.msra.mxu0 0
  %599 = vmatprep.subr.bf16.mxu0 0
  %600 = vmatpush2.bf16.msra.mxu0 0
  %601 = vmatprep.mubr.bf16.mxu0 0
  %602 = vmatmul.mubr.bf16.gmra.mxu0 %v511
  %v603 = vpop.f32.mrf.mxu0
  %v604 = vadd.f32 %v551, %v603
  %v605 = vpop.f32.mrf.mxu0
  %v606 = vadd.f32 %v553, %v605
  %v607 = vpop.f32.mrf.mxu0
  %v608 = vadd.f32 %v555, %v607
  %v609 = vpop.f32.mrf.mxu0
  %v610 = vadd.f32 %v557, %v609
  %611 = vmatprep.mubr.bf16.mxu0 0
  %612 = vmatmul.mubr.bf16.gmra.mxu0 %v514
  %v613 = vpop.f32.mrf.mxu0
  %v614 = vadd.f32 %v561, %v613
  %v615 = vpop.f32.mrf.mxu0
  %v616 = vadd.f32 %v563, %v615
  %v617 = vpop.f32.mrf.mxu0
  %v618 = vadd.f32 %v565, %v617
  %v619 = vpop.f32.mrf.mxu0
  %v620 = vadd.f32 %v567, %v619
  %621 = vdwg.mxu0
  %622 = vmatprep.subr.bf16.mxu0 %v396
  %623 = vmatpush1.bf16.msra.mxu0 %v395
  %624 = vmatprep.subr.bf16.mxu0 %v392
  %625 = vmatpush1.bf16.msra.mxu0 %v391
  %626 = vmatprep.subr.bf16.mxu0 %v388
  %627 = vmatpush1.bf16.msra.mxu0 %v387
  %628 = vmatprep.subr.bf16.mxu0 %v384
  %629 = vmatpush1.bf16.msra.mxu0 %v383
  %630 = vmatprep.subr.bf16.mxu0 %v380
  %631 = vmatpush1.bf16.msra.mxu0 %v379
  %632 = vmatprep.subr.bf16.mxu0 %v376
  %633 = vmatpush1.bf16.msra.mxu0 %v375
  %634 = vmatprep.subr.bf16.mxu0 %v372
  %635 = vmatpush1.bf16.msra.mxu0 %v371
  %636 = vmatprep.subr.bf16.mxu0 %v368
  %637 = vmatpush1.bf16.msra.mxu0 %v367
  %638 = vmatprep.subr.bf16.mxu0 %v428
  %639 = vmatpush2.bf16.msra.mxu0 %v427
  %640 = vmatprep.subr.bf16.mxu0 %v424
  %641 = vmatpush2.bf16.msra.mxu0 %v423
  %642 = vmatprep.subr.bf16.mxu0 %v420
  %643 = vmatpush2.bf16.msra.mxu0 %v419
  %644 = vmatprep.subr.bf16.mxu0 %v416
  %645 = vmatpush2.bf16.msra.mxu0 %v415
  %646 = vmatprep.subr.bf16.mxu0 %v412
  %647 = vmatpush2.bf16.msra.mxu0 %v411
  %648 = vmatprep.subr.bf16.mxu0 %v408
  %649 = vmatpush2.bf16.msra.mxu0 %v407
  %650 = vmatprep.subr.bf16.mxu0 %v404
  %651 = vmatpush2.bf16.msra.mxu0 %v403
  %652 = vmatprep.subr.bf16.mxu0 %v400
  %653 = vmatpush2.bf16.msra.mxu0 %v399
  %654 = vmatprep.mubr.bf16.mxu0 %v140
  %655 = vmatmul.mubr.bf16.gmra.mxu0 %v139
  %v656 = vpop.f32.mrf.mxu0
  %v657 = vadd.f32 %v102, %v656
  %v658 = vpop.f32.mrf.mxu0
  %v659 = vadd.f32 %v102, %v658
  %v660 = vpop.f32.mrf.mxu0
  %v661 = vadd.f32 %v107, %v660
  %v662 = vpop.f32.mrf.mxu0
  %v663 = vadd.f32 %v107, %v662
  %664 = vmatprep.mubr.bf16.mxu0 %v143
  %665 = vmatmul.mubr.bf16.gmra.mxu0 %v142
  %v666 = vpop.f32.mrf.mxu0
  %v667 = vadd.f32 %v112, %v666
  %v668 = vpop.f32.mrf.mxu0
  %v669 = vadd.f32 %v112, %v668
  %v670 = vpop.f32.mrf.mxu0
  %v671 = vadd.f32 %v117, %v670
  %v672 = vpop.f32.mrf.mxu0
  %v673 = vadd.f32 %v117, %v672
  %674 = vdwg.mxu0
  %675 = vmatprep.subr.bf16.mxu0 0
  %676 = vmatpush1.bf16.msra.mxu0 0
  %677 = vmatprep.subr.bf16.mxu0 0
  %678 = vmatpush1.bf16.msra.mxu0 0
  %679 = vmatprep.subr.bf16.mxu0 0
  %680 = vmatpush1.bf16.msra.mxu0 0
  %681 = vmatprep.subr.bf16.mxu0 0
  %682 = vmatpush1.bf16.msra.mxu0 0
  %683 = vmatprep.subr.bf16.mxu0 0
  %684 = vmatpush1.bf16.msra.mxu0 0
  %685 = vmatprep.subr.bf16.mxu0 0
  %686 = vmatpush1.bf16.msra.mxu0 0
  %687 = vmatprep.subr.bf16.mxu0 %v436
  %688 = vmatpush1.bf16.msra.mxu0 %v435
  %689 = vmatprep.subr.bf16.mxu0 %v432
  %690 = vmatpush1.bf16.msra.mxu0 %v431
  %691 = vmatprep.subr.bf16.mxu0 0
  %692 = vmatpush2.bf16.msra.mxu0 0
  %693 = vmatprep.subr.bf16.mxu0 0
  %694 = vmatpush2.bf16.msra.mxu0 0
  %695 = vmatprep.subr.bf16.mxu0 0
  %696 = vmatpush2.bf16.msra.mxu0 0
  %697 = vmatprep.subr.bf16.mxu0 0
  %698 = vmatpush2.bf16.msra.mxu0 0
  %699 = vmatprep.subr.bf16.mxu0 0
  %700 = vmatpush2.bf16.msra.mxu0 0
  %701 = vmatprep.subr.bf16.mxu0 0
  %702 = vmatpush2.bf16.msra.mxu0 0
  %703 = vmatprep.subr.bf16.mxu0 0
  %704 = vmatpush2.bf16.msra.mxu0 0
  %705 = vmatprep.subr.bf16.mxu0 0
  %706 = vmatpush2.bf16.msra.mxu0 0
  %707 = vmatprep.mubr.bf16.mxu0 0
  %708 = vmatmul.mubr.bf16.gmra.mxu0 %v511
  %v709 = vpop.f32.mrf.mxu0
  %v710 = vadd.f32 %v657, %v709
  %v711 = vpop.f32.mrf.mxu0
  %v712 = vadd.f32 %v659, %v711
  %v713 = vpop.f32.mrf.mxu0
  %v714 = vadd.f32 %v661, %v713
  %v715 = vpop.f32.mrf.mxu0
  %v716 = vadd.f32 %v663, %v715
  %717 = vmatprep.mubr.bf16.mxu0 0
  %718 = vmatmul.mubr.bf16.gmra.mxu0 %v514
  %v719 = vpop.f32.mrf.mxu0
  %v720 = vadd.f32 %v667, %v719
  %v721 = vpop.f32.mrf.mxu0
  %v722 = vadd.f32 %v669, %v721
  %v723 = vpop.f32.mrf.mxu0
  %v724 = vadd.f32 %v671, %v723
  %v725 = vpop.f32.mrf.mxu0
  %v726 = vadd.f32 %v673, %v725
  %727 = vdwg.mxu0
  %v728 = vmax.f32 %v604, 0.0
  %v729 = vmax.f32 %v606, 0.0
  %v730 = vmax.f32 %v710, 0.0
  %v731 = vmax.f32 %v712, 0.0
  %v732 = vmax.f32 %v608, 0.0
  %v733 = vmax.f32 %v610, 0.0
  %v734 = vmax.f32 %v714, 0.0
  %v735 = vmax.f32 %v716, 0.0
  %v736 = vmax.f32 %v614, 0.0
  %v737 = vmax.f32 %v616, 0.0
  %v738 = vmax.f32 %v720, 0.0
  %v739 = vmax.f32 %v722, 0.0
  %v740 = vmax.f32 %v618, 0.0
  %v741 = vmax.f32 %v620, 0.0
  %v742 = vmax.f32 %v724, 0.0
  %v743 = vmax.f32 %v726, 0.0
  %v744 = vpack.c.bf16 %v732, %v728
  %v745 = vpack.c.bf16 %v733, %v729
  %v746 = vpack.c.bf16 %v734, %v730
  %v747 = vpack.c.bf16 %v735, %v731
  %v748 = vpack.c.bf16 %v740, %v736
  %v749 = vpack.c.bf16 %v741, %v737
  %v750 = vpack.c.bf16 %v742, %v738
  %v751 = vpack.c.bf16 %v743, %v739
  %v760 = vunpack.c.l.b16 %v744
  %v761 = vunpack.c.l.b16 %v745
  %v762 = vunpack.c.l.b16 %v746
  %v763 = vunpack.c.l.b16 %v747
  %v764 = vunpack.c.h.b16 %v744
  %v765 = vunpack.c.h.b16 %v745
  %v766 = vunpack.c.h.b16 %v746
  %v767 = vunpack.c.h.b16 %v747
  %v768 = vunpack.c.l.b16 %v748
  %v769 = vunpack.c.l.b16 %v749
  %v770 = vunpack.c.l.b16 %v750
  %v771 = vunpack.c.l.b16 %v751
  %v772 = vunpack.c.h.b16 %v748
  %v773 = vunpack.c.h.b16 %v749
  %v774 = vunpack.c.h.b16 %v750
  %v775 = vunpack.c.h.b16 %v751
  %v776 = vpack.c.b16 %v761, %v760
  %v777 = vpack.c.b16 %v763, %v762
  %v778 = vpack.c.b16 %v765, %v764
  %v779 = vpack.c.b16 %v767, %v766
  %v780 = vpack.c.b16 %v769, %v768
  %v781 = vpack.c.b16 %v771, %v770
  %v782 = vpack.c.b16 %v773, %v772
  %v783 = vpack.c.b16 %v775, %v774
  %792 = vst [vmem:[%s3] sm:$0xff] %v776
  %793 = vst [vmem:[%s3 + $0x8] sm:$0xff] %v777
  %794 = vst [vmem:[%s3 + $0x10] sm:$0xff] %v778
  %795 = vst [vmem:[%s3 + $0x18] sm:$0xff] %v779
  %796 = vst [vmem:[%s3 + $0x20] sm:$0xff] %v780
  %797 = vst [vmem:[%s3 + $0x28] sm:$0xff] %v781
  %798 = vst [vmem:[%s3 + $0x30] sm:$0xff] %v782
  %799 = vst [vmem:[%s3 + $0x38] sm:$0xff] %v783
  // Predicated region
  $region14: #{soft_q_forward.4} parent=0 // pred_check
    _
  $region15: #{soft_q_forward.4} parent=0 // pred_check_branch
    %801 = sbr.rel (0) target = $region17
  $region16: #{soft_q_forward.4} parent=0 // pred_region
    _
  $region17: #{soft_q_forward.4} parent=0 // pred_fallthru
    _
  // Predicated region
  $region18: #{soft_q_forward.4} parent=0 // pred_check
    _
  $region19: #{soft_q_forward.4} parent=0 // pred_check_branch
    %803 = sbr.rel (0) target = $region21
  $region20: #{soft_q_forward.4} parent=0 // pred_region
    _
  $region21: #{soft_q_forward.4} parent=0 // pred_fallthru
    _

// kernel: soft_q_forward.5
$region0: #{soft_q_forward.5}
  #allocation0 [shape = 'u32[]', space=smem, size = 0x4, offset = 0x4, fixed_abs, tag = 'smem constant byte address 0x4 - core index']
  #allocation1 [shape = 'u32[144,128]{1,0:T(1,128)}', space=vmem, size = 0x12000, scoped, tag = 'internal scratch']
  #allocation2 [shape = 'f32[1,1]{1,0:T(1,128)S(1)}', space=vmem, size = 0x200, scoped, tag = 'scoped memory for soft_q_forward.5']
  %s0 = inlined_call_operand.vmem [shape: f32[49,8,288], index: 0, kind: input, shape index: {}]
  %s1 = inlined_call_operand.vmem [shape: f32[8,1], index: 1, kind: input, shape index: {}]
  %s2 = inlined_call_operand.vmem [shape: f32[8,4], index: 2, kind: input, shape index: {}]
  %s3 = inlined_call_operand.vmem [shape: f32[288,32], index: 3, kind: input, shape index: {}]
  %s4 = inlined_call_operand.vmem [shape: f32[1,32], index: 4, kind: input, shape index: {}]
  %s5 = inlined_call_operand.vmem [shape: f32[4,33], index: 5, kind: input, shape index: {}]
  %s6 = inlined_call_operand.vmem [shape: f32[1,33], index: 6, kind: input, shape index: {}]
  %s7 = inlined_call_operand.vmem [shape: f32[33,32], index: 7, kind: input, shape index: {}]
  %s8 = inlined_call_operand.vmem [shape: f32[49,32,32], index: 8, kind: input, shape index: {}]
  %s9 = inlined_call_operand.vmem [shape: f32[1,32], index: 9, kind: input, shape index: {}]
  %s10 = inlined_call_operand.vmem [shape: f32[32,32], index: 10, kind: input, shape index: {}]
  %s11 = inlined_call_operand.vmem [shape: f32[1,32], index: 11, kind: input, shape index: {}]
  %s12 = inlined_call_operand.vmem [shape: f32[1,32], index: 12, kind: input, shape index: {}]
  %s13 = inlined_call_operand.<no memory space> [shape: f32[1,1], index: 13, kind: input, shape index: {}]
  %s14 = inlined_call_operand.vmem [shape: f32[8,1], index: 14, kind: output, shape index: {}]
  %s15 = sld [smem:[#allocation0]]
  $region66: #{soft_q_forward.5} parent=0
    _
  %s17 = ssub.s32 1, %s15
  %s18 = scalar_select 0, %s17, %s15
  %v19 = vstv %s13
  %20 = vst [vmem:[#allocation2] sm:$0x1] %v19
  // Predicated region
  $region2: #{soft_q_forward.5} parent=0 // pred_check
    _
  $region3: #{soft_q_forward.5} parent=0 // pred_check_branch
    %22 = sbr.rel (0) target = $region5
  $region4: #{soft_q_forward.5} parent=0 // pred_region
    _
  $region5: #{soft_q_forward.5} parent=0 // pred_fallthru
    _
  // Predicated region
  $region6: #{soft_q_forward.5} parent=0 // pred_check
    _
  $region7: #{soft_q_forward.5} parent=0 // pred_check_branch
    %24 = sbr.rel (0) target = $region9
  $region8: #{soft_q_forward.5} parent=0 // pred_region
    _
  $region9: #{soft_q_forward.5} parent=0 // pred_fallthru
    _
  // Predicated region
  $region10: #{soft_q_forward.5} parent=0 // pred_check
    _
  $region11: #{soft_q_forward.5} parent=0 // pred_check_branch
    %26 = sbr.rel (0) target = $region13
  $region12: #{soft_q_forward.5} parent=0 // pred_region
    _
  $region13: #{soft_q_forward.5} parent=0 // pred_fallthru
    _
  // Predicated region
  $region14: #{soft_q_forward.5} parent=0 // pred_check
    _
  $region15: #{soft_q_forward.5} parent=0 // pred_check_branch
    %28 = sbr.rel (0) target = $region17
  $region16: #{soft_q_forward.5} parent=0 // pred_region
    _
  $region17: #{soft_q_forward.5} parent=0 // pred_fallthru
    _
  // Predicated region
  $region18: #{soft_q_forward.5} parent=0 // pred_check
    _
  $region19: #{soft_q_forward.5} parent=0 // pred_check_branch
    %30 = sbr.rel (0) target = $region21
  $region20: #{soft_q_forward.5} parent=0 // pred_region
    _
  $region21: #{soft_q_forward.5} parent=0 // pred_fallthru
    _
  // Predicated region
  $region22: #{soft_q_forward.5} parent=0 // pred_check
    _
  $region23: #{soft_q_forward.5} parent=0 // pred_check_branch
    %32 = sbr.rel (0) target = $region25
  $region24: #{soft_q_forward.5} parent=0 // pred_region
    _
  $region25: #{soft_q_forward.5} parent=0 // pred_fallthru
    _
  // Predicated region
  $region26: #{soft_q_forward.5} parent=0 // pred_check
    _
  $region27: #{soft_q_forward.5} parent=0 // pred_check_branch
    %34 = sbr.rel (0) target = $region29
  $region28: #{soft_q_forward.5} parent=0 // pred_region
    _
  $region29: #{soft_q_forward.5} parent=0 // pred_fallthru
    _
  // Predicated region
  $region30: #{soft_q_forward.5} parent=0 // pred_check
    _
  $region31: #{soft_q_forward.5} parent=0 // pred_check_branch
    %36 = sbr.rel (0) target = $region33
  $region32: #{soft_q_forward.5} parent=0 // pred_region
    _
  $region33: #{soft_q_forward.5} parent=0 // pred_fallthru
    _
  // Predicated region
  $region34: #{soft_q_forward.5} parent=0 // pred_check
    _
  $region35: #{soft_q_forward.5} parent=0 // pred_check_branch
    %38 = sbr.rel (0) target = $region37
  $region36: #{soft_q_forward.5} parent=0 // pred_region
    _
  $region37: #{soft_q_forward.5} parent=0 // pred_fallthru
    _
  // Predicated region
  $region38: #{soft_q_forward.5} parent=0 // pred_check
    _
  $region39: #{soft_q_forward.5} parent=0 // pred_check_branch
    %40 = sbr.rel (0) target = $region41
  $region40: #{soft_q_forward.5} parent=0 // pred_region
    _
  $region41: #{soft_q_forward.5} parent=0 // pred_fallthru
    _
  // Predicated region
  $region42: #{soft_q_forward.5} parent=0 // pred_check
    _
  $region43: #{soft_q_forward.5} parent=0 // pred_check_branch
    %42 = sbr.rel (0) target = $region45
  $region44: #{soft_q_forward.5} parent=0 // pred_region
    _
  $region45: #{soft_q_forward.5} parent=0 // pred_fallthru
    _
  // Predicated region
  $region46: #{soft_q_forward.5} parent=0 // pred_check
    _
  $region47: #{soft_q_forward.5} parent=0 // pred_check_branch
    %44 = sbr.rel (0) target = $region49
  $region48: #{soft_q_forward.5} parent=0 // pred_region
    _
  $region49: #{soft_q_forward.5} parent=0 // pred_fallthru
    _
  // Predicated region
  $region50: #{soft_q_forward.5} parent=0 // pred_check
    _
  $region51: #{soft_q_forward.5} parent=0 // pred_check_branch
    %46 = sbr.rel (0) target = $region53
  $region52: #{soft_q_forward.5} parent=0 // pred_region
    _
  $region53: #{soft_q_forward.5} parent=0 // pred_fallthru
    _
  // Predicated region
  $region54: #{soft_q_forward.5} parent=0 // pred_check
    _
  $region55: #{soft_q_forward.5} parent=0 // pred_check_branch
    %48 = sbr.rel (0) target = $region57
  $region56: #{soft_q_forward.5} parent=0 // pred_region
    _
  $region57: #{soft_q_forward.5} parent=0 // pred_fallthru
    _
  %v49 = vld [vmem:[%s0] sm:$0xff]
  %v50 = vld [vmem:[%s0 + $0x8] sm:$0xff]
  %v51 = vld [vmem:[%s0 + $0x10] sm:$0xff]
  %v52 = vld [vmem:[%s0 + $0x18] sm:$0xff]
  %v53 = vld [vmem:[%s0 + $0x20] sm:$0xff]
  %v54 = vld [vmem:[%s0 + $0x28] sm:$0xff]
  %v55 = vld [vmem:[%s0 + $0x30] sm:$0xff]
  %v56 = vld [vmem:[%s0 + $0x38] sm:$0xff]
  %v57 = vld [vmem:[%s0 + $0x40] sm:$0xff]
  %v58 = vld [vmem:[%s0 + $0x48] sm:$0xff]
  %v59 = vld [vmem:[%s0 + $0x50] sm:$0xff]
  %v60 = vld [vmem:[%s0 + $0x58] sm:$0xff]
  %v61 = vld [vmem:[%s0 + $0x60] sm:$0xff]
  %v62 = vld [vmem:[%s0 + $0x68] sm:$0xff]
  %v63 = vld [vmem:[%s0 + $0x70] sm:$0xff]
  %v64 = vld [vmem:[%s0 + $0x78] sm:$0xff]
  %v65 = vld [vmem:[%s0 + $0x80] sm:$0xff]
  %v66 = vld [vmem:[%s0 + $0x88] sm:$0xff]
  %v67 = vld [vmem:[%s0 + $0x90] sm:$0xff]
  %v68 = vld [vmem:[%s0 + $0x98] sm:$0xff]
  %v69 = vld [vmem:[%s0 + $0xa0] sm:$0xff]
  %v70 = vld [vmem:[%s0 + $0xa8] sm:$0xff]
  %v71 = vld [vmem:[%s0 + $0xb0] sm:$0xff]
  %v72 = vld [vmem:[%s0 + $0xb8] sm:$0xff]
  %v73 = vld [vmem:[%s0 + $0xc0] sm:$0xff]
  %v74 = vld [vmem:[%s0 + $0xc8] sm:$0xff]
  %v75 = vld [vmem:[%s0 + $0xd0] sm:$0xff]
  %v76 = vld [vmem:[%s0 + $0xd8] sm:$0xff]
  %v77 = vld [vmem:[%s0 + $0xe0] sm:$0xff]
  %v78 = vld [vmem:[%s0 + $0xe8] sm:$0xff]
  %v79 = vld [vmem:[%s0 + $0xf0] sm:$0xff]
  %v80 = vld [vmem:[%s0 + $0xf8] sm:$0xff]
  %v81 = vld [vmem:[%s0 + $0x100] sm:$0xff]
  %v82 = vld [vmem:[%s0 + $0x108] sm:$0xff]
  %v83 = vld [vmem:[%s0 + $0x110] sm:$0xff]
  %v84 = vld [vmem:[%s0 + $0x118] sm:$0xff]
  %v85 = vld [vmem:[%s0 + $0x120] sm:$0xff]
  %v86 = vld [vmem:[%s0 + $0x128] sm:$0xff]
  %v87 = vld [vmem:[%s0 + $0x130] sm:$0xff]
  %v88 = vld [vmem:[%s0 + $0x138] sm:$0xff]
  %v89 = vld [vmem:[%s0 + $0x140] sm:$0xff]
  %v90 = vld [vmem:[%s0 + $0x148] sm:$0xff]
  %v91 = vld [vmem:[%s0 + $0x150] sm:$0xff]
  %v92 = vld [vmem:[%s0 + $0x158] sm:$0xff]
  %v93 = vld [vmem:[%s0 + $0x160] sm:$0xff]
  %v94 = vld [vmem:[%s0 + $0x168] sm:$0xff]
  %v95 = vld [vmem:[%s0 + $0x170] sm:$0xff]
  %v96 = vld [vmem:[%s0 + $0x178] sm:$0xff]
  %v97 = vld [vmem:[%s0 + $0x180] sm:$0xff]
  %v98 = vld [vmem:[%s0 + $0x188] sm:$0xff]
  %v99 = vld [vmem:[%s0 + $0x190] sm:$0xff]
  %v100 = vld [vmem:[%s0 + $0x198] sm:$0xff]
  %v101 = vld [vmem:[%s0 + $0x1a0] sm:$0xff]
  %v102 = vld [vmem:[%s0 + $0x1a8] sm:$0xff]
  %v103 = vld [vmem:[%s0 + $0x1b0] sm:$0xff]
  %v104 = vld [vmem:[%s0 + $0x1b8] sm:$0xff]
  %v105 = vld [vmem:[%s0 + $0x1c0] sm:$0xff]
  %v106 = vld [vmem:[%s0 + $0x1c8] sm:$0xff]
  %v107 = vld [vmem:[%s0 + $0x1d0] sm:$0xff]
  %v108 = vld [vmem:[%s0 + $0x1d8] sm:$0xff]
  %v109 = vld [vmem:[%s0 + $0x1e0] sm:$0xff]
  %v110 = vld [vmem:[%s0 + $0x1e8] sm:$0xff]
  %v111 = vld [vmem:[%s0 + $0x1f0] sm:$0xff]
  %v112 = vld [vmem:[%s0 + $0x1f8] sm:$0xff]
  %v113 = vld [vmem:[%s0 + $0x200] sm:$0xff]
  %v114 = vld [vmem:[%s0 + $0x208] sm:$0xff]
  %v115 = vld [vmem:[%s0 + $0x210] sm:$0xff]
  %v116 = vld [vmem:[%s0 + $0x218] sm:$0xff]
  %v117 = vld [vmem:[%s0 + $0x220] sm:$0xff]
  %v118 = vld [vmem:[%s0 + $0x228] sm:$0xff]
  %v119 = vld [vmem:[%s0 + $0x230] sm:$0xff]
  %v120 = vld [vmem:[%s0 + $0x238] sm:$0xff]
  %v121 = vld [vmem:[%s0 + $0x240] sm:$0xff]
  %v122 = vld [vmem:[%s0 + $0x248] sm:$0xff]
  %v123 = vld [vmem:[%s0 + $0x250] sm:$0xff]
  %v124 = vld [vmem:[%s0 + $0x258] sm:$0xff]
  %v125 = vld [vmem:[%s0 + $0x260] sm:$0xff]
  %v126 = vld [vmem:[%s0 + $0x268] sm:$0xff]
  %v127 = vld [vmem:[%s0 + $0x270] sm:$0xff]
  %v128 = vld [vmem:[%s0 + $0x278] sm:$0xff]
  %v129 = vld [vmem:[%s0 + $0x280] sm:$0xff]
  %v130 = vld [vmem:[%s0 + $0x288] sm:$0xff]
  %v131 = vld [vmem:[%s0 + $0x290] sm:$0xff]
  %v132 = vld [vmem:[%s0 + $0x298] sm:$0xff]
  %v133 = vld [vmem:[%s0 + $0x2a0] sm:$0xff]
  %v134 = vld [vmem:[%s0 + $0x2a8] sm:$0xff]
  %v135 = vld [vmem:[%s0 + $0x2b0] sm:$0xff]
  %v136 = vld [vmem:[%s0 + $0x2b8] sm:$0xff]
  %v137 = vld [vmem:[%s0 + $0x2c0] sm:$0xff]
  %v138 = vld [vmem:[%s0 + $0x2c8] sm:$0xff]
  %v139 = vld [vmem:[%s0 + $0x2d0] sm:$0xff]
  %v140 = vld [vmem:[%s0 + $0x2d8] sm:$0xff]
  %v141 = vld [vmem:[%s0 + $0x2e0] sm:$0xff]
  %v142 = vld [vmem:[%s0 + $0x2e8] sm:$0xff]
  %v143 = vld [vmem:[%s0 + $0x2f0] sm:$0xff]
  %v144 = vld [vmem:[%s0 + $0x2f8] sm:$0xff]
  %v145 = vld [vmem:[%s0 + $0x300] sm:$0xff]
  %v146 = vld [vmem:[%s0 + $0x308] sm:$0xff]
  %v147 = vld [vmem:[%s0 + $0x310] sm:$0xff]
  %v148 = vld [vmem:[%s0 + $0x318] sm:$0xff]
  %v149 = vld [vmem:[%s0 + $0x320] sm:$0xff]
  %v150 = vld [vmem:[%s0 + $0x328] sm:$0xff]
  %v151 = vld [vmem:[%s0 + $0x330] sm:$0xff]
  %v152 = vld [vmem:[%s0 + $0x338] sm:$0xff]
  %v153 = vld [vmem:[%s0 + $0x340] sm:$0xff]
  %v154 = vld [vmem:[%s0 + $0x348] sm:$0xff]
  %v155 = vld [vmem:[%s0 + $0x350] sm:$0xff]
  %v156 = vld [vmem:[%s0 + $0x358] sm:$0xff]
  %v157 = vld [vmem:[%s0 + $0x360] sm:$0xff]
  %v158 = vld [vmem:[%s0 + $0x368] sm:$0xff]
  %v159 = vld [vmem:[%s0 + $0x370] sm:$0xff]
  %v160 = vld [vmem:[%s0 + $0x378] sm:$0xff]
  %v161 = vld [vmem:[%s0 + $0x380] sm:$0xff]
  %v162 = vld [vmem:[%s0 + $0x388] sm:$0xff]
  %v163 = vld [vmem:[%s0 + $0x390] sm:$0xff]
  %v164 = vld [vmem:[%s0 + $0x398] sm:$0xff]
  %v165 = vld [vmem:[%s0 + $0x3a0] sm:$0xff]
  %v166 = vld [vmem:[%s0 + $0x3a8] sm:$0xff]
  %v167 = vld [vmem:[%s0 + $0x3b0] sm:$0xff]
  %v168 = vld [vmem:[%s0 + $0x3b8] sm:$0xff]
  %v169 = vld [vmem:[%s0 + $0x3c0] sm:$0xff]
  %v170 = vld [vmem:[%s0 + $0x3c8] sm:$0xff]
  %v171 = vld [vmem:[%s0 + $0x3d0] sm:$0xff]
  %v172 = vld [vmem:[%s0 + $0x3d8] sm:$0xff]
  %v173 = vld [vmem:[%s0 + $0x3e0] sm:$0xff]
  %v174 = vld [vmem:[%s0 + $0x3e8] sm:$0xff]
  %v175 = vld [vmem:[%s0 + $0x3f0] sm:$0xff]
  %v176 = vld [vmem:[%s0 + $0x3f8] sm:$0xff]
  %v177 = vld [vmem:[%s0 + $0x400] sm:$0xff]
  %v178 = vld [vmem:[%s0 + $0x408] sm:$0xff]
  %v179 = vld [vmem:[%s0 + $0x410] sm:$0xff]
  %v180 = vld [vmem:[%s0 + $0x418] sm:$0xff]
  %v181 = vld [vmem:[%s0 + $0x420] sm:$0xff]
  %v182 = vld [vmem:[%s0 + $0x428] sm:$0xff]
  %v183 = vld [vmem:[%s0 + $0x430] sm:$0xff]
  %v184 = vld [vmem:[%s0 + $0x438] sm:$0xff]
  %v185 = vld [vmem:[%s0 + $0x440] sm:$0xff]
  %v186 = vld [vmem:[%s0 + $0x448] sm:$0xff]
  %v187 = vld [vmem:[%s0 + $0x450] sm:$0xff]
  %v188 = vld [vmem:[%s0 + $0x458] sm:$0xff]
  %v189 = vld [vmem:[%s0 + $0x460] sm:$0xff]
  %v190 = vld [vmem:[%s0 + $0x468] sm:$0xff]
  %v191 = vld [vmem:[%s0 + $0x470] sm:$0xff]
  %v192 = vld [vmem:[%s0 + $0x478] sm:$0xff]
  %v193 = vld [vmem:[%s0 + $0x480] sm:$0xff]
  %v194 = vld [vmem:[%s0 + $0x488] sm:$0xff]
  %v195 = vld [vmem:[%s0 + $0x490] sm:$0xff]
  %v196 = vld [vmem:[%s3] sm:$0xff]
  %v197 = vld [vmem:[%s3 + $0x8] sm:$0xff]
  %v198 = vld [vmem:[%s3 + $0x10] sm:$0xff]
  %v199 = vld [vmem:[%s3 + $0x18] sm:$0xff]
  %v200 = vld [vmem:[%s3 + $0x20] sm:$0xff]
  %v201 = vld [vmem:[%s3 + $0x28] sm:$0xff]
  %v202 = vld [vmem:[%s3 + $0x30] sm:$0xff]
  %v203 = vld [vmem:[%s3 + $0x38] sm:$0xff]
  %v204 = vld [vmem:[%s3 + $0x40] sm:$0xff]
  %v205 = vld [vmem:[%s3 + $0x48] sm:$0xff]
  %v206 = vld [vmem:[%s3 + $0x50] sm:$0xff]
  %v207 = vld [vmem:[%s3 + $0x58] sm:$0xff]
  %v208 = vld [vmem:[%s3 + $0x60] sm:$0xff]
  %v209 = vld [vmem:[%s3 + $0x68] sm:$0xff]
  %v210 = vld [vmem:[%s3 + $0x70] sm:$0xff]
  %v211 = vld [vmem:[%s3 + $0x78] sm:$0xff]
  %v212 = vld [vmem:[%s3 + $0x80] sm:$0xff]
  %v213 = vld [vmem:[%s3 + $0x88] sm:$0xff]
  %v214 = vld [vmem:[%s3 + $0x90] sm:$0xff]
  %v215 = vld [vmem:[%s3 + $0x98] sm:$0xff]
  %v216 = vld [vmem:[%s3 + $0xa0] sm:$0xff]
  %v217 = vld [vmem:[%s3 + $0xa8] sm:$0xff]
  %v218 = vld [vmem:[%s3 + $0xb0] sm:$0xff]
  %v219 = vld [vmem:[%s3 + $0xb8] sm:$0xff]
  %v220 = vld [vmem:[%s3 + $0xc0] sm:$0xff]
  %v221 = vld [vmem:[%s3 + $0xc8] sm:$0xff]
  %v222 = vld [vmem:[%s3 + $0xd0] sm:$0xff]
  %v223 = vld [vmem:[%s3 + $0xd8] sm:$0xff]
  %v224 = vld [vmem:[%s3 + $0xe0] sm:$0xff]
  %v225 = vld [vmem:[%s3 + $0xe8] sm:$0xff]
  %v226 = vld [vmem:[%s3 + $0xf0] sm:$0xff]
  %v227 = vld [vmem:[%s3 + $0xf8] sm:$0xff]
  %v228 = vld [vmem:[%s3 + $0x100] sm:$0xff]
  %v229 = vld [vmem:[%s3 + $0x108] sm:$0xff]
  %v230 = vld [vmem:[%s3 + $0x110] sm:$0xff]
  %v231 = vld [vmem:[%s3 + $0x118] sm:$0xff]
  %v232 = vld [vmem:[%s4] sm:$0x1]
  %v234 = vlaneseq
  %v235 = vshrl.u32 %v234, 7
  %v236 = vsub.s32 0, %v235
  %v237 = vrot.slane %v232, %v236
  %vm239 = vcmask 261120
  %v241 = vsel %vm239, %v51, 0
  %v244 = vsel %vm239, %v54, 0
  %v247 = vsel %vm239, %v57, 0
  %v250 = vsel %vm239, %v60, 0
  %v253 = vsel %vm239, %v63, 0
  %v256 = vsel %vm239, %v66, 0
  %v259 = vsel %vm239, %v69, 0
  %v262 = vsel %vm239, %v72, 0
  %v265 = vsel %vm239, %v75, 0
  %v268 = vsel %vm239, %v78, 0
  %v271 = vsel %vm239, %v81, 0
  %v274 = vsel %vm239, %v84, 0
  %v277 = vsel %vm239, %v87, 0
  %v280 = vsel %vm239, %v90, 0
  %v283 = vsel %vm239, %v93, 0
  %v286 = vsel %vm239, %v96, 0
  %v289 = vsel %vm239, %v99, 0
  %v292 = vsel %vm239, %v102, 0
  %v295 = vsel %vm239, %v105, 0
  %v298 = vsel %vm239, %v108, 0
  %v301 = vsel %vm239, %v111, 0
  %v304 = vsel %vm239, %v114, 0
  %v307 = vsel %vm239, %v117, 0
  %v310 = vsel %vm239, %v120, 0
  %v313 = vsel %vm239, %v123, 0
  %v316 = vsel %vm239, %v126, 0
  %v319 = vsel %vm239, %v129, 0
  %v322 = vsel %vm239, %v132, 0
  %v325 = vsel %vm239, %v135, 0
  %v328 = vsel %vm239, %v138, 0
  %v331 = vsel %vm239, %v141, 0
  %v334 = vsel %vm239, %v144, 0
  %v337 = vsel %vm239, %v147, 0
  %v340 = vsel %vm239, %v150, 0
  %v343 = vsel %vm239, %v153, 0
  %v346 = vsel %vm239, %v156, 0
  %v349 = vsel %vm239, %v159, 0
  %v352 = vsel %vm239, %v162, 0
  %v355 = vsel %vm239, %v165, 0
  %v358 = vsel %vm239, %v168, 0
  %v361 = vsel %vm239, %v171, 0
  %v364 = vsel %vm239, %v174, 0
  %v367 = vsel %vm239, %v177, 0
  %v370 = vsel %vm239, %v180, 0
  %v373 = vsel %vm239, %v183, 0
  %v376 = vsel %vm239, %v186, 0
  %v379 = vsel %vm239, %v189, 0
  %v382 = vsel %vm239, %v192, 0
  %v385 = vsel %vm239, %v195, 0
  %387 = vmatprep.subr.mxu0 0.0
  %388 = vmatpush1.msra.mxu0 %v211
  %389 = vmatprep.subr.mxu0 0.0
  %390 = vmatpush1.msra.mxu0 %v210
  %391 = vmatprep.subr.mxu0 0.0
  %392 = vmatpush1.msra.mxu0 %v209
  %393 = vmatprep.subr.mxu0 0.0
  %394 = vmatpush1.msra.mxu0 %v208
  %395 = vmatprep.subr.mxu0 0.0
  %396 = vmatpush1.msra.mxu0 %v207
  %397 = vmatprep.subr.mxu0 0.0
  %398 = vmatpush1.msra.mxu0 %v206
  %399 = vmatprep.subr.mxu0 0.0
  %400 = vmatpush1.msra.mxu0 %v205
  %401 = vmatprep.subr.mxu0 0.0
  %402 = vmatpush1.msra.mxu0 %v204
  %403 = vmatprep.subr.mxu0 0.0
  %404 = vmatpush1.msra.mxu0 %v203
  %405 = vmatprep.subr.mxu0 0.0
  %406 = vmatpush1.msra.mxu0 %v202
  %407 = vmatprep.subr.mxu0 0.0
  %408 = vmatpush1.msra.mxu0 %v201
  %409 = vmatprep.subr.mxu0 0.0
  %410 = vmatpush1.msra.mxu0 %v200
  %411 = vmatprep.subr.mxu0 0.0
  %412 = vmatpush1.msra.mxu0 %v199
  %413 = vmatprep.subr.mxu0 0.0
  %414 = vmatpush1.msra.mxu0 %v198
  %415 = vmatprep.subr.mxu0 0.0
  %416 = vmatpush1.msra.mxu0 %v197
  %417 = vmatprep.subr.mxu0 0.0
  %418 = vmatpush1.msra.mxu0 %v196
  %419 = vmatprep.subr.mxu0 0.0
  %420 = vmatpush2.msra.mxu0 %v227
  %421 = vmatprep.subr.mxu0 0.0
  %422 = vmatpush2.msra.mxu0 %v226
  %423 = vmatprep.subr.mxu0 0.0
  %424 = vmatpush2.msra.mxu0 %v225
  %425 = vmatprep.subr.mxu0 0.0
  %426 = vmatpush2.msra.mxu0 %v224
  %427 = vmatprep.subr.mxu0 0.0
  %428 = vmatpush2.msra.mxu0 %v223
  %429 = vmatprep.subr.mxu0 0.0
  %430 = vmatpush2.msra.mxu0 %v222
  %431 = vmatprep.subr.mxu0 0.0
  %432 = vmatpush2.msra.mxu0 %v221
  %433 = vmatprep.subr.mxu0 0.0
  %434 = vmatpush2.msra.mxu0 %v220
  %435 = vmatprep.subr.mxu0 0.0
  %436 = vmatpush2.msra.mxu0 %v219
  %437 = vmatprep.subr.mxu0 0.0
  %438 = vmatpush2.msra.mxu0 %v218
  %439 = vmatprep.subr.mxu0 0.0
  %440 = vmatpush2.msra.mxu0 %v217
  %441 = vmatprep.subr.mxu0 0.0
  %442 = vmatpush2.msra.mxu0 %v216
  %443 = vmatprep.subr.mxu0 0.0
  %444 = vmatpush2.msra.mxu0 %v215
  %445 = vmatprep.subr.mxu0 0.0
  %446 = vmatpush2.msra.mxu0 %v214
  %447 = vmatprep.subr.mxu0 0.0
  %448 = vmatpush2.msra.mxu0 %v213
  %449 = vmatprep.subr.mxu0 0.0
  %450 = vmatpush2.msra.mxu0 %v212
  %451 = vmatprep.mubr.f32.mxu0 %v50
  %452 = vmatmul.mubr.f32.gmra.mxu0 %v49
  %v453 = vpop.f32.mrf.mxu0
  %v454 = vadd.f32 %v237, %v453
  %v455 = vpop.f32.mrf.mxu0
  %456 = vmatprep.mubr.f32.mxu0 %v53
  %457 = vmatmul.mubr.f32.gmra.mxu0 %v52
  %v458 = vpop.f32.mrf.mxu0
  %v459 = vadd.f32 %v237, %v458
  %v460 = vpop.f32.mrf.mxu0
  %461 = vmatprep.mubr.f32.mxu0 %v56
  %462 = vmatmul.mubr.f32.gmra.mxu0 %v55
  %v463 = vpop.f32.mrf.mxu0
  %v464 = vadd.f32 %v237, %v463
  %v465 = vpop.f32.mrf.mxu0
  %466 = vmatprep.mubr.f32.mxu0 %v59
  %467 = vmatmul.mubr.f32.gmra.mxu0 %v58
  %v468 = vpop.f32.mrf.mxu0
  %v469 = vadd.f32 %v237, %v468
  %v470 = vpop.f32.mrf.mxu0
  %471 = vmatprep.mubr.f32.mxu0 %v62
  %472 = vmatmul.mubr.f32.gmra.mxu0 %v61
  %v473 = vpop.f32.mrf.mxu0
  %v474 = vadd.f32 %v237, %v473
  %v475 = vpop.f32.mrf.mxu0
  %476 = vmatprep.mubr.f32.mxu0 %v65
  %477 = vmatmul.mubr.f32.gmra.mxu0 %v64
  %v478 = vpop.f32.mrf.mxu0
  %v479 = vadd.f32 %v237, %v478
  %v480 = vpop.f32.mrf.mxu0
  %481 = vmatprep.mubr.f32.mxu0 %v68
  %482 = vmatmul.mubr.f32.gmra.mxu0 %v67
  %v483 = vpop.f32.mrf.mxu0
  %v484 = vadd.f32 %v237, %v483
  %v485 = vpop.f32.mrf.mxu0
  %486 = vmatprep.mubr.f32.mxu0 %v71
  %487 = vmatmul.mubr.f32.gmra.mxu0 %v70
  %v488 = vpop.f32.mrf.mxu0
  %v489 = vadd.f32 %v237, %v488
  %v490 = vpop.f32.mrf.mxu0
  %491 = vmatprep.mubr.f32.mxu0 %v74
  %492 = vmatmul.mubr.f32.gmra.mxu0 %v73
  %v493 = vpop.f32.mrf.mxu0
  %v494 = vadd.f32 %v237, %v493
  %v495 = vpop.f32.mrf.mxu0
  %496 = vmatprep.mubr.f32.mxu0 %v77
  %497 = vmatmul.mubr.f32.gmra.mxu0 %v76
  %v498 = vpop.f32.mrf.mxu0
  %v499 = vadd.f32 %v237, %v498
  %v500 = vpop.f32.mrf.mxu0
  %501 = vmatprep.mubr.f32.mxu0 %v80
  %502 = vmatmul.mubr.f32.gmra.mxu0 %v79
  %v503 = vpop.f32.mrf.mxu0
  %v504 = vadd.f32 %v237, %v503
  %v505 = vpop.f32.mrf.mxu0
  %506 = vmatprep.mubr.f32.mxu0 %v83
  %507 = vmatmul.mubr.f32.gmra.mxu0 %v82
  %v508 = vpop.f32.mrf.mxu0
  %v509 = vadd.f32 %v237, %v508
  %v510 = vpop.f32.mrf.mxu0
  %511 = vmatprep.mubr.f32.mxu0 %v86
  %512 = vmatmul.mubr.f32.gmra.mxu0 %v85
  %v513 = vpop.f32.mrf.mxu0
  %v514 = vadd.f32 %v237, %v513
  %v515 = vpop.f32.mrf.mxu0
  %516 = vmatprep.mubr.f32.mxu0 %v89
  %517 = vmatmul.mubr.f32.gmra.mxu0 %v88
  %v518 = vpop.f32.mrf.mxu0
  %v519 = vadd.f32 %v237, %v518
  %v520 = vpop.f32.mrf.mxu0
  %521 = vmatprep.mubr.f32.mxu0 %v92
  %522 = vmatmul.mubr.f32.gmra.mxu0 %v91
  %v523 = vpop.f32.mrf.mxu0
  %v524 = vadd.f32 %v237, %v523
  %v525 = vpop.f32.mrf.mxu0
  %526 = vmatprep.mubr.f32.mxu0 %v95
  %527 = vmatmul.mubr.f32.gmra.mxu0 %v94
  %v528 = vpop.f32.mrf.mxu0
  %v529 = vadd.f32 %v237, %v528
  %v530 = vpop.f32.mrf.mxu0
  %531 = vmatprep.mubr.f32.mxu0 %v98
  %532 = vmatmul.mubr.f32.gmra.mxu0 %v97
  %v533 = vpop.f32.mrf.mxu0
  %v534 = vadd.f32 %v237, %v533
  %v535 = vpop.f32.mrf.mxu0
  %536 = vmatprep.mubr.f32.mxu0 %v101
  %537 = vmatmul.mubr.f32.gmra.mxu0 %v100
  %v538 = vpop.f32.mrf.mxu0
  %v539 = vadd.f32 %v237, %v538
  %v540 = vpop.f32.mrf.mxu0
  %541 = vmatprep.mubr.f32.mxu0 %v104
  %542 = vmatmul.mubr.f32.gmra.mxu0 %v103
  %v543 = vpop.f32.mrf.mxu0
  %v544 = vadd.f32 %v237, %v543
  %v545 = vpop.f32.mrf.mxu0
  %546 = vmatprep.mubr.f32.mxu0 %v107
  %547 = vmatmul.mubr.f32.gmra.mxu0 %v106
  %v548 = vpop.f32.mrf.mxu0
  %v549 = vadd.f32 %v237, %v548
  %v550 = vpop.f32.mrf.mxu0
  %551 = vmatprep.mubr.f32.mxu0 %v110
  %552 = vmatmul.mubr.f32.gmra.mxu0 %v109
  %v553 = vpop.f32.mrf.mxu0
  %v554 = vadd.f32 %v237, %v553
  %v555 = vpop.f32.mrf.mxu0
  %556 = vmatprep.mubr.f32.mxu0 %v113
  %557 = vmatmul.mubr.f32.gmra.mxu0 %v112
  %v558 = vpop.f32.mrf.mxu0
  %v559 = vadd.f32 %v237, %v558
  %v560 = vpop.f32.mrf.mxu0
  %561 = vmatprep.mubr.f32.mxu0 %v116
  %562 = vmatmul.mubr.f32.gmra.mxu0 %v115
  %v563 = vpop.f32.mrf.mxu0
  %v564 = vadd.f32 %v237, %v563
  %v565 = vpop.f32.mrf.mxu0
  %566 = vmatprep.mubr.f32.mxu0 %v119
  %567 = vmatmul.mubr.f32.gmra.mxu0 %v118
  %v568 = vpop.f32.mrf.mxu0
  %v569 = vadd.f32 %v237, %v568
  %v570 = vpop.f32.mrf.mxu0
  %571 = vmatprep.mubr.f32.mxu0 %v122
  %572 = vmatmul.mubr.f32.gmra.mxu0 %v121
  %v573 = vpop.f32.mrf.mxu0
  %v574 = vadd.f32 %v237, %v573
  %v575 = vpop.f32.mrf.mxu0
  %576 = vmatprep.mubr.f32.mxu0 %v125
  %577 = vmatmul.mubr.f32.gmra.mxu0 %v124
  %v578 = vpop.f32.mrf.mxu0
  %v579 = vadd.f32 %v237, %v578
  %v580 = vpop.f32.mrf.mxu0
  %581 = vmatprep.mubr.f32.mxu0 %v128
  %582 = vmatmul.mubr.f32.gmra.mxu0 %v127
  %v583 = vpop.f32.mrf.mxu0
  %v584 = vadd.f32 %v237, %v583
  %v585 = vpop.f32.mrf.mxu0
  %586 = vmatprep.mubr.f32.mxu0 %v131
  %587 = vmatmul.mubr.f32.gmra.mxu0 %v130
  %v588 = vpop.f32.mrf.mxu0
  %v589 = vadd.f32 %v237, %v588
  %v590 = vpop.f32.mrf.mxu0
  %591 = vmatprep.mubr.f32.mxu0 %v134
  %592 = vmatmul.mubr.f32.gmra.mxu0 %v133
  %v593 = vpop.f32.mrf.mxu0
  %v594 = vadd.f32 %v237, %v593
  %v595 = vpop.f32.mrf.mxu0
  %596 = vmatprep.mubr.f32.mxu0 %v137
  %597 = vmatmul.mubr.f32.gmra.mxu0 %v136
  %v598 = vpop.f32.mrf.mxu0
  %v599 = vadd.f32 %v237, %v598
  %v600 = vpop.f32.mrf.mxu0
  %601 = vmatprep.mubr.f32.mxu0 %v140
  %602 = vmatmul.mubr.f32.gmra.mxu0 %v139
  %v603 = vpop.f32.mrf.mxu0
  %v604 = vadd.f32 %v237, %v603
  %v605 = vpop.f32.mrf.mxu0
  %606 = vmatprep.mubr.f32.mxu0 %v143
  %607 = vmatmul.mubr.f32.gmra.mxu0 %v142
  %v608 = vpop.f32.mrf.mxu0
  %v609 = vadd.f32 %v237, %v608
  %v610 = vpop.f32.mrf.mxu0
  %611 = vmatprep.mubr.f32.mxu0 %v146
  %612 = vmatmul.mubr.f32.gmra.mxu0 %v145
  %v613 = vpop.f32.mrf.mxu0
  %v614 = vadd.f32 %v237, %v613
  %v615 = vpop.f32.mrf.mxu0
  %616 = vmatprep.mubr.f32.mxu0 %v149
  %617 = vmatmul.mubr.f32.gmra.mxu0 %v148
  %v618 = vpop.f32.mrf.mxu0
  %v619 = vadd.f32 %v237, %v618
  %v620 = vpop.f32.mrf.mxu0
  %621 = vmatprep.mubr.f32.mxu0 %v152
  %622 = vmatmul.mubr.f32.gmra.mxu0 %v151
  %v623 = vpop.f32.mrf.mxu0
  %v624 = vadd.f32 %v237, %v623
  %v625 = vpop.f32.mrf.mxu0
  %626 = vmatprep.mubr.f32.mxu0 %v155
  %627 = vmatmul.mubr.f32.gmra.mxu0 %v154
  %v628 = vpop.f32.mrf.mxu0
  %v629 = vadd.f32 %v237, %v628
  %v630 = vpop.f32.mrf.mxu0
  %631 = vmatprep.mubr.f32.mxu0 %v158
  %632 = vmatmul.mubr.f32.gmra.mxu0 %v157
  %v633 = vpop.f32.mrf.mxu0
  %v634 = vadd.f32 %v237, %v633
  %v635 = vpop.f32.mrf.mxu0
  %636 = vmatprep.mubr.f32.mxu0 %v161
  %637 = vmatmul.mubr.f32.gmra.mxu0 %v160
  %v638 = vpop.f32.mrf.mxu0
  %v639 = vadd.f32 %v237, %v638
  %v640 = vpop.f32.mrf.mxu0
  %641 = vmatprep.mubr.f32.mxu0 %v164
  %642 = vmatmul.mubr.f32.gmra.mxu0 %v163
  %v643 = vpop.f32.mrf.mxu0
  %v644 = vadd.f32 %v237, %v643
  %v645 = vpop.f32.mrf.mxu0
  %646 = vmatprep.mubr.f32.mxu0 %v167
  %647 = vmatmul.mubr.f32.gmra.mxu0 %v166
  %v648 = vpop.f32.mrf.mxu0
  %v649 = vadd.f32 %v237, %v648
  %v650 = vpop.f32.mrf.mxu0
  %651 = vmatprep.mubr.f32.mxu0 %v170
  %652 = vmatmul.mubr.f32.gmra.mxu0 %v169
  %v653 = vpop.f32.mrf.mxu0
  %v654 = vadd.f32 %v237, %v653
  %v655 = vpop.f32.mrf.mxu0
  %656 = vmatprep.mubr.f32.mxu0 %v173
  %657 = vmatmul.mubr.f32.gmra.mxu0 %v172
  %v658 = vpop.f32.mrf.mxu0
  %v659 = vadd.f32 %v237, %v658
  %v660 = vpop.f32.mrf.mxu0
  %661 = vmatprep.mubr.f32.mxu0 %v176
  %662 = vmatmul.mubr.f32.gmra.mxu0 %v175
  %v663 = vpop.f32.mrf.mxu0
  %v664 = vadd.f32 %v237, %v663
  %v665 = vpop.f32.mrf.mxu0
  %666 = vmatprep.mubr.f32.mxu0 %v179
  %667 = vmatmul.mubr.f32.gmra.mxu0 %v178
  %v668 = vpop.f32.mrf.mxu0
  %v669 = vadd.f32 %v237, %v668
  %v670 = vpop.f32.mrf.mxu0
  %671 = vmatprep.mubr.f32.mxu0 %v182
  %672 = vmatmul.mubr.f32.gmra.mxu0 %v181
  %v673 = vpop.f32.mrf.mxu0
  %v674 = vadd.f32 %v237, %v673
  %v675 = vpop.f32.mrf.mxu0
  %676 = vmatprep.mubr.f32.mxu0 %v185
  %677 = vmatmul.mubr.f32.gmra.mxu0 %v184
  %v678 = vpop.f32.mrf.mxu0
  %v679 = vadd.f32 %v237, %v678
  %v680 = vpop.f32.mrf.mxu0
  %681 = vmatprep.mubr.f32.mxu0 %v188
  %682 = vmatmul.mubr.f32.gmra.mxu0 %v187
  %v683 = vpop.f32.mrf.mxu0
  %v684 = vadd.f32 %v237, %v683
  %v685 = vpop.f32.mrf.mxu0
  %686 = vmatprep.mubr.f32.mxu0 %v191
  %687 = vmatmul.mubr.f32.gmra.mxu0 %v190
  %v688 = vpop.f32.mrf.mxu0
  %v689 = vadd.f32 %v237, %v688
  %v690 = vpop.f32.mrf.mxu0
  %691 = vmatprep.mubr.f32.mxu0 %v194
  %692 = vmatmul.mubr.f32.gmra.mxu0 %v193
  %v693 = vpop.f32.mrf.mxu0
  %v694 = vadd.f32 %v237, %v693
  %v695 = vpop.f32.mrf.mxu0
  %696 = vdwg.mxu0
  %697 = vmatprep.subr.mxu0 0.0
  %698 = vmatpush1.msra.mxu0 0.0
  %699 = vmatprep.subr.mxu0 0.0
  %700 = vmatpush1.msra.mxu0 0.0
  %701 = vmatprep.subr.mxu0 0.0
  %702 = vmatpush1.msra.mxu0 0.0
  %703 = vmatprep.subr.mxu0 0.0
  %704 = vmatpush1.msra.mxu0 0.0
  %705 = vmatprep.subr.mxu0 0.0
  %706 = vmatpush1.msra.mxu0 0.0
  %707 = vmatprep.subr.mxu0 0.0
  %708 = vmatpush1.msra.mxu0 0.0
  %709 = vmatprep.subr.mxu0 0.0
  %710 = vmatpush1.msra.mxu0 0.0
  %711 = vmatprep.subr.mxu0 0.0
  %712 = vmatpush1.msra.mxu0 0.0
  %713 = vmatprep.subr.mxu0 0.0
  %714 = vmatpush1.msra.mxu0 0.0
  %715 = vmatprep.subr.mxu0 0.0
  %716 = vmatpush1.msra.mxu0 0.0
  %717 = vmatprep.subr.mxu0 0.0
  %718 = vmatpush1.msra.mxu0 0.0
  %719 = vmatprep.subr.mxu0 0.0
  %720 = vmatpush1.msra.mxu0 0.0
  %721 = vmatprep.subr.mxu0 0.0
  %722 = vmatpush1.msra.mxu0 %v231
  %723 = vmatprep.subr.mxu0 0.0
  %724 = vmatpush1.msra.mxu0 %v230
  %725 = vmatprep.subr.mxu0 0.0
  %726 = vmatpush1.msra.mxu0 %v229
  %727 = vmatprep.subr.mxu0 0.0
  %728 = vmatpush1.msra.mxu0 %v228
  %729 = vmatprep.subr.mxu0 0.0
  %730 = vmatpush2.msra.mxu0 0.0
  %731 = vmatprep.subr.mxu0 0.0
  %732 = vmatpush2.msra.mxu0 0.0
  %733 = vmatprep.subr.mxu0 0.0
  %734 = vmatpush2.msra.mxu0 0.0
  %735 = vmatprep.subr.mxu0 0.0
  %736 = vmatpush2.msra.mxu0 0.0
  %737 = vmatprep.subr.mxu0 0.0
  %738 = vmatpush2.msra.mxu0 0.0
  %739 = vmatprep.subr.mxu0 0.0
  %740 = vmatpush2.msra.mxu0 0.0
  %741 = vmatprep.subr.mxu0 0.0
  %742 = vmatpush2.msra.mxu0 0.0
  %743 = vmatprep.subr.mxu0 0.0
  %744 = vmatpush2.msra.mxu0 0.0
  %745 = vmatprep.subr.mxu0 0.0
  %746 = vmatpush2.msra.mxu0 0.0
  %747 = vmatprep.subr.mxu0 0.0
  %748 = vmatpush2.msra.mxu0 0.0
  %749 = vmatprep.subr.mxu0 0.0
  %750 = vmatpush2.msra.mxu0 0.0
  %751 = vmatprep.subr.mxu0 0.0
  %752 = vmatpush2.msra.mxu0 0.0
  %753 = vmatprep.subr.mxu0 0.0
  %754 = vmatpush2.msra.mxu0 0.0
  %755 = vmatprep.subr.mxu0 0.0
  %756 = vmatpush2.msra.mxu0 0.0
  %757 = vmatprep.subr.mxu0 0.0
  %758 = vmatpush2.msra.mxu0 0.0
  %759 = vmatprep.subr.mxu0 0.0
  %760 = vmatpush2.msra.mxu0 0.0
  %761 = vmatprep.mubr.f32.mxu0 0.0
  %762 = vmatmul.mubr.f32.gmra.mxu0 %v241
  %v763 = vpop.f32.mrf.mxu0
  %v764 = vadd.f32 %v454, %v763
  %v765 = vpop.f32.mrf.mxu0
  %766 = vmatprep.mubr.f32.mxu0 0.0
  %767 = vmatmul.mubr.f32.gmra.mxu0 %v244
  %v768 = vpop.f32.mrf.mxu0
  %v769 = vadd.f32 %v459, %v768
  %v770 = vpop.f32.mrf.mxu0
  %771 = vmatprep.mubr.f32.mxu0 0.0
  %772 = vmatmul.mubr.f32.gmra.mxu0 %v247
  %v773 = vpop.f32.mrf.mxu0
  %v774 = vadd.f32 %v464, %v773
  %v775 = vpop.f32.mrf.mxu0
  %776 = vmatprep.mubr.f32.mxu0 0.0
  %777 = vmatmul.mubr.f32.gmra.mxu0 %v250
  %v778 = vpop.f32.mrf.mxu0
  %v779 = vadd.f32 %v469, %v778
  %v780 = vpop.f32.mrf.mxu0
  %781 = vmatprep.mubr.f32.mxu0 0.0
  %782 = vmatmul.mubr.f32.gmra.mxu0 %v253
  %v783 = vpop.f32.mrf.mxu0
  %v784 = vadd.f32 %v474, %v783
  %v785 = vpop.f32.mrf.mxu0
  %786 = vmatprep.mubr.f32.mxu0 0.0
  %787 = vmatmul.mubr.f32.gmra.mxu0 %v256
  %v788 = vpop.f32.mrf.mxu0
  %v789 = vadd.f32 %v479, %v788
  %v790 = vpop.f32.mrf.mxu0
  %791 = vmatprep.mubr.f32.mxu0 0.0
  %792 = vmatmul.mubr.f32.gmra.mxu0 %v259
  %v793 = vpop.f32.mrf.mxu0
  %v794 = vadd.f32 %v484, %v793
  %v795 = vpop.f32.mrf.mxu0
  %796 = vmatprep.mubr.f32.mxu0 0.0
  %797 = vmatmul.mubr.f32.gmra.mxu0 %v262
  %v798 = vpop.f32.mrf.mxu0
  %v799 = vadd.f32 %v489, %v798
  %v800 = vpop.f32.mrf.mxu0
  %801 = vmatprep.mubr.f32.mxu0 0.0
  %802 = vmatmul.mubr.f32.gmra.mxu0 %v265
  %v803 = vpop.f32.mrf.mxu0
  %v804 = vadd.f32 %v494, %v803
  %v805 = vpop.f32.mrf.mxu0
  %806 = vmatprep.mubr.f32.mxu0 0.0
  %807 = vmatmul.mubr.f32.gmra.mxu0 %v268
  %v808 = vpop.f32.mrf.mxu0
  %v809 = vadd.f32 %v499, %v808
  %v810 = vpop.f32.mrf.mxu0
  %811 = vmatprep.mubr.f32.mxu0 0.0
  %812 = vmatmul.mubr.f32.gmra.mxu0 %v271
  %v813 = vpop.f32.mrf.mxu0
  %v814 = vadd.f32 %v504, %v813
  %v815 = vpop.f32.mrf.mxu0
  %816 = vmatprep.mubr.f32.mxu0 0.0
  %817 = vmatmul.mubr.f32.gmra.mxu0 %v274
  %v818 = vpop.f32.mrf.mxu0
  %v819 = vadd.f32 %v509, %v818
  %v820 = vpop.f32.mrf.mxu0
  %821 = vmatprep.mubr.f32.mxu0 0.0
  %822 = vmatmul.mubr.f32.gmra.mxu0 %v277
  %v823 = vpop.f32.mrf.mxu0
  %v824 = vadd.f32 %v514, %v823
  %v825 = vpop.f32.mrf.mxu0
  %826 = vmatprep.mubr.f32.mxu0 0.0
  %827 = vmatmul.mubr.f32.gmra.mxu0 %v280
  %v828 = vpop.f32.mrf.mxu0
  %v829 = vadd.f32 %v519, %v828
  %v830 = vpop.f32.mrf.mxu0
  %831 = vmatprep.mubr.f32.mxu0 0.0
  %832 = vmatmul.mubr.f32.gmra.mxu0 %v283
  %v833 = vpop.f32.mrf.mxu0
  %v834 = vadd.f32 %v524, %v833
  %v835 = vpop.f32.mrf.mxu0
  %836 = vmatprep.mubr.f32.mxu0 0.0
  %837 = vmatmul.mubr.f32.gmra.mxu0 %v286
  %v838 = vpop.f32.mrf.mxu0
  %v839 = vadd.f32 %v529, %v838
  %v840 = vpop.f32.mrf.mxu0
  %841 = vmatprep.mubr.f32.mxu0 0.0
  %842 = vmatmul.mubr.f32.gmra.mxu0 %v289
  %v843 = vpop.f32.mrf.mxu0
  %v844 = vadd.f32 %v534, %v843
  %v845 = vpop.f32.mrf.mxu0
  %846 = vmatprep.mubr.f32.mxu0 0.0
  %847 = vmatmul.mubr.f32.gmra.mxu0 %v292
  %v848 = vpop.f32.mrf.mxu0
  %v849 = vadd.f32 %v539, %v848
  %v850 = vpop.f32.mrf.mxu0
  %851 = vmatprep.mubr.f32.mxu0 0.0
  %852 = vmatmul.mubr.f32.gmra.mxu0 %v295
  %v853 = vpop.f32.mrf.mxu0
  %v854 = vadd.f32 %v544, %v853
  %v855 = vpop.f32.mrf.mxu0
  %856 = vmatprep.mubr.f32.mxu0 0.0
  %857 = vmatmul.mubr.f32.gmra.mxu0 %v298
  %v858 = vpop.f32.mrf.mxu0
  %v859 = vadd.f32 %v549, %v858
  %v860 = vpop.f32.mrf.mxu0
  %861 = vmatprep.mubr.f32.mxu0 0.0
  %862 = vmatmul.mubr.f32.gmra.mxu0 %v301
  %v863 = vpop.f32.mrf.mxu0
  %v864 = vadd.f32 %v554, %v863
  %v865 = vpop.f32.mrf.mxu0
  %866 = vmatprep.mubr.f32.mxu0 0.0
  %867 = vmatmul.mubr.f32.gmra.mxu0 %v304
  %v868 = vpop.f32.mrf.mxu0
  %v869 = vadd.f32 %v559, %v868
  %v870 = vpop.f32.mrf.mxu0
  %871 = vmatprep.mubr.f32.mxu0 0.0
  %872 = vmatmul.mubr.f32.gmra.mxu0 %v307
  %v873 = vpop.f32.mrf.mxu0
  %v874 = vadd.f32 %v564, %v873
  %v875 = vpop.f32.mrf.mxu0
  %876 = vmatprep.mubr.f32.mxu0 0.0
  %877 = vmatmul.mubr.f32.gmra.mxu0 %v310
  %v878 = vpop.f32.mrf.mxu0
  %v879 = vadd.f32 %v569, %v878
  %v880 = vpop.f32.mrf.mxu0
  %881 = vmatprep.mubr.f32.mxu0 0.0
  %882 = vmatmul.mubr.f32.gmra.mxu0 %v313
  %v883 = vpop.f32.mrf.mxu0
  %v884 = vadd.f32 %v574, %v883
  %v885 = vpop.f32.mrf.mxu0
  %886 = vmatprep.mubr.f32.mxu0 0.0
  %887 = vmatmul.mubr.f32.gmra.mxu0 %v316
  %v888 = vpop.f32.mrf.mxu0
  %v889 = vadd.f32 %v579, %v888
  %v890 = vpop.f32.mrf.mxu0
  %891 = vmatprep.mubr.f32.mxu0 0.0
  %892 = vmatmul.mubr.f32.gmra.mxu0 %v319
  %v893 = vpop.f32.mrf.mxu0
  %v894 = vadd.f32 %v584, %v893
  %v895 = vpop.f32.mrf.mxu0
  %896 = vmatprep.mubr.f32.mxu0 0.0
  %897 = vmatmul.mubr.f32.gmra.mxu0 %v322
  %v898 = vpop.f32.mrf.mxu0
  %v899 = vadd.f32 %v589, %v898
  %v900 = vpop.f32.mrf.mxu0
  %901 = vmatprep.mubr.f32.mxu0 0.0
  %902 = vmatmul.mubr.f32.gmra.mxu0 %v325
  %v903 = vpop.f32.mrf.mxu0
  %v904 = vadd.f32 %v594, %v903
  %v905 = vpop.f32.mrf.mxu0
  %906 = vmatprep.mubr.f32.mxu0 0.0
  %907 = vmatmul.mubr.f32.gmra.mxu0 %v328
  %v908 = vpop.f32.mrf.mxu0
  %v909 = vadd.f32 %v599, %v908
  %v910 = vpop.f32.mrf.mxu0
  %911 = vmatprep.mubr.f32.mxu0 0.0
  %912 = vmatmul.mubr.f32.gmra.mxu0 %v331
  %v913 = vpop.f32.mrf.mxu0
  %v914 = vadd.f32 %v604, %v913
  %v915 = vpop.f32.mrf.mxu0
  %916 = vmatprep.mubr.f32.mxu0 0.0
  %917 = vmatmul.mubr.f32.gmra.mxu0 %v334
  %v918 = vpop.f32.mrf.mxu0
  %v919 = vadd.f32 %v609, %v918
  %v920 = vpop.f32.mrf.mxu0
  %921 = vmatprep.mubr.f32.mxu0 0.0
  %922 = vmatmul.mubr.f32.gmra.mxu0 %v337
  %v923 = vpop.f32.mrf.mxu0
  %v924 = vadd.f32 %v614, %v923
  %v925 = vpop.f32.mrf.mxu0
  %926 = vmatprep.mubr.f32.mxu0 0.0
  %927 = vmatmul.mubr.f32.gmra.mxu0 %v340
  %v928 = vpop.f32.mrf.mxu0
  %v929 = vadd.f32 %v619, %v928
  %v930 = vpop.f32.mrf.mxu0
  %931 = vmatprep.mubr.f32.mxu0 0.0
  %932 = vmatmul.mubr.f32.gmra.mxu0 %v343
  %v933 = vpop.f32.mrf.mxu0
  %v934 = vadd.f32 %v624, %v933
  %v935 = vpop.f32.mrf.mxu0
  %936 = vmatprep.mubr.f32.mxu0 0.0
  %937 = vmatmul.mubr.f32.gmra.mxu0 %v346
  %v938 = vpop.f32.mrf.mxu0
  %v939 = vadd.f32 %v629, %v938
  %v940 = vpop.f32.mrf.mxu0
  %941 = vmatprep.mubr.f32.mxu0 0.0
  %942 = vmatmul.mubr.f32.gmra.mxu0 %v349
  %v943 = vpop.f32.mrf.mxu0
  %v944 = vadd.f32 %v634, %v943
  %v945 = vpop.f32.mrf.mxu0
  %946 = vmatprep.mubr.f32.mxu0 0.0
  %947 = vmatmul.mubr.f32.gmra.mxu0 %v352
  %v948 = vpop.f32.mrf.mxu0
  %v949 = vadd.f32 %v639, %v948
  %v950 = vpop.f32.mrf.mxu0
  %951 = vmatprep.mubr.f32.mxu0 0.0
  %952 = vmatmul.mubr.f32.gmra.mxu0 %v355
  %v953 = vpop.f32.mrf.mxu0
  %v954 = vadd.f32 %v644, %v953
  %v955 = vpop.f32.mrf.mxu0
  %956 = vmatprep.mubr.f32.mxu0 0.0
  %957 = vmatmul.mubr.f32.gmra.mxu0 %v358
  %v958 = vpop.f32.mrf.mxu0
  %v959 = vadd.f32 %v649, %v958
  %v960 = vpop.f32.mrf.mxu0
  %961 = vmatprep.mubr.f32.mxu0 0.0
  %962 = vmatmul.mubr.f32.gmra.mxu0 %v361
  %v963 = vpop.f32.mrf.mxu0
  %v964 = vadd.f32 %v654, %v963
  %v965 = vpop.f32.mrf.mxu0
  %966 = vmatprep.mubr.f32.mxu0 0.0
  %967 = vmatmul.mubr.f32.gmra.mxu0 %v364
  %v968 = vpop.f32.mrf.mxu0
  %v969 = vadd.f32 %v659, %v968
  %v970 = vpop.f32.mrf.mxu0
  %971 = vmatprep.mubr.f32.mxu0 0.0
  %972 = vmatmul.mubr.f32.gmra.mxu0 %v367
  %v973 = vpop.f32.mrf.mxu0
  %v974 = vadd.f32 %v664, %v973
  %v975 = vpop.f32.mrf.mxu0
  %976 = vmatprep.mubr.f32.mxu0 0.0
  %977 = vmatmul.mubr.f32.gmra.mxu0 %v370
  %v978 = vpop.f32.mrf.mxu0
  %v979 = vadd.f32 %v669, %v978
  %v980 = vpop.f32.mrf.mxu0
  %981 = vmatprep.mubr.f32.mxu0 0.0
  %982 = vmatmul.mubr.f32.gmra.mxu0 %v373
  %v983 = vpop.f32.mrf.mxu0
  %v984 = vadd.f32 %v674, %v983
  %v985 = vpop.f32.mrf.mxu0
  %986 = vmatprep.mubr.f32.mxu0 0.0
  %987 = vmatmul.mubr.f32.gmra.mxu0 %v376
  %v988 = vpop.f32.mrf.mxu0
  %v989 = vadd.f32 %v679, %v988
  %v990 = vpop.f32.mrf.mxu0
  %991 = vmatprep.mubr.f32.mxu0 0.0
  %992 = vmatmul.mubr.f32.gmra.mxu0 %v379
  %v993 = vpop.f32.mrf.mxu0
  %v994 = vadd.f32 %v684, %v993
  %v995 = vpop.f32.mrf.mxu0
  %996 = vmatprep.mubr.f32.mxu0 0.0
  %997 = vmatmul.mubr.f32.gmra.mxu0 %v382
  %v998 = vpop.f32.mrf.mxu0
  %v999 = vadd.f32 %v689, %v998
  %v1000 = vpop.f32.mrf.mxu0
  %1001 = vmatprep.mubr.f32.mxu0 0.0
  %1002 = vmatmul.mubr.f32.gmra.mxu0 %v385
  %v1003 = vpop.f32.mrf.mxu0
  %v1004 = vadd.f32 %v694, %v1003
  %v1005 = vpop.f32.mrf.mxu0
  %1006 = vdwg.mxu0
  %v1007 = vmax.f32 %v764, 0.0
  %v1008 = vmax.f32 %v769, 0.0
  %v1009 = vmax.f32 %v774, 0.0
  %v1010 = vmax.f32 %v779, 0.0
  %v1011 = vmax.f32 %v784, 0.0
  %v1012 = vmax.f32 %v789, 0.0
  %v1013 = vmax.f32 %v794, 0.0
  %v1014 = vmax.f32 %v799, 0.0
  %v1015 = vmax.f32 %v804, 0.0
  %v1016 = vmax.f32 %v809, 0.0
  %v1017 = vmax.f32 %v814, 0.0
  %v1018 = vmax.f32 %v819, 0.0
  %v1019 = vmax.f32 %v824, 0.0
  %v1020 = vmax.f32 %v829, 0.0
  %v1021 = vmax.f32 %v834, 0.0
  %v1022 = vmax.f32 %v839, 0.0
  %v1023 = vmax.f32 %v844, 0.0
  %v1024 = vmax.f32 %v849, 0.0
  %v1025 = vmax.f32 %v854, 0.0
  %v1026 = vmax.f32 %v859, 0.0
  %v1027 = vmax.f32 %v864, 0.0
  %v1028 = vmax.f32 %v869, 0.0
  %v1029 = vmax.f32 %v874, 0.0
  %v1030 = vmax.f32 %v879, 0.0
  %v1031 = vmax.f32 %v884, 0.0
  %v1032 = vmax.f32 %v889, 0.0
  %v1033 = vmax.f32 %v894, 0.0
  %v1034 = vmax.f32 %v899, 0.0
  %v1035 = vmax.f32 %v904, 0.0
  %v1036 = vmax.f32 %v909, 0.0
  %v1037 = vmax.f32 %v914, 0.0
  %v1038 = vmax.f32 %v919, 0.0
  %v1039 = vmax.f32 %v924, 0.0
  %v1040 = vmax.f32 %v929, 0.0
  %v1041 = vmax.f32 %v934, 0.0
  %v1042 = vmax.f32 %v939, 0.0
  %v1043 = vmax.f32 %v944, 0.0
  %v1044 = vmax.f32 %v949, 0.0
  %v1045 = vmax.f32 %v954, 0.0
  %v1046 = vmax.f32 %v959, 0.0
  %v1047 = vmax.f32 %v964, 0.0
  %v1048 = vmax.f32 %v969, 0.0
  %v1049 = vmax.f32 %v974, 0.0
  %v1050 = vmax.f32 %v979, 0.0
  %v1051 = vmax.f32 %v984, 0.0
  %v1052 = vmax.f32 %v989, 0.0
  %v1053 = vmax.f32 %v994, 0.0
  %v1054 = vmax.f32 %v999, 0.0
  %v1055 = vmax.f32 %v1004, 0.0
  %v1056 = vld [vmem:[%s8] sm:$0xff]
  %v1057 = vld [vmem:[%s8 + $0x8] sm:$0xff]
  %v1058 = vld [vmem:[%s8 + $0x10] sm:$0xff]
  %v1059 = vld [vmem:[%s8 + $0x18] sm:$0xff]
  %v1060 = vld [vmem:[%s8 + $0x20] sm:$0xff]
  %v1061 = vld [vmem:[%s8 + $0x28] sm:$0xff]
  %v1062 = vld [vmem:[%s8 + $0x30] sm:$0xff]
  %v1063 = vld [vmem:[%s8 + $0x38] sm:$0xff]
  %v1064 = vld [vmem:[%s8 + $0x40] sm:$0xff]
  %v1065 = vld [vmem:[%s8 + $0x48] sm:$0xff]
  %v1066 = vld [vmem:[%s8 + $0x50] sm:$0xff]
  %v1067 = vld [vmem:[%s8 + $0x58] sm:$0xff]
  %v1068 = vld [vmem:[%s8 + $0x60] sm:$0xff]
  %v1069 = vld [vmem:[%s8 + $0x68] sm:$0xff]
  %v1070 = vld [vmem:[%s8 + $0x70] sm:$0xff]
  %v1071 = vld [vmem:[%s8 + $0x78] sm:$0xff]
  %v1072 = vld [vmem:[%s8 + $0x80] sm:$0xff]
  %v1073 = vld [vmem:[%s8 + $0x88] sm:$0xff]
  %v1074 = vld [vmem:[%s8 + $0x90] sm:$0xff]
  %v1075 = vld [vmem:[%s8 + $0x98] sm:$0xff]
  %v1076 = vld [vmem:[%s8 + $0xa0] sm:$0xff]
  %v1077 = vld [vmem:[%s8 + $0xa8] sm:$0xff]
  %v1078 = vld [vmem:[%s8 + $0xb0] sm:$0xff]
  %v1079 = vld [vmem:[%s8 + $0xb8] sm:$0xff]
  %v1080 = vld [vmem:[%s8 + $0xc0] sm:$0xff]
  %v1081 = vld [vmem:[%s8 + $0xc8] sm:$0xff]
  %v1082 = vld [vmem:[%s8 + $0xd0] sm:$0xff]
  %v1083 = vld [vmem:[%s8 + $0xd8] sm:$0xff]
  %v1084 = vld [vmem:[%s8 + $0xe0] sm:$0xff]
  %v1085 = vld [vmem:[%s8 + $0xe8] sm:$0xff]
  %v1086 = vld [vmem:[%s8 + $0xf0] sm:$0xff]
  %v1087 = vld [vmem:[%s8 + $0xf8] sm:$0xff]
  %v1088 = vld [vmem:[%s8 + $0x100] sm:$0xff]
  %v1089 = vld [vmem:[%s8 + $0x108] sm:$0xff]
  %v1090 = vld [vmem:[%s8 + $0x110] sm:$0xff]
  %v1091 = vld [vmem:[%s8 + $0x118] sm:$0xff]
  %v1092 = vld [vmem:[%s8 + $0x120] sm:$0xff]
  %v1093 = vld [vmem:[%s8 + $0x128] sm:$0xff]
  %v1094 = vld [vmem:[%s8 + $0x130] sm:$0xff]
  %v1095 = vld [vmem:[%s8 + $0x138] sm:$0xff]
  %v1096 = vld [vmem:[%s8 + $0x140] sm:$0xff]
  %v1097 = vld [vmem:[%s8 + $0x148] sm:$0xff]
  %v1098 = vld [vmem:[%s8 + $0x150] sm:$0xff]
  %v1099 = vld [vmem:[%s8 + $0x158] sm:$0xff]
  %v1100 = vld [vmem:[%s8 + $0x160] sm:$0xff]
  %v1101 = vld [vmem:[%s8 + $0x168] sm:$0xff]
  %v1102 = vld [vmem:[%s8 + $0x170] sm:$0xff]
  %v1103 = vld [vmem:[%s8 + $0x178] sm:$0xff]
  %v1104 = vld [vmem:[%s8 + $0x180] sm:$0xff]
  %v1105 = vld [vmem:[%s8 + $0x188] sm:$0xff]
  %v1106 = vld [vmem:[%s8 + $0x190] sm:$0xff]
  %v1107 = vld [vmem:[%s8 + $0x198] sm:$0xff]
  %v1108 = vld [vmem:[%s8 + $0x1a0] sm:$0xff]
  %v1109 = vld [vmem:[%s8 + $0x1a8] sm:$0xff]
  %v1110 = vld [vmem:[%s8 + $0x1b0] sm:$0xff]
  %v1111 = vld [vmem:[%s8 + $0x1b8] sm:$0xff]
  %v1112 = vld [vmem:[%s8 + $0x1c0] sm:$0xff]
  %v1113 = vld [vmem:[%s8 + $0x1c8] sm:$0xff]
  %v1114 = vld [vmem:[%s8 + $0x1d0] sm:$0xff]
  %v1115 = vld [vmem:[%s8 + $0x1d8] sm:$0xff]
  %v1116 = vld [vmem:[%s8 + $0x1e0] sm:$0xff]
  %v1117 = vld [vmem:[%s8 + $0x1e8] sm:$0xff]
  %v1118 = vld [vmem:[%s8 + $0x1f0] sm:$0xff]
  %v1119 = vld [vmem:[%s8 + $0x1f8] sm:$0xff]
  %v1120 = vld [vmem:[%s8 + $0x200] sm:$0xff]
  %v1121 = vld [vmem:[%s8 + $0x208] sm:$0xff]
  %v1122 = vld [vmem:[%s8 + $0x210] sm:$0xff]
  %v1123 = vld [vmem:[%s8 + $0x218] sm:$0xff]
  %v1124 = vld [vmem:[%s8 + $0x220] sm:$0xff]
  %v1125 = vld [vmem:[%s8 + $0x228] sm:$0xff]
  %v1126 = vld [vmem:[%s8 + $0x230] sm:$0xff]
  %v1127 = vld [vmem:[%s8 + $0x238] sm:$0xff]
  %v1128 = vld [vmem:[%s8 + $0x240] sm:$0xff]
  %v1129 = vld [vmem:[%s8 + $0x248] sm:$0xff]
  %v1130 = vld [vmem:[%s8 + $0x250] sm:$0xff]
  %v1131 = vld [vmem:[%s8 + $0x258] sm:$0xff]
  %v1132 = vld [vmem:[%s8 + $0x260] sm:$0xff]
  %v1133 = vld [vmem:[%s8 + $0x268] sm:$0xff]
  %v1134 = vld [vmem:[%s8 + $0x270] sm:$0xff]
  %v1135 = vld [vmem:[%s8 + $0x278] sm:$0xff]
  %v1136 = vld [vmem:[%s8 + $0x280] sm:$0xff]
  %v1137 = vld [vmem:[%s8 + $0x288] sm:$0xff]
  %v1138 = vld [vmem:[%s8 + $0x290] sm:$0xff]
  %v1139 = vld [vmem:[%s8 + $0x298] sm:$0xff]
  %v1140 = vld [vmem:[%s8 + $0x2a0] sm:$0xff]
  %v1141 = vld [vmem:[%s8 + $0x2a8] sm:$0xff]
  %v1142 = vld [vmem:[%s8 + $0x2b0] sm:$0xff]
  %v1143 = vld [vmem:[%s8 + $0x2b8] sm:$0xff]
  %v1144 = vld [vmem:[%s8 + $0x2c0] sm:$0xff]
  %v1145 = vld [vmem:[%s8 + $0x2c8] sm:$0xff]
  %v1146 = vld [vmem:[%s8 + $0x2d0] sm:$0xff]
  %v1147 = vld [vmem:[%s8 + $0x2d8] sm:$0xff]
  %v1148 = vld [vmem:[%s8 + $0x2e0] sm:$0xff]
  %v1149 = vld [vmem:[%s8 + $0x2e8] sm:$0xff]
  %v1150 = vld [vmem:[%s8 + $0x2f0] sm:$0xff]
  %v1151 = vld [vmem:[%s8 + $0x2f8] sm:$0xff]
  %v1152 = vld [vmem:[%s8 + $0x300] sm:$0xff]
  %v1153 = vld [vmem:[%s8 + $0x308] sm:$0xff]
  %v1154 = vld [vmem:[%s8 + $0x310] sm:$0xff]
  %v1155 = vld [vmem:[%s8 + $0x318] sm:$0xff]
  %v1156 = vld [vmem:[%s8 + $0x320] sm:$0xff]
  %v1157 = vld [vmem:[%s8 + $0x328] sm:$0xff]
  %v1158 = vld [vmem:[%s8 + $0x330] sm:$0xff]
  %v1159 = vld [vmem:[%s8 + $0x338] sm:$0xff]
  %v1160 = vld [vmem:[%s8 + $0x340] sm:$0xff]
  %v1161 = vld [vmem:[%s8 + $0x348] sm:$0xff]
  %v1162 = vld [vmem:[%s8 + $0x350] sm:$0xff]
  %v1163 = vld [vmem:[%s8 + $0x358] sm:$0xff]
  %v1164 = vld [vmem:[%s8 + $0x360] sm:$0xff]
  %v1165 = vld [vmem:[%s8 + $0x368] sm:$0xff]
  %v1166 = vld [vmem:[%s8 + $0x370] sm:$0xff]
  %v1167 = vld [vmem:[%s8 + $0x378] sm:$0xff]
  %v1168 = vld [vmem:[%s8 + $0x380] sm:$0xff]
  %v1169 = vld [vmem:[%s8 + $0x388] sm:$0xff]
  %v1170 = vld [vmem:[%s8 + $0x390] sm:$0xff]
  %v1171 = vld [vmem:[%s8 + $0x398] sm:$0xff]
  %v1172 = vld [vmem:[%s8 + $0x3a0] sm:$0xff]
  %v1173 = vld [vmem:[%s8 + $0x3a8] sm:$0xff]
  %v1174 = vld [vmem:[%s8 + $0x3b0] sm:$0xff]
  %v1175 = vld [vmem:[%s8 + $0x3b8] sm:$0xff]
  %v1176 = vld [vmem:[%s8 + $0x3c0] sm:$0xff]
  %v1177 = vld [vmem:[%s8 + $0x3c8] sm:$0xff]
  %v1178 = vld [vmem:[%s8 + $0x3d0] sm:$0xff]
  %v1179 = vld [vmem:[%s8 + $0x3d8] sm:$0xff]
  %v1180 = vld [vmem:[%s8 + $0x3e0] sm:$0xff]
  %v1181 = vld [vmem:[%s8 + $0x3e8] sm:$0xff]
  %v1182 = vld [vmem:[%s8 + $0x3f0] sm:$0xff]
  %v1183 = vld [vmem:[%s8 + $0x3f8] sm:$0xff]
  %v1184 = vld [vmem:[%s8 + $0x400] sm:$0xff]
  %v1185 = vld [vmem:[%s8 + $0x408] sm:$0xff]
  %v1186 = vld [vmem:[%s8 + $0x410] sm:$0xff]
  %v1187 = vld [vmem:[%s8 + $0x418] sm:$0xff]
  %v1188 = vld [vmem:[%s8 + $0x420] sm:$0xff]
  %v1189 = vld [vmem:[%s8 + $0x428] sm:$0xff]
  %v1190 = vld [vmem:[%s8 + $0x430] sm:$0xff]
  %v1191 = vld [vmem:[%s8 + $0x438] sm:$0xff]
  %v1192 = vld [vmem:[%s8 + $0x440] sm:$0xff]
  %v1193 = vld [vmem:[%s8 + $0x448] sm:$0xff]
  %v1194 = vld [vmem:[%s8 + $0x450] sm:$0xff]
  %v1195 = vld [vmem:[%s8 + $0x458] sm:$0xff]
  %v1196 = vld [vmem:[%s8 + $0x460] sm:$0xff]
  %v1197 = vld [vmem:[%s8 + $0x468] sm:$0xff]
  %v1198 = vld [vmem:[%s8 + $0x470] sm:$0xff]
  %v1199 = vld [vmem:[%s8 + $0x478] sm:$0xff]
  %v1200 = vld [vmem:[%s8 + $0x480] sm:$0xff]
  %v1201 = vld [vmem:[%s8 + $0x488] sm:$0xff]
  %v1202 = vld [vmem:[%s8 + $0x490] sm:$0xff]
  %v1203 = vld [vmem:[%s8 + $0x498] sm:$0xff]
  %v1204 = vld [vmem:[%s8 + $0x4a0] sm:$0xff]
  %v1205 = vld [vmem:[%s8 + $0x4a8] sm:$0xff]
  %v1206 = vld [vmem:[%s8 + $0x4b0] sm:$0xff]
  %v1207 = vld [vmem:[%s8 + $0x4b8] sm:$0xff]
  %v1208 = vld [vmem:[%s8 + $0x4c0] sm:$0xff]
  %v1209 = vld [vmem:[%s8 + $0x4c8] sm:$0xff]
  %v1210 = vld [vmem:[%s8 + $0x4d0] sm:$0xff]
  %v1211 = vld [vmem:[%s8 + $0x4d8] sm:$0xff]
  %v1212 = vld [vmem:[%s8 + $0x4e0] sm:$0xff]
  %v1213 = vld [vmem:[%s8 + $0x4e8] sm:$0xff]
  %v1214 = vld [vmem:[%s8 + $0x4f0] sm:$0xff]
  %v1215 = vld [vmem:[%s8 + $0x4f8] sm:$0xff]
  %v1216 = vld [vmem:[%s8 + $0x500] sm:$0xff]
  %v1217 = vld [vmem:[%s8 + $0x508] sm:$0xff]
  %v1218 = vld [vmem:[%s8 + $0x510] sm:$0xff]
  %v1219 = vld [vmem:[%s8 + $0x518] sm:$0xff]
  %v1220 = vld [vmem:[%s8 + $0x520] sm:$0xff]
  %v1221 = vld [vmem:[%s8 + $0x528] sm:$0xff]
  %v1222 = vld [vmem:[%s8 + $0x530] sm:$0xff]
  %v1223 = vld [vmem:[%s8 + $0x538] sm:$0xff]
  %v1224 = vld [vmem:[%s8 + $0x540] sm:$0xff]
  %v1225 = vld [vmem:[%s8 + $0x548] sm:$0xff]
  %v1226 = vld [vmem:[%s8 + $0x550] sm:$0xff]
  %v1227 = vld [vmem:[%s8 + $0x558] sm:$0xff]
  %v1228 = vld [vmem:[%s8 + $0x560] sm:$0xff]
  %v1229 = vld [vmem:[%s8 + $0x568] sm:$0xff]
  %v1230 = vld [vmem:[%s8 + $0x570] sm:$0xff]
  %v1231 = vld [vmem:[%s8 + $0x578] sm:$0xff]
  %v1232 = vld [vmem:[%s8 + $0x580] sm:$0xff]
  %v1233 = vld [vmem:[%s8 + $0x588] sm:$0xff]
  %v1234 = vld [vmem:[%s8 + $0x590] sm:$0xff]
  %v1235 = vld [vmem:[%s8 + $0x598] sm:$0xff]
  %v1236 = vld [vmem:[%s8 + $0x5a0] sm:$0xff]
  %v1237 = vld [vmem:[%s8 + $0x5a8] sm:$0xff]
  %v1238 = vld [vmem:[%s8 + $0x5b0] sm:$0xff]
  %v1239 = vld [vmem:[%s8 + $0x5b8] sm:$0xff]
  %v1240 = vld [vmem:[%s8 + $0x5c0] sm:$0xff]
  %v1241 = vld [vmem:[%s8 + $0x5c8] sm:$0xff]
  %v1242 = vld [vmem:[%s8 + $0x5d0] sm:$0xff]
  %v1243 = vld [vmem:[%s8 + $0x5d8] sm:$0xff]
  %v1244 = vld [vmem:[%s8 + $0x5e0] sm:$0xff]
  %v1245 = vld [vmem:[%s8 + $0x5e8] sm:$0xff]
  %v1246 = vld [vmem:[%s8 + $0x5f0] sm:$0xff]
  %v1247 = vld [vmem:[%s8 + $0x5f8] sm:$0xff]
  %v1248 = vld [vmem:[%s8 + $0x600] sm:$0xff]
  %v1249 = vld [vmem:[%s8 + $0x608] sm:$0xff]
  %v1250 = vld [vmem:[%s8 + $0x610] sm:$0xff]
  %v1251 = vld [vmem:[%s8 + $0x618] sm:$0xff]
  %v1253 = vsel %vm239, %v1007, 0
  %1255 = vmatprep.subr.mxu0 0.0
  %1256 = vmatpush1.msra.mxu0 0.0
  %1257 = vmatprep.subr.mxu0 0.0
  %1258 = vmatpush1.msra.mxu0 0.0
  %1259 = vmatprep.subr.mxu0 0.0
  %1260 = vmatpush1.msra.mxu0 0.0
  %1261 = vmatprep.subr.mxu0 0.0
  %1262 = vmatpush1.msra.mxu0 0.0
  %1263 = vmatprep.subr.mxu0 0.0
  %1264 = vmatpush1.msra.mxu0 0.0
  %1265 = vmatprep.subr.mxu0 0.0
  %1266 = vmatpush1.msra.mxu0 0.0
  %1267 = vmatprep.subr.mxu0 0.0
  %1268 = vmatpush1.msra.mxu0 0.0
  %1269 = vmatprep.subr.mxu0 0.0
  %1270 = vmatpush1.msra.mxu0 0.0
  %1271 = vmatprep.subr.mxu0 0.0
  %1272 = vmatpush1.msra.mxu0 0.0
  %1273 = vmatprep.subr.mxu0 0.0
  %1274 = vmatpush1.msra.mxu0 0.0
  %1275 = vmatprep.subr.mxu0 0.0
  %1276 = vmatpush1.msra.mxu0 0.0
  %1277 = vmatprep.subr.mxu0 0.0
  %1278 = vmatpush1.msra.mxu0 0.0
  %1279 = vmatprep.subr.mxu0 0.0
  %1280 = vmatpush1.msra.mxu0 %v1059
  %1281 = vmatprep.subr.mxu0 0.0
  %1282 = vmatpush1.msra.mxu0 %v1058
  %1283 = vmatprep.subr.mxu0 0.0
  %1284 = vmatpush1.msra.mxu0 %v1057
  %1285 = vmatprep.subr.mxu0 0.0
  %1286 = vmatpush1.msra.mxu0 %v1056
  %1287 = vmatprep.subr.mxu0 0.0
  %1288 = vmatpush2.msra.mxu0 0.0
  %1289 = vmatprep.subr.mxu0 0.0
  %1290 = vmatpush2.msra.mxu0 0.0
  %1291 = vmatprep.subr.mxu0 0.0
  %1292 = vmatpush2.msra.mxu0 0.0
  %1293 = vmatprep.subr.mxu0 0.0
  %1294 = vmatpush2.msra.mxu0 0.0
  %1295 = vmatprep.subr.mxu0 0.0
  %1296 = vmatpush2.msra.mxu0 0.0
  %1297 = vmatprep.subr.mxu0 0.0
  %1298 = vmatpush2.msra.mxu0 0.0
  %1299 = vmatprep.subr.mxu0 0.0
  %1300 = vmatpush2.msra.mxu0 0.0
  %1301 = vmatprep.subr.mxu0 0.0
  %1302 = vmatpush2.msra.mxu0 0.0
  %1303 = vmatprep.subr.mxu0 0.0
  %1304 = vmatpush2.msra.mxu0 0.0
  %1305 = vmatprep.subr.mxu0 0.0
  %1306 = vmatpush2.msra.mxu0 0.0
  %1307 = vmatprep.subr.mxu0 0.0
  %1308 = vmatpush2.msra.mxu0 0.0
  %1309 = vmatprep.subr.mxu0 0.0
  %1310 = vmatpush2.msra.mxu0 0.0
  %1311 = vmatprep.subr.mxu0 0.0
  %1312 = vmatpush2.msra.mxu0 0.0
  %1313 = vmatprep.subr.mxu0 0.0
  %1314 = vmatpush2.msra.mxu0 0.0
  %1315 = vmatprep.subr.mxu0 0.0
  %1316 = vmatpush2.msra.mxu0 0.0
  %1317 = vmatprep.subr.mxu0 0.0
  %1318 = vmatpush2.msra.mxu0 0.0
  %1319 = vmatprep.mubr.f32.mxu0 0.0
  %1320 = vmatmul.mubr.f32.gmra.mxu0 %v1253
  %v1321 = vpop.f32.mrf.mxu0
  %v1322 = vadd.f32 0.0, %v1321
  %v1323 = vpop.f32.mrf.mxu0
  %1324 = vdwg.mxu0
  %v1326 = vsel %vm239, %v1008, 0
  %1328 = vmatprep.subr.mxu0 0.0
  %1329 = vmatpush1.msra.mxu0 0.0
  %1330 = vmatprep.subr.mxu0 0.0
  %1331 = vmatpush1.msra.mxu0 0.0
  %1332 = vmatprep.subr.mxu0 0.0
  %1333 = vmatpush1.msra.mxu0 0.0
  %1334 = vmatprep.subr.mxu0 0.0
  %1335 = vmatpush1.msra.mxu0 0.0
  %1336 = vmatprep.subr.mxu0 0.0
  %1337 = vmatpush1.msra.mxu0 0.0
  %1338 = vmatprep.subr.mxu0 0.0
  %1339 = vmatpush1.msra.mxu0 0.0
  %1340 = vmatprep.subr.mxu0 0.0
  %1341 = vmatpush1.msra.mxu0 0.0
  %1342 = vmatprep.subr.mxu0 0.0
  %1343 = vmatpush1.msra.mxu0 0.0
  %1344 = vmatprep.subr.mxu0 0.0
  %1345 = vmatpush1.msra.mxu0 0.0
  %1346 = vmatprep.subr.mxu0 0.0
  %1347 = vmatpush1.msra.mxu0 0.0
  %1348 = vmatprep.subr.mxu0 0.0
  %1349 = vmatpush1.msra.mxu0 0.0
  %1350 = vmatprep.subr.mxu0 0.0
  %1351 = vmatpush1.msra.mxu0 0.0
  %1352 = vmatprep.subr.mxu0 0.0
  %1353 = vmatpush1.msra.mxu0 %v1063
  %1354 = vmatprep.subr.mxu0 0.0
  %1355 = vmatpush1.msra.mxu0 %v1062
  %1356 = vmatprep.subr.mxu0 0.0
  %1357 = vmatpush1.msra.mxu0 %v1061
  %1358 = vmatprep.subr.mxu0 0.0
  %1359 = vmatpush1.msra.mxu0 %v1060
  %1360 = vmatprep.subr.mxu0 0.0
  %1361 = vmatpush2.msra.mxu0 0.0
  %1362 = vmatprep.subr.mxu0 0.0
  %1363 = vmatpush2.msra.mxu0 0.0
  %1364 = vmatprep.subr.mxu0 0.0
  %1365 = vmatpush2.msra.mxu0 0.0
  %1366 = vmatprep.subr.mxu0 0.0
  %1367 = vmatpush2.msra.mxu0 0.0
  %1368 = vmatprep.subr.mxu0 0.0
  %1369 = vmatpush2.msra.mxu0 0.0
  %1370 = vmatprep.subr.mxu0 0.0
  %1371 = vmatpush2.msra.mxu0 0.0
  %1372 = vmatprep.subr.mxu0 0.0
  %1373 = vmatpush2.msra.mxu0 0.0
  %1374 = vmatprep.subr.mxu0 0.0
  %1375 = vmatpush2.msra.mxu0 0.0
  %1376 = vmatprep.subr.mxu0 0.0
  %1377 = vmatpush2.msra.mxu0 0.0
  %1378 = vmatprep.subr.mxu0 0.0
  %1379 = vmatpush2.msra.mxu0 0.0
  %1380 = vmatprep.subr.mxu0 0.0
  %1381 = vmatpush2.msra.mxu0 0.0
  %1382 = vmatprep.subr.mxu0 0.0
  %1383 = vmatpush2.msra.mxu0 0.0
  %1384 = vmatprep.subr.mxu0 0.0
  %1385 = vmatpush2.msra.mxu0 0.0
  %1386 = vmatprep.subr.mxu0 0.0
  %1387 = vmatpush2.msra.mxu0 0.0
  %1388 = vmatprep.subr.mxu0 0.0
  %1389 = vmatpush2.msra.mxu0 0.0
  %1390 = vmatprep.subr.mxu0 0.0
  %1391 = vmatpush2.msra.mxu0 0.0
  %1392 = vmatprep.mubr.f32.mxu0 0.0
  %1393 = vmatmul.mubr.f32.gmra.mxu0 %v1326
  %v1394 = vpop.f32.mrf.mxu0
  %v1395 = vadd.f32 0.0, %v1394
  %v1396 = vpop.f32.mrf.mxu0
  %1397 = vdwg.mxu0
  %v1399 = vsel %vm239, %v1009, 0
  %1401 = vmatprep.subr.mxu0 0.0
  %1402 = vmatpush1.msra.mxu0 0.0
  %1403 = vmatprep.subr.mxu0 0.0
  %1404 = vmatpush1.msra.mxu0 0.0
  %1405 = vmatprep.subr.mxu0 0.0
  %1406 = vmatpush1.msra.mxu0 0.0
  %1407 = vmatprep.subr.mxu0 0.0
  %1408 = vmatpush1.msra.mxu0 0.0
  %1409 = vmatprep.subr.mxu0 0.0
  %1410 = vmatpush1.msra.mxu0 0.0
  %1411 = vmatprep.subr.mxu0 0.0
  %1412 = vmatpush1.msra.mxu0 0.0
  %1413 = vmatprep.subr.mxu0 0.0
  %1414 = vmatpush1.msra.mxu0 0.0
  %1415 = vmatprep.subr.mxu0 0.0
  %1416 = vmatpush1.msra.mxu0 0.0
  %1417 = vmatprep.subr.mxu0 0.0
  %1418 = vmatpush1.msra.mxu0 0.0
  %1419 = vmatprep.subr.mxu0 0.0
  %1420 = vmatpush1.msra.mxu0 0.0
  %1421 = vmatprep.subr.mxu0 0.0
  %1422 = vmatpush1.msra.mxu0 0.0
  %1423 = vmatprep.subr.mxu0 0.0
  %1424 = vmatpush1.msra.mxu0 0.0
  %1425 = vmatprep.subr.mxu0 0.0
  %1426 = vmatpush1.msra.mxu0 %v1067
  %1427 = vmatprep.subr.mxu0 0.0
  %1428 = vmatpush1.msra.mxu0 %v1066
  %1429 = vmatprep.subr.mxu0 0.0
  %1430 = vmatpush1.msra.mxu0 %v1065
  %1431 = vmatprep.subr.mxu0 0.0
  %1432 = vmatpush1.msra.mxu0 %v1064
  %1433 = vmatprep.subr.mxu0 0.0
  %1434 = vmatpush2.msra.mxu0 0.0
  %1435 = vmatprep.subr.mxu0 0.0
  %1436 = vmatpush2.msra.mxu0 0.0
  %1437 = vmatprep.subr.mxu0 0.0
  %1438 = vmatpush2.msra.mxu0 0.0
  %1439 = vmatprep.subr.mxu0 0.0
  %1440 = vmatpush2.msra.mxu0 0.0
  %1441 = vmatprep.subr.mxu0 0.0
  %1442 = vmatpush2.msra.mxu0 0.0
  %1443 = vmatprep.subr.mxu0 0.0
  %1444 = vmatpush2.msra.mxu0 0.0
  %1445 = vmatprep.subr.mxu0 0.0
  %1446 = vmatpush2.msra.mxu0 0.0
  %1447 = vmatprep.subr.mxu0 0.0
  %1448 = vmatpush2.msra.mxu0 0.0
  %1449 = vmatprep.subr.mxu0 0.0
  %1450 = vmatpush2.msra.mxu0 0.0
  %1451 = vmatprep.subr.mxu0 0.0
  %1452 = vmatpush2.msra.mxu0 0.0
  %1453 = vmatprep.subr.mxu0 0.0
  %1454 = vmatpush2.msra.mxu0 0.0
  %1455 = vmatprep.subr.mxu0 0.0
  %1456 = vmatpush2.msra.mxu0 0.0
  %1457 = vmatprep.subr.mxu0 0.0
  %1458 = vmatpush2.msra.mxu0 0.0
  %1459 = vmatprep.subr.mxu0 0.0
  %1460 = vmatpush2.msra.mxu0 0.0
  %1461 = vmatprep.subr.mxu0 0.0
  %1462 = vmatpush2.msra.mxu0 0.0
  %1463 = vmatprep.subr.mxu0 0.0
  %1464 = vmatpush2.msra.mxu0 0.0
  %1465 = vmatprep.mubr.f32.mxu0 0.0
  %1466 = vmatmul.mubr.f32.gmra.mxu0 %v1399
  %v1467 = vpop.f32.mrf.mxu0
  %v1468 = vadd.f32 0.0, %v1467
  %v1469 = vpop.f32.mrf.mxu0
  %1470 = vdwg.mxu0
  %v1472 = vsel %vm239, %v1010, 0
  %1474 = vmatprep.subr.mxu0 0.0
  %1475 = vmatpush1.msra.mxu0 0.0
  %1476 = vmatprep.subr.mxu0 0.0
  %1477 = vmatpush1.msra.mxu0 0.0
  %1478 = vmatprep.subr.mxu0 0.0
  %1479 = vmatpush1.msra.mxu0 0.0
  %1480 = vmatprep.subr.mxu0 0.0
  %1481 = vmatpush1.msra.mxu0 0.0
  %1482 = vmatprep.subr.mxu0 0.0
  %1483 = vmatpush1.msra.mxu0 0.0
  %1484 = vmatprep.subr.mxu0 0.0
  %1485 = vmatpush1.msra.mxu0 0.0
  %1486 = vmatprep.subr.mxu0 0.0
  %1487 = vmatpush1.msra.mxu0 0.0
  %1488 = vmatprep.subr.mxu0 0.0
  %1489 = vmatpush1.msra.mxu0 0.0
  %1490 = vmatprep.subr.mxu0 0.0
  %1491 = vmatpush1.msra.mxu0 0.0
  %1492 = vmatprep.subr.mxu0 0.0
  %1493 = vmatpush1.msra.mxu0 0.0
  %1494 = vmatprep.subr.mxu0 0.0
  %1495 = vmatpush1.msra.mxu0 0.0
  %1496 = vmatprep.subr.mxu0 0.0
  %1497 = vmatpush1.msra.mxu0 0.0
  %1498 = vmatprep.subr.mxu0 0.0
  %1499 = vmatpush1.msra.mxu0 %v1071
  %1500 = vmatprep.subr.mxu0 0.0
  %1501 = vmatpush1.msra.mxu0 %v1070
  %1502 = vmatprep.subr.mxu0 0.0
  %1503 = vmatpush1.msra.mxu0 %v1069
  %1504 = vmatprep.subr.mxu0 0.0
  %1505 = vmatpush1.msra.mxu0 %v1068
  %1506 = vmatprep.subr.mxu0 0.0
  %1507 = vmatpush2.msra.mxu0 0.0
  %1508 = vmatprep.subr.mxu0 0.0
  %1509 = vmatpush2.msra.mxu0 0.0
  %1510 = vmatprep.subr.mxu0 0.0
  %1511 = vmatpush2.msra.mxu0 0.0
  %1512 = vmatprep.subr.mxu0 0.0
  %1513 = vmatpush2.msra.mxu0 0.0
  %1514 = vmatprep.subr.mxu0 0.0
  %1515 = vmatpush2.msra.mxu0 0.0
  %1516 = vmatprep.subr.mxu0 0.0
  %1517 = vmatpush2.msra.mxu0 0.0
  %1518 = vmatprep.subr.mxu0 0.0
  %1519 = vmatpush2.msra.mxu0 0.0
  %1520 = vmatprep.subr.mxu0 0.0
  %1521 = vmatpush2.msra.mxu0 0.0
  %1522 = vmatprep.subr.mxu0 0.0
  %1523 = vmatpush2.msra.mxu0 0.0
  %1524 = vmatprep.subr.mxu0 0.0
  %1525 = vmatpush2.msra.mxu0 0.0
  %1526 = vmatprep.subr.mxu0 0.0
  %1527 = vmatpush2.msra.mxu0 0.0
  %1528 = vmatprep.subr.mxu0 0.0
  %1529 = vmatpush2.msra.mxu0 0.0
  %1530 = vmatprep.subr.mxu0 0.0
  %1531 = vmatpush2.msra.mxu0 0.0
  %1532 = vmatprep.subr.mxu0 0.0
  %1533 = vmatpush2.msra.mxu0 0.0
  %1534 = vmatprep.subr.mxu0 0.0
  %1535 = vmatpush2.msra.mxu0 0.0
  %1536 = vmatprep.subr.mxu0 0.0
  %1537 = vmatpush2.msra.mxu0 0.0
  %1538 = vmatprep.mubr.f32.mxu0 0.0
  %1539 = vmatmul.mubr.f32.gmra.mxu0 %v1472
  %v1540 = vpop.f32.mrf.mxu0
  %v1541 = vadd.f32 0.0, %v1540
  %v1542 = vpop.f32.mrf.mxu0
  %1543 = vdwg.mxu0
  %v1545 = vsel %vm239, %v1011, 0
  %1547 = vmatprep.subr.mxu0 0.0
  %1548 = vmatpush1.msra.mxu0 0.0
  %1549 = vmatprep.subr.mxu0 0.0
  %1550 = vmatpush1.msra.mxu0 0.0
  %1551 = vmatprep.subr.mxu0 0.0
  %1552 = vmatpush1.msra.mxu0 0.0
  %1553 = vmatprep.subr.mxu0 0.0
  %1554 = vmatpush1.msra.mxu0 0.0
  %1555 = vmatprep.subr.mxu0 0.0
  %1556 = vmatpush1.msra.mxu0 0.0
  %1557 = vmatprep.subr.mxu0 0.0
  %1558 = vmatpush1.msra.mxu0 0.0
  %1559 = vmatprep.subr.mxu0 0.0
  %1560 = vmatpush1.msra.mxu0 0.0
  %1561 = vmatprep.subr.mxu0 0.0
  %1562 = vmatpush1.msra.mxu0 0.0
  %1563 = vmatprep.subr.mxu0 0.0
  %1564 = vmatpush1.msra.mxu0 0.0
  %1565 = vmatprep.subr.mxu0 0.0
  %1566 = vmatpush1.msra.mxu0 0.0
  %1567 = vmatprep.subr.mxu0 0.0
  %1568 = vmatpush1.msra.mxu0 0.0
  %1569 = vmatprep.subr.mxu0 0.0
  %1570 = vmatpush1.msra.mxu0 0.0
  %1571 = vmatprep.subr.mxu0 0.0
  %1572 = vmatpush1.msra.mxu0 %v1075
  %1573 = vmatprep.subr.mxu0 0.0
  %1574 = vmatpush1.msra.mxu0 %v1074
  %1575 = vmatprep.subr.mxu0 0.0
  %1576 = vmatpush1.msra.mxu0 %v1073
  %1577 = vmatprep.subr.mxu0 0.0
  %1578 = vmatpush1.msra.mxu0 %v1072
  %1579 = vmatprep.subr.mxu0 0.0
  %1580 = vmatpush2.msra.mxu0 0.0
  %1581 = vmatprep.subr.mxu0 0.0
  %1582 = vmatpush2.msra.mxu0 0.0
  %1583 = vmatprep.subr.mxu0 0.0
  %1584 = vmatpush2.msra.mxu0 0.0
  %1585 = vmatprep.subr.mxu0 0.0
  %1586 = vmatpush2.msra.mxu0 0.0
  %1587 = vmatprep.subr.mxu0 0.0
  %1588 = vmatpush2.msra.mxu0 0.0
  %1589 = vmatprep.subr.mxu0 0.0
  %1590 = vmatpush2.msra.mxu0 0.0
  %1591 = vmatprep.subr.mxu0 0.0
  %1592 = vmatpush2.msra.mxu0 0.0
  %1593 = vmatprep.subr.mxu0 0.0
  %1594 = vmatpush2.msra.mxu0 0.0
  %1595 = vmatprep.subr.mxu0 0.0
  %1596 = vmatpush2.msra.mxu0 0.0
  %1597 = vmatprep.subr.mxu0 0.0
  %1598 = vmatpush2.msra.mxu0 0.0
  %1599 = vmatprep.subr.mxu0 0.0
  %1600 = vmatpush2.msra.mxu0 0.0
  %1601 = vmatprep.subr.mxu0 0.0
  %1602 = vmatpush2.msra.mxu0 0.0
  %1603 = vmatprep.subr.mxu0 0.0
  %1604 = vmatpush2.msra.mxu0 0.0
  %1605 = vmatprep.subr.mxu0 0.0
  %1606 = vmatpush2.msra.mxu0 0.0
  %1607 = vmatprep.subr.mxu0 0.0
  %1608 = vmatpush2.msra.mxu0 0.0
  %1609 = vmatprep.subr.mxu0 0.0
  %1610 = vmatpush2.msra.mxu0 0.0
  %1611 = vmatprep.mubr.f32.mxu0 0.0
  %1612 = vmatmul.mubr.f32.gmra.mxu0 %v1545
  %v1613 = vpop.f32.mrf.mxu0
  %v1614 = vadd.f32 0.0, %v1613
  %v1615 = vpop.f32.mrf.mxu0
  %1616 = vdwg.mxu0
  %v1618 = vsel %vm239, %v1012, 0
  %1620 = vmatprep.subr.mxu0 0.0
  %1621 = vmatpush1.msra.mxu0 0.0
  %1622 = vmatprep.subr.mxu0 0.0
  %1623 = vmatpush1.msra.mxu0 0.0
  %1624 = vmatprep.subr.mxu0 0.0
  %1625 = vmatpush1.msra.mxu0 0.0
  %1626 = vmatprep.subr.mxu0 0.0
  %1627 = vmatpush1.msra.mxu0 0.0
  %1628 = vmatprep.subr.mxu0 0.0
  %1629 = vmatpush1.msra.mxu0 0.0
  %1630 = vmatprep.subr.mxu0 0.0
  %1631 = vmatpush1.msra.mxu0 0.0
  %1632 = vmatprep.subr.mxu0 0.0
  %1633 = vmatpush1.msra.mxu0 0.0
  %1634 = vmatprep.subr.mxu0 0.0
  %1635 = vmatpush1.msra.mxu0 0.0
  %1636 = vmatprep.subr.mxu0 0.0
  %1637 = vmatpush1.msra.mxu0 0.0
  %1638 = vmatprep.subr.mxu0 0.0
  %1639 = vmatpush1.msra.mxu0 0.0
  %1640 = vmatprep.subr.mxu0 0.0
  %1641 = vmatpush1.msra.mxu0 0.0
  %1642 = vmatprep.subr.mxu0 0.0
  %1643 = vmatpush1.msra.mxu0 0.0
  %1644 = vmatprep.subr.mxu0 0.0
  %1645 = vmatpush1.msra.mxu0 %v1079
  %1646 = vmatprep.subr.mxu0 0.0
  %1647 = vmatpush1.msra.mxu0 %v1078
  %1648 = vmatprep.subr.mxu0 0.0
  %1649 = vmatpush1.msra.mxu0 %v1077
  %1650 = vmatprep.subr.mxu0 0.0
  %1651 = vmatpush1.msra.mxu0 %v1076
  %1652 = vmatprep.subr.mxu0 0.0
  %1653 = vmatpush2.msra.mxu0 0.0
  %1654 = vmatprep.subr.mxu0 0.0
  %1655 = vmatpush2.msra.mxu0 0.0
  %1656 = vmatprep.subr.mxu0 0.0
  %1657 = vmatpush2.msra.mxu0 0.0
  %1658 = vmatprep.subr.mxu0 0.0
  %1659 = vmatpush2.msra.mxu0 0.0
  %1660 = vmatprep.subr.mxu0 0.0
  %1661 = vmatpush2.msra.mxu0 0.0
  %1662 = vmatprep.subr.mxu0 0.0
  %1663 = vmatpush2.msra.mxu0 0.0
  %1664 = vmatprep.subr.mxu0 0.0
  %1665 = vmatpush2.msra.mxu0 0.0
  %1666 = vmatprep.subr.mxu0 0.0
  %1667 = vmatpush2.msra.mxu0 0.0
  %1668 = vmatprep.subr.mxu0 0.0
  %1669 = vmatpush2.msra.mxu0 0.0
  %1670 = vmatprep.subr.mxu0 0.0
  %1671 = vmatpush2.msra.mxu0 0.0
  %1672 = vmatprep.subr.mxu0 0.0
  %1673 = vmatpush2.msra.mxu0 0.0
  %1674 = vmatprep.subr.mxu0 0.0
  %1675 = vmatpush2.msra.mxu0 0.0
  %1676 = vmatprep.subr.mxu0 0.0
  %1677 = vmatpush2.msra.mxu0 0.0
  %1678 = vmatprep.subr.mxu0 0.0
  %1679 = vmatpush2.msra.mxu0 0.0
  %1680 = vmatprep.subr.mxu0 0.0
  %1681 = vmatpush2.msra.mxu0 0.0
  %1682 = vmatprep.subr.mxu0 0.0
  %1683 = vmatpush2.msra.mxu0 0.0
  %1684 = vmatprep.mubr.f32.mxu0 0.0
  %1685 = vmatmul.mubr.f32.gmra.mxu0 %v1618
  %v1686 = vpop.f32.mrf.mxu0
  %v1687 = vadd.f32 0.0, %v1686
  %v1688 = vpop.f32.mrf.mxu0
  %1689 = vdwg.mxu0
  %v1691 = vsel %vm239, %v1013, 0
  %1693 = vmatprep.subr.mxu0 0.0
  %1694 = vmatpush1.msra.mxu0 0.0
  %1695 = vmatprep.subr.mxu0 0.0
  %1696 = vmatpush1.msra.mxu0 0.0
  %1697 = vmatprep.subr.mxu0 0.0
  %1698 = vmatpush1.msra.mxu0 0.0
  %1699 = vmatprep.subr.mxu0 0.0
  %1700 = vmatpush1.msra.mxu0 0.0
  %1701 = vmatprep.subr.mxu0 0.0
  %1702 = vmatpush1.msra.mxu0 0.0
  %1703 = vmatprep.subr.mxu0 0.0
  %1704 = vmatpush1.msra.mxu0 0.0
  %1705 = vmatprep.subr.mxu0 0.0
  %1706 = vmatpush1.msra.mxu0 0.0
  %1707 = vmatprep.subr.mxu0 0.0
  %1708 = vmatpush1.msra.mxu0 0.0
  %1709 = vmatprep.subr.mxu0 0.0
  %1710 = vmatpush1.msra.mxu0 0.0
  %1711 = vmatprep.subr.mxu0 0.0
  %1712 = vmatpush1.msra.mxu0 0.0
  %1713 = vmatprep.subr.mxu0 0.0
  %1714 = vmatpush1.msra.mxu0 0.0
  %1715 = vmatprep.subr.mxu0 0.0
  %1716 = vmatpush1.msra.mxu0 0.0
  %1717 = vmatprep.subr.mxu0 0.0
  %1718 = vmatpush1.msra.mxu0 %v1083
  %1719 = vmatprep.subr.mxu0 0.0
  %1720 = vmatpush1.msra.mxu0 %v1082
  %1721 = vmatprep.subr.mxu0 0.0
  %1722 = vmatpush1.msra.mxu0 %v1081
  %1723 = vmatprep.subr.mxu0 0.0
  %1724 = vmatpush1.msra.mxu0 %v1080
  %1725 = vmatprep.subr.mxu0 0.0
  %1726 = vmatpush2.msra.mxu0 0.0
  %1727 = vmatprep.subr.mxu0 0.0
  %1728 = vmatpush2.msra.mxu0 0.0
  %1729 = vmatprep.subr.mxu0 0.0
  %1730 = vmatpush2.msra.mxu0 0.0
  %1731 = vmatprep.subr.mxu0 0.0
  %1732 = vmatpush2.msra.mxu0 0.0
  %1733 = vmatprep.subr.mxu0 0.0
  %1734 = vmatpush2.msra.mxu0 0.0
  %1735 = vmatprep.subr.mxu0 0.0
  %1736 = vmatpush2.msra.mxu0 0.0
  %1737 = vmatprep.subr.mxu0 0.0
  %1738 = vmatpush2.msra.mxu0 0.0
  %1739 = vmatprep.subr.mxu0 0.0
  %1740 = vmatpush2.msra.mxu0 0.0
  %1741 = vmatprep.subr.mxu0 0.0
  %1742 = vmatpush2.msra.mxu0 0.0
  %1743 = vmatprep.subr.mxu0 0.0
  %1744 = vmatpush2.msra.mxu0 0.0
  %1745 = vmatprep.subr.mxu0 0.0
  %1746 = vmatpush2.msra.mxu0 0.0
  %1747 = vmatprep.subr.mxu0 0.0
  %1748 = vmatpush2.msra.mxu0 0.0
  %1749 = vmatprep.subr.mxu0 0.0
  %1750 = vmatpush2.msra.mxu0 0.0
  %1751 = vmatprep.subr.mxu0 0.0
  %1752 = vmatpush2.msra.mxu0 0.0
  %1753 = vmatprep.subr.mxu0 0.0
  %1754 = vmatpush2.msra.mxu0 0.0
  %1755 = vmatprep.subr.mxu0 0.0
  %1756 = vmatpush2.msra.mxu0 0.0
  %1757 = vmatprep.mubr.f32.mxu0 0.0
  %1758 = vmatmul.mubr.f32.gmra.mxu0 %v1691
  %v1759 = vpop.f32.mrf.mxu0
  %v1760 = vadd.f32 0.0, %v1759
  %v1761 = vpop.f32.mrf.mxu0
  %1762 = vdwg.mxu0
  %v1764 = vsel %vm239, %v1014, 0
  %1766 = vmatprep.subr.mxu0 0.0
  %1767 = vmatpush1.msra.mxu0 0.0
  %1768 = vmatprep.subr.mxu0 0.0
  %1769 = vmatpush1.msra.mxu0 0.0
  %1770 = vmatprep.subr.mxu0 0.0
  %1771 = vmatpush1.msra.mxu0 0.0
  %1772 = vmatprep.subr.mxu0 0.0
  %1773 = vmatpush1.msra.mxu0 0.0
  %1774 = vmatprep.subr.mxu0 0.0
  %1775 = vmatpush1.msra.mxu0 0.0
  %1776 = vmatprep.subr.mxu0 0.0
  %1777 = vmatpush1.msra.mxu0 0.0
  %1778 = vmatprep.subr.mxu0 0.0
  %1779 = vmatpush1.msra.mxu0 0.0
  %1780 = vmatprep.subr.mxu0 0.0
  %1781 = vmatpush1.msra.mxu0 0.0
  %1782 = vmatprep.subr.mxu0 0.0
  %1783 = vmatpush1.msra.mxu0 0.0
  %1784 = vmatprep.subr.mxu0 0.0
  %1785 = vmatpush1.msra.mxu0 0.0
  %1786 = vmatprep.subr.mxu0 0.0
  %1787 = vmatpush1.msra.mxu0 0.0
  %1788 = vmatprep.subr.mxu0 0.0
  %1789 = vmatpush1.msra.mxu0 0.0
  %1790 = vmatprep.subr.mxu0 0.0
  %1791 = vmatpush1.msra.mxu0 %v1087
  %1792 = vmatprep.subr.mxu0 0.0
  %1793 = vmatpush1.msra.mxu0 %v1086
  %1794 = vmatprep.subr.mxu0 0.0
  %1795 = vmatpush1.msra.mxu0 %v1085
  %1796 = vmatprep.subr.mxu0 0.0
  %1797 = vmatpush1.msra.mxu0 %v1084
  %1798 = vmatprep.subr.mxu0 0.0
  %1799 = vmatpush2.msra.mxu0 0.0
  %1800 = vmatprep.subr.mxu0 0.0
  %1801 = vmatpush2.msra.mxu0 0.0
  %1802 = vmatprep.subr.mxu0 0.0
  %1803 = vmatpush2.msra.mxu0 0.0
  %1804 = vmatprep.subr.mxu0 0.0
  %1805 = vmatpush2.msra.mxu0 0.0
  %1806 = vmatprep.subr.mxu0 0.0
  %1807 = vmatpush2.msra.mxu0 0.0
  %1808 = vmatprep.subr.mxu0 0.0
  %1809 = vmatpush2.msra.mxu0 0.0
  %1810 = vmatprep.subr.mxu0 0.0
  %1811 = vmatpush2.msra.mxu0 0.0
  %1812 = vmatprep.subr.mxu0 0.0
  %1813 = vmatpush2.msra.mxu0 0.0
  %1814 = vmatprep.subr.mxu0 0.0
  %1815 = vmatpush2.msra.mxu0 0.0
  %1816 = vmatprep.subr.mxu0 0.0
  %1817 = vmatpush2.msra.mxu0 0.0
  %1818 = vmatprep.subr.mxu0 0.0
  %1819 = vmatpush2.msra.mxu0 0.0
  %1820 = vmatprep.subr.mxu0 0.0
  %1821 = vmatpush2.msra.mxu0 0.0
  %1822 = vmatprep.subr.mxu0 0.0
  %1823 = vmatpush2.msra.mxu0 0.0
  %1824 = vmatprep.subr.mxu0 0.0
  %1825 = vmatpush2.msra.mxu0 0.0
  %1826 = vmatprep.subr.mxu0 0.0
  %1827 = vmatpush2.msra.mxu0 0.0
  %1828 = vmatprep.subr.mxu0 0.0
  %1829 = vmatpush2.msra.mxu0 0.0
  %1830 = vmatprep.mubr.f32.mxu0 0.0
  %1831 = vmatmul.mubr.f32.gmra.mxu0 %v1764
  %v1832 = vpop.f32.mrf.mxu0
  %v1833 = vadd.f32 0.0, %v1832
  %v1834 = vpop.f32.mrf.mxu0
  %1835 = vdwg.mxu0
  %v1837 = vsel %vm239, %v1015, 0
  %1839 = vmatprep.subr.mxu0 0.0
  %1840 = vmatpush1.msra.mxu0 0.0
  %1841 = vmatprep.subr.mxu0 0.0
  %1842 = vmatpush1.msra.mxu0 0.0
  %1843 = vmatprep.subr.mxu0 0.0
  %1844 = vmatpush1.msra.mxu0 0.0
  %1845 = vmatprep.subr.mxu0 0.0
  %1846 = vmatpush1.msra.mxu0 0.0
  %1847 = vmatprep.subr.mxu0 0.0
  %1848 = vmatpush1.msra.mxu0 0.0
  %1849 = vmatprep.subr.mxu0 0.0
  %1850 = vmatpush1.msra.mxu0 0.0
  %1851 = vmatprep.subr.mxu0 0.0
  %1852 = vmatpush1.msra.mxu0 0.0
  %1853 = vmatprep.subr.mxu0 0.0
  %1854 = vmatpush1.msra.mxu0 0.0
  %1855 = vmatprep.subr.mxu0 0.0
  %1856 = vmatpush1.msra.mxu0 0.0
  %1857 = vmatprep.subr.mxu0 0.0
  %1858 = vmatpush1.msra.mxu0 0.0
  %1859 = vmatprep.subr.mxu0 0.0
  %1860 = vmatpush1.msra.mxu0 0.0
  %1861 = vmatprep.subr.mxu0 0.0
  %1862 = vmatpush1.msra.mxu0 0.0
  %1863 = vmatprep.subr.mxu0 0.0
  %1864 = vmatpush1.msra.mxu0 %v1091
  %1865 = vmatprep.subr.mxu0 0.0
  %1866 = vmatpush1.msra.mxu0 %v1090
  %1867 = vmatprep.subr.mxu0 0.0
  %1868 = vmatpush1.msra.mxu0 %v1089
  %1869 = vmatprep.subr.mxu0 0.0
  %1870 = vmatpush1.msra.mxu0 %v1088
  %1871 = vmatprep.subr.mxu0 0.0
  %1872 = vmatpush2.msra.mxu0 0.0
  %1873 = vmatprep.subr.mxu0 0.0
  %1874 = vmatpush2.msra.mxu0 0.0
  %1875 = vmatprep.subr.mxu0 0.0
  %1876 = vmatpush2.msra.mxu0 0.0
  %1877 = vmatprep.subr.mxu0 0.0
  %1878 = vmatpush2.msra.mxu0 0.0
  %1879 = vmatprep.subr.mxu0 0.0
  %1880 = vmatpush2.msra.mxu0 0.0
  %1881 = vmatprep.subr.mxu0 0.0
  %1882 = vmatpush2.msra.mxu0 0.0
  %1883 = vmatprep.subr.mxu0 0.0
  %1884 = vmatpush2.msra.mxu0 0.0
  %1885 = vmatprep.subr.mxu0 0.0
  %1886 = vmatpush2.msra.mxu0 0.0
  %1887 = vmatprep.subr.mxu0 0.0
  %1888 = vmatpush2.msra.mxu0 0.0
  %1889 = vmatprep.subr.mxu0 0.0
  %1890 = vmatpush2.msra.mxu0 0.0
  %1891 = vmatprep.subr.mxu0 0.0
  %1892 = vmatpush2.msra.mxu0 0.0
  %1893 = vmatprep.subr.mxu0 0.0
  %1894 = vmatpush2.msra.mxu0 0.0
  %1895 = vmatprep.subr.mxu0 0.0
  %1896 = vmatpush2.msra.mxu0 0.0
  %1897 = vmatprep.subr.mxu0 0.0
  %1898 = vmatpush2.msra.mxu0 0.0
  %1899 = vmatprep.subr.mxu0 0.0
  %1900 = vmatpush2.msra.mxu0 0.0
  %1901 = vmatprep.subr.mxu0 0.0
  %1902 = vmatpush2.msra.mxu0 0.0
  %1903 = vmatprep.mubr.f32.mxu0 0.0
  %1904 = vmatmul.mubr.f32.gmra.mxu0 %v1837
  %v1905 = vpop.f32.mrf.mxu0
  %v1906 = vadd.f32 0.0, %v1905
  %v1907 = vpop.f32.mrf.mxu0
  %1908 = vdwg.mxu0
  %v1910 = vsel %vm239, %v1016, 0
  %1912 = vmatprep.subr.mxu0 0.0
  %1913 = vmatpush1.msra.mxu0 0.0
  %1914 = vmatprep.subr.mxu0 0.0
  %1915 = vmatpush1.msra.mxu0 0.0
  %1916 = vmatprep.subr.mxu0 0.0
  %1917 = vmatpush1.msra.mxu0 0.0
  %1918 = vmatprep.subr.mxu0 0.0
  %1919 = vmatpush1.msra.mxu0 0.0
  %1920 = vmatprep.subr.mxu0 0.0
  %1921 = vmatpush1.msra.mxu0 0.0
  %1922 = vmatprep.subr.mxu0 0.0
  %1923 = vmatpush1.msra.mxu0 0.0
  %1924 = vmatprep.subr.mxu0 0.0
  %1925 = vmatpush1.msra.mxu0 0.0
  %1926 = vmatprep.subr.mxu0 0.0
  %1927 = vmatpush1.msra.mxu0 0.0
  %1928 = vmatprep.subr.mxu0 0.0
  %1929 = vmatpush1.msra.mxu0 0.0
  %1930 = vmatprep.subr.mxu0 0.0
  %1931 = vmatpush1.msra.mxu0 0.0
  %1932 = vmatprep.subr.mxu0 0.0
  %1933 = vmatpush1.msra.mxu0 0.0
  %1934 = vmatprep.subr.mxu0 0.0
  %1935 = vmatpush1.msra.mxu0 0.0
  %1936 = vmatprep.subr.mxu0 0.0
  %1937 = vmatpush1.msra.mxu0 %v1095
  %1938 = vmatprep.subr.mxu0 0.0
  %1939 = vmatpush1.msra.mxu0 %v1094
  %1940 = vmatprep.subr.mxu0 0.0
  %1941 = vmatpush1.msra.mxu0 %v1093
  %1942 = vmatprep.subr.mxu0 0.0
  %1943 = vmatpush1.msra.mxu0 %v1092
  %1944 = vmatprep.subr.mxu0 0.0
  %1945 = vmatpush2.msra.mxu0 0.0
  %1946 = vmatprep.subr.mxu0 0.0
  %1947 = vmatpush2.msra.mxu0 0.0
  %1948 = vmatprep.subr.mxu0 0.0
  %1949 = vmatpush2.msra.mxu0 0.0
  %1950 = vmatprep.subr.mxu0 0.0
  %1951 = vmatpush2.msra.mxu0 0.0
  %1952 = vmatprep.subr.mxu0 0.0
  %1953 = vmatpush2.msra.mxu0 0.0
  %1954 = vmatprep.subr.mxu0 0.0
  %1955 = vmatpush2.msra.mxu0 0.0
  %1956 = vmatprep.subr.mxu0 0.0
  %1957 = vmatpush2.msra.mxu0 0.0
  %1958 = vmatprep.subr.mxu0 0.0
  %1959 = vmatpush2.msra.mxu0 0.0
  %1960 = vmatprep.subr.mxu0 0.0
  %1961 = vmatpush2.msra.mxu0 0.0
  %1962 = vmatprep.subr.mxu0 0.0
  %1963 = vmatpush2.msra.mxu0 0.0
  %1964 = vmatprep.subr.mxu0 0.0
  %1965 = vmatpush2.msra.mxu0 0.0
  %1966 = vmatprep.subr.mxu0 0.0
  %1967 = vmatpush2.msra.mxu0 0.0
  %1968 = vmatprep.subr.mxu0 0.0
  %1969 = vmatpush2.msra.mxu0 0.0
  %1970 = vmatprep.subr.mxu0 0.0
  %1971 = vmatpush2.msra.mxu0 0.0
  %1972 = vmatprep.subr.mxu0 0.0
  %1973 = vmatpush2.msra.mxu0 0.0
  %1974 = vmatprep.subr.mxu0 0.0
  %1975 = vmatpush2.msra.mxu0 0.0
  %1976 = vmatprep.mubr.f32.mxu0 0.0
  %1977 = vmatmul.mubr.f32.gmra.mxu0 %v1910
  %v1978 = vpop.f32.mrf.mxu0
  %v1979 = vadd.f32 0.0, %v1978
  %v1980 = vpop.f32.mrf.mxu0
  %1981 = vdwg.mxu0
  %v1983 = vsel %vm239, %v1017, 0
  %1985 = vmatprep.subr.mxu0 0.0
  %1986 = vmatpush1.msra.mxu0 0.0
  %1987 = vmatprep.subr.mxu0 0.0
  %1988 = vmatpush1.msra.mxu0 0.0
  %1989 = vmatprep.subr.mxu0 0.0
  %1990 = vmatpush1.msra.mxu0 0.0
  %1991 = vmatprep.subr.mxu0 0.0
  %1992 = vmatpush1.msra.mxu0 0.0
  %1993 = vmatprep.subr.mxu0 0.0
  %1994 = vmatpush1.msra.mxu0 0.0
  %1995 = vmatprep.subr.mxu0 0.0
  %1996 = vmatpush1.msra.mxu0 0.0
  %1997 = vmatprep.subr.mxu0 0.0
  %1998 = vmatpush1.msra.mxu0 0.0
  %1999 = vmatprep.subr.mxu0 0.0
  %2000 = vmatpush1.msra.mxu0 0.0
  %2001 = vmatprep.subr.mxu0 0.0
  %2002 = vmatpush1.msra.mxu0 0.0
  %2003 = vmatprep.subr.mxu0 0.0
  %2004 = vmatpush1.msra.mxu0 0.0
  %2005 = vmatprep.subr.mxu0 0.0
  %2006 = vmatpush1.msra.mxu0 0.0
  %2007 = vmatprep.subr.mxu0 0.0
  %2008 = vmatpush1.msra.mxu0 0.0
  %2009 = vmatprep.subr.mxu0 0.0
  %2010 = vmatpush1.msra.mxu0 %v1099
  %2011 = vmatprep.subr.mxu0 0.0
  %2012 = vmatpush1.msra.mxu0 %v1098
  %2013 = vmatprep.subr.mxu0 0.0
  %2014 = vmatpush1.msra.mxu0 %v1097
  %2015 = vmatprep.subr.mxu0 0.0
  %2016 = vmatpush1.msra.mxu0 %v1096
  %2017 = vmatprep.subr.mxu0 0.0
  %2018 = vmatpush2.msra.mxu0 0.0
  %2019 = vmatprep.subr.mxu0 0.0
  %2020 = vmatpush2.msra.mxu0 0.0
  %2021 = vmatprep.subr.mxu0 0.0
  %2022 = vmatpush2.msra.mxu0 0.0
  %2023 = vmatprep.subr.mxu0 0.0
  %2024 = vmatpush2.msra.mxu0 0.0
  %2025 = vmatprep.subr.mxu0 0.0
  %2026 = vmatpush2.msra.mxu0 0.0
  %2027 = vmatprep.subr.mxu0 0.0
  %2028 = vmatpush2.msra.mxu0 0.0
  %2029 = vmatprep.subr.mxu0 0.0
  %2030 = vmatpush2.msra.mxu0 0.0
  %2031 = vmatprep.subr.mxu0 0.0
  %2032 = vmatpush2.msra.mxu0 0.0
  %2033 = vmatprep.subr.mxu0 0.0
  %2034 = vmatpush2.msra.mxu0 0.0
  %2035 = vmatprep.subr.mxu0 0.0
  %2036 = vmatpush2.msra.mxu0 0.0
  %2037 = vmatprep.subr.mxu0 0.0
  %2038 = vmatpush2.msra.mxu0 0.0
  %2039 = vmatprep.subr.mxu0 0.0
  %2040 = vmatpush2.msra.mxu0 0.0
  %2041 = vmatprep.subr.mxu0 0.0
  %2042 = vmatpush2.msra.mxu0 0.0
  %2043 = vmatprep.subr.mxu0 0.0
  %2044 = vmatpush2.msra.mxu0 0.0
  %2045 = vmatprep.subr.mxu0 0.0
  %2046 = vmatpush2.msra.mxu0 0.0
  %2047 = vmatprep.subr.mxu0 0.0
  %2048 = vmatpush2.msra.mxu0 0.0
  %2049 = vmatprep.mubr.f32.mxu0 0.0
  %2050 = vmatmul.mubr.f32.gmra.mxu0 %v1983
  %v2051 = vpop.f32.mrf.mxu0
  %v2052 = vadd.f32 0.0, %v2051
  %v2053 = vpop.f32.mrf.mxu0
  %2054 = vdwg.mxu0
  %v2056 = vsel %vm239, %v1018, 0
  %2058 = vmatprep.subr.mxu0 0.0
  %2059 = vmatpush1.msra.mxu0 0.0
  %2060 = vmatprep.subr.mxu0 0.0
  %2061 = vmatpush1.msra.mxu0 0.0
  %2062 = vmatprep.subr.mxu0 0.0
  %2063 = vmatpush1.msra.mxu0 0.0
  %2064 = vmatprep.subr.mxu0 0.0
  %2065 = vmatpush1.msra.mxu0 0.0
  %2066 = vmatprep.subr.mxu0 0.0
  %2067 = vmatpush1.msra.mxu0 0.0
  %2068 = vmatprep.subr.mxu0 0.0
  %2069 = vmatpush1.msra.mxu0 0.0
  %2070 = vmatprep.subr.mxu0 0.0
  %2071 = vmatpush1.msra.mxu0 0.0
  %2072 = vmatprep.subr.mxu0 0.0
  %2073 = vmatpush1.msra.mxu0 0.0
  %2074 = vmatprep.subr.mxu0 0.0
  %2075 = vmatpush1.msra.mxu0 0.0
  %2076 = vmatprep.subr.mxu0 0.0
  %2077 = vmatpush1.msra.mxu0 0.0
  %2078 = vmatprep.subr.mxu0 0.0
  %2079 = vmatpush1.msra.mxu0 0.0
  %2080 = vmatprep.subr.mxu0 0.0
  %2081 = vmatpush1.msra.mxu0 0.0
  %2082 = vmatprep.subr.mxu0 0.0
  %2083 = vmatpush1.msra.mxu0 %v1103
  %2084 = vmatprep.subr.mxu0 0.0
  %2085 = vmatpush1.msra.mxu0 %v1102
  %2086 = vmatprep.subr.mxu0 0.0
  %2087 = vmatpush1.msra.mxu0 %v1101
  %2088 = vmatprep.subr.mxu0 0.0
  %2089 = vmatpush1.msra.mxu0 %v1100
  %2090 = vmatprep.subr.mxu0 0.0
  %2091 = vmatpush2.msra.mxu0 0.0
  %2092 = vmatprep.subr.mxu0 0.0
  %2093 = vmatpush2.msra.mxu0 0.0
  %2094 = vmatprep.subr.mxu0 0.0
  %2095 = vmatpush2.msra.mxu0 0.0
  %2096 = vmatprep.subr.mxu0 0.0
  %2097 = vmatpush2.msra.mxu0 0.0
  %2098 = vmatprep.subr.mxu0 0.0
  %2099 = vmatpush2.msra.mxu0 0.0
  %2100 = vmatprep.subr.mxu0 0.0
  %2101 = vmatpush2.msra.mxu0 0.0
  %2102 = vmatprep.subr.mxu0 0.0
  %2103 = vmatpush2.msra.mxu0 0.0
  %2104 = vmatprep.subr.mxu0 0.0
  %2105 = vmatpush2.msra.mxu0 0.0
  %2106 = vmatprep.subr.mxu0 0.0
  %2107 = vmatpush2.msra.mxu0 0.0
  %2108 = vmatprep.subr.mxu0 0.0
  %2109 = vmatpush2.msra.mxu0 0.0
  %2110 = vmatprep.subr.mxu0 0.0
  %2111 = vmatpush2.msra.mxu0 0.0
  %2112 = vmatprep.subr.mxu0 0.0
  %2113 = vmatpush2.msra.mxu0 0.0
  %2114 = vmatprep.subr.mxu0 0.0
  %2115 = vmatpush2.msra.mxu0 0.0
  %2116 = vmatprep.subr.mxu0 0.0
  %2117 = vmatpush2.msra.mxu0 0.0
  %2118 = vmatprep.subr.mxu0 0.0
  %2119 = vmatpush2.msra.mxu0 0.0
  %2120 = vmatprep.subr.mxu0 0.0
  %2121 = vmatpush2.msra.mxu0 0.0
  %2122 = vmatprep.mubr.f32.mxu0 0.0
  %2123 = vmatmul.mubr.f32.gmra.mxu0 %v2056
  %v2124 = vpop.f32.mrf.mxu0
  %v2125 = vadd.f32 0.0, %v2124
  %v2126 = vpop.f32.mrf.mxu0
  %2127 = vdwg.mxu0
  %v2129 = vsel %vm239, %v1019, 0
  %2131 = vmatprep.subr.mxu0 0.0
  %2132 = vmatpush1.msra.mxu0 0.0
  %2133 = vmatprep.subr.mxu0 0.0
  %2134 = vmatpush1.msra.mxu0 0.0
  %2135 = vmatprep.subr.mxu0 0.0
  %2136 = vmatpush1.msra.mxu0 0.0
  %2137 = vmatprep.subr.mxu0 0.0
  %2138 = vmatpush1.msra.mxu0 0.0
  %2139 = vmatprep.subr.mxu0 0.0
  %2140 = vmatpush1.msra.mxu0 0.0
  %2141 = vmatprep.subr.mxu0 0.0
  %2142 = vmatpush1.msra.mxu0 0.0
  %2143 = vmatprep.subr.mxu0 0.0
  %2144 = vmatpush1.msra.mxu0 0.0
  %2145 = vmatprep.subr.mxu0 0.0
  %2146 = vmatpush1.msra.mxu0 0.0
  %2147 = vmatprep.subr.mxu0 0.0
  %2148 = vmatpush1.msra.mxu0 0.0
  %2149 = vmatprep.subr.mxu0 0.0
  %2150 = vmatpush1.msra.mxu0 0.0
  %2151 = vmatprep.subr.mxu0 0.0
  %2152 = vmatpush1.msra.mxu0 0.0
  %2153 = vmatprep.subr.mxu0 0.0
  %2154 = vmatpush1.msra.mxu0 0.0
  %2155 = vmatprep.subr.mxu0 0.0
  %2156 = vmatpush1.msra.mxu0 %v1107
  %2157 = vmatprep.subr.mxu0 0.0
  %2158 = vmatpush1.msra.mxu0 %v1106
  %2159 = vmatprep.subr.mxu0 0.0
  %2160 = vmatpush1.msra.mxu0 %v1105
  %2161 = vmatprep.subr.mxu0 0.0
  %2162 = vmatpush1.msra.mxu0 %v1104
  %2163 = vmatprep.subr.mxu0 0.0
  %2164 = vmatpush2.msra.mxu0 0.0
  %2165 = vmatprep.subr.mxu0 0.0
  %2166 = vmatpush2.msra.mxu0 0.0
  %2167 = vmatprep.subr.mxu0 0.0
  %2168 = vmatpush2.msra.mxu0 0.0
  %2169 = vmatprep.subr.mxu0 0.0
  %2170 = vmatpush2.msra.mxu0 0.0
  %2171 = vmatprep.subr.mxu0 0.0
  %2172 = vmatpush2.msra.mxu0 0.0
  %2173 = vmatprep.subr.mxu0 0.0
  %2174 = vmatpush2.msra.mxu0 0.0
  %2175 = vmatprep.subr.mxu0 0.0
  %2176 = vmatpush2.msra.mxu0 0.0
  %2177 = vmatprep.subr.mxu0 0.0
  %2178 = vmatpush2.msra.mxu0 0.0
  %2179 = vmatprep.subr.mxu0 0.0
  %2180 = vmatpush2.msra.mxu0 0.0
  %2181 = vmatprep.subr.mxu0 0.0
  %2182 = vmatpush2.msra.mxu0 0.0
  %2183 = vmatprep.subr.mxu0 0.0
  %2184 = vmatpush2.msra.mxu0 0.0
  %2185 = vmatprep.subr.mxu0 0.0
  %2186 = vmatpush2.msra.mxu0 0.0
  %2187 = vmatprep.subr.mxu0 0.0
  %2188 = vmatpush2.msra.mxu0 0.0
  %2189 = vmatprep.subr.mxu0 0.0
  %2190 = vmatpush2.msra.mxu0 0.0
  %2191 = vmatprep.subr.mxu0 0.0
  %2192 = vmatpush2.msra.mxu0 0.0
  %2193 = vmatprep.subr.mxu0 0.0
  %2194 = vmatpush2.msra.mxu0 0.0
  %2195 = vmatprep.mubr.f32.mxu0 0.0
  %2196 = vmatmul.mubr.f32.gmra.mxu0 %v2129
  %v2197 = vpop.f32.mrf.mxu0
  %v2198 = vadd.f32 0.0, %v2197
  %v2199 = vpop.f32.mrf.mxu0
  %2200 = vdwg.mxu0
  %v2202 = vsel %vm239, %v1020, 0
  %2204 = vmatprep.subr.mxu0 0.0
  %2205 = vmatpush1.msra.mxu0 0.0
  %2206 = vmatprep.subr.mxu0 0.0
  %2207 = vmatpush1.msra.mxu0 0.0
  %2208 = vmatprep.subr.mxu0 0.0
  %2209 = vmatpush1.msra.mxu0 0.0
  %2210 = vmatprep.subr.mxu0 0.0
  %2211 = vmatpush1.msra.mxu0 0.0
  %2212 = vmatprep.subr.mxu0 0.0
  %2213 = vmatpush1.msra.mxu0 0.0
  %2214 = vmatprep.subr.mxu0 0.0
  %2215 = vmatpush1.msra.mxu0 0.0
  %2216 = vmatprep.subr.mxu0 0.0
  %2217 = vmatpush1.msra.mxu0 0.0
  %2218 = vmatprep.subr.mxu0 0.0
  %2219 = vmatpush1.msra.mxu0 0.0
  %2220 = vmatprep.subr.mxu0 0.0
  %2221 = vmatpush1.msra.mxu0 0.0
  %2222 = vmatprep.subr.mxu0 0.0
  %2223 = vmatpush1.msra.mxu0 0.0
  %2224 = vmatprep.subr.mxu0 0.0
  %2225 = vmatpush1.msra.mxu0 0.0
  %2226 = vmatprep.subr.mxu0 0.0
  %2227 = vmatpush1.msra.mxu0 0.0
  %2228 = vmatprep.subr.mxu0 0.0
  %2229 = vmatpush1.msra.mxu0 %v1111
  %2230 = vmatprep.subr.mxu0 0.0
  %2231 = vmatpush1.msra.mxu0 %v1110
  %2232 = vmatprep.subr.mxu0 0.0
  %2233 = vmatpush1.msra.mxu0 %v1109
  %2234 = vmatprep.subr.mxu0 0.0
  %2235 = vmatpush1.msra.mxu0 %v1108
  %2236 = vmatprep.subr.mxu0 0.0
  %2237 = vmatpush2.msra.mxu0 0.0
  %2238 = vmatprep.subr.mxu0 0.0
  %2239 = vmatpush2.msra.mxu0 0.0
  %2240 = vmatprep.subr.mxu0 0.0
  %2241 = vmatpush2.msra.mxu0 0.0
  %2242 = vmatprep.subr.mxu0 0.0
  %2243 = vmatpush2.msra.mxu0 0.0
  %2244 = vmatprep.subr.mxu0 0.0
  %2245 = vmatpush2.msra.mxu0 0.0
  %2246 = vmatprep.subr.mxu0 0.0
  %2247 = vmatpush2.msra.mxu0 0.0
  %2248 = vmatprep.subr.mxu0 0.0
  %2249 = vmatpush2.msra.mxu0 0.0
  %2250 = vmatprep.subr.mxu0 0.0
  %2251 = vmatpush2.msra.mxu0 0.0
  %2252 = vmatprep.subr.mxu0 0.0
  %2253 = vmatpush2.msra.mxu0 0.0
  %2254 = vmatprep.subr.mxu0 0.0
  %2255 = vmatpush2.msra.mxu0 0.0
  %2256 = vmatprep.subr.mxu0 0.0
  %2257 = vmatpush2.msra.mxu0 0.0
  %2258 = vmatprep.subr.mxu0 0.0
  %2259 = vmatpush2.msra.mxu0 0.0
  %2260 = vmatprep.subr.mxu0 0.0
  %2261 = vmatpush2.msra.mxu0 0.0
  %2262 = vmatprep.subr.mxu0 0.0
  %2263 = vmatpush2.msra.mxu0 0.0
  %2264 = vmatprep.subr.mxu0 0.0
  %2265 = vmatpush2.msra.mxu0 0.0
  %2266 = vmatprep.subr.mxu0 0.0
  %2267 = vmatpush2.msra.mxu0 0.0
  %2268 = vmatprep.mubr.f32.mxu0 0.0
  %2269 = vmatmul.mubr.f32.gmra.mxu0 %v2202
  %v2270 = vpop.f32.mrf.mxu0
  %v2271 = vadd.f32 0.0, %v2270
  %v2272 = vpop.f32.mrf.mxu0
  %2273 = vdwg.mxu0
  %v2275 = vsel %vm239, %v1021, 0
  %2277 = vmatprep.subr.mxu0 0.0
  %2278 = vmatpush1.msra.mxu0 0.0
  %2279 = vmatprep.subr.mxu0 0.0
  %2280 = vmatpush1.msra.mxu0 0.0
  %2281 = vmatprep.subr.mxu0 0.0
  %2282 = vmatpush1.msra.mxu0 0.0
  %2283 = vmatprep.subr.mxu0 0.0
  %2284 = vmatpush1.msra.mxu0 0.0
  %2285 = vmatprep.subr.mxu0 0.0
  %2286 = vmatpush1.msra.mxu0 0.0
  %2287 = vmatprep.subr.mxu0 0.0
  %2288 = vmatpush1.msra.mxu0 0.0
  %2289 = vmatprep.subr.mxu0 0.0
  %2290 = vmatpush1.msra.mxu0 0.0
  %2291 = vmatprep.subr.mxu0 0.0
  %2292 = vmatpush1.msra.mxu0 0.0
  %2293 = vmatprep.subr.mxu0 0.0
  %2294 = vmatpush1.msra.mxu0 0.0
  %2295 = vmatprep.subr.mxu0 0.0
  %2296 = vmatpush1.msra.mxu0 0.0
  %2297 = vmatprep.subr.mxu0 0.0
  %2298 = vmatpush1.msra.mxu0 0.0
  %2299 = vmatprep.subr.mxu0 0.0
  %2300 = vmatpush1.msra.mxu0 0.0
  %2301 = vmatprep.subr.mxu0 0.0
  %2302 = vmatpush1.msra.mxu0 %v1115
  %2303 = vmatprep.subr.mxu0 0.0
  %2304 = vmatpush1.msra.mxu0 %v1114
  %2305 = vmatprep.subr.mxu0 0.0
  %2306 = vmatpush1.msra.mxu0 %v1113
  %2307 = vmatprep.subr.mxu0 0.0
  %2308 = vmatpush1.msra.mxu0 %v1112
  %2309 = vmatprep.subr.mxu0 0.0
  %2310 = vmatpush2.msra.mxu0 0.0
  %2311 = vmatprep.subr.mxu0 0.0
  %2312 = vmatpush2.msra.mxu0 0.0
  %2313 = vmatprep.subr.mxu0 0.0
  %2314 = vmatpush2.msra.mxu0 0.0
  %2315 = vmatprep.subr.mxu0 0.0
  %2316 = vmatpush2.msra.mxu0 0.0
  %2317 = vmatprep.subr.mxu0 0.0
  %2318 = vmatpush2.msra.mxu0 0.0
  %2319 = vmatprep.subr.mxu0 0.0
  %2320 = vmatpush2.msra.mxu0 0.0
  %2321 = vmatprep.subr.mxu0 0.0
  %2322 = vmatpush2.msra.mxu0 0.0
  %2323 = vmatprep.subr.mxu0 0.0
  %2324 = vmatpush2.msra.mxu0 0.0
  %2325 = vmatprep.subr.mxu0 0.0
  %2326 = vmatpush2.msra.mxu0 0.0
  %2327 = vmatprep.subr.mxu0 0.0
  %2328 = vmatpush2.msra.mxu0 0.0
  %2329 = vmatprep.subr.mxu0 0.0
  %2330 = vmatpush2.msra.mxu0 0.0
  %2331 = vmatprep.subr.mxu0 0.0
  %2332 = vmatpush2.msra.mxu0 0.0
  %2333 = vmatprep.subr.mxu0 0.0
  %2334 = vmatpush2.msra.mxu0 0.0
  %2335 = vmatprep.subr.mxu0 0.0
  %2336 = vmatpush2.msra.mxu0 0.0
  %2337 = vmatprep.subr.mxu0 0.0
  %2338 = vmatpush2.msra.mxu0 0.0
  %2339 = vmatprep.subr.mxu0 0.0
  %2340 = vmatpush2.msra.mxu0 0.0
  %2341 = vmatprep.mubr.f32.mxu0 0.0
  %2342 = vmatmul.mubr.f32.gmra.mxu0 %v2275
  %v2343 = vpop.f32.mrf.mxu0
  %v2344 = vadd.f32 0.0, %v2343
  %v2345 = vpop.f32.mrf.mxu0
  %2346 = vdwg.mxu0
  %v2348 = vsel %vm239, %v1022, 0
  %2350 = vmatprep.subr.mxu0 0.0
  %2351 = vmatpush1.msra.mxu0 0.0
  %2352 = vmatprep.subr.mxu0 0.0
  %2353 = vmatpush1.msra.mxu0 0.0
  %2354 = vmatprep.subr.mxu0 0.0
  %2355 = vmatpush1.msra.mxu0 0.0
  %2356 = vmatprep.subr.mxu0 0.0
  %2357 = vmatpush1.msra.mxu0 0.0
  %2358 = vmatprep.subr.mxu0 0.0
  %2359 = vmatpush1.msra.mxu0 0.0
  %2360 = vmatprep.subr.mxu0 0.0
  %2361 = vmatpush1.msra.mxu0 0.0
  %2362 = vmatprep.subr.mxu0 0.0
  %2363 = vmatpush1.msra.mxu0 0.0
  %2364 = vmatprep.subr.mxu0 0.0
  %2365 = vmatpush1.msra.mxu0 0.0
  %2366 = vmatprep.subr.mxu0 0.0
  %2367 = vmatpush1.msra.mxu0 0.0
  %2368 = vmatprep.subr.mxu0 0.0
  %2369 = vmatpush1.msra.mxu0 0.0
  %2370 = vmatprep.subr.mxu0 0.0
  %2371 = vmatpush1.msra.mxu0 0.0
  %2372 = vmatprep.subr.mxu0 0.0
  %2373 = vmatpush1.msra.mxu0 0.0
  %2374 = vmatprep.subr.mxu0 0.0
  %2375 = vmatpush1.msra.mxu0 %v1119
  %2376 = vmatprep.subr.mxu0 0.0
  %2377 = vmatpush1.msra.mxu0 %v1118
  %2378 = vmatprep.subr.mxu0 0.0
  %2379 = vmatpush1.msra.mxu0 %v1117
  %2380 = vmatprep.subr.mxu0 0.0
  %2381 = vmatpush1.msra.mxu0 %v1116
  %2382 = vmatprep.subr.mxu0 0.0
  %2383 = vmatpush2.msra.mxu0 0.0
  %2384 = vmatprep.subr.mxu0 0.0
  %2385 = vmatpush2.msra.mxu0 0.0
  %2386 = vmatprep.subr.mxu0 0.0
  %2387 = vmatpush2.msra.mxu0 0.0
  %2388 = vmatprep.subr.mxu0 0.0
  %2389 = vmatpush2.msra.mxu0 0.0
  %2390 = vmatprep.subr.mxu0 0.0
  %2391 = vmatpush2.msra.mxu0 0.0
  %2392 = vmatprep.subr.mxu0 0.0
  %2393 = vmatpush2.msra.mxu0 0.0
  %2394 = vmatprep.subr.mxu0 0.0
  %2395 = vmatpush2.msra.mxu0 0.0
  %2396 = vmatprep.subr.mxu0 0.0
  %2397 = vmatpush2.msra.mxu0 0.0
  %2398 = vmatprep.subr.mxu0 0.0
  %2399 = vmatpush2.msra.mxu0 0.0
  %2400 = vmatprep.subr.mxu0 0.0
  %2401 = vmatpush2.msra.mxu0 0.0
  %2402 = vmatprep.subr.mxu0 0.0
  %2403 = vmatpush2.msra.mxu0 0.0
  %2404 = vmatprep.subr.mxu0 0.0
  %2405 = vmatpush2.msra.mxu0 0.0
  %2406 = vmatprep.subr.mxu0 0.0
  %2407 = vmatpush2.msra.mxu0 0.0
  %2408 = vmatprep.subr.mxu0 0.0
  %2409 = vmatpush2.msra.mxu0 0.0
  %2410 = vmatprep.subr.mxu0 0.0
  %2411 = vmatpush2.msra.mxu0 0.0
  %2412 = vmatprep.subr.mxu0 0.0
  %2413 = vmatpush2.msra.mxu0 0.0
  %2414 = vmatprep.mubr.f32.mxu0 0.0
  %2415 = vmatmul.mubr.f32.gmra.mxu0 %v2348
  %v2416 = vpop.f32.mrf.mxu0
  %v2417 = vadd.f32 0.0, %v2416
  %v2418 = vpop.f32.mrf.mxu0
  %2419 = vdwg.mxu0
  %v2421 = vsel %vm239, %v1023, 0
  %2423 = vmatprep.subr.mxu0 0.0
  %2424 = vmatpush1.msra.mxu0 0.0
  %2425 = vmatprep.subr.mxu0 0.0
  %2426 = vmatpush1.msra.mxu0 0.0
  %2427 = vmatprep.subr.mxu0 0.0
  %2428 = vmatpush1.msra.mxu0 0.0
  %2429 = vmatprep.subr.mxu0 0.0
  %2430 = vmatpush1.msra.mxu0 0.0
  %2431 = vmatprep.subr.mxu0 0.0
  %2432 = vmatpush1.msra.mxu0 0.0
  %2433 = vmatprep.subr.mxu0 0.0
  %2434 = vmatpush1.msra.mxu0 0.0
  %2435 = vmatprep.subr.mxu0 0.0
  %2436 = vmatpush1.msra.mxu0 0.0
  %2437 = vmatprep.subr.mxu0 0.0
  %2438 = vmatpush1.msra.mxu0 0.0
  %2439 = vmatprep.subr.mxu0 0.0
  %2440 = vmatpush1.msra.mxu0 0.0
  %2441 = vmatprep.subr.mxu0 0.0
  %2442 = vmatpush1.msra.mxu0 0.0
  %2443 = vmatprep.subr.mxu0 0.0
  %2444 = vmatpush1.msra.mxu0 0.0
  %2445 = vmatprep.subr.mxu0 0.0
  %2446 = vmatpush1.msra.mxu0 0.0
  %2447 = vmatprep.subr.mxu0 0.0
  %2448 = vmatpush1.msra.mxu0 %v1123
  %2449 = vmatprep.subr.mxu0 0.0
  %2450 = vmatpush1.msra.mxu0 %v1122
  %2451 = vmatprep.subr.mxu0 0.0
  %2452 = vmatpush1.msra.mxu0 %v1121
  %2453 = vmatprep.subr.mxu0 0.0
  %2454 = vmatpush1.msra.mxu0 %v1120
  %2455 = vmatprep.subr.mxu0 0.0
  %2456 = vmatpush2.msra.mxu0 0.0
  %2457 = vmatprep.subr.mxu0 0.0
  %2458 = vmatpush2.msra.mxu0 0.0
  %2459 = vmatprep.subr.mxu0 0.0
  %2460 = vmatpush2.msra.mxu0 0.0
  %2461 = vmatprep.subr.mxu0 0.0
  %2462 = vmatpush2.msra.mxu0 0.0
  %2463 = vmatprep.subr.mxu0 0.0
  %2464 = vmatpush2.msra.mxu0 0.0
  %2465 = vmatprep.subr.mxu0 0.0
  %2466 = vmatpush2.msra.mxu0 0.0
  %2467 = vmatprep.subr.mxu0 0.0
  %2468 = vmatpush2.msra.mxu0 0.0
  %2469 = vmatprep.subr.mxu0 0.0
  %2470 = vmatpush2.msra.mxu0 0.0
  %2471 = vmatprep.subr.mxu0 0.0
  %2472 = vmatpush2.msra.mxu0 0.0
  %2473 = vmatprep.subr.mxu0 0.0
  %2474 = vmatpush2.msra.mxu0 0.0
  %2475 = vmatprep.subr.mxu0 0.0
  %2476 = vmatpush2.msra.mxu0 0.0
  %2477 = vmatprep.subr.mxu0 0.0
  %2478 = vmatpush2.msra.mxu0 0.0
  %2479 = vmatprep.subr.mxu0 0.0
  %2480 = vmatpush2.msra.mxu0 0.0
  %2481 = vmatprep.subr.mxu0 0.0
  %2482 = vmatpush2.msra.mxu0 0.0
  %2483 = vmatprep.subr.mxu0 0.0
  %2484 = vmatpush2.msra.mxu0 0.0
  %2485 = vmatprep.subr.mxu0 0.0
  %2486 = vmatpush2.msra.mxu0 0.0
  %2487 = vmatprep.mubr.f32.mxu0 0.0
  %2488 = vmatmul.mubr.f32.gmra.mxu0 %v2421
  %v2489 = vpop.f32.mrf.mxu0
  %v2490 = vadd.f32 0.0, %v2489
  %v2491 = vpop.f32.mrf.mxu0
  %2492 = vdwg.mxu0
  %v2494 = vsel %vm239, %v1024, 0
  %2496 = vmatprep.subr.mxu0 0.0
  %2497 = vmatpush1.msra.mxu0 0.0
  %2498 = vmatprep.subr.mxu0 0.0
  %2499 = vmatpush1.msra.mxu0 0.0
  %2500 = vmatprep.subr.mxu0 0.0
  %2501 = vmatpush1.msra.mxu0 0.0
  %2502 = vmatprep.subr.mxu0 0.0
  %2503 = vmatpush1.msra.mxu0 0.0
  %2504 = vmatprep.subr.mxu0 0.0
  %2505 = vmatpush1.msra.mxu0 0.0
  %2506 = vmatprep.subr.mxu0 0.0
  %2507 = vmatpush1.msra.mxu0 0.0
  %2508 = vmatprep.subr.mxu0 0.0
  %2509 = vmatpush1.msra.mxu0 0.0
  %2510 = vmatprep.subr.mxu0 0.0
  %2511 = vmatpush1.msra.mxu0 0.0
  %2512 = vmatprep.subr.mxu0 0.0
  %2513 = vmatpush1.msra.mxu0 0.0
  %2514 = vmatprep.subr.mxu0 0.0
  %2515 = vmatpush1.msra.mxu0 0.0
  %2516 = vmatprep.subr.mxu0 0.0
  %2517 = vmatpush1.msra.mxu0 0.0
  %2518 = vmatprep.subr.mxu0 0.0
  %2519 = vmatpush1.msra.mxu0 0.0
  %2520 = vmatprep.subr.mxu0 0.0
  %2521 = vmatpush1.msra.mxu0 %v1127
  %2522 = vmatprep.subr.mxu0 0.0
  %2523 = vmatpush1.msra.mxu0 %v1126
  %2524 = vmatprep.subr.mxu0 0.0
  %2525 = vmatpush1.msra.mxu0 %v1125
  %2526 = vmatprep.subr.mxu0 0.0
  %2527 = vmatpush1.msra.mxu0 %v1124
  %2528 = vmatprep.subr.mxu0 0.0
  %2529 = vmatpush2.msra.mxu0 0.0
  %2530 = vmatprep.subr.mxu0 0.0
  %2531 = vmatpush2.msra.mxu0 0.0
  %2532 = vmatprep.subr.mxu0 0.0
  %2533 = vmatpush2.msra.mxu0 0.0
  %2534 = vmatprep.subr.mxu0 0.0
  %2535 = vmatpush2.msra.mxu0 0.0
  %2536 = vmatprep.subr.mxu0 0.0
  %2537 = vmatpush2.msra.mxu0 0.0
  %2538 = vmatprep.subr.mxu0 0.0
  %2539 = vmatpush2.msra.mxu0 0.0
  %2540 = vmatprep.subr.mxu0 0.0
  %2541 = vmatpush2.msra.mxu0 0.0
  %2542 = vmatprep.subr.mxu0 0.0
  %2543 = vmatpush2.msra.mxu0 0.0
  %2544 = vmatprep.subr.mxu0 0.0
  %2545 = vmatpush2.msra.mxu0 0.0
  %2546 = vmatprep.subr.mxu0 0.0
  %2547 = vmatpush2.msra.mxu0 0.0
  %2548 = vmatprep.subr.mxu0 0.0
  %2549 = vmatpush2.msra.mxu0 0.0
  %2550 = vmatprep.subr.mxu0 0.0
  %2551 = vmatpush2.msra.mxu0 0.0
  %2552 = vmatprep.subr.mxu0 0.0
  %2553 = vmatpush2.msra.mxu0 0.0
  %2554 = vmatprep.subr.mxu0 0.0
  %2555 = vmatpush2.msra.mxu0 0.0
  %2556 = vmatprep.subr.mxu0 0.0
  %2557 = vmatpush2.msra.mxu0 0.0
  %2558 = vmatprep.subr.mxu0 0.0
  %2559 = vmatpush2.msra.mxu0 0.0
  %2560 = vmatprep.mubr.f32.mxu0 0.0
  %2561 = vmatmul.mubr.f32.gmra.mxu0 %v2494
  %v2562 = vpop.f32.mrf.mxu0
  %v2563 = vadd.f32 0.0, %v2562
  %v2564 = vpop.f32.mrf.mxu0
  %2565 = vdwg.mxu0
  %v2567 = vsel %vm239, %v1025, 0
  %2569 = vmatprep.subr.mxu0 0.0
  %2570 = vmatpush1.msra.mxu0 0.0
  %2571 = vmatprep.subr.mxu0 0.0
  %2572 = vmatpush1.msra.mxu0 0.0
  %2573 = vmatprep.subr.mxu0 0.0
  %2574 = vmatpush1.msra.mxu0 0.0
  %2575 = vmatprep.subr.mxu0 0.0
  %2576 = vmatpush1.msra.mxu0 0.0
  %2577 = vmatprep.subr.mxu0 0.0
  %2578 = vmatpush1.msra.mxu0 0.0
  %2579 = vmatprep.subr.mxu0 0.0
  %2580 = vmatpush1.msra.mxu0 0.0
  %2581 = vmatprep.subr.mxu0 0.0
  %2582 = vmatpush1.msra.mxu0 0.0
  %2583 = vmatprep.subr.mxu0 0.0
  %2584 = vmatpush1.msra.mxu0 0.0
  %2585 = vmatprep.subr.mxu0 0.0
  %2586 = vmatpush1.msra.mxu0 0.0
  %2587 = vmatprep.subr.mxu0 0.0
  %2588 = vmatpush1.msra.mxu0 0.0
  %2589 = vmatprep.subr.mxu0 0.0
  %2590 = vmatpush1.msra.mxu0 0.0
  %2591 = vmatprep.subr.mxu0 0.0
  %2592 = vmatpush1.msra.mxu0 0.0
  %2593 = vmatprep.subr.mxu0 0.0
  %2594 = vmatpush1.msra.mxu0 %v1131
  %2595 = vmatprep.subr.mxu0 0.0
  %2596 = vmatpush1.msra.mxu0 %v1130
  %2597 = vmatprep.subr.mxu0 0.0
  %2598 = vmatpush1.msra.mxu0 %v1129
  %2599 = vmatprep.subr.mxu0 0.0
  %2600 = vmatpush1.msra.mxu0 %v1128
  %2601 = vmatprep.subr.mxu0 0.0
  %2602 = vmatpush2.msra.mxu0 0.0
  %2603 = vmatprep.subr.mxu0 0.0
  %2604 = vmatpush2.msra.mxu0 0.0
  %2605 = vmatprep.subr.mxu0 0.0
  %2606 = vmatpush2.msra.mxu0 0.0
  %2607 = vmatprep.subr.mxu0 0.0
  %2608 = vmatpush2.msra.mxu0 0.0
  %2609 = vmatprep.subr.mxu0 0.0
  %2610 = vmatpush2.msra.mxu0 0.0
  %2611 = vmatprep.subr.mxu0 0.0
  %2612 = vmatpush2.msra.mxu0 0.0
  %2613 = vmatprep.subr.mxu0 0.0
  %2614 = vmatpush2.msra.mxu0 0.0
  %2615 = vmatprep.subr.mxu0 0.0
  %2616 = vmatpush2.msra.mxu0 0.0
  %2617 = vmatprep.subr.mxu0 0.0
  %2618 = vmatpush2.msra.mxu0 0.0
  %2619 = vmatprep.subr.mxu0 0.0
  %2620 = vmatpush2.msra.mxu0 0.0
  %2621 = vmatprep.subr.mxu0 0.0
  %2622 = vmatpush2.msra.mxu0 0.0
  %2623 = vmatprep.subr.mxu0 0.0
  %2624 = vmatpush2.msra.mxu0 0.0
  %2625 = vmatprep.subr.mxu0 0.0
  %2626 = vmatpush2.msra.mxu0 0.0
  %2627 = vmatprep.subr.mxu0 0.0
  %2628 = vmatpush2.msra.mxu0 0.0
  %2629 = vmatprep.subr.mxu0 0.0
  %2630 = vmatpush2.msra.mxu0 0.0
  %2631 = vmatprep.subr.mxu0 0.0
  %2632 = vmatpush2.msra.mxu0 0.0
  %2633 = vmatprep.mubr.f32.mxu0 0.0
  %2634 = vmatmul.mubr.f32.gmra.mxu0 %v2567
  %v2635 = vpop.f32.mrf.mxu0
  %v2636 = vadd.f32 0.0, %v2635
  %v2637 = vpop.f32.mrf.mxu0
  %2638 = vdwg.mxu0
  %v2640 = vsel %vm239, %v1026, 0
  %2642 = vmatprep.subr.mxu0 0.0
  %2643 = vmatpush1.msra.mxu0 0.0
  %2644 = vmatprep.subr.mxu0 0.0
  %2645 = vmatpush1.msra.mxu0 0.0
  %2646 = vmatprep.subr.mxu0 0.0
  %2647 = vmatpush1.msra.mxu0 0.0
  %2648 = vmatprep.subr.mxu0 0.0
  %2649 = vmatpush1.msra.mxu0 0.0
  %2650 = vmatprep.subr.mxu0 0.0
  %2651 = vmatpush1.msra.mxu0 0.0
  %2652 = vmatprep.subr.mxu0 0.0
  %2653 = vmatpush1.msra.mxu0 0.0
  %2654 = vmatprep.subr.mxu0 0.0
  %2655 = vmatpush1.msra.mxu0 0.0
  %2656 = vmatprep.subr.mxu0 0.0
  %2657 = vmatpush1.msra.mxu0 0.0
  %2658 = vmatprep.subr.mxu0 0.0
  %2659 = vmatpush1.msra.mxu0 0.0
  %2660 = vmatprep.subr.mxu0 0.0
  %2661 = vmatpush1.msra.mxu0 0.0
  %2662 = vmatprep.subr.mxu0 0.0
  %2663 = vmatpush1.msra.mxu0 0.0
  %2664 = vmatprep.subr.mxu0 0.0
  %2665 = vmatpush1.msra.mxu0 0.0
  %2666 = vmatprep.subr.mxu0 0.0
  %2667 = vmatpush1.msra.mxu0 %v1135
  %2668 = vmatprep.subr.mxu0 0.0
  %2669 = vmatpush1.msra.mxu0 %v1134
  %2670 = vmatprep.subr.mxu0 0.0
  %2671 = vmatpush1.msra.mxu0 %v1133
  %2672 = vmatprep.subr.mxu0 0.0
  %2673 = vmatpush1.msra.mxu0 %v1132
  %2674 = vmatprep.subr.mxu0 0.0
  %2675 = vmatpush2.msra.mxu0 0.0
  %2676 = vmatprep.subr.mxu0 0.0
  %2677 = vmatpush2.msra.mxu0 0.0
  %2678 = vmatprep.subr.mxu0 0.0
  %2679 = vmatpush2.msra.mxu0 0.0
  %2680 = vmatprep.subr.mxu0 0.0
  %2681 = vmatpush2.msra.mxu0 0.0
  %2682 = vmatprep.subr.mxu0 0.0
  %2683 = vmatpush2.msra.mxu0 0.0
  %2684 = vmatprep.subr.mxu0 0.0
  %2685 = vmatpush2.msra.mxu0 0.0
  %2686 = vmatprep.subr.mxu0 0.0
  %2687 = vmatpush2.msra.mxu0 0.0
  %2688 = vmatprep.subr.mxu0 0.0
  %2689 = vmatpush2.msra.mxu0 0.0
  %2690 = vmatprep.subr.mxu0 0.0
  %2691 = vmatpush2.msra.mxu0 0.0
  %2692 = vmatprep.subr.mxu0 0.0
  %2693 = vmatpush2.msra.mxu0 0.0
  %2694 = vmatprep.subr.mxu0 0.0
  %2695 = vmatpush2.msra.mxu0 0.0
  %2696 = vmatprep.subr.mxu0 0.0
  %2697 = vmatpush2.msra.mxu0 0.0
  %2698 = vmatprep.subr.mxu0 0.0
  %2699 = vmatpush2.msra.mxu0 0.0
  %2700 = vmatprep.subr.mxu0 0.0
  %2701 = vmatpush2.msra.mxu0 0.0
  %2702 = vmatprep.subr.mxu0 0.0
  %2703 = vmatpush2.msra.mxu0 0.0
  %2704 = vmatprep.subr.mxu0 0.0
  %2705 = vmatpush2.msra.mxu0 0.0
  %2706 = vmatprep.mubr.f32.mxu0 0.0
  %2707 = vmatmul.mubr.f32.gmra.mxu0 %v2640
  %v2708 = vpop.f32.mrf.mxu0
  %v2709 = vadd.f32 0.0, %v2708
  %v2710 = vpop.f32.mrf.mxu0
  %2711 = vdwg.mxu0
  %v2713 = vsel %vm239, %v1027, 0
  %2715 = vmatprep.subr.mxu0 0.0
  %2716 = vmatpush1.msra.mxu0 0.0
  %2717 = vmatprep.subr.mxu0 0.0
  %2718 = vmatpush1.msra.mxu0 0.0
  %2719 = vmatprep.subr.mxu0 0.0
  %2720 = vmatpush1.msra.mxu0 0.0
  %2721 = vmatprep.subr.mxu0 0.0
  %2722 = vmatpush1.msra.mxu0 0.0
  %2723 = vmatprep.subr.mxu0 0.0
  %2724 = vmatpush1.msra.mxu0 0.0
  %2725 = vmatprep.subr.mxu0 0.0
  %2726 = vmatpush1.msra.mxu0 0.0
  %2727 = vmatprep.subr.mxu0 0.0
  %2728 = vmatpush1.msra.mxu0 0.0
  %2729 = vmatprep.subr.mxu0 0.0
  %2730 = vmatpush1.msra.mxu0 0.0
  %2731 = vmatprep.subr.mxu0 0.0
  %2732 = vmatpush1.msra.mxu0 0.0
  %2733 = vmatprep.subr.mxu0 0.0
  %2734 = vmatpush1.msra.mxu0 0.0
  %2735 = vmatprep.subr.mxu0 0.0
  %2736 = vmatpush1.msra.mxu0 0.0
  %2737 = vmatprep.subr.mxu0 0.0
  %2738 = vmatpush1.msra.mxu0 0.0
  %2739 = vmatprep.subr.mxu0 0.0
  %2740 = vmatpush1.msra.mxu0 %v1139
  %2741 = vmatprep.subr.mxu0 0.0
  %2742 = vmatpush1.msra.mxu0 %v1138
  %2743 = vmatprep.subr.mxu0 0.0
  %2744 = vmatpush1.msra.mxu0 %v1137
  %2745 = vmatprep.subr.mxu0 0.0
  %2746 = vmatpush1.msra.mxu0 %v1136
  %2747 = vmatprep.subr.mxu0 0.0
  %2748 = vmatpush2.msra.mxu0 0.0
  %2749 = vmatprep.subr.mxu0 0.0
  %2750 = vmatpush2.msra.mxu0 0.0
  %2751 = vmatprep.subr.mxu0 0.0
  %2752 = vmatpush2.msra.mxu0 0.0
  %2753 = vmatprep.subr.mxu0 0.0
  %2754 = vmatpush2.msra.mxu0 0.0
  %2755 = vmatprep.subr.mxu0 0.0
  %2756 = vmatpush2.msra.mxu0 0.0
  %2757 = vmatprep.subr.mxu0 0.0
  %2758 = vmatpush2.msra.mxu0 0.0
  %2759 = vmatprep.subr.mxu0 0.0
  %2760 = vmatpush2.msra.mxu0 0.0
  %2761 = vmatprep.subr.mxu0 0.0
  %2762 = vmatpush2.msra.mxu0 0.0
  %2763 = vmatprep.subr.mxu0 0.0
  %2764 = vmatpush2.msra.mxu0 0.0
  %2765 = vmatprep.subr.mxu0 0.0
  %2766 = vmatpush2.msra.mxu0 0.0
  %2767 = vmatprep.subr.mxu0 0.0
  %2768 = vmatpush2.msra.mxu0 0.0
  %2769 = vmatprep.subr.mxu0 0.0
  %2770 = vmatpush2.msra.mxu0 0.0
  %2771 = vmatprep.subr.mxu0 0.0
  %2772 = vmatpush2.msra.mxu0 0.0
  %2773 = vmatprep.subr.mxu0 0.0
  %2774 = vmatpush2.msra.mxu0 0.0
  %2775 = vmatprep.subr.mxu0 0.0
  %2776 = vmatpush2.msra.mxu0 0.0
  %2777 = vmatprep.subr.mxu0 0.0
  %2778 = vmatpush2.msra.mxu0 0.0
  %2779 = vmatprep.mubr.f32.mxu0 0.0
  %2780 = vmatmul.mubr.f32.gmra.mxu0 %v2713
  %v2781 = vpop.f32.mrf.mxu0
  %v2782 = vadd.f32 0.0, %v2781
  %v2783 = vpop.f32.mrf.mxu0
  %2784 = vdwg.mxu0
  %v2786 = vsel %vm239, %v1028, 0
  %2788 = vmatprep.subr.mxu0 0.0
  %2789 = vmatpush1.msra.mxu0 0.0
  %2790 = vmatprep.subr.mxu0 0.0
  %2791 = vmatpush1.msra.mxu0 0.0
  %2792 = vmatprep.subr.mxu0 0.0
  %2793 = vmatpush1.msra.mxu0 0.0
  %2794 = vmatprep.subr.mxu0 0.0
  %2795 = vmatpush1.msra.mxu0 0.0
  %2796 = vmatprep.subr.mxu0 0.0
  %2797 = vmatpush1.msra.mxu0 0.0
  %2798 = vmatprep.subr.mxu0 0.0
  %2799 = vmatpush1.msra.mxu0 0.0
  %2800 = vmatprep.subr.mxu0 0.0
  %2801 = vmatpush1.msra.mxu0 0.0
  %2802 = vmatprep.subr.mxu0 0.0
  %2803 = vmatpush1.msra.mxu0 0.0
  %2804 = vmatprep.subr.mxu0 0.0
  %2805 = vmatpush1.msra.mxu0 0.0
  %2806 = vmatprep.subr.mxu0 0.0
  %2807 = vmatpush1.msra.mxu0 0.0
  %2808 = vmatprep.subr.mxu0 0.0
  %2809 = vmatpush1.msra.mxu0 0.0
  %2810 = vmatprep.subr.mxu0 0.0
  %2811 = vmatpush1.msra.mxu0 0.0
  %2812 = vmatprep.subr.mxu0 0.0
  %2813 = vmatpush1.msra.mxu0 %v1143
  %2814 = vmatprep.subr.mxu0 0.0
  %2815 = vmatpush1.msra.mxu0 %v1142
  %2816 = vmatprep.subr.mxu0 0.0
  %2817 = vmatpush1.msra.mxu0 %v1141
  %2818 = vmatprep.subr.mxu0 0.0
  %2819 = vmatpush1.msra.mxu0 %v1140
  %2820 = vmatprep.subr.mxu0 0.0
  %2821 = vmatpush2.msra.mxu0 0.0
  %2822 = vmatprep.subr.mxu0 0.0
  %2823 = vmatpush2.msra.mxu0 0.0
  %2824 = vmatprep.subr.mxu0 0.0
  %2825 = vmatpush2.msra.mxu0 0.0
  %2826 = vmatprep.subr.mxu0 0.0
  %2827 = vmatpush2.msra.mxu0 0.0
  %2828 = vmatprep.subr.mxu0 0.0
  %2829 = vmatpush2.msra.mxu0 0.0
  %2830 = vmatprep.subr.mxu0 0.0
  %2831 = vmatpush2.msra.mxu0 0.0
  %2832 = vmatprep.subr.mxu0 0.0
  %2833 = vmatpush2.msra.mxu0 0.0
  %2834 = vmatprep.subr.mxu0 0.0
  %2835 = vmatpush2.msra.mxu0 0.0
  %2836 = vmatprep.subr.mxu0 0.0
  %2837 = vmatpush2.msra.mxu0 0.0
  %2838 = vmatprep.subr.mxu0 0.0
  %2839 = vmatpush2.msra.mxu0 0.0
  %2840 = vmatprep.subr.mxu0 0.0
  %2841 = vmatpush2.msra.mxu0 0.0
  %2842 = vmatprep.subr.mxu0 0.0
  %2843 = vmatpush2.msra.mxu0 0.0
  %2844 = vmatprep.subr.mxu0 0.0
  %2845 = vmatpush2.msra.mxu0 0.0
  %2846 = vmatprep.subr.mxu0 0.0
  %2847 = vmatpush2.msra.mxu0 0.0
  %2848 = vmatprep.subr.mxu0 0.0
  %2849 = vmatpush2.msra.mxu0 0.0
  %2850 = vmatprep.subr.mxu0 0.0
  %2851 = vmatpush2.msra.mxu0 0.0
  %2852 = vmatprep.mubr.f32.mxu0 0.0
  %2853 = vmatmul.mubr.f32.gmra.mxu0 %v2786
  %v2854 = vpop.f32.mrf.mxu0
  %v2855 = vadd.f32 0.0, %v2854
  %v2856 = vpop.f32.mrf.mxu0
  %2857 = vdwg.mxu0
  %v2859 = vsel %vm239, %v1029, 0
  %2861 = vmatprep.subr.mxu0 0.0
  %2862 = vmatpush1.msra.mxu0 0.0
  %2863 = vmatprep.subr.mxu0 0.0
  %2864 = vmatpush1.msra.mxu0 0.0
  %2865 = vmatprep.subr.mxu0 0.0
  %2866 = vmatpush1.msra.mxu0 0.0
  %2867 = vmatprep.subr.mxu0 0.0
  %2868 = vmatpush1.msra.mxu0 0.0
  %2869 = vmatprep.subr.mxu0 0.0
  %2870 = vmatpush1.msra.mxu0 0.0
  %2871 = vmatprep.subr.mxu0 0.0
  %2872 = vmatpush1.msra.mxu0 0.0
  %2873 = vmatprep.subr.mxu0 0.0
  %2874 = vmatpush1.msra.mxu0 0.0
  %2875 = vmatprep.subr.mxu0 0.0
  %2876 = vmatpush1.msra.mxu0 0.0
  %2877 = vmatprep.subr.mxu0 0.0
  %2878 = vmatpush1.msra.mxu0 0.0
  %2879 = vmatprep.subr.mxu0 0.0
  %2880 = vmatpush1.msra.mxu0 0.0
  %2881 = vmatprep.subr.mxu0 0.0
  %2882 = vmatpush1.msra.mxu0 0.0
  %2883 = vmatprep.subr.mxu0 0.0
  %2884 = vmatpush1.msra.mxu0 0.0
  %2885 = vmatprep.subr.mxu0 0.0
  %2886 = vmatpush1.msra.mxu0 %v1147
  %2887 = vmatprep.subr.mxu0 0.0
  %2888 = vmatpush1.msra.mxu0 %v1146
  %2889 = vmatprep.subr.mxu0 0.0
  %2890 = vmatpush1.msra.mxu0 %v1145
  %2891 = vmatprep.subr.mxu0 0.0
  %2892 = vmatpush1.msra.mxu0 %v1144
  %2893 = vmatprep.subr.mxu0 0.0
  %2894 = vmatpush2.msra.mxu0 0.0
  %2895 = vmatprep.subr.mxu0 0.0
  %2896 = vmatpush2.msra.mxu0 0.0
  %2897 = vmatprep.subr.mxu0 0.0
  %2898 = vmatpush2.msra.mxu0 0.0
  %2899 = vmatprep.subr.mxu0 0.0
  %2900 = vmatpush2.msra.mxu0 0.0
  %2901 = vmatprep.subr.mxu0 0.0
  %2902 = vmatpush2.msra.mxu0 0.0
  %2903 = vmatprep.subr.mxu0 0.0
  %2904 = vmatpush2.msra.mxu0 0.0
  %2905 = vmatprep.subr.mxu0 0.0
  %2906 = vmatpush2.msra.mxu0 0.0
  %2907 = vmatprep.subr.mxu0 0.0
  %2908 = vmatpush2.msra.mxu0 0.0
  %2909 = vmatprep.subr.mxu0 0.0
  %2910 = vmatpush2.msra.mxu0 0.0
  %2911 = vmatprep.subr.mxu0 0.0
  %2912 = vmatpush2.msra.mxu0 0.0
  %2913 = vmatprep.subr.mxu0 0.0
  %2914 = vmatpush2.msra.mxu0 0.0
  %2915 = vmatprep.subr.mxu0 0.0
  %2916 = vmatpush2.msra.mxu0 0.0
  %2917 = vmatprep.subr.mxu0 0.0
  %2918 = vmatpush2.msra.mxu0 0.0
  %2919 = vmatprep.subr.mxu0 0.0
  %2920 = vmatpush2.msra.mxu0 0.0
  %2921 = vmatprep.subr.mxu0 0.0
  %2922 = vmatpush2.msra.mxu0 0.0
  %2923 = vmatprep.subr.mxu0 0.0
  %2924 = vmatpush2.msra.mxu0 0.0
  %2925 = vmatprep.mubr.f32.mxu0 0.0
  %2926 = vmatmul.mubr.f32.gmra.mxu0 %v2859
  %v2927 = vpop.f32.mrf.mxu0
  %v2928 = vadd.f32 0.0, %v2927
  %v2929 = vpop.f32.mrf.mxu0
  %2930 = vdwg.mxu0
  %v2932 = vsel %vm239, %v1030, 0
  %2934 = vmatprep.subr.mxu0 0.0
  %2935 = vmatpush1.msra.mxu0 0.0
  %2936 = vmatprep.subr.mxu0 0.0
  %2937 = vmatpush1.msra.mxu0 0.0
  %2938 = vmatprep.subr.mxu0 0.0
  %2939 = vmatpush1.msra.mxu0 0.0
  %2940 = vmatprep.subr.mxu0 0.0
  %2941 = vmatpush1.msra.mxu0 0.0
  %2942 = vmatprep.subr.mxu0 0.0
  %2943 = vmatpush1.msra.mxu0 0.0
  %2944 = vmatprep.subr.mxu0 0.0
  %2945 = vmatpush1.msra.mxu0 0.0
  %2946 = vmatprep.subr.mxu0 0.0
  %2947 = vmatpush1.msra.mxu0 0.0
  %2948 = vmatprep.subr.mxu0 0.0
  %2949 = vmatpush1.msra.mxu0 0.0
  %2950 = vmatprep.subr.mxu0 0.0
  %2951 = vmatpush1.msra.mxu0 0.0
  %2952 = vmatprep.subr.mxu0 0.0
  %2953 = vmatpush1.msra.mxu0 0.0
  %2954 = vmatprep.subr.mxu0 0.0
  %2955 = vmatpush1.msra.mxu0 0.0
  %2956 = vmatprep.subr.mxu0 0.0
  %2957 = vmatpush1.msra.mxu0 0.0
  %2958 = vmatprep.subr.mxu0 0.0
  %2959 = vmatpush1.msra.mxu0 %v1151
  %2960 = vmatprep.subr.mxu0 0.0
  %2961 = vmatpush1.msra.mxu0 %v1150
  %2962 = vmatprep.subr.mxu0 0.0
  %2963 = vmatpush1.msra.mxu0 %v1149
  %2964 = vmatprep.subr.mxu0 0.0
  %2965 = vmatpush1.msra.mxu0 %v1148
  %2966 = vmatprep.subr.mxu0 0.0
  %2967 = vmatpush2.msra.mxu0 0.0
  %2968 = vmatprep.subr.mxu0 0.0
  %2969 = vmatpush2.msra.mxu0 0.0
  %2970 = vmatprep.subr.mxu0 0.0
  %2971 = vmatpush2.msra.mxu0 0.0
  %2972 = vmatprep.subr.mxu0 0.0
  %2973 = vmatpush2.msra.mxu0 0.0
  %2974 = vmatprep.subr.mxu0 0.0
  %2975 = vmatpush2.msra.mxu0 0.0
  %2976 = vmatprep.subr.mxu0 0.0
  %2977 = vmatpush2.msra.mxu0 0.0
  %2978 = vmatprep.subr.mxu0 0.0
  %2979 = vmatpush2.msra.mxu0 0.0
  %2980 = vmatprep.subr.mxu0 0.0
  %2981 = vmatpush2.msra.mxu0 0.0
  %2982 = vmatprep.subr.mxu0 0.0
  %2983 = vmatpush2.msra.mxu0 0.0
  %2984 = vmatprep.subr.mxu0 0.0
  %2985 = vmatpush2.msra.mxu0 0.0
  %2986 = vmatprep.subr.mxu0 0.0
  %2987 = vmatpush2.msra.mxu0 0.0
  %2988 = vmatprep.subr.mxu0 0.0
  %2989 = vmatpush2.msra.mxu0 0.0
  %2990 = vmatprep.subr.mxu0 0.0
  %2991 = vmatpush2.msra.mxu0 0.0
  %2992 = vmatprep.subr.mxu0 0.0
  %2993 = vmatpush2.msra.mxu0 0.0
  %2994 = vmatprep.subr.mxu0 0.0
  %2995 = vmatpush2.msra.mxu0 0.0
  %2996 = vmatprep.subr.mxu0 0.0
  %2997 = vmatpush2.msra.mxu0 0.0
  %2998 = vmatprep.mubr.f32.mxu0 0.0
  %2999 = vmatmul.mubr.f32.gmra.mxu0 %v2932
  %v3000 = vpop.f32.mrf.mxu0
  %v3001 = vadd.f32 0.0, %v3000
  %v3002 = vpop.f32.mrf.mxu0
  %3003 = vdwg.mxu0
  %v3005 = vsel %vm239, %v1031, 0
  %3007 = vmatprep.subr.mxu0 0.0
  %3008 = vmatpush1.msra.mxu0 0.0
  %3009 = vmatprep.subr.mxu0 0.0
  %3010 = vmatpush1.msra.mxu0 0.0
  %3011 = vmatprep.subr.mxu0 0.0
  %3012 = vmatpush1.msra.mxu0 0.0
  %3013 = vmatprep.subr.mxu0 0.0
  %3014 = vmatpush1.msra.mxu0 0.0
  %3015 = vmatprep.subr.mxu0 0.0
  %3016 = vmatpush1.msra.mxu0 0.0
  %3017 = vmatprep.subr.mxu0 0.0
  %3018 = vmatpush1.msra.mxu0 0.0
  %3019 = vmatprep.subr.mxu0 0.0
  %3020 = vmatpush1.msra.mxu0 0.0
  %3021 = vmatprep.subr.mxu0 0.0
  %3022 = vmatpush1.msra.mxu0 0.0
  %3023 = vmatprep.subr.mxu0 0.0
  %3024 = vmatpush1.msra.mxu0 0.0
  %3025 = vmatprep.subr.mxu0 0.0
  %3026 = vmatpush1.msra.mxu0 0.0
  %3027 = vmatprep.subr.mxu0 0.0
  %3028 = vmatpush1.msra.mxu0 0.0
  %3029 = vmatprep.subr.mxu0 0.0
  %3030 = vmatpush1.msra.mxu0 0.0
  %3031 = vmatprep.subr.mxu0 0.0
  %3032 = vmatpush1.msra.mxu0 %v1155
  %3033 = vmatprep.subr.mxu0 0.0
  %3034 = vmatpush1.msra.mxu0 %v1154
  %3035 = vmatprep.subr.mxu0 0.0
  %3036 = vmatpush1.msra.mxu0 %v1153
  %3037 = vmatprep.subr.mxu0 0.0
  %3038 = vmatpush1.msra.mxu0 %v1152
  %3039 = vmatprep.subr.mxu0 0.0
  %3040 = vmatpush2.msra.mxu0 0.0
  %3041 = vmatprep.subr.mxu0 0.0
  %3042 = vmatpush2.msra.mxu0 0.0
  %3043 = vmatprep.subr.mxu0 0.0
  %3044 = vmatpush2.msra.mxu0 0.0
  %3045 = vmatprep.subr.mxu0 0.0
  %3046 = vmatpush2.msra.mxu0 0.0
  %3047 = vmatprep.subr.mxu0 0.0
  %3048 = vmatpush2.msra.mxu0 0.0
  %3049 = vmatprep.subr.mxu0 0.0
  %3050 = vmatpush2.msra.mxu0 0.0
  %3051 = vmatprep.subr.mxu0 0.0
  %3052 = vmatpush2.msra.mxu0 0.0
  %3053 = vmatprep.subr.mxu0 0.0
  %3054 = vmatpush2.msra.mxu0 0.0
  %3055 = vmatprep.subr.mxu0 0.0
  %3056 = vmatpush2.msra.mxu0 0.0
  %3057 = vmatprep.subr.mxu0 0.0
  %3058 = vmatpush2.msra.mxu0 0.0
  %3059 = vmatprep.subr.mxu0 0.0
  %3060 = vmatpush2.msra.mxu0 0.0
  %3061 = vmatprep.subr.mxu0 0.0
  %3062 = vmatpush2.msra.mxu0 0.0
  %3063 = vmatprep.subr.mxu0 0.0
  %3064 = vmatpush2.msra.mxu0 0.0
  %3065 = vmatprep.subr.mxu0 0.0
  %3066 = vmatpush2.msra.mxu0 0.0
  %3067 = vmatprep.subr.mxu0 0.0
  %3068 = vmatpush2.msra.mxu0 0.0
  %3069 = vmatprep.subr.mxu0 0.0
  %3070 = vmatpush2.msra.mxu0 0.0
  %3071 = vmatprep.mubr.f32.mxu0 0.0
  %3072 = vmatmul.mubr.f32.gmra.mxu0 %v3005
  %v3073 = vpop.f32.mrf.mxu0
  %v3074 = vadd.f32 0.0, %v3073
  %v3075 = vpop.f32.mrf.mxu0
  %3076 = vdwg.mxu0
  %v3078 = vsel %vm239, %v1032, 0
  %3080 = vmatprep.subr.mxu0 0.0
  %3081 = vmatpush1.msra.mxu0 0.0
  %3082 = vmatprep.subr.mxu0 0.0
  %3083 = vmatpush1.msra.mxu0 0.0
  %3084 = vmatprep.subr.mxu0 0.0
  %3085 = vmatpush1.msra.mxu0 0.0
  %3086 = vmatprep.subr.mxu0 0.0
  %3087 = vmatpush1.msra.mxu0 0.0
  %3088 = vmatprep.subr.mxu0 0.0
  %3089 = vmatpush1.msra.mxu0 0.0
  %3090 = vmatprep.subr.mxu0 0.0
  %3091 = vmatpush1.msra.mxu0 0.0
  %3092 = vmatprep.subr.mxu0 0.0
  %3093 = vmatpush1.msra.mxu0 0.0
  %3094 = vmatprep.subr.mxu0 0.0
  %3095 = vmatpush1.msra.mxu0 0.0
  %3096 = vmatprep.subr.mxu0 0.0
  %3097 = vmatpush1.msra.mxu0 0.0
  %3098 = vmatprep.subr.mxu0 0.0
  %3099 = vmatpush1.msra.mxu0 0.0
  %3100 = vmatprep.subr.mxu0 0.0
  %3101 = vmatpush1.msra.mxu0 0.0
  %3102 = vmatprep.subr.mxu0 0.0
  %3103 = vmatpush1.msra.mxu0 0.0
  %3104 = vmatprep.subr.mxu0 0.0
  %3105 = vmatpush1.msra.mxu0 %v1159
  %3106 = vmatprep.subr.mxu0 0.0
  %3107 = vmatpush1.msra.mxu0 %v1158
  %3108 = vmatprep.subr.mxu0 0.0
  %3109 = vmatpush1.msra.mxu0 %v1157
  %3110 = vmatprep.subr.mxu0 0.0
  %3111 = vmatpush1.msra.mxu0 %v1156
  %3112 = vmatprep.subr.mxu0 0.0
  %3113 = vmatpush2.msra.mxu0 0.0
  %3114 = vmatprep.subr.mxu0 0.0
  %3115 = vmatpush2.msra.mxu0 0.0
  %3116 = vmatprep.subr.mxu0 0.0
  %3117 = vmatpush2.msra.mxu0 0.0
  %3118 = vmatprep.subr.mxu0 0.0
  %3119 = vmatpush2.msra.mxu0 0.0
  %3120 = vmatprep.subr.mxu0 0.0
  %3121 = vmatpush2.msra.mxu0 0.0
  %3122 = vmatprep.subr.mxu0 0.0
  %3123 = vmatpush2.msra.mxu0 0.0
  %3124 = vmatprep.subr.mxu0 0.0
  %3125 = vmatpush2.msra.mxu0 0.0
  %3126 = vmatprep.subr.mxu0 0.0
  %3127 = vmatpush2.msra.mxu0 0.0
  %3128 = vmatprep.subr.mxu0 0.0
  %3129 = vmatpush2.msra.mxu0 0.0
  %3130 = vmatprep.subr.mxu0 0.0
  %3131 = vmatpush2.msra.mxu0 0.0
  %3132 = vmatprep.subr.mxu0 0.0
  %3133 = vmatpush2.msra.mxu0 0.0
  %3134 = vmatprep.subr.mxu0 0.0
  %3135 = vmatpush2.msra.mxu0 0.0
  %3136 = vmatprep.subr.mxu0 0.0
  %3137 = vmatpush2.msra.mxu0 0.0
  %3138 = vmatprep.subr.mxu0 0.0
  %3139 = vmatpush2.msra.mxu0 0.0
  %3140 = vmatprep.subr.mxu0 0.0
  %3141 = vmatpush2.msra.mxu0 0.0
  %3142 = vmatprep.subr.mxu0 0.0
  %3143 = vmatpush2.msra.mxu0 0.0
  %3144 = vmatprep.mubr.f32.mxu0 0.0
  %3145 = vmatmul.mubr.f32.gmra.mxu0 %v3078
  %v3146 = vpop.f32.mrf.mxu0
  %v3147 = vadd.f32 0.0, %v3146
  %v3148 = vpop.f32.mrf.mxu0
  %3149 = vdwg.mxu0
  %v3151 = vsel %vm239, %v1033, 0
  %3153 = vmatprep.subr.mxu0 0.0
  %3154 = vmatpush1.msra.mxu0 0.0
  %3155 = vmatprep.subr.mxu0 0.0
  %3156 = vmatpush1.msra.mxu0 0.0
  %3157 = vmatprep.subr.mxu0 0.0
  %3158 = vmatpush1.msra.mxu0 0.0
  %3159 = vmatprep.subr.mxu0 0.0
  %3160 = vmatpush1.msra.mxu0 0.0
  %3161 = vmatprep.subr.mxu0 0.0
  %3162 = vmatpush1.msra.mxu0 0.0
  %3163 = vmatprep.subr.mxu0 0.0
  %3164 = vmatpush1.msra.mxu0 0.0
  %3165 = vmatprep.subr.mxu0 0.0
  %3166 = vmatpush1.msra.mxu0 0.0
  %3167 = vmatprep.subr.mxu0 0.0
  %3168 = vmatpush1.msra.mxu0 0.0
  %3169 = vmatprep.subr.mxu0 0.0
  %3170 = vmatpush1.msra.mxu0 0.0
  %3171 = vmatprep.subr.mxu0 0.0
  %3172 = vmatpush1.msra.mxu0 0.0
  %3173 = vmatprep.subr.mxu0 0.0
  %3174 = vmatpush1.msra.mxu0 0.0
  %3175 = vmatprep.subr.mxu0 0.0
  %3176 = vmatpush1.msra.mxu0 0.0
  %3177 = vmatprep.subr.mxu0 0.0
  %3178 = vmatpush1.msra.mxu0 %v1163
  %3179 = vmatprep.subr.mxu0 0.0
  %3180 = vmatpush1.msra.mxu0 %v1162
  %3181 = vmatprep.subr.mxu0 0.0
  %3182 = vmatpush1.msra.mxu0 %v1161
  %3183 = vmatprep.subr.mxu0 0.0
  %3184 = vmatpush1.msra.mxu0 %v1160
  %3185 = vmatprep.subr.mxu0 0.0
  %3186 = vmatpush2.msra.mxu0 0.0
  %3187 = vmatprep.subr.mxu0 0.0
  %3188 = vmatpush2.msra.mxu0 0.0
  %3189 = vmatprep.subr.mxu0 0.0
  %3190 = vmatpush2.msra.mxu0 0.0
  %3191 = vmatprep.subr.mxu0 0.0
  %3192 = vmatpush2.msra.mxu0 0.0
  %3193 = vmatprep.subr.mxu0 0.0
  %3194 = vmatpush2.msra.mxu0 0.0
  %3195 = vmatprep.subr.mxu0 0.0
  %3196 = vmatpush2.msra.mxu0 0.0
  %3197 = vmatprep.subr.mxu0 0.0
  %3198 = vmatpush2.msra.mxu0 0.0
  %3199 = vmatprep.subr.mxu0 0.0
  %3200 = vmatpush2.msra.mxu0 0.0
  %3201 = vmatprep.subr.mxu0 0.0
  %3202 = vmatpush2.msra.mxu0 0.0
  %3203 = vmatprep.subr.mxu0 0.0
  %3204 = vmatpush2.msra.mxu0 0.0
  %3205 = vmatprep.subr.mxu0 0.0
  %3206 = vmatpush2.msra.mxu0 0.0
  %3207 = vmatprep.subr.mxu0 0.0
  %3208 = vmatpush2.msra.mxu0 0.0
  %3209 = vmatprep.subr.mxu0 0.0
  %3210 = vmatpush2.msra.mxu0 0.0
  %3211 = vmatprep.subr.mxu0 0.0
  %3212 = vmatpush2.msra.mxu0 0.0
  %3213 = vmatprep.subr.mxu0 0.0
  %3214 = vmatpush2.msra.mxu0 0.0
  %3215 = vmatprep.subr.mxu0 0.0
  %3216 = vmatpush2.msra.mxu0 0.0
  %3217 = vmatprep.mubr.f32.mxu0 0.0
  %3218 = vmatmul.mubr.f32.gmra.mxu0 %v3151
  %v3219 = vpop.f32.mrf.mxu0
  %v3220 = vadd.f32 0.0, %v3219
  %v3221 = vpop.f32.mrf.mxu0
  %3222 = vdwg.mxu0
  %v3224 = vsel %vm239, %v1034, 0
  %3226 = vmatprep.subr.mxu0 0.0
  %3227 = vmatpush1.msra.mxu0 0.0
  %3228 = vmatprep.subr.mxu0 0.0
  %3229 = vmatpush1.msra.mxu0 0.0
  %3230 = vmatprep.subr.mxu0 0.0
  %3231 = vmatpush1.msra.mxu0 0.0
  %3232 = vmatprep.subr.mxu0 0.0
  %3233 = vmatpush1.msra.mxu0 0.0
  %3234 = vmatprep.subr.mxu0 0.0
  %3235 = vmatpush1.msra.mxu0 0.0
  %3236 = vmatprep.subr.mxu0 0.0
  %3237 = vmatpush1.msra.mxu0 0.0
  %3238 = vmatprep.subr.mxu0 0.0
  %3239 = vmatpush1.msra.mxu0 0.0
  %3240 = vmatprep.subr.mxu0 0.0
  %3241 = vmatpush1.msra.mxu0 0.0
  %3242 = vmatprep.subr.mxu0 0.0
  %3243 = vmatpush1.msra.mxu0 0.0
  %3244 = vmatprep.subr.mxu0 0.0
  %3245 = vmatpush1.msra.mxu0 0.0
  %3246 = vmatprep.subr.mxu0 0.0
  %3247 = vmatpush1.msra.mxu0 0.0
  %3248 = vmatprep.subr.mxu0 0.0
  %3249 = vmatpush1.msra.mxu0 0.0
  %3250 = vmatprep.subr.mxu0 0.0
  %3251 = vmatpush1.msra.mxu0 %v1167
  %3252 = vmatprep.subr.mxu0 0.0
  %3253 = vmatpush1.msra.mxu0 %v1166
  %3254 = vmatprep.subr.mxu0 0.0
  %3255 = vmatpush1.msra.mxu0 %v1165
  %3256 = vmatprep.subr.mxu0 0.0
  %3257 = vmatpush1.msra.mxu0 %v1164
  %3258 = vmatprep.subr.mxu0 0.0
  %3259 = vmatpush2.msra.mxu0 0.0
  %3260 = vmatprep.subr.mxu0 0.0
  %3261 = vmatpush2.msra.mxu0 0.0
  %3262 = vmatprep.subr.mxu0 0.0
  %3263 = vmatpush2.msra.mxu0 0.0
  %3264 = vmatprep.subr.mxu0 0.0
  %3265 = vmatpush2.msra.mxu0 0.0
  %3266 = vmatprep.subr.mxu0 0.0
  %3267 = vmatpush2.msra.mxu0 0.0
  %3268 = vmatprep.subr.mxu0 0.0
  %3269 = vmatpush2.msra.mxu0 0.0
  %3270 = vmatprep.subr.mxu0 0.0
  %3271 = vmatpush2.msra.mxu0 0.0
  %3272 = vmatprep.subr.mxu0 0.0
  %3273 = vmatpush2.msra.mxu0 0.0
  %3274 = vmatprep.subr.mxu0 0.0
  %3275 = vmatpush2.msra.mxu0 0.0
  %3276 = vmatprep.subr.mxu0 0.0
  %3277 = vmatpush2.msra.mxu0 0.0
  %3278 = vmatprep.subr.mxu0 0.0
  %3279 = vmatpush2.msra.mxu0 0.0
  %3280 = vmatprep.subr.mxu0 0.0
  %3281 = vmatpush2.msra.mxu0 0.0
  %3282 = vmatprep.subr.mxu0 0.0
  %3283 = vmatpush2.msra.mxu0 0.0
  %3284 = vmatprep.subr.mxu0 0.0
  %3285 = vmatpush2.msra.mxu0 0.0
  %3286 = vmatprep.subr.mxu0 0.0
  %3287 = vmatpush2.msra.mxu0 0.0
  %3288 = vmatprep.subr.mxu0 0.0
  %3289 = vmatpush2.msra.mxu0 0.0
  %3290 = vmatprep.mubr.f32.mxu0 0.0
  %3291 = vmatmul.mubr.f32.gmra.mxu0 %v3224
  %v3292 = vpop.f32.mrf.mxu0
  %v3293 = vadd.f32 0.0, %v3292
  %v3294 = vpop.f32.mrf.mxu0
  %3295 = vdwg.mxu0
  %v3297 = vsel %vm239, %v1035, 0
  %3299 = vmatprep.subr.mxu0 0.0
  %3300 = vmatpush1.msra.mxu0 0.0
  %3301 = vmatprep.subr.mxu0 0.0
  %3302 = vmatpush1.msra.mxu0 0.0
  %3303 = vmatprep.subr.mxu0 0.0
  %3304 = vmatpush1.msra.mxu0 0.0
  %3305 = vmatprep.subr.mxu0 0.0
  %3306 = vmatpush1.msra.mxu0 0.0
  %3307 = vmatprep.subr.mxu0 0.0
  %3308 = vmatpush1.msra.mxu0 0.0
  %3309 = vmatprep.subr.mxu0 0.0
  %3310 = vmatpush1.msra.mxu0 0.0
  %3311 = vmatprep.subr.mxu0 0.0
  %3312 = vmatpush1.msra.mxu0 0.0
  %3313 = vmatprep.subr.mxu0 0.0
  %3314 = vmatpush1.msra.mxu0 0.0
  %3315 = vmatprep.subr.mxu0 0.0
  %3316 = vmatpush1.msra.mxu0 0.0
  %3317 = vmatprep.subr.mxu0 0.0
  %3318 = vmatpush1.msra.mxu0 0.0
  %3319 = vmatprep.subr.mxu0 0.0
  %3320 = vmatpush1.msra.mxu0 0.0
  %3321 = vmatprep.subr.mxu0 0.0
  %3322 = vmatpush1.msra.mxu0 0.0
  %3323 = vmatprep.subr.mxu0 0.0
  %3324 = vmatpush1.msra.mxu0 %v1171
  %3325 = vmatprep.subr.mxu0 0.0
  %3326 = vmatpush1.msra.mxu0 %v1170
  %3327 = vmatprep.subr.mxu0 0.0
  %3328 = vmatpush1.msra.mxu0 %v1169
  %3329 = vmatprep.subr.mxu0 0.0
  %3330 = vmatpush1.msra.mxu0 %v1168
  %3331 = vmatprep.subr.mxu0 0.0
  %3332 = vmatpush2.msra.mxu0 0.0
  %3333 = vmatprep.subr.mxu0 0.0
  %3334 = vmatpush2.msra.mxu0 0.0
  %3335 = vmatprep.subr.mxu0 0.0
  %3336 = vmatpush2.msra.mxu0 0.0
  %3337 = vmatprep.subr.mxu0 0.0
  %3338 = vmatpush2.msra.mxu0 0.0
  %3339 = vmatprep.subr.mxu0 0.0
  %3340 = vmatpush2.msra.mxu0 0.0
  %3341 = vmatprep.subr.mxu0 0.0
  %3342 = vmatpush2.msra.mxu0 0.0
  %3343 = vmatprep.subr.mxu0 0.0
  %3344 = vmatpush2.msra.mxu0 0.0
  %3345 = vmatprep.subr.mxu0 0.0
  %3346 = vmatpush2.msra.mxu0 0.0
  %3347 = vmatprep.subr.mxu0 0.0
  %3348 = vmatpush2.msra.mxu0 0.0
  %3349 = vmatprep.subr.mxu0 0.0
  %3350 = vmatpush2.msra.mxu0 0.0
  %3351 = vmatprep.subr.mxu0 0.0
  %3352 = vmatpush2.msra.mxu0 0.0
  %3353 = vmatprep.subr.mxu0 0.0
  %3354 = vmatpush2.msra.mxu0 0.0
  %3355 = vmatprep.subr.mxu0 0.0
  %3356 = vmatpush2.msra.mxu0 0.0
  %3357 = vmatprep.subr.mxu0 0.0
  %3358 = vmatpush2.msra.mxu0 0.0
  %3359 = vmatprep.subr.mxu0 0.0
  %3360 = vmatpush2.msra.mxu0 0.0
  %3361 = vmatprep.subr.mxu0 0.0
  %3362 = vmatpush2.msra.mxu0 0.0
  %3363 = vmatprep.mubr.f32.mxu0 0.0
  %3364 = vmatmul.mubr.f32.gmra.mxu0 %v3297
  %v3365 = vpop.f32.mrf.mxu0
  %v3366 = vadd.f32 0.0, %v3365
  %v3367 = vpop.f32.mrf.mxu0
  %3368 = vdwg.mxu0
  %v3370 = vsel %vm239, %v1036, 0
  %3372 = vmatprep.subr.mxu0 0.0
  %3373 = vmatpush1.msra.mxu0 0.0
  %3374 = vmatprep.subr.mxu0 0.0
  %3375 = vmatpush1.msra.mxu0 0.0
  %3376 = vmatprep.subr.mxu0 0.0
  %3377 = vmatpush1.msra.mxu0 0.0
  %3378 = vmatprep.subr.mxu0 0.0
  %3379 = vmatpush1.msra.mxu0 0.0
  %3380 = vmatprep.subr.mxu0 0.0
  %3381 = vmatpush1.msra.mxu0 0.0
  %3382 = vmatprep.subr.mxu0 0.0
  %3383 = vmatpush1.msra.mxu0 0.0
  %3384 = vmatprep.subr.mxu0 0.0
  %3385 = vmatpush1.msra.mxu0 0.0
  %3386 = vmatprep.subr.mxu0 0.0
  %3387 = vmatpush1.msra.mxu0 0.0
  %3388 = vmatprep.subr.mxu0 0.0
  %3389 = vmatpush1.msra.mxu0 0.0
  %3390 = vmatprep.subr.mxu0 0.0
  %3391 = vmatpush1.msra.mxu0 0.0
  %3392 = vmatprep.subr.mxu0 0.0
  %3393 = vmatpush1.msra.mxu0 0.0
  %3394 = vmatprep.subr.mxu0 0.0
  %3395 = vmatpush1.msra.mxu0 0.0
  %3396 = vmatprep.subr.mxu0 0.0
  %3397 = vmatpush1.msra.mxu0 %v1175
  %3398 = vmatprep.subr.mxu0 0.0
  %3399 = vmatpush1.msra.mxu0 %v1174
  %3400 = vmatprep.subr.mxu0 0.0
  %3401 = vmatpush1.msra.mxu0 %v1173
  %3402 = vmatprep.subr.mxu0 0.0
  %3403 = vmatpush1.msra.mxu0 %v1172
  %3404 = vmatprep.subr.mxu0 0.0
  %3405 = vmatpush2.msra.mxu0 0.0
  %3406 = vmatprep.subr.mxu0 0.0
  %3407 = vmatpush2.msra.mxu0 0.0
  %3408 = vmatprep.subr.mxu0 0.0
  %3409 = vmatpush2.msra.mxu0 0.0
  %3410 = vmatprep.subr.mxu0 0.0
  %3411 = vmatpush2.msra.mxu0 0.0
  %3412 = vmatprep.subr.mxu0 0.0
  %3413 = vmatpush2.msra.mxu0 0.0
  %3414 = vmatprep.subr.mxu0 0.0
  %3415 = vmatpush2.msra.mxu0 0.0
  %3416 = vmatprep.subr.mxu0 0.0
  %3417 = vmatpush2.msra.mxu0 0.0
  %3418 = vmatprep.subr.mxu0 0.0
  %3419 = vmatpush2.msra.mxu0 0.0
  %3420 = vmatprep.subr.mxu0 0.0
  %3421 = vmatpush2.msra.mxu0 0.0
  %3422 = vmatprep.subr.mxu0 0.0
  %3423 = vmatpush2.msra.mxu0 0.0
  %3424 = vmatprep.subr.mxu0 0.0
  %3425 = vmatpush2.msra.mxu0 0.0
  %3426 = vmatprep.subr.mxu0 0.0
  %3427 = vmatpush2.msra.mxu0 0.0
  %3428 = vmatprep.subr.mxu0 0.0
  %3429 = vmatpush2.msra.mxu0 0.0
  %3430 = vmatprep.subr.mxu0 0.0
  %3431 = vmatpush2.msra.mxu0 0.0
  %3432 = vmatprep.subr.mxu0 0.0
  %3433 = vmatpush2.msra.mxu0 0.0
  %3434 = vmatprep.subr.mxu0 0.0
  %3435 = vmatpush2.msra.mxu0 0.0
  %3436 = vmatprep.mubr.f32.mxu0 0.0
  %3437 = vmatmul.mubr.f32.gmra.mxu0 %v3370
  %v3438 = vpop.f32.mrf.mxu0
  %v3439 = vadd.f32 0.0, %v3438
  %v3440 = vpop.f32.mrf.mxu0
  %3441 = vdwg.mxu0
  %v3443 = vsel %vm239, %v1037, 0
  %3445 = vmatprep.subr.mxu0 0.0
  %3446 = vmatpush1.msra.mxu0 0.0
  %3447 = vmatprep.subr.mxu0 0.0
  %3448 = vmatpush1.msra.mxu0 0.0
  %3449 = vmatprep.subr.mxu0 0.0
  %3450 = vmatpush1.msra.mxu0 0.0
  %3451 = vmatprep.subr.mxu0 0.0
  %3452 = vmatpush1.msra.mxu0 0.0
  %3453 = vmatprep.subr.mxu0 0.0
  %3454 = vmatpush1.msra.mxu0 0.0
  %3455 = vmatprep.subr.mxu0 0.0
  %3456 = vmatpush1.msra.mxu0 0.0
  %3457 = vmatprep.subr.mxu0 0.0
  %3458 = vmatpush1.msra.mxu0 0.0
  %3459 = vmatprep.subr.mxu0 0.0
  %3460 = vmatpush1.msra.mxu0 0.0
  %3461 = vmatprep.subr.mxu0 0.0
  %3462 = vmatpush1.msra.mxu0 0.0
  %3463 = vmatprep.subr.mxu0 0.0
  %3464 = vmatpush1.msra.mxu0 0.0
  %3465 = vmatprep.subr.mxu0 0.0
  %3466 = vmatpush1.msra.mxu0 0.0
  %3467 = vmatprep.subr.mxu0 0.0
  %3468 = vmatpush1.msra.mxu0 0.0
  %3469 = vmatprep.subr.mxu0 0.0
  %3470 = vmatpush1.msra.mxu0 %v1179
  %3471 = vmatprep.subr.mxu0 0.0
  %3472 = vmatpush1.msra.mxu0 %v1178
  %3473 = vmatprep.subr.mxu0 0.0
  %3474 = vmatpush1.msra.mxu0 %v1177
  %3475 = vmatprep.subr.mxu0 0.0
  %3476 = vmatpush1.msra.mxu0 %v1176
  %3477 = vmatprep.subr.mxu0 0.0
  %3478 = vmatpush2.msra.mxu0 0.0
  %3479 = vmatprep.subr.mxu0 0.0
  %3480 = vmatpush2.msra.mxu0 0.0
  %3481 = vmatprep.subr.mxu0 0.0
  %3482 = vmatpush2.msra.mxu0 0.0
  %3483 = vmatprep.subr.mxu0 0.0
  %3484 = vmatpush2.msra.mxu0 0.0
  %3485 = vmatprep.subr.mxu0 0.0
  %3486 = vmatpush2.msra.mxu0 0.0
  %3487 = vmatprep.subr.mxu0 0.0
  %3488 = vmatpush2.msra.mxu0 0.0
  %3489 = vmatprep.subr.mxu0 0.0
  %3490 = vmatpush2.msra.mxu0 0.0
  %3491 = vmatprep.subr.mxu0 0.0
  %3492 = vmatpush2.msra.mxu0 0.0
  %3493 = vmatprep.subr.mxu0 0.0
  %3494 = vmatpush2.msra.mxu0 0.0
  %3495 = vmatprep.subr.mxu0 0.0
  %3496 = vmatpush2.msra.mxu0 0.0
  %3497 = vmatprep.subr.mxu0 0.0
  %3498 = vmatpush2.msra.mxu0 0.0
  %3499 = vmatprep.subr.mxu0 0.0
  %3500 = vmatpush2.msra.mxu0 0.0
  %3501 = vmatprep.subr.mxu0 0.0
  %3502 = vmatpush2.msra.mxu0 0.0
  %3503 = vmatprep.subr.mxu0 0.0
  %3504 = vmatpush2.msra.mxu0 0.0
  %3505 = vmatprep.subr.mxu0 0.0
  %3506 = vmatpush2.msra.mxu0 0.0
  %3507 = vmatprep.subr.mxu0 0.0
  %3508 = vmatpush2.msra.mxu0 0.0
  %3509 = vmatprep.mubr.f32.mxu0 0.0
  %3510 = vmatmul.mubr.f32.gmra.mxu0 %v3443
  %v3511 = vpop.f32.mrf.mxu0
  %v3512 = vadd.f32 0.0, %v3511
  %v3513 = vpop.f32.mrf.mxu0
  %3514 = vdwg.mxu0
  %v3516 = vsel %vm239, %v1038, 0
  %3518 = vmatprep.subr.mxu0 0.0
  %3519 = vmatpush1.msra.mxu0 0.0
  %3520 = vmatprep.subr.mxu0 0.0
  %3521 = vmatpush1.msra.mxu0 0.0
  %3522 = vmatprep.subr.mxu0 0.0
  %3523 = vmatpush1.msra.mxu0 0.0
  %3524 = vmatprep.subr.mxu0 0.0
  %3525 = vmatpush1.msra.mxu0 0.0
  %3526 = vmatprep.subr.mxu0 0.0
  %3527 = vmatpush1.msra.mxu0 0.0
  %3528 = vmatprep.subr.mxu0 0.0
  %3529 = vmatpush1.msra.mxu0 0.0
  %3530 = vmatprep.subr.mxu0 0.0
  %3531 = vmatpush1.msra.mxu0 0.0
  %3532 = vmatprep.subr.mxu0 0.0
  %3533 = vmatpush1.msra.mxu0 0.0
  %3534 = vmatprep.subr.mxu0 0.0
  %3535 = vmatpush1.msra.mxu0 0.0
  %3536 = vmatprep.subr.mxu0 0.0
  %3537 = vmatpush1.msra.mxu0 0.0
  %3538 = vmatprep.subr.mxu0 0.0
  %3539 = vmatpush1.msra.mxu0 0.0
  %3540 = vmatprep.subr.mxu0 0.0
  %3541 = vmatpush1.msra.mxu0 0.0
  %3542 = vmatprep.subr.mxu0 0.0
  %3543 = vmatpush1.msra.mxu0 %v1183
  %3544 = vmatprep.subr.mxu0 0.0
  %3545 = vmatpush1.msra.mxu0 %v1182
  %3546 = vmatprep.subr.mxu0 0.0
  %3547 = vmatpush1.msra.mxu0 %v1181
  %3548 = vmatprep.subr.mxu0 0.0
  %3549 = vmatpush1.msra.mxu0 %v1180
  %3550 = vmatprep.subr.mxu0 0.0
  %3551 = vmatpush2.msra.mxu0 0.0
  %3552 = vmatprep.subr.mxu0 0.0
  %3553 = vmatpush2.msra.mxu0 0.0
  %3554 = vmatprep.subr.mxu0 0.0
  %3555 = vmatpush2.msra.mxu0 0.0
  %3556 = vmatprep.subr.mxu0 0.0
  %3557 = vmatpush2.msra.mxu0 0.0
  %3558 = vmatprep.subr.mxu0 0.0
  %3559 = vmatpush2.msra.mxu0 0.0
  %3560 = vmatprep.subr.mxu0 0.0
  %3561 = vmatpush2.msra.mxu0 0.0
  %3562 = vmatprep.subr.mxu0 0.0
  %3563 = vmatpush2.msra.mxu0 0.0
  %3564 = vmatprep.subr.mxu0 0.0
  %3565 = vmatpush2.msra.mxu0 0.0
  %3566 = vmatprep.subr.mxu0 0.0
  %3567 = vmatpush2.msra.mxu0 0.0
  %3568 = vmatprep.subr.mxu0 0.0
  %3569 = vmatpush2.msra.mxu0 0.0
  %3570 = vmatprep.subr.mxu0 0.0
  %3571 = vmatpush2.msra.mxu0 0.0
  %3572 = vmatprep.subr.mxu0 0.0
  %3573 = vmatpush2.msra.mxu0 0.0
  %3574 = vmatprep.subr.mxu0 0.0
  %3575 = vmatpush2.msra.mxu0 0.0
  %3576 = vmatprep.subr.mxu0 0.0
  %3577 = vmatpush2.msra.mxu0 0.0
  %3578 = vmatprep.subr.mxu0 0.0
  %3579 = vmatpush2.msra.mxu0 0.0
  %3580 = vmatprep.subr.mxu0 0.0
  %3581 = vmatpush2.msra.mxu0 0.0
  %3582 = vmatprep.mubr.f32.mxu0 0.0
  %3583 = vmatmul.mubr.f32.gmra.mxu0 %v3516
  %v3584 = vpop.f32.mrf.mxu0
  %v3585 = vadd.f32 0.0, %v3584
  %v3586 = vpop.f32.mrf.mxu0
  %3587 = vdwg.mxu0
  %v3589 = vsel %vm239, %v1039, 0
  %3591 = vmatprep.subr.mxu0 0.0
  %3592 = vmatpush1.msra.mxu0 0.0
  %3593 = vmatprep.subr.mxu0 0.0
  %3594 = vmatpush1.msra.mxu0 0.0
  %3595 = vmatprep.subr.mxu0 0.0
  %3596 = vmatpush1.msra.mxu0 0.0
  %3597 = vmatprep.subr.mxu0 0.0
  %3598 = vmatpush1.msra.mxu0 0.0
  %3599 = vmatprep.subr.mxu0 0.0
  %3600 = vmatpush1.msra.mxu0 0.0
  %3601 = vmatprep.subr.mxu0 0.0
  %3602 = vmatpush1.msra.mxu0 0.0
  %3603 = vmatprep.subr.mxu0 0.0
  %3604 = vmatpush1.msra.mxu0 0.0
  %3605 = vmatprep.subr.mxu0 0.0
  %3606 = vmatpush1.msra.mxu0 0.0
  %3607 = vmatprep.subr.mxu0 0.0
  %3608 = vmatpush1.msra.mxu0 0.0
  %3609 = vmatprep.subr.mxu0 0.0
  %3610 = vmatpush1.msra.mxu0 0.0
  %3611 = vmatprep.subr.mxu0 0.0
  %3612 = vmatpush1.msra.mxu0 0.0
  %3613 = vmatprep.subr.mxu0 0.0
  %3614 = vmatpush1.msra.mxu0 0.0
  %3615 = vmatprep.subr.mxu0 0.0
  %3616 = vmatpush1.msra.mxu0 %v1187
  %3617 = vmatprep.subr.mxu0 0.0
  %3618 = vmatpush1.msra.mxu0 %v1186
  %3619 = vmatprep.subr.mxu0 0.0
  %3620 = vmatpush1.msra.mxu0 %v1185
  %3621 = vmatprep.subr.mxu0 0.0
  %3622 = vmatpush1.msra.mxu0 %v1184
  %3623 = vmatprep.subr.mxu0 0.0
  %3624 = vmatpush2.msra.mxu0 0.0
  %3625 = vmatprep.subr.mxu0 0.0
  %3626 = vmatpush2.msra.mxu0 0.0
  %3627 = vmatprep.subr.mxu0 0.0
  %3628 = vmatpush2.msra.mxu0 0.0
  %3629 = vmatprep.subr.mxu0 0.0
  %3630 = vmatpush2.msra.mxu0 0.0
  %3631 = vmatprep.subr.mxu0 0.0
  %3632 = vmatpush2.msra.mxu0 0.0
  %3633 = vmatprep.subr.mxu0 0.0
  %3634 = vmatpush2.msra.mxu0 0.0
  %3635 = vmatprep.subr.mxu0 0.0
  %3636 = vmatpush2.msra.mxu0 0.0
  %3637 = vmatprep.subr.mxu0 0.0
  %3638 = vmatpush2.msra.mxu0 0.0
  %3639 = vmatprep.subr.mxu0 0.0
  %3640 = vmatpush2.msra.mxu0 0.0
  %3641 = vmatprep.subr.mxu0 0.0
  %3642 = vmatpush2.msra.mxu0 0.0
  %3643 = vmatprep.subr.mxu0 0.0
  %3644 = vmatpush2.msra.mxu0 0.0
  %3645 = vmatprep.subr.mxu0 0.0
  %3646 = vmatpush2.msra.mxu0 0.0
  %3647 = vmatprep.subr.mxu0 0.0
  %3648 = vmatpush2.msra.mxu0 0.0
  %3649 = vmatprep.subr.mxu0 0.0
  %3650 = vmatpush2.msra.mxu0 0.0
  %3651 = vmatprep.subr.mxu0 0.0
  %3652 = vmatpush2.msra.mxu0 0.0
  %3653 = vmatprep.subr.mxu0 0.0
  %3654 = vmatpush2.msra.mxu0 0.0
  %3655 = vmatprep.mubr.f32.mxu0 0.0
  %3656 = vmatmul.mubr.f32.gmra.mxu0 %v3589
  %v3657 = vpop.f32.mrf.mxu0
  %v3658 = vadd.f32 0.0, %v3657
  %v3659 = vpop.f32.mrf.mxu0
  %3660 = vdwg.mxu0
  %v3662 = vsel %vm239, %v1040, 0
  %3664 = vmatprep.subr.mxu0 0.0
  %3665 = vmatpush1.msra.mxu0 0.0
  %3666 = vmatprep.subr.mxu0 0.0
  %3667 = vmatpush1.msra.mxu0 0.0
  %3668 = vmatprep.subr.mxu0 0.0
  %3669 = vmatpush1.msra.mxu0 0.0
  %3670 = vmatprep.subr.mxu0 0.0
  %3671 = vmatpush1.msra.mxu0 0.0
  %3672 = vmatprep.subr.mxu0 0.0
  %3673 = vmatpush1.msra.mxu0 0.0
  %3674 = vmatprep.subr.mxu0 0.0
  %3675 = vmatpush1.msra.mxu0 0.0
  %3676 = vmatprep.subr.mxu0 0.0
  %3677 = vmatpush1.msra.mxu0 0.0
  %3678 = vmatprep.subr.mxu0 0.0
  %3679 = vmatpush1.msra.mxu0 0.0
  %3680 = vmatprep.subr.mxu0 0.0
  %3681 = vmatpush1.msra.mxu0 0.0
  %3682 = vmatprep.subr.mxu0 0.0
  %3683 = vmatpush1.msra.mxu0 0.0
  %3684 = vmatprep.subr.mxu0 0.0
  %3685 = vmatpush1.msra.mxu0 0.0
  %3686 = vmatprep.subr.mxu0 0.0
  %3687 = vmatpush1.msra.mxu0 0.0
  %3688 = vmatprep.subr.mxu0 0.0
  %3689 = vmatpush1.msra.mxu0 %v1191
  %3690 = vmatprep.subr.mxu0 0.0
  %3691 = vmatpush1.msra.mxu0 %v1190
  %3692 = vmatprep.subr.mxu0 0.0
  %3693 = vmatpush1.msra.mxu0 %v1189
  %3694 = vmatprep.subr.mxu0 0.0
  %3695 = vmatpush1.msra.mxu0 %v1188
  %3696 = vmatprep.subr.mxu0 0.0
  %3697 = vmatpush2.msra.mxu0 0.0
  %3698 = vmatprep.subr.mxu0 0.0
  %3699 = vmatpush2.msra.mxu0 0.0
  %3700 = vmatprep.subr.mxu0 0.0
  %3701 = vmatpush2.msra.mxu0 0.0
  %3702 = vmatprep.subr.mxu0 0.0
  %3703 = vmatpush2.msra.mxu0 0.0
  %3704 = vmatprep.subr.mxu0 0.0
  %3705 = vmatpush2.msra.mxu0 0.0
  %3706 = vmatprep.subr.mxu0 0.0
  %3707 = vmatpush2.msra.mxu0 0.0
  %3708 = vmatprep.subr.mxu0 0.0
  %3709 = vmatpush2.msra.mxu0 0.0
  %3710 = vmatprep.subr.mxu0 0.0
  %3711 = vmatpush2.msra.mxu0 0.0
  %3712 = vmatprep.subr.mxu0 0.0
  %3713 = vmatpush2.msra.mxu0 0.0
  %3714 = vmatprep.subr.mxu0 0.0
  %3715 = vmatpush2.msra.mxu0 0.0
  %3716 = vmatprep.subr.mxu0 0.0
  %3717 = vmatpush2.msra.mxu0 0.0
  %3718 = vmatprep.subr.mxu0 0.0
  %3719 = vmatpush2.msra.mxu0 0.0
  %3720 = vmatprep.subr.mxu0 0.0
  %3721 = vmatpush2.msra.mxu0 0.0
  %3722 = vmatprep.subr.mxu0 0.0
  %3723 = vmatpush2.msra.mxu0 0.0
  %3724 = vmatprep.subr.mxu0 0.0
  %3725 = vmatpush2.msra.mxu0 0.0
  %3726 = vmatprep.subr.mxu0 0.0
  %3727 = vmatpush2.msra.mxu0 0.0
  %3728 = vmatprep.mubr.f32.mxu0 0.0
  %3729 = vmatmul.mubr.f32.gmra.mxu0 %v3662
  %v3730 = vpop.f32.mrf.mxu0
  %v3731 = vadd.f32 0.0, %v3730
  %v3732 = vpop.f32.mrf.mxu0
  %3733 = vdwg.mxu0
  %v3735 = vsel %vm239, %v1041, 0
  %3737 = vmatprep.subr.mxu0 0.0
  %3738 = vmatpush1.msra.mxu0 0.0
  %3739 = vmatprep.subr.mxu0 0.0
  %3740 = vmatpush1.msra.mxu0 0.0
  %3741 = vmatprep.subr.mxu0 0.0
  %3742 = vmatpush1.msra.mxu0 0.0
  %3743 = vmatprep.subr.mxu0 0.0
  %3744 = vmatpush1.msra.mxu0 0.0
  %3745 = vmatprep.subr.mxu0 0.0
  %3746 = vmatpush1.msra.mxu0 0.0
  %3747 = vmatprep.subr.mxu0 0.0
  %3748 = vmatpush1.msra.mxu0 0.0
  %3749 = vmatprep.subr.mxu0 0.0
  %3750 = vmatpush1.msra.mxu0 0.0
  %3751 = vmatprep.subr.mxu0 0.0
  %3752 = vmatpush1.msra.mxu0 0.0
  %3753 = vmatprep.subr.mxu0 0.0
  %3754 = vmatpush1.msra.mxu0 0.0
  %3755 = vmatprep.subr.mxu0 0.0
  %3756 = vmatpush1.msra.mxu0 0.0
  %3757 = vmatprep.subr.mxu0 0.0
  %3758 = vmatpush1.msra.mxu0 0.0
  %3759 = vmatprep.subr.mxu0 0.0
  %3760 = vmatpush1.msra.mxu0 0.0
  %3761 = vmatprep.subr.mxu0 0.0
  %3762 = vmatpush1.msra.mxu0 %v1195
  %3763 = vmatprep.subr.mxu0 0.0
  %3764 = vmatpush1.msra.mxu0 %v1194
  %3765 = vmatprep.subr.mxu0 0.0
  %3766 = vmatpush1.msra.mxu0 %v1193
  %3767 = vmatprep.subr.mxu0 0.0
  %3768 = vmatpush1.msra.mxu0 %v1192
  %3769 = vmatprep.subr.mxu0 0.0
  %3770 = vmatpush2.msra.mxu0 0.0
  %3771 = vmatprep.subr.mxu0 0.0
  %3772 = vmatpush2.msra.mxu0 0.0
  %3773 = vmatprep.subr.mxu0 0.0
  %3774 = vmatpush2.msra.mxu0 0.0
  %3775 = vmatprep.subr.mxu0 0.0
  %3776 = vmatpush2.msra.mxu0 0.0
  %3777 = vmatprep.subr.mxu0 0.0
  %3778 = vmatpush2.msra.mxu0 0.0
  %3779 = vmatprep.subr.mxu0 0.0
  %3780 = vmatpush2.msra.mxu0 0.0
  %3781 = vmatprep.subr.mxu0 0.0
  %3782 = vmatpush2.msra.mxu0 0.0
  %3783 = vmatprep.subr.mxu0 0.0
  %3784 = vmatpush2.msra.mxu0 0.0
  %3785 = vmatprep.subr.mxu0 0.0
  %3786 = vmatpush2.msra.mxu0 0.0
  %3787 = vmatprep.subr.mxu0 0.0
  %3788 = vmatpush2.msra.mxu0 0.0
  %3789 = vmatprep.subr.mxu0 0.0
  %3790 = vmatpush2.msra.mxu0 0.0
  %3791 = vmatprep.subr.mxu0 0.0
  %3792 = vmatpush2.msra.mxu0 0.0
  %3793 = vmatprep.subr.mxu0 0.0
  %3794 = vmatpush2.msra.mxu0 0.0
  %3795 = vmatprep.subr.mxu0 0.0
  %3796 = vmatpush2.msra.mxu0 0.0
  %3797 = vmatprep.subr.mxu0 0.0
  %3798 = vmatpush2.msra.mxu0 0.0
  %3799 = vmatprep.subr.mxu0 0.0
  %3800 = vmatpush2.msra.mxu0 0.0
  %3801 = vmatprep.mubr.f32.mxu0 0.0
  %3802 = vmatmul.mubr.f32.gmra.mxu0 %v3735
  %v3803 = vpop.f32.mrf.mxu0
  %v3804 = vadd.f32 0.0, %v3803
  %v3805 = vpop.f32.mrf.mxu0
  %3806 = vdwg.mxu0
  %v3808 = vsel %vm239, %v1042, 0
  %3810 = vmatprep.subr.mxu0 0.0
  %3811 = vmatpush1.msra.mxu0 0.0
  %3812 = vmatprep.subr.mxu0 0.0
  %3813 = vmatpush1.msra.mxu0 0.0
  %3814 = vmatprep.subr.mxu0 0.0
  %3815 = vmatpush1.msra.mxu0 0.0
  %3816 = vmatprep.subr.mxu0 0.0
  %3817 = vmatpush1.msra.mxu0 0.0
  %3818 = vmatprep.subr.mxu0 0.0
  %3819 = vmatpush1.msra.mxu0 0.0
  %3820 = vmatprep.subr.mxu0 0.0
  %3821 = vmatpush1.msra.mxu0 0.0
  %3822 = vmatprep.subr.mxu0 0.0
  %3823 = vmatpush1.msra.mxu0 0.0
  %3824 = vmatprep.subr.mxu0 0.0
  %3825 = vmatpush1.msra.mxu0 0.0
  %3826 = vmatprep.subr.mxu0 0.0
  %3827 = vmatpush1.msra.mxu0 0.0
  %3828 = vmatprep.subr.mxu0 0.0
  %3829 = vmatpush1.msra.mxu0 0.0
  %3830 = vmatprep.subr.mxu0 0.0
  %3831 = vmatpush1.msra.mxu0 0.0
  %3832 = vmatprep.subr.mxu0 0.0
  %3833 = vmatpush1.msra.mxu0 0.0
  %3834 = vmatprep.subr.mxu0 0.0
  %3835 = vmatpush1.msra.mxu0 %v1199
  %3836 = vmatprep.subr.mxu0 0.0
  %3837 = vmatpush1.msra.mxu0 %v1198
  %3838 = vmatprep.subr.mxu0 0.0
  %3839 = vmatpush1.msra.mxu0 %v1197
  %3840 = vmatprep.subr.mxu0 0.0
  %3841 = vmatpush1.msra.mxu0 %v1196
  %3842 = vmatprep.subr.mxu0 0.0
  %3843 = vmatpush2.msra.mxu0 0.0
  %3844 = vmatprep.subr.mxu0 0.0
  %3845 = vmatpush2.msra.mxu0 0.0
  %3846 = vmatprep.subr.mxu0 0.0
  %3847 = vmatpush2.msra.mxu0 0.0
  %3848 = vmatprep.subr.mxu0 0.0
  %3849 = vmatpush2.msra.mxu0 0.0
  %3850 = vmatprep.subr.mxu0 0.0
  %3851 = vmatpush2.msra.mxu0 0.0
  %3852 = vmatprep.subr.mxu0 0.0
  %3853 = vmatpush2.msra.mxu0 0.0
  %3854 = vmatprep.subr.mxu0 0.0
  %3855 = vmatpush2.msra.mxu0 0.0
  %3856 = vmatprep.subr.mxu0 0.0
  %3857 = vmatpush2.msra.mxu0 0.0
  %3858 = vmatprep.subr.mxu0 0.0
  %3859 = vmatpush2.msra.mxu0 0.0
  %3860 = vmatprep.subr.mxu0 0.0
  %3861 = vmatpush2.msra.mxu0 0.0
  %3862 = vmatprep.subr.mxu0 0.0
  %3863 = vmatpush2.msra.mxu0 0.0
  %3864 = vmatprep.subr.mxu0 0.0
  %3865 = vmatpush2.msra.mxu0 0.0
  %3866 = vmatprep.subr.mxu0 0.0
  %3867 = vmatpush2.msra.mxu0 0.0
  %3868 = vmatprep.subr.mxu0 0.0
  %3869 = vmatpush2.msra.mxu0 0.0
  %3870 = vmatprep.subr.mxu0 0.0
  %3871 = vmatpush2.msra.mxu0 0.0
  %3872 = vmatprep.subr.mxu0 0.0
  %3873 = vmatpush2.msra.mxu0 0.0
  %3874 = vmatprep.mubr.f32.mxu0 0.0
  %3875 = vmatmul.mubr.f32.gmra.mxu0 %v3808
  %v3876 = vpop.f32.mrf.mxu0
  %v3877 = vadd.f32 0.0, %v3876
  %v3878 = vpop.f32.mrf.mxu0
  %3879 = vdwg.mxu0
  %v3881 = vsel %vm239, %v1043, 0
  %3883 = vmatprep.subr.mxu0 0.0
  %3884 = vmatpush1.msra.mxu0 0.0
  %3885 = vmatprep.subr.mxu0 0.0
  %3886 = vmatpush1.msra.mxu0 0.0
  %3887 = vmatprep.subr.mxu0 0.0
  %3888 = vmatpush1.msra.mxu0 0.0
  %3889 = vmatprep.subr.mxu0 0.0
  %3890 = vmatpush1.msra.mxu0 0.0
  %3891 = vmatprep.subr.mxu0 0.0
  %3892 = vmatpush1.msra.mxu0 0.0
  %3893 = vmatprep.subr.mxu0 0.0
  %3894 = vmatpush1.msra.mxu0 0.0
  %3895 = vmatprep.subr.mxu0 0.0
  %3896 = vmatpush1.msra.mxu0 0.0
  %3897 = vmatprep.subr.mxu0 0.0
  %3898 = vmatpush1.msra.mxu0 0.0
  %3899 = vmatprep.subr.mxu0 0.0
  %3900 = vmatpush1.msra.mxu0 0.0
  %3901 = vmatprep.subr.mxu0 0.0
  %3902 = vmatpush1.msra.mxu0 0.0
  %3903 = vmatprep.subr.mxu0 0.0
  %3904 = vmatpush1.msra.mxu0 0.0
  %3905 = vmatprep.subr.mxu0 0.0
  %3906 = vmatpush1.msra.mxu0 0.0
  %3907 = vmatprep.subr.mxu0 0.0
  %3908 = vmatpush1.msra.mxu0 %v1203
  %3909 = vmatprep.subr.mxu0 0.0
  %3910 = vmatpush1.msra.mxu0 %v1202
  %3911 = vmatprep.subr.mxu0 0.0
  %3912 = vmatpush1.msra.mxu0 %v1201
  %3913 = vmatprep.subr.mxu0 0.0
  %3914 = vmatpush1.msra.mxu0 %v1200
  %3915 = vmatprep.subr.mxu0 0.0
  %3916 = vmatpush2.msra.mxu0 0.0
  %3917 = vmatprep.subr.mxu0 0.0
  %3918 = vmatpush2.msra.mxu0 0.0
  %3919 = vmatprep.subr.mxu0 0.0
  %3920 = vmatpush2.msra.mxu0 0.0
  %3921 = vmatprep.subr.mxu0 0.0
  %3922 = vmatpush2.msra.mxu0 0.0
  %3923 = vmatprep.subr.mxu0 0.0
  %3924 = vmatpush2.msra.mxu0 0.0
  %3925 = vmatprep.subr.mxu0 0.0
  %3926 = vmatpush2.msra.mxu0 0.0
  %3927 = vmatprep.subr.mxu0 0.0
  %3928 = vmatpush2.msra.mxu0 0.0
  %3929 = vmatprep.subr.mxu0 0.0
  %3930 = vmatpush2.msra.mxu0 0.0
  %3931 = vmatprep.subr.mxu0 0.0
  %3932 = vmatpush2.msra.mxu0 0.0
  %3933 = vmatprep.subr.mxu0 0.0
  %3934 = vmatpush2.msra.mxu0 0.0
  %3935 = vmatprep.subr.mxu0 0.0
  %3936 = vmatpush2.msra.mxu0 0.0
  %3937 = vmatprep.subr.mxu0 0.0
  %3938 = vmatpush2.msra.mxu0 0.0
  %3939 = vmatprep.subr.mxu0 0.0
  %3940 = vmatpush2.msra.mxu0 0.0
  %3941 = vmatprep.subr.mxu0 0.0
  %3942 = vmatpush2.msra.mxu0 0.0
  %3943 = vmatprep.subr.mxu0 0.0
  %3944 = vmatpush2.msra.mxu0 0.0
  %3945 = vmatprep.subr.mxu0 0.0
  %3946 = vmatpush2.msra.mxu0 0.0
  %3947 = vmatprep.mubr.f32.mxu0 0.0
  %3948 = vmatmul.mubr.f32.gmra.mxu0 %v3881
  %v3949 = vpop.f32.mrf.mxu0
  %v3950 = vadd.f32 0.0, %v3949
  %v3951 = vpop.f32.mrf.mxu0
  %3952 = vdwg.mxu0
  %v3954 = vsel %vm239, %v1044, 0
  %3956 = vmatprep.subr.mxu0 0.0
  %3957 = vmatpush1.msra.mxu0 0.0
  %3958 = vmatprep.subr.mxu0 0.0
  %3959 = vmatpush1.msra.mxu0 0.0
  %3960 = vmatprep.subr.mxu0 0.0
  %3961 = vmatpush1.msra.mxu0 0.0
  %3962 = vmatprep.subr.mxu0 0.0
  %3963 = vmatpush1.msra.mxu0 0.0
  %3964 = vmatprep.subr.mxu0 0.0
  %3965 = vmatpush1.msra.mxu0 0.0
  %3966 = vmatprep.subr.mxu0 0.0
  %3967 = vmatpush1.msra.mxu0 0.0
  %3968 = vmatprep.subr.mxu0 0.0
  %3969 = vmatpush1.msra.mxu0 0.0
  %3970 = vmatprep.subr.mxu0 0.0
  %3971 = vmatpush1.msra.mxu0 0.0
  %3972 = vmatprep.subr.mxu0 0.0
  %3973 = vmatpush1.msra.mxu0 0.0
  %3974 = vmatprep.subr.mxu0 0.0
  %3975 = vmatpush1.msra.mxu0 0.0
  %3976 = vmatprep.subr.mxu0 0.0
  %3977 = vmatpush1.msra.mxu0 0.0
  %3978 = vmatprep.subr.mxu0 0.0
  %3979 = vmatpush1.msra.mxu0 0.0
  %3980 = vmatprep.subr.mxu0 0.0
  %3981 = vmatpush1.msra.mxu0 %v1207
  %3982 = vmatprep.subr.mxu0 0.0
  %3983 = vmatpush1.msra.mxu0 %v1206
  %3984 = vmatprep.subr.mxu0 0.0
  %3985 = vmatpush1.msra.mxu0 %v1205
  %3986 = vmatprep.subr.mxu0 0.0
  %3987 = vmatpush1.msra.mxu0 %v1204
  %3988 = vmatprep.subr.mxu0 0.0
  %3989 = vmatpush2.msra.mxu0 0.0
  %3990 = vmatprep.subr.mxu0 0.0
  %3991 = vmatpush2.msra.mxu0 0.0
  %3992 = vmatprep.subr.mxu0 0.0
  %3993 = vmatpush2.msra.mxu0 0.0
  %3994 = vmatprep.subr.mxu0 0.0
  %3995 = vmatpush2.msra.mxu0 0.0
  %3996 = vmatprep.subr.mxu0 0.0
  %3997 = vmatpush2.msra.mxu0 0.0
  %3998 = vmatprep.subr.mxu0 0.0
  %3999 = vmatpush2.msra.mxu0 0.0
  %4000 = vmatprep.subr.mxu0 0.0
  %4001 = vmatpush2.msra.mxu0 0.0
  %4002 = vmatprep.subr.mxu0 0.0
  %4003 = vmatpush2.msra.mxu0 0.0
  %4004 = vmatprep.subr.mxu0 0.0
  %4005 = vmatpush2.msra.mxu0 0.0
  %4006 = vmatprep.subr.mxu0 0.0
  %4007 = vmatpush2.msra.mxu0 0.0
  %4008 = vmatprep.subr.mxu0 0.0
  %4009 = vmatpush2.msra.mxu0 0.0
  %4010 = vmatprep.subr.mxu0 0.0
  %4011 = vmatpush2.msra.mxu0 0.0
  %4012 = vmatprep.subr.mxu0 0.0
  %4013 = vmatpush2.msra.mxu0 0.0
  %4014 = vmatprep.subr.mxu0 0.0
  %4015 = vmatpush2.msra.mxu0 0.0
  %4016 = vmatprep.subr.mxu0 0.0
  %4017 = vmatpush2.msra.mxu0 0.0
  %4018 = vmatprep.subr.mxu0 0.0
  %4019 = vmatpush2.msra.mxu0 0.0
  %4020 = vmatprep.mubr.f32.mxu0 0.0
  %4021 = vmatmul.mubr.f32.gmra.mxu0 %v3954
  %v4022 = vpop.f32.mrf.mxu0
  %v4023 = vadd.f32 0.0, %v4022
  %v4024 = vpop.f32.mrf.mxu0
  %4025 = vdwg.mxu0
  %v4027 = vsel %vm239, %v1045, 0
  %4029 = vmatprep.subr.mxu0 0.0
  %4030 = vmatpush1.msra.mxu0 0.0
  %4031 = vmatprep.subr.mxu0 0.0
  %4032 = vmatpush1.msra.mxu0 0.0
  %4033 = vmatprep.subr.mxu0 0.0
  %4034 = vmatpush1.msra.mxu0 0.0
  %4035 = vmatprep.subr.mxu0 0.0
  %4036 = vmatpush1.msra.mxu0 0.0
  %4037 = vmatprep.subr.mxu0 0.0
  %4038 = vmatpush1.msra.mxu0 0.0
  %4039 = vmatprep.subr.mxu0 0.0
  %4040 = vmatpush1.msra.mxu0 0.0
  %4041 = vmatprep.subr.mxu0 0.0
  %4042 = vmatpush1.msra.mxu0 0.0
  %4043 = vmatprep.subr.mxu0 0.0
  %4044 = vmatpush1.msra.mxu0 0.0
  %4045 = vmatprep.subr.mxu0 0.0
  %4046 = vmatpush1.msra.mxu0 0.0
  %4047 = vmatprep.subr.mxu0 0.0
  %4048 = vmatpush1.msra.mxu0 0.0
  %4049 = vmatprep.subr.mxu0 0.0
  %4050 = vmatpush1.msra.mxu0 0.0
  %4051 = vmatprep.subr.mxu0 0.0
  %4052 = vmatpush1.msra.mxu0 0.0
  %4053 = vmatprep.subr.mxu0 0.0
  %4054 = vmatpush1.msra.mxu0 %v1211
  %4055 = vmatprep.subr.mxu0 0.0
  %4056 = vmatpush1.msra.mxu0 %v1210
  %4057 = vmatprep.subr.mxu0 0.0
  %4058 = vmatpush1.msra.mxu0 %v1209
  %4059 = vmatprep.subr.mxu0 0.0
  %4060 = vmatpush1.msra.mxu0 %v1208
  %4061 = vmatprep.subr.mxu0 0.0
  %4062 = vmatpush2.msra.mxu0 0.0
  %4063 = vmatprep.subr.mxu0 0.0
  %4064 = vmatpush2.msra.mxu0 0.0
  %4065 = vmatprep.subr.mxu0 0.0
  %4066 = vmatpush2.msra.mxu0 0.0
  %4067 = vmatprep.subr.mxu0 0.0
  %4068 = vmatpush2.msra.mxu0 0.0
  %4069 = vmatprep.subr.mxu0 0.0
  %4070 = vmatpush2.msra.mxu0 0.0
  %4071 = vmatprep.subr.mxu0 0.0
  %4072 = vmatpush2.msra.mxu0 0.0
  %4073 = vmatprep.subr.mxu0 0.0
  %4074 = vmatpush2.msra.mxu0 0.0
  %4075 = vmatprep.subr.mxu0 0.0
  %4076 = vmatpush2.msra.mxu0 0.0
  %4077 = vmatprep.subr.mxu0 0.0
  %4078 = vmatpush2.msra.mxu0 0.0
  %4079 = vmatprep.subr.mxu0 0.0
  %4080 = vmatpush2.msra.mxu0 0.0
  %4081 = vmatprep.subr.mxu0 0.0
  %4082 = vmatpush2.msra.mxu0 0.0
  %4083 = vmatprep.subr.mxu0 0.0
  %4084 = vmatpush2.msra.mxu0 0.0
  %4085 = vmatprep.subr.mxu0 0.0
  %4086 = vmatpush2.msra.mxu0 0.0
  %4087 = vmatprep.subr.mxu0 0.0
  %4088 = vmatpush2.msra.mxu0 0.0
  %4089 = vmatprep.subr.mxu0 0.0
  %4090 = vmatpush2.msra.mxu0 0.0
  %4091 = vmatprep.subr.mxu0 0.0
  %4092 = vmatpush2.msra.mxu0 0.0
  %4093 = vmatprep.mubr.f32.mxu0 0.0
  %4094 = vmatmul.mubr.f32.gmra.mxu0 %v4027
  %v4095 = vpop.f32.mrf.mxu0
  %v4096 = vadd.f32 0.0, %v4095
  %v4097 = vpop.f32.mrf.mxu0
  %4098 = vdwg.mxu0
  %v4100 = vsel %vm239, %v1046, 0
  %4102 = vmatprep.subr.mxu0 0.0
  %4103 = vmatpush1.msra.mxu0 0.0
  %4104 = vmatprep.subr.mxu0 0.0
  %4105 = vmatpush1.msra.mxu0 0.0
  %4106 = vmatprep.subr.mxu0 0.0
  %4107 = vmatpush1.msra.mxu0 0.0
  %4108 = vmatprep.subr.mxu0 0.0
  %4109 = vmatpush1.msra.mxu0 0.0
  %4110 = vmatprep.subr.mxu0 0.0
  %4111 = vmatpush1.msra.mxu0 0.0
  %4112 = vmatprep.subr.mxu0 0.0
  %4113 = vmatpush1.msra.mxu0 0.0
  %4114 = vmatprep.subr.mxu0 0.0
  %4115 = vmatpush1.msra.mxu0 0.0
  %4116 = vmatprep.subr.mxu0 0.0
  %4117 = vmatpush1.msra.mxu0 0.0
  %4118 = vmatprep.subr.mxu0 0.0
  %4119 = vmatpush1.msra.mxu0 0.0
  %4120 = vmatprep.subr.mxu0 0.0
  %4121 = vmatpush1.msra.mxu0 0.0
  %4122 = vmatprep.subr.mxu0 0.0
  %4123 = vmatpush1.msra.mxu0 0.0
  %4124 = vmatprep.subr.mxu0 0.0
  %4125 = vmatpush1.msra.mxu0 0.0
  %4126 = vmatprep.subr.mxu0 0.0
  %4127 = vmatpush1.msra.mxu0 %v1215
  %4128 = vmatprep.subr.mxu0 0.0
  %4129 = vmatpush1.msra.mxu0 %v1214
  %4130 = vmatprep.subr.mxu0 0.0
  %4131 = vmatpush1.msra.mxu0 %v1213
  %4132 = vmatprep.subr.mxu0 0.0
  %4133 = vmatpush1.msra.mxu0 %v1212
  %4134 = vmatprep.subr.mxu0 0.0
  %4135 = vmatpush2.msra.mxu0 0.0
  %4136 = vmatprep.subr.mxu0 0.0
  %4137 = vmatpush2.msra.mxu0 0.0
  %4138 = vmatprep.subr.mxu0 0.0
  %4139 = vmatpush2.msra.mxu0 0.0
  %4140 = vmatprep.subr.mxu0 0.0
  %4141 = vmatpush2.msra.mxu0 0.0
  %4142 = vmatprep.subr.mxu0 0.0
  %4143 = vmatpush2.msra.mxu0 0.0
  %4144 = vmatprep.subr.mxu0 0.0
  %4145 = vmatpush2.msra.mxu0 0.0
  %4146 = vmatprep.subr.mxu0 0.0
  %4147 = vmatpush2.msra.mxu0 0.0
  %4148 = vmatprep.subr.mxu0 0.0
  %4149 = vmatpush2.msra.mxu0 0.0
  %4150 = vmatprep.subr.mxu0 0.0
  %4151 = vmatpush2.msra.mxu0 0.0
  %4152 = vmatprep.subr.mxu0 0.0
  %4153 = vmatpush2.msra.mxu0 0.0
  %4154 = vmatprep.subr.mxu0 0.0
  %4155 = vmatpush2.msra.mxu0 0.0
  %4156 = vmatprep.subr.mxu0 0.0
  %4157 = vmatpush2.msra.mxu0 0.0
  %4158 = vmatprep.subr.mxu0 0.0
  %4159 = vmatpush2.msra.mxu0 0.0
  %4160 = vmatprep.subr.mxu0 0.0
  %4161 = vmatpush2.msra.mxu0 0.0
  %4162 = vmatprep.subr.mxu0 0.0
  %4163 = vmatpush2.msra.mxu0 0.0
  %4164 = vmatprep.subr.mxu0 0.0
  %4165 = vmatpush2.msra.mxu0 0.0
  %4166 = vmatprep.mubr.f32.mxu0 0.0
  %4167 = vmatmul.mubr.f32.gmra.mxu0 %v4100
  %v4168 = vpop.f32.mrf.mxu0
  %v4169 = vadd.f32 0.0, %v4168
  %v4170 = vpop.f32.mrf.mxu0
  %4171 = vdwg.mxu0
  %v4173 = vsel %vm239, %v1047, 0
  %4175 = vmatprep.subr.mxu0 0.0
  %4176 = vmatpush1.msra.mxu0 0.0
  %4177 = vmatprep.subr.mxu0 0.0
  %4178 = vmatpush1.msra.mxu0 0.0
  %4179 = vmatprep.subr.mxu0 0.0
  %4180 = vmatpush1.msra.mxu0 0.0
  %4181 = vmatprep.subr.mxu0 0.0
  %4182 = vmatpush1.msra.mxu0 0.0
  %4183 = vmatprep.subr.mxu0 0.0
  %4184 = vmatpush1.msra.mxu0 0.0
  %4185 = vmatprep.subr.mxu0 0.0
  %4186 = vmatpush1.msra.mxu0 0.0
  %4187 = vmatprep.subr.mxu0 0.0
  %4188 = vmatpush1.msra.mxu0 0.0
  %4189 = vmatprep.subr.mxu0 0.0
  %4190 = vmatpush1.msra.mxu0 0.0
  %4191 = vmatprep.subr.mxu0 0.0
  %4192 = vmatpush1.msra.mxu0 0.0
  %4193 = vmatprep.subr.mxu0 0.0
  %4194 = vmatpush1.msra.mxu0 0.0
  %4195 = vmatprep.subr.mxu0 0.0
  %4196 = vmatpush1.msra.mxu0 0.0
  %4197 = vmatprep.subr.mxu0 0.0
  %4198 = vmatpush1.msra.mxu0 0.0
  %4199 = vmatprep.subr.mxu0 0.0
  %4200 = vmatpush1.msra.mxu0 %v1219
  %4201 = vmatprep.subr.mxu0 0.0
  %4202 = vmatpush1.msra.mxu0 %v1218
  %4203 = vmatprep.subr.mxu0 0.0
  %4204 = vmatpush1.msra.mxu0 %v1217
  %4205 = vmatprep.subr.mxu0 0.0
  %4206 = vmatpush1.msra.mxu0 %v1216
  %4207 = vmatprep.subr.mxu0 0.0
  %4208 = vmatpush2.msra.mxu0 0.0
  %4209 = vmatprep.subr.mxu0 0.0
  %4210 = vmatpush2.msra.mxu0 0.0
  %4211 = vmatprep.subr.mxu0 0.0
  %4212 = vmatpush2.msra.mxu0 0.0
  %4213 = vmatprep.subr.mxu0 0.0
  %4214 = vmatpush2.msra.mxu0 0.0
  %4215 = vmatprep.subr.mxu0 0.0
  %4216 = vmatpush2.msra.mxu0 0.0
  %4217 = vmatprep.subr.mxu0 0.0
  %4218 = vmatpush2.msra.mxu0 0.0
  %4219 = vmatprep.subr.mxu0 0.0
  %4220 = vmatpush2.msra.mxu0 0.0
  %4221 = vmatprep.subr.mxu0 0.0
  %4222 = vmatpush2.msra.mxu0 0.0
  %4223 = vmatprep.subr.mxu0 0.0
  %4224 = vmatpush2.msra.mxu0 0.0
  %4225 = vmatprep.subr.mxu0 0.0
  %4226 = vmatpush2.msra.mxu0 0.0
  %4227 = vmatprep.subr.mxu0 0.0
  %4228 = vmatpush2.msra.mxu0 0.0
  %4229 = vmatprep.subr.mxu0 0.0
  %4230 = vmatpush2.msra.mxu0 0.0
  %4231 = vmatprep.subr.mxu0 0.0
  %4232 = vmatpush2.msra.mxu0 0.0
  %4233 = vmatprep.subr.mxu0 0.0
  %4234 = vmatpush2.msra.mxu0 0.0
  %4235 = vmatprep.subr.mxu0 0.0
  %4236 = vmatpush2.msra.mxu0 0.0
  %4237 = vmatprep.subr.mxu0 0.0
  %4238 = vmatpush2.msra.mxu0 0.0
  %4239 = vmatprep.mubr.f32.mxu0 0.0
  %4240 = vmatmul.mubr.f32.gmra.mxu0 %v4173
  %v4241 = vpop.f32.mrf.mxu0
  %v4242 = vadd.f32 0.0, %v4241
  %v4243 = vpop.f32.mrf.mxu0
  %4244 = vdwg.mxu0
  %v4246 = vsel %vm239, %v1048, 0
  %4248 = vmatprep.subr.mxu0 0.0
  %4249 = vmatpush1.msra.mxu0 0.0
  %4250 = vmatprep.subr.mxu0 0.0
  %4251 = vmatpush1.msra.mxu0 0.0
  %4252 = vmatprep.subr.mxu0 0.0
  %4253 = vmatpush1.msra.mxu0 0.0
  %4254 = vmatprep.subr.mxu0 0.0
  %4255 = vmatpush1.msra.mxu0 0.0
  %4256 = vmatprep.subr.mxu0 0.0
  %4257 = vmatpush1.msra.mxu0 0.0
  %4258 = vmatprep.subr.mxu0 0.0
  %4259 = vmatpush1.msra.mxu0 0.0
  %4260 = vmatprep.subr.mxu0 0.0
  %4261 = vmatpush1.msra.mxu0 0.0
  %4262 = vmatprep.subr.mxu0 0.0
  %4263 = vmatpush1.msra.mxu0 0.0
  %4264 = vmatprep.subr.mxu0 0.0
  %4265 = vmatpush1.msra.mxu0 0.0
  %4266 = vmatprep.subr.mxu0 0.0
  %4267 = vmatpush1.msra.mxu0 0.0
  %4268 = vmatprep.subr.mxu0 0.0
  %4269 = vmatpush1.msra.mxu0 0.0
  %4270 = vmatprep.subr.mxu0 0.0
  %4271 = vmatpush1.msra.mxu0 0.0
  %4272 = vmatprep.subr.mxu0 0.0
  %4273 = vmatpush1.msra.mxu0 %v1223
  %4274 = vmatprep.subr.mxu0 0.0
  %4275 = vmatpush1.msra.mxu0 %v1222
  %4276 = vmatprep.subr.mxu0 0.0
  %4277 = vmatpush1.msra.mxu0 %v1221
  %4278 = vmatprep.subr.mxu0 0.0
  %4279 = vmatpush1.msra.mxu0 %v1220
  %4280 = vmatprep.subr.mxu0 0.0
  %4281 = vmatpush2.msra.mxu0 0.0
  %4282 = vmatprep.subr.mxu0 0.0
  %4283 = vmatpush2.msra.mxu0 0.0
  %4284 = vmatprep.subr.mxu0 0.0
  %4285 = vmatpush2.msra.mxu0 0.0
  %4286 = vmatprep.subr.mxu0 0.0
  %4287 = vmatpush2.msra.mxu0 0.0
  %4288 = vmatprep.subr.mxu0 0.0
  %4289 = vmatpush2.msra.mxu0 0.0
  %4290 = vmatprep.subr.mxu0 0.0
  %4291 = vmatpush2.msra.mxu0 0.0
  %4292 = vmatprep.subr.mxu0 0.0
  %4293 = vmatpush2.msra.mxu0 0.0
  %4294 = vmatprep.subr.mxu0 0.0
  %4295 = vmatpush2.msra.mxu0 0.0
  %4296 = vmatprep.subr.mxu0 0.0
  %4297 = vmatpush2.msra.mxu0 0.0
  %4298 = vmatprep.subr.mxu0 0.0
  %4299 = vmatpush2.msra.mxu0 0.0
  %4300 = vmatprep.subr.mxu0 0.0
  %4301 = vmatpush2.msra.mxu0 0.0
  %4302 = vmatprep.subr.mxu0 0.0
  %4303 = vmatpush2.msra.mxu0 0.0
  %4304 = vmatprep.subr.mxu0 0.0
  %4305 = vmatpush2.msra.mxu0 0.0
  %4306 = vmatprep.subr.mxu0 0.0
  %4307 = vmatpush2.msra.mxu0 0.0
  %4308 = vmatprep.subr.mxu0 0.0
  %4309 = vmatpush2.msra.mxu0 0.0
  %4310 = vmatprep.subr.mxu0 0.0
  %4311 = vmatpush2.msra.mxu0 0.0
  %4312 = vmatprep.mubr.f32.mxu0 0.0
  %4313 = vmatmul.mubr.f32.gmra.mxu0 %v4246
  %v4314 = vpop.f32.mrf.mxu0
  %v4315 = vadd.f32 0.0, %v4314
  %v4316 = vpop.f32.mrf.mxu0
  %4317 = vdwg.mxu0
  %v4319 = vsel %vm239, %v1049, 0
  %4321 = vmatprep.subr.mxu0 0.0
  %4322 = vmatpush1.msra.mxu0 0.0
  %4323 = vmatprep.subr.mxu0 0.0
  %4324 = vmatpush1.msra.mxu0 0.0
  %4325 = vmatprep.subr.mxu0 0.0
  %4326 = vmatpush1.msra.mxu0 0.0
  %4327 = vmatprep.subr.mxu0 0.0
  %4328 = vmatpush1.msra.mxu0 0.0
  %4329 = vmatprep.subr.mxu0 0.0
  %4330 = vmatpush1.msra.mxu0 0.0
  %4331 = vmatprep.subr.mxu0 0.0
  %4332 = vmatpush1.msra.mxu0 0.0
  %4333 = vmatprep.subr.mxu0 0.0
  %4334 = vmatpush1.msra.mxu0 0.0
  %4335 = vmatprep.subr.mxu0 0.0
  %4336 = vmatpush1.msra.mxu0 0.0
  %4337 = vmatprep.subr.mxu0 0.0
  %4338 = vmatpush1.msra.mxu0 0.0
  %4339 = vmatprep.subr.mxu0 0.0
  %4340 = vmatpush1.msra.mxu0 0.0
  %4341 = vmatprep.subr.mxu0 0.0
  %4342 = vmatpush1.msra.mxu0 0.0
  %4343 = vmatprep.subr.mxu0 0.0
  %4344 = vmatpush1.msra.mxu0 0.0
  %4345 = vmatprep.subr.mxu0 0.0
  %4346 = vmatpush1.msra.mxu0 %v1227
  %4347 = vmatprep.subr.mxu0 0.0
  %4348 = vmatpush1.msra.mxu0 %v1226
  %4349 = vmatprep.subr.mxu0 0.0
  %4350 = vmatpush1.msra.mxu0 %v1225
  %4351 = vmatprep.subr.mxu0 0.0
  %4352 = vmatpush1.msra.mxu0 %v1224
  %4353 = vmatprep.subr.mxu0 0.0
  %4354 = vmatpush2.msra.mxu0 0.0
  %4355 = vmatprep.subr.mxu0 0.0
  %4356 = vmatpush2.msra.mxu0 0.0
  %4357 = vmatprep.subr.mxu0 0.0
  %4358 = vmatpush2.msra.mxu0 0.0
  %4359 = vmatprep.subr.mxu0 0.0
  %4360 = vmatpush2.msra.mxu0 0.0
  %4361 = vmatprep.subr.mxu0 0.0
  %4362 = vmatpush2.msra.mxu0 0.0
  %4363 = vmatprep.subr.mxu0 0.0
  %4364 = vmatpush2.msra.mxu0 0.0
  %4365 = vmatprep.subr.mxu0 0.0
  %4366 = vmatpush2.msra.mxu0 0.0
  %4367 = vmatprep.subr.mxu0 0.0
  %4368 = vmatpush2.msra.mxu0 0.0
  %4369 = vmatprep.subr.mxu0 0.0
  %4370 = vmatpush2.msra.mxu0 0.0
  %4371 = vmatprep.subr.mxu0 0.0
  %4372 = vmatpush2.msra.mxu0 0.0
  %4373 = vmatprep.subr.mxu0 0.0
  %4374 = vmatpush2.msra.mxu0 0.0
  %4375 = vmatprep.subr.mxu0 0.0
  %4376 = vmatpush2.msra.mxu0 0.0
  %4377 = vmatprep.subr.mxu0 0.0
  %4378 = vmatpush2.msra.mxu0 0.0
  %4379 = vmatprep.subr.mxu0 0.0
  %4380 = vmatpush2.msra.mxu0 0.0
  %4381 = vmatprep.subr.mxu0 0.0
  %4382 = vmatpush2.msra.mxu0 0.0
  %4383 = vmatprep.subr.mxu0 0.0
  %4384 = vmatpush2.msra.mxu0 0.0
  %4385 = vmatprep.mubr.f32.mxu0 0.0
  %4386 = vmatmul.mubr.f32.gmra.mxu0 %v4319
  %v4387 = vpop.f32.mrf.mxu0
  %v4388 = vadd.f32 0.0, %v4387
  %v4389 = vpop.f32.mrf.mxu0
  %4390 = vdwg.mxu0
  %v4392 = vsel %vm239, %v1050, 0
  %4394 = vmatprep.subr.mxu0 0.0
  %4395 = vmatpush1.msra.mxu0 0.0
  %4396 = vmatprep.subr.mxu0 0.0
  %4397 = vmatpush1.msra.mxu0 0.0
  %4398 = vmatprep.subr.mxu0 0.0
  %4399 = vmatpush1.msra.mxu0 0.0
  %4400 = vmatprep.subr.mxu0 0.0
  %4401 = vmatpush1.msra.mxu0 0.0
  %4402 = vmatprep.subr.mxu0 0.0
  %4403 = vmatpush1.msra.mxu0 0.0
  %4404 = vmatprep.subr.mxu0 0.0
  %4405 = vmatpush1.msra.mxu0 0.0
  %4406 = vmatprep.subr.mxu0 0.0
  %4407 = vmatpush1.msra.mxu0 0.0
  %4408 = vmatprep.subr.mxu0 0.0
  %4409 = vmatpush1.msra.mxu0 0.0
  %4410 = vmatprep.subr.mxu0 0.0
  %4411 = vmatpush1.msra.mxu0 0.0
  %4412 = vmatprep.subr.mxu0 0.0
  %4413 = vmatpush1.msra.mxu0 0.0
  %4414 = vmatprep.subr.mxu0 0.0
  %4415 = vmatpush1.msra.mxu0 0.0
  %4416 = vmatprep.subr.mxu0 0.0
  %4417 = vmatpush1.msra.mxu0 0.0
  %4418 = vmatprep.subr.mxu0 0.0
  %4419 = vmatpush1.msra.mxu0 %v1231
  %4420 = vmatprep.subr.mxu0 0.0
  %4421 = vmatpush1.msra.mxu0 %v1230
  %4422 = vmatprep.subr.mxu0 0.0
  %4423 = vmatpush1.msra.mxu0 %v1229
  %4424 = vmatprep.subr.mxu0 0.0
  %4425 = vmatpush1.msra.mxu0 %v1228
  %4426 = vmatprep.subr.mxu0 0.0
  %4427 = vmatpush2.msra.mxu0 0.0
  %4428 = vmatprep.subr.mxu0 0.0
  %4429 = vmatpush2.msra.mxu0 0.0
  %4430 = vmatprep.subr.mxu0 0.0
  %4431 = vmatpush2.msra.mxu0 0.0
  %4432 = vmatprep.subr.mxu0 0.0
  %4433 = vmatpush2.msra.mxu0 0.0
  %4434 = vmatprep.subr.mxu0 0.0
  %4435 = vmatpush2.msra.mxu0 0.0
  %4436 = vmatprep.subr.mxu0 0.0
  %4437 = vmatpush2.msra.mxu0 0.0
  %4438 = vmatprep.subr.mxu0 0.0
  %4439 = vmatpush2.msra.mxu0 0.0
  %4440 = vmatprep.subr.mxu0 0.0
  %4441 = vmatpush2.msra.mxu0 0.0
  %4442 = vmatprep.subr.mxu0 0.0
  %4443 = vmatpush2.msra.mxu0 0.0
  %4444 = vmatprep.subr.mxu0 0.0
  %4445 = vmatpush2.msra.mxu0 0.0
  %4446 = vmatprep.subr.mxu0 0.0
  %4447 = vmatpush2.msra.mxu0 0.0
  %4448 = vmatprep.subr.mxu0 0.0
  %4449 = vmatpush2.msra.mxu0 0.0
  %4450 = vmatprep.subr.mxu0 0.0
  %4451 = vmatpush2.msra.mxu0 0.0
  %4452 = vmatprep.subr.mxu0 0.0
  %4453 = vmatpush2.msra.mxu0 0.0
  %4454 = vmatprep.subr.mxu0 0.0
  %4455 = vmatpush2.msra.mxu0 0.0
  %4456 = vmatprep.subr.mxu0 0.0
  %4457 = vmatpush2.msra.mxu0 0.0
  %4458 = vmatprep.mubr.f32.mxu0 0.0
  %4459 = vmatmul.mubr.f32.gmra.mxu0 %v4392
  %v4460 = vpop.f32.mrf.mxu0
  %v4461 = vadd.f32 0.0, %v4460
  %v4462 = vpop.f32.mrf.mxu0
  %4463 = vdwg.mxu0
  %v4465 = vsel %vm239, %v1051, 0
  %4467 = vmatprep.subr.mxu0 0.0
  %4468 = vmatpush1.msra.mxu0 0.0
  %4469 = vmatprep.subr.mxu0 0.0
  %4470 = vmatpush1.msra.mxu0 0.0
  %4471 = vmatprep.subr.mxu0 0.0
  %4472 = vmatpush1.msra.mxu0 0.0
  %4473 = vmatprep.subr.mxu0 0.0
  %4474 = vmatpush1.msra.mxu0 0.0
  %4475 = vmatprep.subr.mxu0 0.0
  %4476 = vmatpush1.msra.mxu0 0.0
  %4477 = vmatprep.subr.mxu0 0.0
  %4478 = vmatpush1.msra.mxu0 0.0
  %4479 = vmatprep.subr.mxu0 0.0
  %4480 = vmatpush1.msra.mxu0 0.0
  %4481 = vmatprep.subr.mxu0 0.0
  %4482 = vmatpush1.msra.mxu0 0.0
  %4483 = vmatprep.subr.mxu0 0.0
  %4484 = vmatpush1.msra.mxu0 0.0
  %4485 = vmatprep.subr.mxu0 0.0
  %4486 = vmatpush1.msra.mxu0 0.0
  %4487 = vmatprep.subr.mxu0 0.0
  %4488 = vmatpush1.msra.mxu0 0.0
  %4489 = vmatprep.subr.mxu0 0.0
  %4490 = vmatpush1.msra.mxu0 0.0
  %4491 = vmatprep.subr.mxu0 0.0
  %4492 = vmatpush1.msra.mxu0 %v1235
  %4493 = vmatprep.subr.mxu0 0.0
  %4494 = vmatpush1.msra.mxu0 %v1234
  %4495 = vmatprep.subr.mxu0 0.0
  %4496 = vmatpush1.msra.mxu0 %v1233
  %4497 = vmatprep.subr.mxu0 0.0
  %4498 = vmatpush1.msra.mxu0 %v1232
  %4499 = vmatprep.subr.mxu0 0.0
  %4500 = vmatpush2.msra.mxu0 0.0
  %4501 = vmatprep.subr.mxu0 0.0
  %4502 = vmatpush2.msra.mxu0 0.0
  %4503 = vmatprep.subr.mxu0 0.0
  %4504 = vmatpush2.msra.mxu0 0.0
  %4505 = vmatprep.subr.mxu0 0.0
  %4506 = vmatpush2.msra.mxu0 0.0
  %4507 = vmatprep.subr.mxu0 0.0
  %4508 = vmatpush2.msra.mxu0 0.0
  %4509 = vmatprep.subr.mxu0 0.0
  %4510 = vmatpush2.msra.mxu0 0.0
  %4511 = vmatprep.subr.mxu0 0.0
  %4512 = vmatpush2.msra.mxu0 0.0
  %4513 = vmatprep.subr.mxu0 0.0
  %4514 = vmatpush2.msra.mxu0 0.0
  %4515 = vmatprep.subr.mxu0 0.0
  %4516 = vmatpush2.msra.mxu0 0.0
  %4517 = vmatprep.subr.mxu0 0.0
  %4518 = vmatpush2.msra.mxu0 0.0
  %4519 = vmatprep.subr.mxu0 0.0
  %4520 = vmatpush2.msra.mxu0 0.0
  %4521 = vmatprep.subr.mxu0 0.0
  %4522 = vmatpush2.msra.mxu0 0.0
  %4523 = vmatprep.subr.mxu0 0.0
  %4524 = vmatpush2.msra.mxu0 0.0
  %4525 = vmatprep.subr.mxu0 0.0
  %4526 = vmatpush2.msra.mxu0 0.0
  %4527 = vmatprep.subr.mxu0 0.0
  %4528 = vmatpush2.msra.mxu0 0.0
  %4529 = vmatprep.subr.mxu0 0.0
  %4530 = vmatpush2.msra.mxu0 0.0
  %4531 = vmatprep.mubr.f32.mxu0 0.0
  %4532 = vmatmul.mubr.f32.gmra.mxu0 %v4465
  %v4533 = vpop.f32.mrf.mxu0
  %v4534 = vadd.f32 0.0, %v4533
  %v4535 = vpop.f32.mrf.mxu0
  %4536 = vdwg.mxu0
  %v4538 = vsel %vm239, %v1052, 0
  %4540 = vmatprep.subr.mxu0 0.0
  %4541 = vmatpush1.msra.mxu0 0.0
  %4542 = vmatprep.subr.mxu0 0.0
  %4543 = vmatpush1.msra.mxu0 0.0
  %4544 = vmatprep.subr.mxu0 0.0
  %4545 = vmatpush1.msra.mxu0 0.0
  %4546 = vmatprep.subr.mxu0 0.0
  %4547 = vmatpush1.msra.mxu0 0.0
  %4548 = vmatprep.subr.mxu0 0.0
  %4549 = vmatpush1.msra.mxu0 0.0
  %4550 = vmatprep.subr.mxu0 0.0
  %4551 = vmatpush1.msra.mxu0 0.0
  %4552 = vmatprep.subr.mxu0 0.0
  %4553 = vmatpush1.msra.mxu0 0.0
  %4554 = vmatprep.subr.mxu0 0.0
  %4555 = vmatpush1.msra.mxu0 0.0
  %4556 = vmatprep.subr.mxu0 0.0
  %4557 = vmatpush1.msra.mxu0 0.0
  %4558 = vmatprep.subr.mxu0 0.0
  %4559 = vmatpush1.msra.mxu0 0.0
  %4560 = vmatprep.subr.mxu0 0.0
  %4561 = vmatpush1.msra.mxu0 0.0
  %4562 = vmatprep.subr.mxu0 0.0
  %4563 = vmatpush1.msra.mxu0 0.0
  %4564 = vmatprep.subr.mxu0 0.0
  %4565 = vmatpush1.msra.mxu0 %v1239
  %4566 = vmatprep.subr.mxu0 0.0
  %4567 = vmatpush1.msra.mxu0 %v1238
  %4568 = vmatprep.subr.mxu0 0.0
  %4569 = vmatpush1.msra.mxu0 %v1237
  %4570 = vmatprep.subr.mxu0 0.0
  %4571 = vmatpush1.msra.mxu0 %v1236
  %4572 = vmatprep.subr.mxu0 0.0
  %4573 = vmatpush2.msra.mxu0 0.0
  %4574 = vmatprep.subr.mxu0 0.0
  %4575 = vmatpush2.msra.mxu0 0.0
  %4576 = vmatprep.subr.mxu0 0.0
  %4577 = vmatpush2.msra.mxu0 0.0
  %4578 = vmatprep.subr.mxu0 0.0
  %4579 = vmatpush2.msra.mxu0 0.0
  %4580 = vmatprep.subr.mxu0 0.0
  %4581 = vmatpush2.msra.mxu0 0.0
  %4582 = vmatprep.subr.mxu0 0.0
  %4583 = vmatpush2.msra.mxu0 0.0
  %4584 = vmatprep.subr.mxu0 0.0
  %4585 = vmatpush2.msra.mxu0 0.0
  %4586 = vmatprep.subr.mxu0 0.0
  %4587 = vmatpush2.msra.mxu0 0.0
  %4588 = vmatprep.subr.mxu0 0.0
  %4589 = vmatpush2.msra.mxu0 0.0
  %4590 = vmatprep.subr.mxu0 0.0
  %4591 = vmatpush2.msra.mxu0 0.0
  %4592 = vmatprep.subr.mxu0 0.0
  %4593 = vmatpush2.msra.mxu0 0.0
  %4594 = vmatprep.subr.mxu0 0.0
  %4595 = vmatpush2.msra.mxu0 0.0
  %4596 = vmatprep.subr.mxu0 0.0
  %4597 = vmatpush2.msra.mxu0 0.0
  %4598 = vmatprep.subr.mxu0 0.0
  %4599 = vmatpush2.msra.mxu0 0.0
  %4600 = vmatprep.subr.mxu0 0.0
  %4601 = vmatpush2.msra.mxu0 0.0
  %4602 = vmatprep.subr.mxu0 0.0
  %4603 = vmatpush2.msra.mxu0 0.0
  %4604 = vmatprep.mubr.f32.mxu0 0.0
  %4605 = vmatmul.mubr.f32.gmra.mxu0 %v4538
  %v4606 = vpop.f32.mrf.mxu0
  %v4607 = vadd.f32 0.0, %v4606
  %v4608 = vpop.f32.mrf.mxu0
  %4609 = vdwg.mxu0
  %v4611 = vsel %vm239, %v1053, 0
  %4613 = vmatprep.subr.mxu0 0.0
  %4614 = vmatpush1.msra.mxu0 0.0
  %4615 = vmatprep.subr.mxu0 0.0
  %4616 = vmatpush1.msra.mxu0 0.0
  %4617 = vmatprep.subr.mxu0 0.0
  %4618 = vmatpush1.msra.mxu0 0.0
  %4619 = vmatprep.subr.mxu0 0.0
  %4620 = vmatpush1.msra.mxu0 0.0
  %4621 = vmatprep.subr.mxu0 0.0
  %4622 = vmatpush1.msra.mxu0 0.0
  %4623 = vmatprep.subr.mxu0 0.0
  %4624 = vmatpush1.msra.mxu0 0.0
  %4625 = vmatprep.subr.mxu0 0.0
  %4626 = vmatpush1.msra.mxu0 0.0
  %4627 = vmatprep.subr.mxu0 0.0
  %4628 = vmatpush1.msra.mxu0 0.0
  %4629 = vmatprep.subr.mxu0 0.0
  %4630 = vmatpush1.msra.mxu0 0.0
  %4631 = vmatprep.subr.mxu0 0.0
  %4632 = vmatpush1.msra.mxu0 0.0
  %4633 = vmatprep.subr.mxu0 0.0
  %4634 = vmatpush1.msra.mxu0 0.0
  %4635 = vmatprep.subr.mxu0 0.0
  %4636 = vmatpush1.msra.mxu0 0.0
  %4637 = vmatprep.subr.mxu0 0.0
  %4638 = vmatpush1.msra.mxu0 %v1243
  %4639 = vmatprep.subr.mxu0 0.0
  %4640 = vmatpush1.msra.mxu0 %v1242
  %4641 = vmatprep.subr.mxu0 0.0
  %4642 = vmatpush1.msra.mxu0 %v1241
  %4643 = vmatprep.subr.mxu0 0.0
  %4644 = vmatpush1.msra.mxu0 %v1240
  %4645 = vmatprep.subr.mxu0 0.0
  %4646 = vmatpush2.msra.mxu0 0.0
  %4647 = vmatprep.subr.mxu0 0.0
  %4648 = vmatpush2.msra.mxu0 0.0
  %4649 = vmatprep.subr.mxu0 0.0
  %4650 = vmatpush2.msra.mxu0 0.0
  %4651 = vmatprep.subr.mxu0 0.0
  %4652 = vmatpush2.msra.mxu0 0.0
  %4653 = vmatprep.subr.mxu0 0.0
  %4654 = vmatpush2.msra.mxu0 0.0
  %4655 = vmatprep.subr.mxu0 0.0
  %4656 = vmatpush2.msra.mxu0 0.0
  %4657 = vmatprep.subr.mxu0 0.0
  %4658 = vmatpush2.msra.mxu0 0.0
  %4659 = vmatprep.subr.mxu0 0.0
  %4660 = vmatpush2.msra.mxu0 0.0
  %4661 = vmatprep.subr.mxu0 0.0
  %4662 = vmatpush2.msra.mxu0 0.0
  %4663 = vmatprep.subr.mxu0 0.0
  %4664 = vmatpush2.msra.mxu0 0.0
  %4665 = vmatprep.subr.mxu0 0.0
  %4666 = vmatpush2.msra.mxu0 0.0
  %4667 = vmatprep.subr.mxu0 0.0
  %4668 = vmatpush2.msra.mxu0 0.0
  %4669 = vmatprep.subr.mxu0 0.0
  %4670 = vmatpush2.msra.mxu0 0.0
  %4671 = vmatprep.subr.mxu0 0.0
  %4672 = vmatpush2.msra.mxu0 0.0
  %4673 = vmatprep.subr.mxu0 0.0
  %4674 = vmatpush2.msra.mxu0 0.0
  %4675 = vmatprep.subr.mxu0 0.0
  %4676 = vmatpush2.msra.mxu0 0.0
  %4677 = vmatprep.mubr.f32.mxu0 0.0
  %4678 = vmatmul.mubr.f32.gmra.mxu0 %v4611
  %v4679 = vpop.f32.mrf.mxu0
  %v4680 = vadd.f32 0.0, %v4679
  %v4681 = vpop.f32.mrf.mxu0
  %4682 = vdwg.mxu0
  %v4684 = vsel %vm239, %v1054, 0
  %4686 = vmatprep.subr.mxu0 0.0
  %4687 = vmatpush1.msra.mxu0 0.0
  %4688 = vmatprep.subr.mxu0 0.0
  %4689 = vmatpush1.msra.mxu0 0.0
  %4690 = vmatprep.subr.mxu0 0.0
  %4691 = vmatpush1.msra.mxu0 0.0
  %4692 = vmatprep.subr.mxu0 0.0
  %4693 = vmatpush1.msra.mxu0 0.0
  %4694 = vmatprep.subr.mxu0 0.0
  %4695 = vmatpush1.msra.mxu0 0.0
  %4696 = vmatprep.subr.mxu0 0.0
  %4697 = vmatpush1.msra.mxu0 0.0
  %4698 = vmatprep.subr.mxu0 0.0
  %4699 = vmatpush1.msra.mxu0 0.0
  %4700 = vmatprep.subr.mxu0 0.0
  %4701 = vmatpush1.msra.mxu0 0.0
  %4702 = vmatprep.subr.mxu0 0.0
  %4703 = vmatpush1.msra.mxu0 0.0
  %4704 = vmatprep.subr.mxu0 0.0
  %4705 = vmatpush1.msra.mxu0 0.0
  %4706 = vmatprep.subr.mxu0 0.0
  %4707 = vmatpush1.msra.mxu0 0.0
  %4708 = vmatprep.subr.mxu0 0.0
  %4709 = vmatpush1.msra.mxu0 0.0
  %4710 = vmatprep.subr.mxu0 0.0
  %4711 = vmatpush1.msra.mxu0 %v1247
  %4712 = vmatprep.subr.mxu0 0.0
  %4713 = vmatpush1.msra.mxu0 %v1246
  %4714 = vmatprep.subr.mxu0 0.0
  %4715 = vmatpush1.msra.mxu0 %v1245
  %4716 = vmatprep.subr.mxu0 0.0
  %4717 = vmatpush1.msra.mxu0 %v1244
  %4718 = vmatprep.subr.mxu0 0.0
  %4719 = vmatpush2.msra.mxu0 0.0
  %4720 = vmatprep.subr.mxu0 0.0
  %4721 = vmatpush2.msra.mxu0 0.0
  %4722 = vmatprep.subr.mxu0 0.0
  %4723 = vmatpush2.msra.mxu0 0.0
  %4724 = vmatprep.subr.mxu0 0.0
  %4725 = vmatpush2.msra.mxu0 0.0
  %4726 = vmatprep.subr.mxu0 0.0
  %4727 = vmatpush2.msra.mxu0 0.0
  %4728 = vmatprep.subr.mxu0 0.0
  %4729 = vmatpush2.msra.mxu0 0.0
  %4730 = vmatprep.subr.mxu0 0.0
  %4731 = vmatpush2.msra.mxu0 0.0
  %4732 = vmatprep.subr.mxu0 0.0
  %4733 = vmatpush2.msra.mxu0 0.0
  %4734 = vmatprep.subr.mxu0 0.0
  %4735 = vmatpush2.msra.mxu0 0.0
  %4736 = vmatprep.subr.mxu0 0.0
  %4737 = vmatpush2.msra.mxu0 0.0
  %4738 = vmatprep.subr.mxu0 0.0
  %4739 = vmatpush2.msra.mxu0 0.0
  %4740 = vmatprep.subr.mxu0 0.0
  %4741 = vmatpush2.msra.mxu0 0.0
  %4742 = vmatprep.subr.mxu0 0.0
  %4743 = vmatpush2.msra.mxu0 0.0
  %4744 = vmatprep.subr.mxu0 0.0
  %4745 = vmatpush2.msra.mxu0 0.0
  %4746 = vmatprep.subr.mxu0 0.0
  %4747 = vmatpush2.msra.mxu0 0.0
  %4748 = vmatprep.subr.mxu0 0.0
  %4749 = vmatpush2.msra.mxu0 0.0
  %4750 = vmatprep.mubr.f32.mxu0 0.0
  %4751 = vmatmul.mubr.f32.gmra.mxu0 %v4684
  %v4752 = vpop.f32.mrf.mxu0
  %v4753 = vadd.f32 0.0, %v4752
  %v4754 = vpop.f32.mrf.mxu0
  %4755 = vdwg.mxu0
  %v4757 = vsel %vm239, %v1055, 0
  %4759 = vmatprep.subr.mxu0 0.0
  %4760 = vmatpush1.msra.mxu0 0.0
  %4761 = vmatprep.subr.mxu0 0.0
  %4762 = vmatpush1.msra.mxu0 0.0
  %4763 = vmatprep.subr.mxu0 0.0
  %4764 = vmatpush1.msra.mxu0 0.0
  %4765 = vmatprep.subr.mxu0 0.0
  %4766 = vmatpush1.msra.mxu0 0.0
  %4767 = vmatprep.subr.mxu0 0.0
  %4768 = vmatpush1.msra.mxu0 0.0
  %4769 = vmatprep.subr.mxu0 0.0
  %4770 = vmatpush1.msra.mxu0 0.0
  %4771 = vmatprep.subr.mxu0 0.0
  %4772 = vmatpush1.msra.mxu0 0.0
  %4773 = vmatprep.subr.mxu0 0.0
  %4774 = vmatpush1.msra.mxu0 0.0
  %4775 = vmatprep.subr.mxu0 0.0
  %4776 = vmatpush1.msra.mxu0 0.0
  %4777 = vmatprep.subr.mxu0 0.0
  %4778 = vmatpush1.msra.mxu0 0.0
  %4779 = vmatprep.subr.mxu0 0.0
  %4780 = vmatpush1.msra.mxu0 0.0
  %4781 = vmatprep.subr.mxu0 0.0
  %4782 = vmatpush1.msra.mxu0 0.0
  %4783 = vmatprep.subr.mxu0 0.0
  %4784 = vmatpush1.msra.mxu0 %v1251
  %4785 = vmatprep.subr.mxu0 0.0
  %4786 = vmatpush1.msra.mxu0 %v1250
  %4787 = vmatprep.subr.mxu0 0.0
  %4788 = vmatpush1.msra.mxu0 %v1249
  %4789 = vmatprep.subr.mxu0 0.0
  %4790 = vmatpush1.msra.mxu0 %v1248
  %4791 = vmatprep.subr.mxu0 0.0
  %4792 = vmatpush2.msra.mxu0 0.0
  %4793 = vmatprep.subr.mxu0 0.0
  %4794 = vmatpush2.msra.mxu0 0.0
  %4795 = vmatprep.subr.mxu0 0.0
  %4796 = vmatpush2.msra.mxu0 0.0
  %4797 = vmatprep.subr.mxu0 0.0
  %4798 = vmatpush2.msra.mxu0 0.0
  %4799 = vmatprep.subr.mxu0 0.0
  %4800 = vmatpush2.msra.mxu0 0.0
  %4801 = vmatprep.subr.mxu0 0.0
  %4802 = vmatpush2.msra.mxu0 0.0
  %4803 = vmatprep.subr.mxu0 0.0
  %4804 = vmatpush2.msra.mxu0 0.0
  %4805 = vmatprep.subr.mxu0 0.0
  %4806 = vmatpush2.msra.mxu0 0.0
  %4807 = vmatprep.subr.mxu0 0.0
  %4808 = vmatpush2.msra.mxu0 0.0
  %4809 = vmatprep.subr.mxu0 0.0
  %4810 = vmatpush2.msra.mxu0 0.0
  %4811 = vmatprep.subr.mxu0 0.0
  %4812 = vmatpush2.msra.mxu0 0.0
  %4813 = vmatprep.subr.mxu0 0.0
  %4814 = vmatpush2.msra.mxu0 0.0
  %4815 = vmatprep.subr.mxu0 0.0
  %4816 = vmatpush2.msra.mxu0 0.0
  %4817 = vmatprep.subr.mxu0 0.0
  %4818 = vmatpush2.msra.mxu0 0.0
  %4819 = vmatprep.subr.mxu0 0.0
  %4820 = vmatpush2.msra.mxu0 0.0
  %4821 = vmatprep.subr.mxu0 0.0
  %4822 = vmatpush2.msra.mxu0 0.0
  %4823 = vmatprep.mubr.f32.mxu0 0.0
  %4824 = vmatmul.mubr.f32.gmra.mxu0 %v4757
  %v4825 = vpop.f32.mrf.mxu0
  %v4826 = vadd.f32 0.0, %v4825
  %v4827 = vpop.f32.mrf.mxu0
  %4828 = vdwg.mxu0
  %v4829 = vsel %vm239, %v1322, 0.0
  %v4830 = vsel %vm239, %v1395, 0.0
  %v4831 = vadd.f32 %v4829, %v4830
  %v4832 = vsel %vm239, %v1468, 0.0
  %v4833 = vadd.f32 %v4831, %v4832
  %v4834 = vsel %vm239, %v1541, 0.0
  %v4835 = vadd.f32 %v4833, %v4834
  %v4836 = vsel %vm239, %v1614, 0.0
  %v4837 = vadd.f32 %v4835, %v4836
  %v4838 = vsel %vm239, %v1687, 0.0
  %v4839 = vadd.f32 %v4837, %v4838
  %v4840 = vsel %vm239, %v1760, 0.0
  %v4841 = vadd.f32 %v4839, %v4840
  %v4842 = vsel %vm239, %v1833, 0.0
  %v4843 = vadd.f32 %v4841, %v4842
  %v4844 = vsel %vm239, %v1906, 0.0
  %v4845 = vadd.f32 %v4843, %v4844
  %v4846 = vsel %vm239, %v1979, 0.0
  %v4847 = vadd.f32 %v4845, %v4846
  %v4848 = vsel %vm239, %v2052, 0.0
  %v4849 = vadd.f32 %v4847, %v4848
  %v4850 = vsel %vm239, %v2125, 0.0
  %v4851 = vadd.f32 %v4849, %v4850
  %v4852 = vsel %vm239, %v2198, 0.0
  %v4853 = vadd.f32 %v4851, %v4852
  %v4854 = vsel %vm239, %v2271, 0.0
  %v4855 = vadd.f32 %v4853, %v4854
  %v4856 = vsel %vm239, %v2344, 0.0
  %v4857 = vadd.f32 %v4855, %v4856
  %v4858 = vsel %vm239, %v2417, 0.0
  %v4859 = vadd.f32 %v4857, %v4858
  %v4860 = vsel %vm239, %v2490, 0.0
  %v4861 = vadd.f32 %v4859, %v4860
  %v4862 = vsel %vm239, %v2563, 0.0
  %v4863 = vadd.f32 %v4861, %v4862
  %v4864 = vsel %vm239, %v2636, 0.0
  %v4865 = vadd.f32 %v4863, %v4864
  %v4866 = vsel %vm239, %v2709, 0.0
  %v4867 = vadd.f32 %v4865, %v4866
  %v4868 = vsel %vm239, %v2782, 0.0
  %v4869 = vadd.f32 %v4867, %v4868
  %v4870 = vsel %vm239, %v2855, 0.0
  %v4871 = vadd.f32 %v4869, %v4870
  %v4872 = vsel %vm239, %v2928, 0.0
  %v4873 = vadd.f32 %v4871, %v4872
  %v4874 = vsel %vm239, %v3001, 0.0
  %v4875 = vadd.f32 %v4873, %v4874
  %v4876 = vsel %vm239, %v3074, 0.0
  %v4877 = vadd.f32 %v4875, %v4876
  %v4878 = vsel %vm239, %v3147, 0.0
  %v4879 = vadd.f32 %v4877, %v4878
  %v4880 = vsel %vm239, %v3220, 0.0
  %v4881 = vadd.f32 %v4879, %v4880
  %v4882 = vsel %vm239, %v3293, 0.0
  %v4883 = vadd.f32 %v4881, %v4882
  %v4884 = vsel %vm239, %v3366, 0.0
  %v4885 = vadd.f32 %v4883, %v4884
  %v4886 = vsel %vm239, %v3439, 0.0
  %v4887 = vadd.f32 %v4885, %v4886
  %v4888 = vsel %vm239, %v3512, 0.0
  %v4889 = vadd.f32 %v4887, %v4888
  %v4890 = vsel %vm239, %v3585, 0.0
  %v4891 = vadd.f32 %v4889, %v4890
  %v4892 = vsel %vm239, %v3658, 0.0
  %v4893 = vadd.f32 %v4891, %v4892
  %v4894 = vsel %vm239, %v3731, 0.0
  %v4895 = vadd.f32 %v4893, %v4894
  %v4896 = vsel %vm239, %v3804, 0.0
  %v4897 = vadd.f32 %v4895, %v4896
  %v4898 = vsel %vm239, %v3877, 0.0
  %v4899 = vadd.f32 %v4897, %v4898
  %v4900 = vsel %vm239, %v3950, 0.0
  %v4901 = vadd.f32 %v4899, %v4900
  %v4902 = vsel %vm239, %v4023, 0.0
  %v4903 = vadd.f32 %v4901, %v4902
  %v4904 = vsel %vm239, %v4096, 0.0
  %v4905 = vadd.f32 %v4903, %v4904
  %v4906 = vsel %vm239, %v4169, 0.0
  %v4907 = vadd.f32 %v4905, %v4906
  %v4908 = vsel %vm239, %v4242, 0.0
  %v4909 = vadd.f32 %v4907, %v4908
  %v4910 = vsel %vm239, %v4315, 0.0
  %v4911 = vadd.f32 %v4909, %v4910
  %v4912 = vsel %vm239, %v4388, 0.0
  %v4913 = vadd.f32 %v4911, %v4912
  %v4914 = vsel %vm239, %v4461, 0.0
  %v4915 = vadd.f32 %v4913, %v4914
  %v4916 = vsel %vm239, %v4534, 0.0
  %v4917 = vadd.f32 %v4915, %v4916
  %v4918 = vsel %vm239, %v4607, 0.0
  %v4919 = vadd.f32 %v4917, %v4918
  %v4920 = vsel %vm239, %v4680, 0.0
  %v4921 = vadd.f32 %v4919, %v4920
  %v4922 = vsel %vm239, %v4753, 0.0
  %v4923 = vadd.f32 %v4921, %v4922
  %v4924 = vsel %vm239, %v4826, 0.0
  %v4925 = vadd.f32 %v4923, %v4924
  %v4926 = vld [vmem:[%s7] sm:$0xff]
  %v4927 = vld [vmem:[%s7 + $0x8] sm:$0xff]
  %v4928 = vld [vmem:[%s7 + $0x10] sm:$0xff]
  %v4929 = vld [vmem:[%s7 + $0x18] sm:$0xff]
  %v4930 = vld [vmem:[%s7 + $0x20] sm:$0x1]
  %v4931 = vld [vmem:[%s2] sm:$0xff]
  %v4932 = vld [vmem:[%s5] sm:$0xf]
  %v4933 = vld [vmem:[%s6] sm:$0x1]
  %v4935 = vlaneseq
  %v4936 = vshrl.u32 %v4935, 7
  %v4937 = vsub.s32 0, %v4936
  %v4938 = vrot.slane %v4933, %v4937
  %vm4940 = vcmask 31744
  %v4942 = vsel %vm4940, %v4931, 0
  %vm4944 = vcmask 1043456
  %v4946 = vsel %vm4944, %v4932, 0
  %4948 = vmatprep.subr.mxu0 0.0
  %4949 = vmatpush1.msra.mxu0 0.0
  %4950 = vmatprep.subr.mxu0 0.0
  %4951 = vmatpush1.msra.mxu0 0.0
  %4952 = vmatprep.subr.mxu0 0.0
  %4953 = vmatpush1.msra.mxu0 0.0
  %4954 = vmatprep.subr.mxu0 0.0
  %4955 = vmatpush1.msra.mxu0 0.0
  %4956 = vmatprep.subr.mxu0 0.0
  %4957 = vmatpush1.msra.mxu0 0.0
  %4958 = vmatprep.subr.mxu0 0.0
  %4959 = vmatpush1.msra.mxu0 0.0
  %4960 = vmatprep.subr.mxu0 0.0
  %4961 = vmatpush1.msra.mxu0 0.0
  %4962 = vmatprep.subr.mxu0 0.0
  %4963 = vmatpush1.msra.mxu0 0.0
  %4964 = vmatprep.subr.mxu0 0.0
  %4965 = vmatpush1.msra.mxu0 0.0
  %4966 = vmatprep.subr.mxu0 0.0
  %4967 = vmatpush1.msra.mxu0 0.0
  %4968 = vmatprep.subr.mxu0 0.0
  %4969 = vmatpush1.msra.mxu0 0.0
  %4970 = vmatprep.subr.mxu0 0.0
  %4971 = vmatpush1.msra.mxu0 0.0
  %4972 = vmatprep.subr.mxu0 0.0
  %4973 = vmatpush1.msra.mxu0 0.0
  %4974 = vmatprep.subr.mxu0 0.0
  %4975 = vmatpush1.msra.mxu0 0.0
  %4976 = vmatprep.subr.mxu0 0.0
  %4977 = vmatpush1.msra.mxu0 0.0
  %4978 = vmatprep.subr.mxu0 0.0
  %4979 = vmatpush1.msra.mxu0 %v4946
  %4980 = vmatprep.subr.mxu0 0.0
  %4981 = vmatpush2.msra.mxu0 0.0
  %4982 = vmatprep.subr.mxu0 0.0
  %4983 = vmatpush2.msra.mxu0 0.0
  %4984 = vmatprep.subr.mxu0 0.0
  %4985 = vmatpush2.msra.mxu0 0.0
  %4986 = vmatprep.subr.mxu0 0.0
  %4987 = vmatpush2.msra.mxu0 0.0
  %4988 = vmatprep.subr.mxu0 0.0
  %4989 = vmatpush2.msra.mxu0 0.0
  %4990 = vmatprep.subr.mxu0 0.0
  %4991 = vmatpush2.msra.mxu0 0.0
  %4992 = vmatprep.subr.mxu0 0.0
  %4993 = vmatpush2.msra.mxu0 0.0
  %4994 = vmatprep.subr.mxu0 0.0
  %4995 = vmatpush2.msra.mxu0 0.0
  %4996 = vmatprep.subr.mxu0 0.0
  %4997 = vmatpush2.msra.mxu0 0.0
  %4998 = vmatprep.subr.mxu0 0.0
  %4999 = vmatpush2.msra.mxu0 0.0
  %5000 = vmatprep.subr.mxu0 0.0
  %5001 = vmatpush2.msra.mxu0 0.0
  %5002 = vmatprep.subr.mxu0 0.0
  %5003 = vmatpush2.msra.mxu0 0.0
  %5004 = vmatprep.subr.mxu0 0.0
  %5005 = vmatpush2.msra.mxu0 0.0
  %5006 = vmatprep.subr.mxu0 0.0
  %5007 = vmatpush2.msra.mxu0 0.0
  %5008 = vmatprep.subr.mxu0 0.0
  %5009 = vmatpush2.msra.mxu0 0.0
  %5010 = vmatprep.subr.mxu0 0.0
  %5011 = vmatpush2.msra.mxu0 0.0
  %5012 = vmatprep.mubr.f32.mxu0 0.0
  %5013 = vmatmul.mubr.f32.gmra.mxu0 %v4942
  %v5014 = vpop.f32.mrf.mxu0
  %v5015 = vadd.f32 %v4938, %v5014
  %v5016 = vpop.f32.mrf.mxu0
  %5017 = vdwg.mxu0
  %v5018 = vmax.f32 %v5015, 0.0
  %v5019 = vld [vmem:[%s9] sm:$0x1]
  %v5021 = vlaneseq
  %v5022 = vshrl.u32 %v5021, 7
  %v5023 = vsub.s32 0, %v5022
  %v5024 = vrot.slane %v5019, %v5023
  %v5026 = vadd.f32 %v4925, %v5024
  %v5027 = vld [vmem:[%s1] sm:$0xff]
  %5029 = vset.pattern.permute.xlu0 0
  %5030 = vperm.xlu0 %5029, %v5027
  %v5031 = vpop.permute.xlu0 %5030
  %v5033 = vlaneseq
  %v5034 = vshrl.u32 %v5033, 7
  %v5035 = vsub.s32 0, %v5034
  %v5036 = vrot.slane %v4926, %v5035
  %v5037 = vmul.f32 %v5031, %v5036
  %v5038 = vadd.f32 %v5026, %v5037
  %vm5039 = vcmask 269312
  %v5041 = vsel %vm5039, %v5018, 0
  %vm5043 = vcmask 1040384
  %v5045 = vsel %vm5043, %v4930, 0
  %5047 = vmatprep.subr.mxu0 0.0
  %5048 = vmatpush1.msra.mxu0 0.0
  %5049 = vmatprep.subr.mxu0 0.0
  %5050 = vmatpush1.msra.mxu0 0.0
  %5051 = vmatprep.subr.mxu0 0.0
  %5052 = vmatpush1.msra.mxu0 0.0
  %5053 = vmatprep.subr.mxu0 0.0
  %5054 = vmatpush1.msra.mxu0 0.0
  %5055 = vmatprep.subr.mxu0 0.0
  %5056 = vmatpush1.msra.mxu0 0.0
  %5057 = vmatprep.subr.mxu0 0.0
  %5058 = vmatpush1.msra.mxu0 0.0
  %5059 = vmatprep.subr.mxu0 0.0
  %5060 = vmatpush1.msra.mxu0 0.0
  %5061 = vmatprep.subr.mxu0 0.0
  %5062 = vmatpush1.msra.mxu0 0.0
  %5063 = vmatprep.subr.mxu0 0.0
  %5064 = vmatpush1.msra.mxu0 0.0
  %5065 = vmatprep.subr.mxu0 0.0
  %5066 = vmatpush1.msra.mxu0 0.0
  %5067 = vmatprep.subr.mxu0 0.0
  %5068 = vmatpush1.msra.mxu0 0.0
  %5069 = vmatprep.subr.mxu0 0.0
  %5070 = vmatpush1.msra.mxu0 %v5045
  %5071 = vmatprep.subr.mxu0 0.0
  %5072 = vmatpush1.msra.mxu0 %v4929
  %5073 = vmatprep.subr.mxu0 0.0
  %5074 = vmatpush1.msra.mxu0 %v4928
  %5075 = vmatprep.subr.mxu0 0.0
  %5076 = vmatpush1.msra.mxu0 %v4927
  %5077 = vmatprep.subr.mxu0 0.0
  %5078 = vmatpush1.msra.mxu0 %v4926
  %5079 = vmatprep.subr.mxu0 0.0
  %5080 = vmatpush2.msra.mxu0 0.0
  %5081 = vmatprep.subr.mxu0 0.0
  %5082 = vmatpush2.msra.mxu0 0.0
  %5083 = vmatprep.subr.mxu0 0.0
  %5084 = vmatpush2.msra.mxu0 0.0
  %5085 = vmatprep.subr.mxu0 0.0
  %5086 = vmatpush2.msra.mxu0 0.0
  %5087 = vmatprep.subr.mxu0 0.0
  %5088 = vmatpush2.msra.mxu0 0.0
  %5089 = vmatprep.subr.mxu0 0.0
  %5090 = vmatpush2.msra.mxu0 0.0
  %5091 = vmatprep.subr.mxu0 0.0
  %5092 = vmatpush2.msra.mxu0 0.0
  %5093 = vmatprep.subr.mxu0 0.0
  %5094 = vmatpush2.msra.mxu0 0.0
  %5095 = vmatprep.subr.mxu0 0.0
  %5096 = vmatpush2.msra.mxu0 0.0
  %5097 = vmatprep.subr.mxu0 0.0
  %5098 = vmatpush2.msra.mxu0 0.0
  %5099 = vmatprep.subr.mxu0 0.0
  %5100 = vmatpush2.msra.mxu0 0.0
  %5101 = vmatprep.subr.mxu0 0.0
  %5102 = vmatpush2.msra.mxu0 0.0
  %5103 = vmatprep.subr.mxu0 0.0
  %5104 = vmatpush2.msra.mxu0 0.0
  %5105 = vmatprep.subr.mxu0 0.0
  %5106 = vmatpush2.msra.mxu0 0.0
  %5107 = vmatprep.subr.mxu0 0.0
  %5108 = vmatpush2.msra.mxu0 0.0
  %5109 = vmatprep.subr.mxu0 0.0
  %5110 = vmatpush2.msra.mxu0 0.0
  %5111 = vmatprep.mubr.f32.mxu0 0.0
  %5112 = vmatmul.mubr.f32.gmra.mxu0 %v5041
  %v5113 = vpop.f32.mrf.mxu0
  %v5114 = vadd.f32 0.0, %v5113
  %v5115 = vpop.f32.mrf.mxu0
  %5116 = vdwg.mxu0
  %v5117 = vadd.f32 %v5038, %v5114
  %v5118 = vld [vmem:[%s10] sm:$0xff]
  %v5119 = vld [vmem:[%s10 + $0x8] sm:$0xff]
  %v5120 = vld [vmem:[%s10 + $0x10] sm:$0xff]
  %v5121 = vld [vmem:[%s10 + $0x18] sm:$0xff]
  %v5122 = vld [vmem:[%s11] sm:$0x1]
  %v5124 = vlaneseq
  %v5125 = vshrl.u32 %v5124, 7
  %v5126 = vsub.s32 0, %v5125
  %v5127 = vrot.slane %v5122, %v5126
  %v5130 = vsel %vm239, %v5117, 0
  %5132 = vmatprep.subr.mxu0 0.0
  %5133 = vmatpush1.msra.mxu0 0.0
  %5134 = vmatprep.subr.mxu0 0.0
  %5135 = vmatpush1.msra.mxu0 0.0
  %5136 = vmatprep.subr.mxu0 0.0
  %5137 = vmatpush1.msra.mxu0 0.0
  %5138 = vmatprep.subr.mxu0 0.0
  %5139 = vmatpush1.msra.mxu0 0.0
  %5140 = vmatprep.subr.mxu0 0.0
  %5141 = vmatpush1.msra.mxu0 0.0
  %5142 = vmatprep.subr.mxu0 0.0
  %5143 = vmatpush1.msra.mxu0 0.0
  %5144 = vmatprep.subr.mxu0 0.0
  %5145 = vmatpush1.msra.mxu0 0.0
  %5146 = vmatprep.subr.mxu0 0.0
  %5147 = vmatpush1.msra.mxu0 0.0
  %5148 = vmatprep.subr.mxu0 0.0
  %5149 = vmatpush1.msra.mxu0 0.0
  %5150 = vmatprep.subr.mxu0 0.0
  %5151 = vmatpush1.msra.mxu0 0.0
  %5152 = vmatprep.subr.mxu0 0.0
  %5153 = vmatpush1.msra.mxu0 0.0
  %5154 = vmatprep.subr.mxu0 0.0
  %5155 = vmatpush1.msra.mxu0 0.0
  %5156 = vmatprep.subr.mxu0 0.0
  %5157 = vmatpush1.msra.mxu0 %v5121
  %5158 = vmatprep.subr.mxu0 0.0
  %5159 = vmatpush1.msra.mxu0 %v5120
  %5160 = vmatprep.subr.mxu0 0.0
  %5161 = vmatpush1.msra.mxu0 %v5119
  %5162 = vmatprep.subr.mxu0 0.0
  %5163 = vmatpush1.msra.mxu0 %v5118
  %5164 = vmatprep.subr.mxu0 0.0
  %5165 = vmatpush2.msra.mxu0 0.0
  %5166 = vmatprep.subr.mxu0 0.0
  %5167 = vmatpush2.msra.mxu0 0.0
  %5168 = vmatprep.subr.mxu0 0.0
  %5169 = vmatpush2.msra.mxu0 0.0
  %5170 = vmatprep.subr.mxu0 0.0
  %5171 = vmatpush2.msra.mxu0 0.0
  %5172 = vmatprep.subr.mxu0 0.0
  %5173 = vmatpush2.msra.mxu0 0.0
  %5174 = vmatprep.subr.mxu0 0.0
  %5175 = vmatpush2.msra.mxu0 0.0
  %5176 = vmatprep.subr.mxu0 0.0
  %5177 = vmatpush2.msra.mxu0 0.0
  %5178 = vmatprep.subr.mxu0 0.0
  %5179 = vmatpush2.msra.mxu0 0.0
  %5180 = vmatprep.subr.mxu0 0.0
  %5181 = vmatpush2.msra.mxu0 0.0
  %5182 = vmatprep.subr.mxu0 0.0
  %5183 = vmatpush2.msra.mxu0 0.0
  %5184 = vmatprep.subr.mxu0 0.0
  %5185 = vmatpush2.msra.mxu0 0.0
  %5186 = vmatprep.subr.mxu0 0.0
  %5187 = vmatpush2.msra.mxu0 0.0
  %5188 = vmatprep.subr.mxu0 0.0
  %5189 = vmatpush2.msra.mxu0 0.0
  %5190 = vmatprep.subr.mxu0 0.0
  %5191 = vmatpush2.msra.mxu0 0.0
  %5192 = vmatprep.subr.mxu0 0.0
  %5193 = vmatpush2.msra.mxu0 0.0
  %5194 = vmatprep.subr.mxu0 0.0
  %5195 = vmatpush2.msra.mxu0 0.0
  %5196 = vmatprep.mubr.f32.mxu0 0.0
  %5197 = vmatmul.mubr.f32.gmra.mxu0 %v5130
  %v5198 = vpop.f32.mrf.mxu0
  %v5199 = vadd.f32 %v5127, %v5198
  %v5200 = vpop.f32.mrf.mxu0
  %5201 = vdwg.mxu0
  %v5202 = vld [vmem:[%s12] sm:$0x1]
  %v5204 = vlaneseq
  %v5205 = vshrl.u32 %v5204, 7
  %v5206 = vsub.s32 0, %v5205
  %v5207 = vrot.slane %v5202, %v5206
  %v5209 = vmul.f32 %v5199, %v5207
  %v5210 = vsel %vm239, %v5209, 0.0
  %5211 = vadd.xlane.f32.xlu0 %v5210
  %v5212 = vpop.xlane.xlu0 %5211
  %v5213 = vld [vmem:[#allocation2] sm:$0x1]
  %v5215 = vlaneseq
  %v5216 = vshrl.u32 %v5215, 7
  %v5217 = vsub.s32 0, %v5216
  %v5218 = vrot.slane %v5213, %v5217
  %v5220 = vadd.f32 %v5212, %v5218
  %vm5221 = vcmask 7168
  %5222 = vst.msk [vmem:[%s14] sm:$0xff] %vm5221, %v5220
  // Predicated region
  $region58: #{soft_q_forward.5} parent=0 // pred_check
    _
  $region59: #{soft_q_forward.5} parent=0 // pred_check_branch
    %5224 = sbr.rel (0) target = $region61
  $region60: #{soft_q_forward.5} parent=0 // pred_region
    _
  $region61: #{soft_q_forward.5} parent=0 // pred_fallthru
    _
  // Predicated region
  $region62: #{soft_q_forward.5} parent=0 // pred_check
    _
  $region63: #{soft_q_forward.5} parent=0 // pred_check_branch
    %5226 = sbr.rel (0) target = $region65
  $region64: #{soft_q_forward.5} parent=0 // pred_region
    _
  $region65: #{soft_q_forward.5} parent=0 // pred_fallthru
    _

</llo_original>
